<compile_context>
chip_gen: v7x
topology: tpu7x:2x2x1
jax: 0.10.0
libtpu: 0.0.40
codegen_flags: <defaults>
</compile_context>

<pallas_src>
import functools

import jax
import jax.numpy as jnp
from jax.experimental import pallas as pl
from jax.experimental.pallas import tpu as pltpu


# ----------------------------------------------------------------------------
# Row-tile selection: biggest tile that fits a VMEM budget (double-buffered
# x/out blocks + f32 accumulator), multiple of 8, and split into >=2 blocks
# when there is enough work so the v7x megacore gets both TensorCores.
# ----------------------------------------------------------------------------
def _pick_row_tile(M, K, N, in_bytes=2, out_bytes=2,
                   vmem_budget=8 * 1024 * 1024, min_parallel_rows=512):
    row_bytes = 2 * in_bytes * K + 2 * out_bytes * N + 4 * N
    cap = max(8, (vmem_budget // row_bytes) // 8 * 8)
    if M > cap:
        return cap                                  # VMEM-bounded tile
    if M >= min_parallel_rows:
        return ((M + 1) // 2 + 7) // 8 * 8          # 2 parallel blocks (megacore)
    return M                                        # single full-extent block


# ----------------------------------------------------------------------------
# Pallas kernel: fused (X @ W + b) with optional ReLU (conv-as-matmul path).
# bf16 operands on the MXU, f32 accumulate / bias / ReLU, cast on store.
# ----------------------------------------------------------------------------
def _matmul_bias_kernel(x_ref, w_ref, b_ref, o_ref, *, relu):
    acc = jnp.dot(x_ref[...], w_ref[...], preferred_element_type=jnp.float32)
    acc = acc + b_ref[...]                      # (tm, N) + (1, N) broadcast
    if relu:
        acc = jnp.maximum(acc, 0.0)
    o_ref[...] = acc.astype(o_ref.dtype)


def matmul_bias(x, w, b, *, relu, out_dtype):
    """y = x @ w + b (optionally ReLU).  x:(M,K) bf16, w:(K,N) bf16, b:(1,N) f32."""
    M, K = x.shape
    K2, N = w.shape
    assert K == K2 and b.shape == (1, N)
    tm = _pick_row_tile(M, K, N, in_bytes=x.dtype.itemsize,
                        out_bytes=jnp.dtype(out_dtype).itemsize)
    grid = (pl.cdiv(M, tm),)
    return pl.pallas_call(
        functools.partial(_matmul_bias_kernel, relu=relu),
        out_shape=jax.ShapeDtypeStruct((M, N), out_dtype),
        grid_spec=pltpu.PrefetchScalarGridSpec(
            num_scalar_prefetch=0,
            grid=grid,
            in_specs=[
                pl.BlockSpec((tm, K), lambda i: (i, 0)),
                pl.BlockSpec((K, N), lambda i: (0, 0)),
                pl.BlockSpec((1, N), lambda i: (0, 0)),
            ],
            out_specs=pl.BlockSpec((tm, N), lambda i: (i, 0)),
        ),
        compiler_params=pltpu.CompilerParams(
            dimension_semantics=("parallel",)),
    )(x, w, b)


# ----------------------------------------------------------------------------
# Pallas kernel: fused head  out = (x @ W0 + b0) @ W12 + b12
# (linear0 has no ReLU in the reference module; W12/b12 are lin1|lin2 concat).
# ----------------------------------------------------------------------------
def _head_kernel(x_ref, w0_ref, b0_ref, w12_ref, b12_ref, o_ref):
    h = jnp.dot(x_ref[...], w0_ref[...], preferred_element_type=jnp.float32)
    h = h + b0_ref[...]
    out = jnp.dot(h.astype(w12_ref.dtype), w12_ref[...],
                  preferred_element_type=jnp.float32)
    o_ref[...] = out + b12_ref[...]


def fused_heads(x, w0, b0, w12, b12):
    B, K = x.shape
    K2, H = w0.shape
    H2, N = w12.shape
    assert K == K2 and H == H2
    tb = B if B <= 1024 else 1024               # 1024 is a multiple of 8
    grid = (pl.cdiv(B, tb),)
    return pl.pallas_call(
        _head_kernel,
        out_shape=jax.ShapeDtypeStruct((B, N), jnp.float32),
        grid_spec=pltpu.PrefetchScalarGridSpec(
            num_scalar_prefetch=0,
            grid=grid,
            in_specs=[
                pl.BlockSpec((tb, K), lambda i: (i, 0)),
                pl.BlockSpec((K, H), lambda i: (0, 0)),
                pl.BlockSpec((1, H), lambda i: (0, 0)),
                pl.BlockSpec((H, N), lambda i: (0, 0)),
                pl.BlockSpec((1, N), lambda i: (0, 0)),
            ],
            out_specs=pl.BlockSpec((tb, N), lambda i: (i, 0)),
        ),
        compiler_params=pltpu.CompilerParams(
            dimension_semantics=("parallel",)),
    )(x, w0, b0, w12, b12)


# ----------------------------------------------------------------------------
# XLA glue: im2col patch extraction for conv3x3, stride 2, padding 1 (bf16).
# Column order is (kh, kw, cin) and matches the weight repack in prepare_params.
# TODO(synk): patch extraction is kept as XLA glue (one fused pad+slice+stack
#             per layer) rather than in-kernel gathering, for lowering safety.
# ----------------------------------------------------------------------------
def im2col(x_nhwc, k=3, s=2, p=1):
    B, H, W, C = x_nhwc.shape
    xp = jnp.pad(x_nhwc, ((0, 0), (p, p), (p, p), (0, 0)))
    Ho = (H + 2 * p - k) // s + 1
    Wo = (W + 2 * p - k) // s + 1
    cols = []
    for di in range(k):
        for dj in range(k):
            cols.append(xp[:, di:di + s * Ho:s, dj:dj + s * Wo:s, :])
    patches = jnp.stack(cols, axis=-2)              # (B, Ho, Wo, k*k, C)
    return patches.reshape(B * Ho * Wo, k * k * C), Ho, Wo


def conv2d_relu(x_nhwc, w_flat, b_row):
    """Conv2d(3x3, s=2, p=1) + ReLU; w_flat:(k*k*Cin,Cout) bf16, b_row:(1,Cout) f32."""
    B = x_nhwc.shape[0]
    cout = w_flat.shape[1]
    patches, Ho, Wo = im2col(x_nhwc)
    y = matmul_bias(patches, w_flat, b_row, relu=True, out_dtype=jnp.bfloat16)
    return y.reshape(B, Ho, Wo, cout)


# ----------------------------------------------------------------------------
# PPO forward pass (5 pallas_calls total: 4 convs + 1 fused head).
# ----------------------------------------------------------------------------
def ppo_forward(params, x_nchw):
    x = jnp.transpose(x_nchw, (0, 2, 3, 1)).astype(jnp.bfloat16)   # NCHW->NHWC bf16
    for i in range(4):
        x = conv2d_relu(x, params[f"conv{i}_w"], params[f"conv{i}_b"])
    B = x.shape[0]
    # (B, 6, 6, 32) -> (B, 1152) in (h, w, c) order; linear0's columns were
    # permuted once in prepare_params() so this matches PyTorch's NCHW flatten.
    feat = x.reshape(B, -1)
    out = fused_heads(feat, params["lin0_w"], params["lin0_b"],
                      params["lin12_w"], params["lin12_b"])
    num_actions = params["lin12_b"].shape[1] - 1
    return out[:, :num_actions], out[:, num_actions:]


# ----------------------------------------------------------------------------
# Deterministic parameter init (PyTorch layout) + one-time weight repack.
# TODO(synk): orthogonal_/xavier_uniform_ init sequence not reproduced
#             bit-for-bit; deterministic scaled-normal weights, zero biases.
# ----------------------------------------------------------------------------
def init_params(key, num_inputs, num_actions, channels=32, k=3, fc=32 * 6 * 6):
    keys = jax.random.split(key, 7)
    p = {}
    c_in = num_inputs
    for i in range(4):
        fan_in = c_in * k * k
        p[f"conv{i}_w"] = (jax.random.normal(keys[i], (channels, c_in, k, k),
                                             jnp.float32) / jnp.sqrt(fan_in))
        p[f"conv{i}_b"] = jnp.zeros((channels,), jnp.float32)
        c_in = channels
    p["lin0_w"] = jax.random.normal(keys[4], (512, fc), jnp.float32) / jnp.sqrt(fc)
    p["lin0_b"] = jnp.zeros((512,), jnp.float32)
    p["lin1_w"] = jax.random.normal(keys[5], (num_actions, 512),
                                    jnp.float32) / jnp.sqrt(512.0)
    p["lin1_b"] = jnp.zeros((num_actions,), jnp.float32)
    p["lin2_w"] = jax.random.normal(keys[6], (1, 512), jnp.float32) / jnp.sqrt(512.0)
    p["lin2_b"] = jnp.zeros((1,), jnp.float32)
    return p


def prepare_params(p, channels=32, k=3, hw=6):
    """Fold every runtime transpose / flatten permutation / head concat into
    the weights once; cast matmul operands to bf16, keep biases in f32."""
    fp = {}
    for i in range(4):
        w = p[f"conv{i}_w"]                                   # (Cout, Cin, k, k)
        cout, cin = w.shape[0], w.shape[1]
        fp[f"conv{i}_w"] = (jnp.transpose(w, (2, 3, 1, 0))    # (kh, kw, Cin, Cout)
                            .reshape(k * k * cin, cout).astype(jnp.bfloat16))
        fp[f"conv{i}_b"] = p[f"conv{i}_b"].reshape(1, cout).astype(jnp.float32)
    # linear0 consumes PyTorch's NCHW flatten (c,h,w); our activations flatten
    # as (h,w,c) -> permute linear0's input columns to match.
    w0 = p["lin0_w"].reshape(-1, channels, hw, hw)            # (512, C, H, W)
    fp["lin0_w"] = (jnp.transpose(w0, (2, 3, 1, 0))           # (H, W, C, 512)
                    .reshape(hw * hw * channels, -1).astype(jnp.bfloat16))
    fp["lin0_b"] = p["lin0_b"].reshape(1, -1).astype(jnp.float32)
    # heads: concat so one kernel / one store covers logits and value.
    w12 = jnp.concatenate([p["lin1_w"], p["lin2_w"]], axis=0)  # (A+1, 512)
    b12 = jnp.concatenate([p["lin1_b"], p["lin2_b"]], axis=0)  # (A+1,)
    fp["lin12_w"] = jnp.transpose(w12, (1, 0)).astype(jnp.bfloat16)   # (512, A+1)
    fp["lin12_b"] = b12.reshape(1, -1).astype(jnp.float32)
    return fp


if __name__ == "__main__":
    # Spatial size must be 96x96 so four stride-2 convs yield 6x6, matching
    # self.fc = 32 * 6 * 6 in the module.
    B, NUM_INPUTS, H, W = 2, 4, 96, 96
    NUM_ACTIONS = 6

    key = jax.random.PRNGKey(0)
    k_x, k_p = jax.random.split(key)
    x = jax.random.normal(k_x, (B, NUM_INPUTS, H, W), jnp.float32)  # NCHW
    params = prepare_params(init_params(k_p, NUM_INPUTS, NUM_ACTIONS))

    logits, value = jax.jit(ppo_forward)(params, x)
    jax.block_until_ready((logits, value))

    assert logits.shape == (B, NUM_ACTIONS), logits.shape
    assert value.shape == (B, 1), value.shape
    assert bool(jnp.all(jnp.isfinite(logits))) and bool(jnp.all(jnp.isfinite(value)))
    print("KERNEL_OK")
</pallas_src>

<mosaic_0001>
module attributes {stable_mosaic.version = 11 : i64} {
  func.func @_matmul_bias_kernel(%arg0: i32, %arg1: memref<2304x36xbf16, #tpu.memory_space<vmem>>, %arg2: memref<36x32xbf16, #tpu.memory_space<vmem>>, %arg3: memref<1x32xf32, #tpu.memory_space<vmem>>, %arg4: memref<2304x32xbf16, #tpu.memory_space<vmem>>) attributes {dimension_semantics = [#tpu.dimension_semantics<parallel>], iteration_bounds = array<i64: 2>, scalar_prefetch = 0 : i64, scratch_operands = 0 : i64, tpu.core_type = #tpu.core_type<tc>, window_params = [{transform_indices = @transform_0, window_bounds = array<i64: 2304, 36>}, {pipeline_mode = #tpu.pipeline_mode<synchronous>, transform_indices = @transform_1, window_bounds = array<i64: 36, 32>}, {pipeline_mode = #tpu.pipeline_mode<synchronous>, transform_indices = @transform_2, window_bounds = array<i64: 1, 32>}, {transform_indices = @transform_3, window_bounds = array<i64: 2304, 32>}]} {
    %c0 = arith.constant 0 : index
    %c0_0 = arith.constant 0 : index
    %0 = vector.load %arg1[%c0, %c0_0] : memref<2304x36xbf16, #tpu.memory_space<vmem>>, vector<2304x36xbf16>
    %c0_1 = arith.constant 0 : index
    %c0_2 = arith.constant 0 : index
    %1 = vector.load %arg2[%c0_1, %c0_2] : memref<36x32xbf16, #tpu.memory_space<vmem>>, vector<36x32xbf16>
    %cst = arith.constant dense<0.000000e+00> : vector<2304x32xf32>
    %2 = tpu.matmul %0, %1, %cst {dimension_numbers = #tpu.dot_dimension_numbers<[1], [0], [0], [1], [0, 0, 1, 1], [], []>} : vector<2304x36xbf16>, vector<36x32xbf16>, vector<2304x32xf32> -> vector<2304x32xf32>
    %c0_3 = arith.constant 0 : index
    %c0_4 = arith.constant 0 : index
    %3 = vector.load %arg3[%c0_3, %c0_4] : memref<1x32xf32, #tpu.memory_space<vmem>>, vector<1x32xf32>
    %4 = vector.broadcast %3 : vector<1x32xf32> to vector<2304x32xf32>
    %5 = arith.addf %2, %4 : vector<2304x32xf32>
    %cst_5 = arith.constant 0.000000e+00 : f32
    %6 = vector.broadcast %cst_5 : f32 to vector<2304x32xf32>
    %7 = arith.maximumf %5, %6 : vector<2304x32xf32>
    %8 = arith.truncf %7 : vector<2304x32xf32> to vector<2304x32xbf16>
    %c0_6 = arith.constant 0 : index
    %c0_7 = arith.constant 0 : index
    %9 = vector.load %arg4[%c0_6, %c0_7] : memref<2304x32xbf16, #tpu.memory_space<vmem>>, vector<2304x32xbf16>
    tpu.vector_store %arg4[%c0_6, %c0_7], %8 {strides = array<i32>} : memref<2304x32xbf16, #tpu.memory_space<vmem>>, vector<2304x32xbf16>,
    return
  }
  func.func @transform_0(%arg0: i32) -> (i32, i32) {
    %c0_i32 = arith.constant 0 : i32
    %c0_i32_0 = arith.constant 0 : i32
    return %arg0, %c0_i32 : i32, i32
  }
  func.func @transform_1(%arg0: i32) -> (i32, i32) {
    %c0_i32 = arith.constant 0 : i32
    %c0_i32_0 = arith.constant 0 : i32
    %c0_i32_1 = arith.constant 0 : i32
    return %c0_i32, %c0_i32_0 : i32, i32
  }
  func.func @transform_2(%arg0: i32) -> (i32, i32) {
    %c0_i32 = arith.constant 0 : i32
    %c0_i32_0 = arith.constant 0 : i32
    %c0_i32_1 = arith.constant 0 : i32
    return %c0_i32, %c0_i32_0 : i32, i32
  }
  func.func @transform_3(%arg0: i32) -> (i32, i32) {
    %c0_i32 = arith.constant 0 : i32
    %c0_i32_0 = arith.constant 0 : i32
    return %arg0, %c0_i32 : i32, i32
  }
}

module attributes {stable_mosaic.version = 11 : i64} {
  func.func @_matmul_bias_kernel(%arg0: i32, %arg1: memref<576x288xbf16, #tpu.memory_space<vmem>>, %arg2: memref<288x32xbf16, #tpu.memory_space<vmem>>, %arg3: memref<1x32xf32, #tpu.memory_space<vmem>>, %arg4: memref<576x32xbf16, #tpu.memory_space<vmem>>) attributes {dimension_semantics = [#tpu.dimension_semantics<parallel>], iteration_bounds = array<i64: 2>, scalar_prefetch = 0 : i64, scratch_operands = 0 : i64, tpu.core_type = #tpu.core_type<tc>, window_params = [{transform_indices = @transform_0, window_bounds = array<i64: 576, 288>}, {pipeline_mode = #tpu.pipeline_mode<synchronous>, transform_indices = @transform_1, window_bounds = array<i64: 288, 32>}, {pipeline_mode = #tpu.pipeline_mode<synchronous>, transform_indices = @transform_2, window_bounds = array<i64: 1, 32>}, {transform_indices = @transform_3, window_bounds = array<i64: 576, 32>}]} {
    %c0 = arith.constant 0 : index
    %c0_0 = arith.constant 0 : index
    %0 = vector.load %arg1[%c0, %c0_0] : memref<576x288xbf16, #tpu.memory_space<vmem>>, vector<576x288xbf16>
    %c0_1 = arith.constant 0 : index
    %c0_2 = arith.constant 0 : index
    %1 = vector.load %arg2[%c0_1, %c0_2] : memref<288x32xbf16, #tpu.memory_space<vmem>>, vector<288x32xbf16>
    %cst = arith.constant dense<0.000000e+00> : vector<576x32xf32>
    %2 = tpu.matmul %0, %1, %cst {dimension_numbers = #tpu.dot_dimension_numbers<[1], [0], [0], [1], [0, 0, 1, 1], [], []>} : vector<576x288xbf16>, vector<288x32xbf16>, vector<576x32xf32> -> vector<576x32xf32>
    %c0_3 = arith.constant 0 : index
    %c0_4 = arith.constant 0 : index
    %3 = vector.load %arg3[%c0_3, %c0_4] : memref<1x32xf32, #tpu.memory_space<vmem>>, vector<1x32xf32>
    %4 = vector.broadcast %3 : vector<1x32xf32> to vector<576x32xf32>
    %5 = arith.addf %2, %4 : vector<576x32xf32>
    %cst_5 = arith.constant 0.000000e+00 : f32
    %6 = vector.broadcast %cst_5 : f32 to vector<576x32xf32>
    %7 = arith.maximumf %5, %6 : vector<576x32xf32>
    %8 = arith.truncf %7 : vector<576x32xf32> to vector<576x32xbf16>
    %c0_6 = arith.constant 0 : index
    %c0_7 = arith.constant 0 : index
    %9 = vector.load %arg4[%c0_6, %c0_7] : memref<576x32xbf16, #tpu.memory_space<vmem>>, vector<576x32xbf16>
    tpu.vector_store %arg4[%c0_6, %c0_7], %8 {strides = array<i32>} : memref<576x32xbf16, #tpu.memory_space<vmem>>, vector<576x32xbf16>,
    return
  }
  func.func @transform_0(%arg0: i32) -> (i32, i32) {
    %c0_i32 = arith.constant 0 : i32
    %c0_i32_0 = arith.constant 0 : i32
    return %arg0, %c0_i32 : i32, i32
  }
  func.func @transform_1(%arg0: i32) -> (i32, i32) {
    %c0_i32 = arith.constant 0 : i32
    %c0_i32_0 = arith.constant 0 : i32
    %c0_i32_1 = arith.constant 0 : i32
    return %c0_i32, %c0_i32_0 : i32, i32
  }
  func.func @transform_2(%arg0: i32) -> (i32, i32) {
    %c0_i32 = arith.constant 0 : i32
    %c0_i32_0 = arith.constant 0 : i32
    %c0_i32_1 = arith.constant 0 : i32
    return %c0_i32, %c0_i32_0 : i32, i32
  }
  func.func @transform_3(%arg0: i32) -> (i32, i32) {
    %c0_i32 = arith.constant 0 : i32
    %c0_i32_0 = arith.constant 0 : i32
    return %arg0, %c0_i32 : i32, i32
  }
}

module attributes {stable_mosaic.version = 11 : i64} {
  func.func @_matmul_bias_kernel(%arg0: i32, %arg1: memref<288x288xbf16, #tpu.memory_space<vmem>>, %arg2: memref<288x32xbf16, #tpu.memory_space<vmem>>, %arg3: memref<1x32xf32, #tpu.memory_space<vmem>>, %arg4: memref<288x32xbf16, #tpu.memory_space<vmem>>) attributes {dimension_semantics = [#tpu.dimension_semantics<parallel>], iteration_bounds = array<i64: 1>, scalar_prefetch = 0 : i64, scratch_operands = 0 : i64, tpu.core_type = #tpu.core_type<tc>, window_params = [{transform_indices = @transform_0, window_bounds = array<i64: 288, 288>}, {pipeline_mode = #tpu.pipeline_mode<synchronous>, transform_indices = @transform_1, window_bounds = array<i64: 288, 32>}, {pipeline_mode = #tpu.pipeline_mode<synchronous>, transform_indices = @transform_2, window_bounds = array<i64: 1, 32>}, {transform_indices = @transform_3, window_bounds = array<i64: 288, 32>}]} {
    %c0 = arith.constant 0 : index
    %c0_0 = arith.constant 0 : index
    %0 = vector.load %arg1[%c0, %c0_0] : memref<288x288xbf16, #tpu.memory_space<vmem>>, vector<288x288xbf16>
    %c0_1 = arith.constant 0 : index
    %c0_2 = arith.constant 0 : index
    %1 = vector.load %arg2[%c0_1, %c0_2] : memref<288x32xbf16, #tpu.memory_space<vmem>>, vector<288x32xbf16>
    %cst = arith.constant dense<0.000000e+00> : vector<288x32xf32>
    %2 = tpu.matmul %0, %1, %cst {dimension_numbers = #tpu.dot_dimension_numbers<[1], [0], [0], [1], [0, 0, 1, 1], [], []>} : vector<288x288xbf16>, vector<288x32xbf16>, vector<288x32xf32> -> vector<288x32xf32>
    %c0_3 = arith.constant 0 : index
    %c0_4 = arith.constant 0 : index
    %3 = vector.load %arg3[%c0_3, %c0_4] : memref<1x32xf32, #tpu.memory_space<vmem>>, vector<1x32xf32>
    %4 = vector.broadcast %3 : vector<1x32xf32> to vector<288x32xf32>
    %5 = arith.addf %2, %4 : vector<288x32xf32>
    %cst_5 = arith.constant 0.000000e+00 : f32
    %6 = vector.broadcast %cst_5 : f32 to vector<288x32xf32>
    %7 = arith.maximumf %5, %6 : vector<288x32xf32>
    %8 = arith.truncf %7 : vector<288x32xf32> to vector<288x32xbf16>
    %c0_6 = arith.constant 0 : index
    %c0_7 = arith.constant 0 : index
    %9 = vector.load %arg4[%c0_6, %c0_7] : memref<288x32xbf16, #tpu.memory_space<vmem>>, vector<288x32xbf16>
    tpu.vector_store %arg4[%c0_6, %c0_7], %8 {strides = array<i32>} : memref<288x32xbf16, #tpu.memory_space<vmem>>, vector<288x32xbf16>,
    return
  }
  func.func @transform_0(%arg0: i32) -> (i32, i32) {
    %c0_i32 = arith.constant 0 : i32
    %c0_i32_0 = arith.constant 0 : i32
    return %arg0, %c0_i32 : i32, i32
  }
  func.func @transform_1(%arg0: i32) -> (i32, i32) {
    %c0_i32 = arith.constant 0 : i32
    %c0_i32_0 = arith.constant 0 : i32
    %c0_i32_1 = arith.constant 0 : i32
    return %c0_i32, %c0_i32_0 : i32, i32
  }
  func.func @transform_2(%arg0: i32) -> (i32, i32) {
    %c0_i32 = arith.constant 0 : i32
    %c0_i32_0 = arith.constant 0 : i32
    %c0_i32_1 = arith.constant 0 : i32
    return %c0_i32, %c0_i32_0 : i32, i32
  }
  func.func @transform_3(%arg0: i32) -> (i32, i32) {
    %c0_i32 = arith.constant 0 : i32
    %c0_i32_0 = arith.constant 0 : i32
    return %arg0, %c0_i32 : i32, i32
  }
}

module attributes {stable_mosaic.version = 11 : i64} {
  func.func @_matmul_bias_kernel(%arg0: i32, %arg1: memref<72x288xbf16, #tpu.memory_space<vmem>>, %arg2: memref<288x32xbf16, #tpu.memory_space<vmem>>, %arg3: memref<1x32xf32, #tpu.memory_space<vmem>>, %arg4: memref<72x32xbf16, #tpu.memory_space<vmem>>) attributes {dimension_semantics = [#tpu.dimension_semantics<parallel>], iteration_bounds = array<i64: 1>, scalar_prefetch = 0 : i64, scratch_operands = 0 : i64, tpu.core_type = #tpu.core_type<tc>, window_params = [{transform_indices = @transform_0, window_bounds = array<i64: 72, 288>}, {pipeline_mode = #tpu.pipeline_mode<synchronous>, transform_indices = @transform_1, window_bounds = array<i64: 288, 32>}, {pipeline_mode = #tpu.pipeline_mode<synchronous>, transform_indices = @transform_2, window_bounds = array<i64: 1, 32>}, {transform_indices = @transform_3, window_bounds = array<i64: 72, 32>}]} {
    %c0 = arith.constant 0 : index
    %c0_0 = arith.constant 0 : index
    %0 = vector.load %arg1[%c0, %c0_0] : memref<72x288xbf16, #tpu.memory_space<vmem>>, vector<72x288xbf16>
    %c0_1 = arith.constant 0 : index
    %c0_2 = arith.constant 0 : index
    %1 = vector.load %arg2[%c0_1, %c0_2] : memref<288x32xbf16, #tpu.memory_space<vmem>>, vector<288x32xbf16>
    %cst = arith.constant dense<0.000000e+00> : vector<72x32xf32>
    %2 = tpu.matmul %0, %1, %cst {dimension_numbers = #tpu.dot_dimension_numbers<[1], [0], [0], [1], [0, 0, 1, 1], [], []>} : vector<72x288xbf16>, vector<288x32xbf16>, vector<72x32xf32> -> vector<72x32xf32>
    %c0_3 = arith.constant 0 : index
    %c0_4 = arith.constant 0 : index
    %3 = vector.load %arg3[%c0_3, %c0_4] : memref<1x32xf32, #tpu.memory_space<vmem>>, vector<1x32xf32>
    %4 = vector.broadcast %3 : vector<1x32xf32> to vector<72x32xf32>
    %5 = arith.addf %2, %4 : vector<72x32xf32>
    %cst_5 = arith.constant 0.000000e+00 : f32
    %6 = vector.broadcast %cst_5 : f32 to vector<72x32xf32>
    %7 = arith.maximumf %5, %6 : vector<72x32xf32>
    %8 = arith.truncf %7 : vector<72x32xf32> to vector<72x32xbf16>
    %c0_6 = arith.constant 0 : index
    %c0_7 = arith.constant 0 : index
    %9 = vector.load %arg4[%c0_6, %c0_7] : memref<72x32xbf16, #tpu.memory_space<vmem>>, vector<72x32xbf16>
    tpu.vector_store %arg4[%c0_6, %c0_7], %8 {strides = array<i32>} : memref<72x32xbf16, #tpu.memory_space<vmem>>, vector<72x32xbf16>,
    return
  }
  func.func @transform_0(%arg0: i32) -> (i32, i32) {
    %c0_i32 = arith.constant 0 : i32
    %c0_i32_0 = arith.constant 0 : i32
    return %arg0, %c0_i32 : i32, i32
  }
  func.func @transform_1(%arg0: i32) -> (i32, i32) {
    %c0_i32 = arith.constant 0 : i32
    %c0_i32_0 = arith.constant 0 : i32
    %c0_i32_1 = arith.constant 0 : i32
    return %c0_i32, %c0_i32_0 : i32, i32
  }
  func.func @transform_2(%arg0: i32) -> (i32, i32) {
    %c0_i32 = arith.constant 0 : i32
    %c0_i32_0 = arith.constant 0 : i32
    %c0_i32_1 = arith.constant 0 : i32
    return %c0_i32, %c0_i32_0 : i32, i32
  }
  func.func @transform_3(%arg0: i32) -> (i32, i32) {
    %c0_i32 = arith.constant 0 : i32
    %c0_i32_0 = arith.constant 0 : i32
    return %arg0, %c0_i32 : i32, i32
  }
}

module attributes {stable_mosaic.version = 11 : i64} {
  func.func @_head_kernel(%arg0: i32, %arg1: memref<2x1152xbf16, #tpu.memory_space<vmem>>, %arg2: memref<1152x512xbf16, #tpu.memory_space<vmem>>, %arg3: memref<1x512xf32, #tpu.memory_space<vmem>>, %arg4: memref<512x7xbf16, #tpu.memory_space<vmem>>, %arg5: memref<1x7xf32, #tpu.memory_space<vmem>>, %arg6: memref<2x7xf32, #tpu.memory_space<vmem>>) attributes {dimension_semantics = [#tpu.dimension_semantics<parallel>], iteration_bounds = array<i64: 1>, scalar_prefetch = 0 : i64, scratch_operands = 0 : i64, tpu.core_type = #tpu.core_type<tc>, window_params = [{transform_indices = @transform_0, window_bounds = array<i64: 2, 1152>}, {pipeline_mode = #tpu.pipeline_mode<synchronous>, transform_indices = @transform_1, window_bounds = array<i64: 1152, 512>}, {pipeline_mode = #tpu.pipeline_mode<synchronous>, transform_indices = @transform_2, window_bounds = array<i64: 1, 512>}, {pipeline_mode = #tpu.pipeline_mode<synchronous>, transform_indices = @transform_3, window_bounds = array<i64: 512, 7>}, {pipeline_mode = #tpu.pipeline_mode<synchronous>, transform_indices = @transform_4, window_bounds = array<i64: 1, 7>}, {transform_indices = @transform_5, window_bounds = array<i64: 2, 7>}]} {
    %c0 = arith.constant 0 : index
    %c0_0 = arith.constant 0 : index
    %0 = vector.load %arg1[%c0, %c0_0] : memref<2x1152xbf16, #tpu.memory_space<vmem>>, vector<2x1152xbf16>
    %c0_1 = arith.constant 0 : index
    %c0_2 = arith.constant 0 : index
    %1 = vector.load %arg2[%c0_1, %c0_2] : memref<1152x512xbf16, #tpu.memory_space<vmem>>, vector<1152x512xbf16>
    %cst = arith.constant dense<0.000000e+00> : vector<2x512xf32>
    %2 = tpu.matmul %0, %1, %cst {dimension_numbers = #tpu.dot_dimension_numbers<[1], [0], [0], [1], [0, 0, 1, 1], [], []>} : vector<2x1152xbf16>, vector<1152x512xbf16>, vector<2x512xf32> -> vector<2x512xf32>
    %c0_3 = arith.constant 0 : index
    %c0_4 = arith.constant 0 : index
    %3 = vector.load %arg3[%c0_3, %c0_4] : memref<1x512xf32, #tpu.memory_space<vmem>>, vector<1x512xf32>
    %4 = vector.broadcast %3 : vector<1x512xf32> to vector<2x512xf32>
    %5 = arith.addf %2, %4 : vector<2x512xf32>
    %6 = arith.truncf %5 : vector<2x512xf32> to vector<2x512xbf16>
    %c0_5 = arith.constant 0 : index
    %c0_6 = arith.constant 0 : index
    %7 = vector.load %arg4[%c0_5, %c0_6] : memref<512x7xbf16, #tpu.memory_space<vmem>>, vector<512x7xbf16>
    %cst_7 = arith.constant dense<0.000000e+00> : vector<2x7xf32>
    %8 = tpu.matmul %6, %7, %cst_7 {dimension_numbers = #tpu.dot_dimension_numbers<[1], [0], [0], [1], [0, 0, 1, 1], [], []>} : vector<2x512xbf16>, vector<512x7xbf16>, vector<2x7xf32> -> vector<2x7xf32>
    %c0_8 = arith.constant 0 : index
    %c0_9 = arith.constant 0 : index
    %9 = vector.load %arg5[%c0_8, %c0_9] : memref<1x7xf32, #tpu.memory_space<vmem>>, vector<1x7xf32>
    %10 = vector.broadcast %9 : vector<1x7xf32> to vector<2x7xf32>
    %11 = arith.addf %8, %10 : vector<2x7xf32>
    %c0_10 = arith.constant 0 : index
    %c0_11 = arith.constant 0 : index
    %12 = vector.load %arg6[%c0_10, %c0_11] : memref<2x7xf32, #tpu.memory_space<vmem>>, vector<2x7xf32>
    tpu.vector_store %arg6[%c0_10, %c0_11], %11 {strides = array<i32>} : memref<2x7xf32, #tpu.memory_space<vmem>>, vector<2x7xf32>,
    return
  }
  func.func @transform_0(%arg0: i32) -> (i32, i32) {
    %c0_i32 = arith.constant 0 : i32
    %c0_i32_0 = arith.constant 0 : i32
    return %arg0, %c0_i32 : i32, i32
  }
  func.func @transform_1(%arg0: i32) -> (i32, i32) {
    %c0_i32 = arith.constant 0 : i32
    %c0_i32_0 = arith.constant 0 : i32
    %c0_i32_1 = arith.constant 0 : i32
    return %c0_i32, %c0_i32_0 : i32, i32
  }
  func.func @transform_2(%arg0: i32) -> (i32, i32) {
    %c0_i32 = arith.constant 0 : i32
    %c0_i32_0 = arith.constant 0 : i32
    %c0_i32_1 = arith.constant 0 : i32
    return %c0_i32, %c0_i32_0 : i32, i32
  }
  func.func @transform_3(%arg0: i32) -> (i32, i32) {
    %c0_i32 = arith.constant 0 : i32
    %c0_i32_0 = arith.constant 0 : i32
    %c0_i32_1 = arith.constant 0 : i32
    return %c0_i32, %c0_i32_0 : i32, i32
  }
  func.func @transform_4(%arg0: i32) -> (i32, i32) {
    %c0_i32 = arith.constant 0 : i32
    %c0_i32_0 = arith.constant 0 : i32
    %c0_i32_1 = arith.constant 0 : i32
    return %c0_i32, %c0_i32_0 : i32, i32
  }
  func.func @transform_5(%arg0: i32) -> (i32, i32) {
    %c0_i32 = arith.constant 0 : i32
    %c0_i32_0 = arith.constant 0 : i32
    return %arg0, %c0_i32 : i32, i32
  }
}

</mosaic_0001>

<llo_original>
// kernel: ppo_forward.5
$region0: #{ppo_forward.5}
  #allocation0 [shape = 'u32[]', space=smem, size = 0x4, offset = 0x4, fixed_abs, tag = 'smem constant byte address 0x4 - core index']
  #allocation1 [shape = 'u32[144,128]{1,0:T(1,128)}', space=vmem, size = 0x12000, scoped, tag = 'internal scratch']
  %s0 = inlined_call_operand.vmem [shape: bf16[4608,36], index: 0, kind: input, shape index: {}]
  %s1 = inlined_call_operand.vmem [shape: bf16[36,32], index: 1, kind: input, shape index: {}]
  %s2 = inlined_call_operand.vmem [shape: f32[1,32], index: 2, kind: input, shape index: {}]
  %s3 = inlined_call_operand.vmem [shape: bf16[4608,32], index: 3, kind: output, shape index: {}]
  %s4 = sld [smem:[#allocation0]]
  $region45: #{ppo_forward.5} parent=0
    _
  %s6 = ssub.s32 1, %s4
  %s7 = scalar_select 0, %s6, %s4
  loop: start=0, step=1, limit=4
  $region2: #{ppo_forward.5} parent=0 // loop_pre_header
    _
  $region3: #{ppo_forward.5} parent=0 // loop_header
    %s9 = sphi 0, %s13
    %p10 = scmp.ge.s32.totalorder %s9, 4
    %s19 = sphi 0, %s21
    %s22 = sphi 0, %s19
    %s23 = sphi 0, %s22
    %s39 = sphi 0, %s23
    %s43 = sphi 0, %s43
    %s45 = sphi 0, %s43
    %s46 = sphi 0, %s45
    %s60 = sphi 0, %s46
    %s64 = sphi 0, %s64
    %s66 = sphi 0, %s64
    %s67 = sphi 0, %s66
    %s81 = sphi 0, %s67
    %s87 = sphi 0, %s89
    %s90 = sphi 0, %s87
    %s91 = sphi 0, %s90
    %s107 = sphi 0, %s91
  $region4: #{ppo_forward.5} parent=0 // loop_header_branch
    %12 = sbr.rel (%p10) target = $region8
  $region5: #{ppo_forward.5} parent=0 // loop_body
    %s14 = ssub.s32 %s9, 1
    %s15 = ssub.s32 %s9, 2
    %s16 = sadd.s32 %s9, 1
    %s17 = ssub.s32 %s9, %s16
    %p18 = scmp.eq.s32.totalorder %s17, 0
    %s20 = sadd.s32 %s19, 1
    %s21 = scalar_select %p18, %s19, %s20
    %p24 = pneg %p18
    %p25 = scmp.eq.s32.totalorder %s9, 1
    %p26 = por %p24, %p25
    %p27 = scmp.ne.s32.totalorder %s19, %s22
    %p28 = scmp.eq.s32.totalorder %s9, 0
    %p29 = por %p27, %p28
    %p30 = scmp.ne.s32.totalorder %s19, %s22
    %p31 = scmp.eq.s32.totalorder %s14, 1
    %p32 = por %p30, %p31
    %p33 = scmp.ne.s32.totalorder %s22, %s23
    %p34 = scmp.eq.s32.totalorder %s14, 0
    %p35 = por %p33, %p34
    %p36 = scmp.ne.s32.totalorder %s22, %s23
    %p37 = scmp.eq.s32.totalorder %s15, 1
    %p38 = por %p36, %p37
    %p40 = scmp.ne.s32.totalorder %s23, %s39
    %p41 = scmp.eq.s32.totalorder %s15, 0
    %p42 = por %p40, %p41
    %s44 = sadd.s32 %s43, 1
    %p47 = scmp.eq.s32.totalorder %s9, 1
    %p48 = scmp.ne.s32.totalorder %s43, %s45
    %p49 = scmp.eq.s32.totalorder %s9, 0
    %p50 = por %p48, %p49
    %p51 = scmp.ne.s32.totalorder %s43, %s45
    %p52 = scmp.eq.s32.totalorder %s14, 1
    %p53 = por %p51, %p52
    %p54 = scmp.ne.s32.totalorder %s45, %s46
    %p55 = scmp.eq.s32.totalorder %s14, 0
    %p56 = por %p54, %p55
    %p57 = scmp.ne.s32.totalorder %s45, %s46
    %p58 = scmp.eq.s32.totalorder %s15, 1
    %p59 = por %p57, %p58
    %p61 = scmp.ne.s32.totalorder %s46, %s60
    %p62 = scmp.eq.s32.totalorder %s15, 0
    %p63 = por %p61, %p62
    %s65 = sadd.s32 %s64, 1
    %p68 = scmp.eq.s32.totalorder %s9, 1
    %p69 = scmp.ne.s32.totalorder %s64, %s66
    %p70 = scmp.eq.s32.totalorder %s9, 0
    %p71 = por %p69, %p70
    %p72 = scmp.ne.s32.totalorder %s64, %s66
    %p73 = scmp.eq.s32.totalorder %s14, 1
    %p74 = por %p72, %p73
    %p75 = scmp.ne.s32.totalorder %s66, %s67
    %p76 = scmp.eq.s32.totalorder %s14, 0
    %p77 = por %p75, %p76
    %p78 = scmp.ne.s32.totalorder %s66, %s67
    %p79 = scmp.eq.s32.totalorder %s15, 1
    %p80 = por %p78, %p79
    %p82 = scmp.ne.s32.totalorder %s67, %s81
    %p83 = scmp.eq.s32.totalorder %s15, 0
    %p84 = por %p82, %p83
    %s85 = ssub.s32 %s9, %s16
    %p86 = scmp.eq.s32.totalorder %s85, 0
    %s88 = sadd.s32 %s87, 1
    %s89 = scalar_select %p86, %s87, %s88
    %p92 = pneg %p86
    %p93 = scmp.eq.s32.totalorder %s9, 1
    %p94 = por %p92, %p93
    %p95 = scmp.ne.s32.totalorder %s87, %s90
    %p96 = scmp.eq.s32.totalorder %s9, 0
    %p97 = por %p95, %p96
    %p98 = scmp.ne.s32.totalorder %s87, %s90
    %p99 = scmp.eq.s32.totalorder %s14, 1
    %p100 = por %p98, %p99
    %p101 = scmp.ne.s32.totalorder %s90, %s91
    %p102 = scmp.eq.s32.totalorder %s14, 0
    %p103 = por %p101, %p102
    %p104 = scmp.ne.s32.totalorder %s90, %s91
    %p105 = scmp.eq.s32.totalorder %s15, 1
    %p106 = por %p104, %p105
    %p108 = scmp.ne.s32.totalorder %s91, %s107
    %p109 = scmp.eq.s32.totalorder %s15, 0
    %p110 = por %p108, %p109
    %p111 = scmp.le.s32.totalorder 1, %s9
    %p112 = scmp.lt.s32.totalorder %s9, 3
    %p113 = pnand %p111, %p112
    %p114 = pneg %p113
    // Predicated region
    $region9: #{ppo_forward.5} parent=5 // pred_check
      _
    $region10: #{ppo_forward.5} parent=5 // pred_check_branch
      %116 = sbr.rel (%p113) target = $region12
    $region11: #{ppo_forward.5} parent=5 // pred_region
      %s117 = ssub.s32 %s9, 1
      // Predicated region
      $region13: #{ppo_forward.5} parent=11 // pred_check
        %p118 = pneg %p56
      $region14: #{ppo_forward.5} parent=11 // pred_check_branch
        %120 = sbr.rel (%p118) target = $region16
      $region15: #{ppo_forward.5} parent=11 // pred_region
        _
      $region16: #{ppo_forward.5} parent=11 // pred_fallthru
        _
      // Predicated region
      $region17: #{ppo_forward.5} parent=11 // pred_check
        %p121 = pneg %p77
      $region18: #{ppo_forward.5} parent=11 // pred_check_branch
        %123 = sbr.rel (%p121) target = $region20
      $region19: #{ppo_forward.5} parent=11 // pred_region
        _
      $region20: #{ppo_forward.5} parent=11 // pred_fallthru
        _
    $region12: #{ppo_forward.5} parent=5 // pred_fallthru
      _
    %p124 = scmp.lt.s32.totalorder %s9, 2
    // Predicated region
    $region21: #{ppo_forward.5} parent=5 // pred_check
      %p125 = pneg %p124
    $region22: #{ppo_forward.5} parent=5 // pred_check_branch
      %127 = sbr.rel (%p125) target = $region24
    $region23: #{ppo_forward.5} parent=5 // pred_region
      // Predicated region
      $region25: #{ppo_forward.5} parent=23 // pred_check
        %p128 = pneg %p29
      $region26: #{ppo_forward.5} parent=23 // pred_check_branch
        %130 = sbr.rel (%p128) target = $region28
      $region27: #{ppo_forward.5} parent=23 // pred_region
        %s131 = smul.u32 288, %s9
        %p132 = scmp.lt.s32.totalorder %s131, 575
        %s133 = scalar_select %p132, %s131, 575
        %s134 = smul.addr %s133, 4
        %s135 = scalar_lea.vmem %s0, %s134
        %s136 = smul.u32 288, %s9
      $region28: #{ppo_forward.5} parent=23 // pred_fallthru
        _
    $region24: #{ppo_forward.5} parent=5 // pred_fallthru
      _
    %p137 = scmp.le.s32.totalorder 1, %s9
    %p138 = scmp.lt.s32.totalorder %s9, 3
    %p139 = pnand %p137, %p138
    %p140 = pneg %p139
    // Predicated region
    $region29: #{ppo_forward.5} parent=5 // pred_check
      _
    $region30: #{ppo_forward.5} parent=5 // pred_check_branch
      %142 = sbr.rel (%p139) target = $region32
    $region31: #{ppo_forward.5} parent=5 // pred_region
      %s143 = ssub.s32 %s9, 1
      %s144 = smul.u32 288, %s14
      %p145 = scmp.lt.s32.totalorder %s144, 575
      %s146 = scalar_select %p145, %s144, 575
      %s147 = smul.addr %s146, 4
      %s148 = scalar_lea.vmem %s0, %s147
      %p149 = pneg %p35
      %p150 = pneg %p32
      %p151 = pneg %p56
      %p152 = pneg %p53
      %p153 = pneg %p77
      %p154 = pneg %p74
      %p155 = pneg %p103
      %p156 = pneg %p100
      %s157 = smul.u32 288, %s14
      %p158 = scmp.lt.s32.totalorder %s157, 575
      %s159 = scalar_select %p158, %s157, 575
      %s160 = smul.addr %s159, 4
      %s161 = scalar_lea.vmem %s3, %s160
      %s162 = smul.u32 288, %s14
      %p163 = scmp.lt.s32.totalorder %s162, 575
      %s164 = scalar_select %p163, %s162, 575
      %s165 = smul.addr %s164, 4
      %s166 = scalar_lea.vmem %s0, %s165
      %s167 = smul.u32 288, %s14
      %s168 = smul.u32 288, %s14
      %p169 = scmp.lt.s32.totalorder %s168, 575
      %s170 = scalar_select %p169, %s168, 575
      %s171 = smul.addr %s170, 4
      %s172 = scalar_lea.vmem %s3, %s171
      %s173 = smul.u32 288, %s14
      %v175 = vld [vmem:[%s166] sm:$0xf]
      %v176 = vld [vmem:[%s166 + $0x4] sm:$0xf]
      %v177 = vld [vmem:[%s166 + $0x8] sm:$0xf]
      %v178 = vld [vmem:[%s166 + $0xc] sm:$0xf]
      %v179 = vld [vmem:[%s166 + $0x10] sm:$0xf]
      %v180 = vld [vmem:[%s166 + $0x14] sm:$0xf]
      %v181 = vld [vmem:[%s166 + $0x18] sm:$0xf]
      %v182 = vld [vmem:[%s166 + $0x1c] sm:$0xf]
      %v183 = vld [vmem:[%s166 + $0x20] sm:$0xf]
      %v184 = vld [vmem:[%s166 + $0x24] sm:$0xf]
      %v185 = vld [vmem:[%s166 + $0x28] sm:$0xf]
      %v186 = vld [vmem:[%s166 + $0x2c] sm:$0xf]
      %v187 = vld [vmem:[%s166 + $0x30] sm:$0xf]
      %v188 = vld [vmem:[%s166 + $0x34] sm:$0xf]
      %v189 = vld [vmem:[%s166 + $0x38] sm:$0xf]
      %v190 = vld [vmem:[%s166 + $0x3c] sm:$0xf]
      %v191 = vld [vmem:[%s166 + $0x40] sm:$0xf]
      %v192 = vld [vmem:[%s166 + $0x44] sm:$0xf]
      %v193 = vld [vmem:[%s166 + $0x48] sm:$0xf]
      %v194 = vld [vmem:[%s166 + $0x4c] sm:$0xf]
      %v195 = vld [vmem:[%s166 + $0x50] sm:$0xf]
      %v196 = vld [vmem:[%s166 + $0x54] sm:$0xf]
      %v197 = vld [vmem:[%s166 + $0x58] sm:$0xf]
      %v198 = vld [vmem:[%s166 + $0x5c] sm:$0xf]
      %v199 = vld [vmem:[%s166 + $0x60] sm:$0xf]
      %v200 = vld [vmem:[%s166 + $0x64] sm:$0xf]
      %v201 = vld [vmem:[%s166 + $0x68] sm:$0xf]
      %v202 = vld [vmem:[%s166 + $0x6c] sm:$0xf]
      %v203 = vld [vmem:[%s166 + $0x70] sm:$0xf]
      %v204 = vld [vmem:[%s166 + $0x74] sm:$0xf]
      %v205 = vld [vmem:[%s166 + $0x78] sm:$0xf]
      %v206 = vld [vmem:[%s166 + $0x7c] sm:$0xf]
      %v207 = vld [vmem:[%s166 + $0x80] sm:$0xf]
      %v208 = vld [vmem:[%s166 + $0x84] sm:$0xf]
      %v209 = vld [vmem:[%s166 + $0x88] sm:$0xf]
      %v210 = vld [vmem:[%s166 + $0x8c] sm:$0xf]
      %v211 = vld [vmem:[%s166 + $0x90] sm:$0xf]
      %v212 = vld [vmem:[%s166 + $0x94] sm:$0xf]
      %v213 = vld [vmem:[%s166 + $0x98] sm:$0xf]
      %v214 = vld [vmem:[%s166 + $0x9c] sm:$0xf]
      %v215 = vld [vmem:[%s166 + $0xa0] sm:$0xf]
      %v216 = vld [vmem:[%s166 + $0xa4] sm:$0xf]
      %v217 = vld [vmem:[%s166 + $0xa8] sm:$0xf]
      %v218 = vld [vmem:[%s166 + $0xac] sm:$0xf]
      %v219 = vld [vmem:[%s166 + $0xb0] sm:$0xf]
      %v220 = vld [vmem:[%s166 + $0xb4] sm:$0xf]
      %v221 = vld [vmem:[%s166 + $0xb8] sm:$0xf]
      %v222 = vld [vmem:[%s166 + $0xbc] sm:$0xf]
      %v223 = vld [vmem:[%s166 + $0xc0] sm:$0xf]
      %v224 = vld [vmem:[%s166 + $0xc4] sm:$0xf]
      %v225 = vld [vmem:[%s166 + $0xc8] sm:$0xf]
      %v226 = vld [vmem:[%s166 + $0xcc] sm:$0xf]
      %v227 = vld [vmem:[%s166 + $0xd0] sm:$0xf]
      %v228 = vld [vmem:[%s166 + $0xd4] sm:$0xf]
      %v229 = vld [vmem:[%s166 + $0xd8] sm:$0xf]
      %v230 = vld [vmem:[%s166 + $0xdc] sm:$0xf]
      %v231 = vld [vmem:[%s166 + $0xe0] sm:$0xf]
      %v232 = vld [vmem:[%s166 + $0xe4] sm:$0xf]
      %v233 = vld [vmem:[%s166 + $0xe8] sm:$0xf]
      %v234 = vld [vmem:[%s166 + $0xec] sm:$0xf]
      %v235 = vld [vmem:[%s166 + $0xf0] sm:$0xf]
      %v236 = vld [vmem:[%s166 + $0xf4] sm:$0xf]
      %v237 = vld [vmem:[%s166 + $0xf8] sm:$0xf]
      %v238 = vld [vmem:[%s166 + $0xfc] sm:$0xf]
      %v239 = vld [vmem:[%s166 + $0x100] sm:$0xf]
      %v240 = vld [vmem:[%s166 + $0x104] sm:$0xf]
      %v241 = vld [vmem:[%s166 + $0x108] sm:$0xf]
      %v242 = vld [vmem:[%s166 + $0x10c] sm:$0xf]
      %v243 = vld [vmem:[%s166 + $0x110] sm:$0xf]
      %v244 = vld [vmem:[%s166 + $0x114] sm:$0xf]
      %v245 = vld [vmem:[%s166 + $0x118] sm:$0xf]
      %v246 = vld [vmem:[%s166 + $0x11c] sm:$0xf]
      %v247 = vld [vmem:[%s166 + $0x120] sm:$0xf]
      %v248 = vld [vmem:[%s166 + $0x124] sm:$0xf]
      %v249 = vld [vmem:[%s166 + $0x128] sm:$0xf]
      %v250 = vld [vmem:[%s166 + $0x12c] sm:$0xf]
      %v251 = vld [vmem:[%s166 + $0x130] sm:$0xf]
      %v252 = vld [vmem:[%s166 + $0x134] sm:$0xf]
      %v253 = vld [vmem:[%s166 + $0x138] sm:$0xf]
      %v254 = vld [vmem:[%s166 + $0x13c] sm:$0xf]
      %v255 = vld [vmem:[%s166 + $0x140] sm:$0xf]
      %v256 = vld [vmem:[%s166 + $0x144] sm:$0xf]
      %v257 = vld [vmem:[%s166 + $0x148] sm:$0xf]
      %v258 = vld [vmem:[%s166 + $0x14c] sm:$0xf]
      %v259 = vld [vmem:[%s166 + $0x150] sm:$0xf]
      %v260 = vld [vmem:[%s166 + $0x154] sm:$0xf]
      %v261 = vld [vmem:[%s166 + $0x158] sm:$0xf]
      %v262 = vld [vmem:[%s166 + $0x15c] sm:$0xf]
      %v263 = vld [vmem:[%s166 + $0x160] sm:$0xf]
      %v264 = vld [vmem:[%s166 + $0x164] sm:$0xf]
      %v265 = vld [vmem:[%s166 + $0x168] sm:$0xf]
      %v266 = vld [vmem:[%s166 + $0x16c] sm:$0xf]
      %v267 = vld [vmem:[%s166 + $0x170] sm:$0xf]
      %v268 = vld [vmem:[%s166 + $0x174] sm:$0xf]
      %v269 = vld [vmem:[%s166 + $0x178] sm:$0xf]
      %v270 = vld [vmem:[%s166 + $0x17c] sm:$0xf]
      %v271 = vld [vmem:[%s166 + $0x180] sm:$0xf]
      %v272 = vld [vmem:[%s166 + $0x184] sm:$0xf]
      %v273 = vld [vmem:[%s166 + $0x188] sm:$0xf]
      %v274 = vld [vmem:[%s166 + $0x18c] sm:$0xf]
      %v275 = vld [vmem:[%s166 + $0x190] sm:$0xf]
      %v276 = vld [vmem:[%s166 + $0x194] sm:$0xf]
      %v277 = vld [vmem:[%s166 + $0x198] sm:$0xf]
      %v278 = vld [vmem:[%s166 + $0x19c] sm:$0xf]
      %v279 = vld [vmem:[%s166 + $0x1a0] sm:$0xf]
      %v280 = vld [vmem:[%s166 + $0x1a4] sm:$0xf]
      %v281 = vld [vmem:[%s166 + $0x1a8] sm:$0xf]
      %v282 = vld [vmem:[%s166 + $0x1ac] sm:$0xf]
      %v283 = vld [vmem:[%s166 + $0x1b0] sm:$0xf]
      %v284 = vld [vmem:[%s166 + $0x1b4] sm:$0xf]
      %v285 = vld [vmem:[%s166 + $0x1b8] sm:$0xf]
      %v286 = vld [vmem:[%s166 + $0x1bc] sm:$0xf]
      %v287 = vld [vmem:[%s166 + $0x1c0] sm:$0xf]
      %v288 = vld [vmem:[%s166 + $0x1c4] sm:$0xf]
      %v289 = vld [vmem:[%s166 + $0x1c8] sm:$0xf]
      %v290 = vld [vmem:[%s166 + $0x1cc] sm:$0xf]
      %v291 = vld [vmem:[%s166 + $0x1d0] sm:$0xf]
      %v292 = vld [vmem:[%s166 + $0x1d4] sm:$0xf]
      %v293 = vld [vmem:[%s166 + $0x1d8] sm:$0xf]
      %v294 = vld [vmem:[%s166 + $0x1dc] sm:$0xf]
      %v295 = vld [vmem:[%s166 + $0x1e0] sm:$0xf]
      %v296 = vld [vmem:[%s166 + $0x1e4] sm:$0xf]
      %v297 = vld [vmem:[%s166 + $0x1e8] sm:$0xf]
      %v298 = vld [vmem:[%s166 + $0x1ec] sm:$0xf]
      %v299 = vld [vmem:[%s166 + $0x1f0] sm:$0xf]
      %v300 = vld [vmem:[%s166 + $0x1f4] sm:$0xf]
      %v301 = vld [vmem:[%s166 + $0x1f8] sm:$0xf]
      %v302 = vld [vmem:[%s166 + $0x1fc] sm:$0xf]
      %v303 = vld [vmem:[%s166 + $0x200] sm:$0xf]
      %v304 = vld [vmem:[%s166 + $0x204] sm:$0xf]
      %v305 = vld [vmem:[%s166 + $0x208] sm:$0xf]
      %v306 = vld [vmem:[%s166 + $0x20c] sm:$0xf]
      %v307 = vld [vmem:[%s166 + $0x210] sm:$0xf]
      %v308 = vld [vmem:[%s166 + $0x214] sm:$0xf]
      %v309 = vld [vmem:[%s166 + $0x218] sm:$0xf]
      %v310 = vld [vmem:[%s166 + $0x21c] sm:$0xf]
      %v311 = vld [vmem:[%s166 + $0x220] sm:$0xf]
      %v312 = vld [vmem:[%s166 + $0x224] sm:$0xf]
      %v313 = vld [vmem:[%s166 + $0x228] sm:$0xf]
      %v314 = vld [vmem:[%s166 + $0x22c] sm:$0xf]
      %v315 = vld [vmem:[%s166 + $0x230] sm:$0xf]
      %v316 = vld [vmem:[%s166 + $0x234] sm:$0xf]
      %v317 = vld [vmem:[%s166 + $0x238] sm:$0xf]
      %v318 = vld [vmem:[%s166 + $0x23c] sm:$0xf]
      %v319 = vld [vmem:[%s166 + $0x240] sm:$0xf]
      %v320 = vld [vmem:[%s166 + $0x244] sm:$0xf]
      %v321 = vld [vmem:[%s166 + $0x248] sm:$0xf]
      %v322 = vld [vmem:[%s166 + $0x24c] sm:$0xf]
      %v323 = vld [vmem:[%s166 + $0x250] sm:$0xf]
      %v324 = vld [vmem:[%s166 + $0x254] sm:$0xf]
      %v325 = vld [vmem:[%s166 + $0x258] sm:$0xf]
      %v326 = vld [vmem:[%s166 + $0x25c] sm:$0xf]
      %v327 = vld [vmem:[%s166 + $0x260] sm:$0xf]
      %v328 = vld [vmem:[%s166 + $0x264] sm:$0xf]
      %v329 = vld [vmem:[%s166 + $0x268] sm:$0xf]
      %v330 = vld [vmem:[%s166 + $0x26c] sm:$0xf]
      %v331 = vld [vmem:[%s166 + $0x270] sm:$0xf]
      %v332 = vld [vmem:[%s166 + $0x274] sm:$0xf]
      %v333 = vld [vmem:[%s166 + $0x278] sm:$0xf]
      %v334 = vld [vmem:[%s166 + $0x27c] sm:$0xf]
      %v335 = vld [vmem:[%s166 + $0x280] sm:$0xf]
      %v336 = vld [vmem:[%s166 + $0x284] sm:$0xf]
      %v337 = vld [vmem:[%s166 + $0x288] sm:$0xf]
      %v338 = vld [vmem:[%s166 + $0x28c] sm:$0xf]
      %v339 = vld [vmem:[%s166 + $0x290] sm:$0xf]
      %v340 = vld [vmem:[%s166 + $0x294] sm:$0xf]
      %v341 = vld [vmem:[%s166 + $0x298] sm:$0xf]
      %v342 = vld [vmem:[%s166 + $0x29c] sm:$0xf]
      %v343 = vld [vmem:[%s166 + $0x2a0] sm:$0xf]
      %v344 = vld [vmem:[%s166 + $0x2a4] sm:$0xf]
      %v345 = vld [vmem:[%s166 + $0x2a8] sm:$0xf]
      %v346 = vld [vmem:[%s166 + $0x2ac] sm:$0xf]
      %v347 = vld [vmem:[%s166 + $0x2b0] sm:$0xf]
      %v348 = vld [vmem:[%s166 + $0x2b4] sm:$0xf]
      %v349 = vld [vmem:[%s166 + $0x2b8] sm:$0xf]
      %v350 = vld [vmem:[%s166 + $0x2bc] sm:$0xf]
      %v351 = vld [vmem:[%s166 + $0x2c0] sm:$0xf]
      %v352 = vld [vmem:[%s166 + $0x2c4] sm:$0xf]
      %v353 = vld [vmem:[%s166 + $0x2c8] sm:$0xf]
      %v354 = vld [vmem:[%s166 + $0x2cc] sm:$0xf]
      %v355 = vld [vmem:[%s166 + $0x2d0] sm:$0xf]
      %v356 = vld [vmem:[%s166 + $0x2d4] sm:$0xf]
      %v357 = vld [vmem:[%s166 + $0x2d8] sm:$0xf]
      %v358 = vld [vmem:[%s166 + $0x2dc] sm:$0xf]
      %v359 = vld [vmem:[%s166 + $0x2e0] sm:$0xf]
      %v360 = vld [vmem:[%s166 + $0x2e4] sm:$0xf]
      %v361 = vld [vmem:[%s166 + $0x2e8] sm:$0xf]
      %v362 = vld [vmem:[%s166 + $0x2ec] sm:$0xf]
      %v363 = vld [vmem:[%s166 + $0x2f0] sm:$0xf]
      %v364 = vld [vmem:[%s166 + $0x2f4] sm:$0xf]
      %v365 = vld [vmem:[%s166 + $0x2f8] sm:$0xf]
      %v366 = vld [vmem:[%s166 + $0x2fc] sm:$0xf]
      %v367 = vld [vmem:[%s166 + $0x300] sm:$0xf]
      %v368 = vld [vmem:[%s166 + $0x304] sm:$0xf]
      %v369 = vld [vmem:[%s166 + $0x308] sm:$0xf]
      %v370 = vld [vmem:[%s166 + $0x30c] sm:$0xf]
      %v371 = vld [vmem:[%s166 + $0x310] sm:$0xf]
      %v372 = vld [vmem:[%s166 + $0x314] sm:$0xf]
      %v373 = vld [vmem:[%s166 + $0x318] sm:$0xf]
      %v374 = vld [vmem:[%s166 + $0x31c] sm:$0xf]
      %v375 = vld [vmem:[%s166 + $0x320] sm:$0xf]
      %v376 = vld [vmem:[%s166 + $0x324] sm:$0xf]
      %v377 = vld [vmem:[%s166 + $0x328] sm:$0xf]
      %v378 = vld [vmem:[%s166 + $0x32c] sm:$0xf]
      %v379 = vld [vmem:[%s166 + $0x330] sm:$0xf]
      %v380 = vld [vmem:[%s166 + $0x334] sm:$0xf]
      %v381 = vld [vmem:[%s166 + $0x338] sm:$0xf]
      %v382 = vld [vmem:[%s166 + $0x33c] sm:$0xf]
      %v383 = vld [vmem:[%s166 + $0x340] sm:$0xf]
      %v384 = vld [vmem:[%s166 + $0x344] sm:$0xf]
      %v385 = vld [vmem:[%s166 + $0x348] sm:$0xf]
      %v386 = vld [vmem:[%s166 + $0x34c] sm:$0xf]
      %v387 = vld [vmem:[%s166 + $0x350] sm:$0xf]
      %v388 = vld [vmem:[%s166 + $0x354] sm:$0xf]
      %v389 = vld [vmem:[%s166 + $0x358] sm:$0xf]
      %v390 = vld [vmem:[%s166 + $0x35c] sm:$0xf]
      %v391 = vld [vmem:[%s166 + $0x360] sm:$0xf]
      %v392 = vld [vmem:[%s166 + $0x364] sm:$0xf]
      %v393 = vld [vmem:[%s166 + $0x368] sm:$0xf]
      %v394 = vld [vmem:[%s166 + $0x36c] sm:$0xf]
      %v395 = vld [vmem:[%s166 + $0x370] sm:$0xf]
      %v396 = vld [vmem:[%s166 + $0x374] sm:$0xf]
      %v397 = vld [vmem:[%s166 + $0x378] sm:$0xf]
      %v398 = vld [vmem:[%s166 + $0x37c] sm:$0xf]
      %v399 = vld [vmem:[%s166 + $0x380] sm:$0xf]
      %v400 = vld [vmem:[%s166 + $0x384] sm:$0xf]
      %v401 = vld [vmem:[%s166 + $0x388] sm:$0xf]
      %v402 = vld [vmem:[%s166 + $0x38c] sm:$0xf]
      %v403 = vld [vmem:[%s166 + $0x390] sm:$0xf]
      %v404 = vld [vmem:[%s166 + $0x394] sm:$0xf]
      %v405 = vld [vmem:[%s166 + $0x398] sm:$0xf]
      %v406 = vld [vmem:[%s166 + $0x39c] sm:$0xf]
      %v407 = vld [vmem:[%s166 + $0x3a0] sm:$0xf]
      %v408 = vld [vmem:[%s166 + $0x3a4] sm:$0xf]
      %v409 = vld [vmem:[%s166 + $0x3a8] sm:$0xf]
      %v410 = vld [vmem:[%s166 + $0x3ac] sm:$0xf]
      %v411 = vld [vmem:[%s166 + $0x3b0] sm:$0xf]
      %v412 = vld [vmem:[%s166 + $0x3b4] sm:$0xf]
      %v413 = vld [vmem:[%s166 + $0x3b8] sm:$0xf]
      %v414 = vld [vmem:[%s166 + $0x3bc] sm:$0xf]
      %v415 = vld [vmem:[%s166 + $0x3c0] sm:$0xf]
      %v416 = vld [vmem:[%s166 + $0x3c4] sm:$0xf]
      %v417 = vld [vmem:[%s166 + $0x3c8] sm:$0xf]
      %v418 = vld [vmem:[%s166 + $0x3cc] sm:$0xf]
      %v419 = vld [vmem:[%s166 + $0x3d0] sm:$0xf]
      %v420 = vld [vmem:[%s166 + $0x3d4] sm:$0xf]
      %v421 = vld [vmem:[%s166 + $0x3d8] sm:$0xf]
      %v422 = vld [vmem:[%s166 + $0x3dc] sm:$0xf]
      %v423 = vld [vmem:[%s166 + $0x3e0] sm:$0xf]
      %v424 = vld [vmem:[%s166 + $0x3e4] sm:$0xf]
      %v425 = vld [vmem:[%s166 + $0x3e8] sm:$0xf]
      %v426 = vld [vmem:[%s166 + $0x3ec] sm:$0xf]
      %v427 = vld [vmem:[%s166 + $0x3f0] sm:$0xf]
      %v428 = vld [vmem:[%s166 + $0x3f4] sm:$0xf]
      %v429 = vld [vmem:[%s166 + $0x3f8] sm:$0xf]
      %v430 = vld [vmem:[%s166 + $0x3fc] sm:$0xf]
      %v431 = vld [vmem:[%s166 + $0x400] sm:$0xf]
      %v432 = vld [vmem:[%s166 + $0x404] sm:$0xf]
      %v433 = vld [vmem:[%s166 + $0x408] sm:$0xf]
      %v434 = vld [vmem:[%s166 + $0x40c] sm:$0xf]
      %v435 = vld [vmem:[%s166 + $0x410] sm:$0xf]
      %v436 = vld [vmem:[%s166 + $0x414] sm:$0xf]
      %v437 = vld [vmem:[%s166 + $0x418] sm:$0xf]
      %v438 = vld [vmem:[%s166 + $0x41c] sm:$0xf]
      %v439 = vld [vmem:[%s166 + $0x420] sm:$0xf]
      %v440 = vld [vmem:[%s166 + $0x424] sm:$0xf]
      %v441 = vld [vmem:[%s166 + $0x428] sm:$0xf]
      %v442 = vld [vmem:[%s166 + $0x42c] sm:$0xf]
      %v443 = vld [vmem:[%s166 + $0x430] sm:$0xf]
      %v444 = vld [vmem:[%s166 + $0x434] sm:$0xf]
      %v445 = vld [vmem:[%s166 + $0x438] sm:$0xf]
      %v446 = vld [vmem:[%s166 + $0x43c] sm:$0xf]
      %v447 = vld [vmem:[%s166 + $0x440] sm:$0xf]
      %v448 = vld [vmem:[%s166 + $0x444] sm:$0xf]
      %v449 = vld [vmem:[%s166 + $0x448] sm:$0xf]
      %v450 = vld [vmem:[%s166 + $0x44c] sm:$0xf]
      %v451 = vld [vmem:[%s166 + $0x450] sm:$0xf]
      %v452 = vld [vmem:[%s166 + $0x454] sm:$0xf]
      %v453 = vld [vmem:[%s166 + $0x458] sm:$0xf]
      %v454 = vld [vmem:[%s166 + $0x45c] sm:$0xf]
      %v455 = vld [vmem:[%s166 + $0x460] sm:$0xf]
      %v456 = vld [vmem:[%s166 + $0x464] sm:$0xf]
      %v457 = vld [vmem:[%s166 + $0x468] sm:$0xf]
      %v458 = vld [vmem:[%s166 + $0x46c] sm:$0xf]
      %v459 = vld [vmem:[%s166 + $0x470] sm:$0xf]
      %v460 = vld [vmem:[%s166 + $0x474] sm:$0xf]
      %v461 = vld [vmem:[%s166 + $0x478] sm:$0xf]
      %v462 = vld [vmem:[%s166 + $0x47c] sm:$0xf]
      %v463 = vld [vmem:[%s1] sm:$0xf]
      %v464 = vld [vmem:[%s1 + $0x4] sm:$0xf]
      %v465 = vld [vmem:[%s1 + $0x8] sm:$0xf]
      %v466 = vld [vmem:[%s1 + $0xc] sm:$0xf]
      %v467 = vld [vmem:[%s1 + $0x10] sm:$0x3]
      %v468 = vld [vmem:[%s2] sm:$0x1]
      %v470 = vlaneseq
      %v471 = vshrl.u32 %v470, 7
      %v472 = vsub.s32 0, %v471
      %v473 = vrot.slane %v468, %v472
      %v763 = vunpack.c.l.b16 %v175
      %v764 = vunpack.c.l.b16 %v176
      %v765 = vunpack.c.l.b16 %v177
      %v766 = vunpack.c.l.b16 %v178
      %v767 = vunpack.c.l.b16 %v179
      %v768 = vunpack.c.l.b16 %v180
      %v769 = vunpack.c.l.b16 %v181
      %v770 = vunpack.c.l.b16 %v182
      %v771 = vunpack.c.l.b16 %v183
      %v772 = vunpack.c.l.b16 %v184
      %v773 = vunpack.c.l.b16 %v185
      %v774 = vunpack.c.l.b16 %v186
      %v775 = vunpack.c.l.b16 %v187
      %v776 = vunpack.c.l.b16 %v188
      %v777 = vunpack.c.l.b16 %v189
      %v778 = vunpack.c.l.b16 %v190
      %v779 = vunpack.c.l.b16 %v191
      %v780 = vunpack.c.l.b16 %v192
      %v781 = vunpack.c.l.b16 %v193
      %v782 = vunpack.c.l.b16 %v194
      %v783 = vunpack.c.l.b16 %v195
      %v784 = vunpack.c.l.b16 %v196
      %v785 = vunpack.c.l.b16 %v197
      %v786 = vunpack.c.l.b16 %v198
      %v787 = vunpack.c.l.b16 %v199
      %v788 = vunpack.c.l.b16 %v200
      %v789 = vunpack.c.l.b16 %v201
      %v790 = vunpack.c.l.b16 %v202
      %v791 = vunpack.c.l.b16 %v203
      %v792 = vunpack.c.l.b16 %v204
      %v793 = vunpack.c.l.b16 %v205
      %v794 = vunpack.c.l.b16 %v206
      %v795 = vunpack.c.l.b16 %v207
      %v796 = vunpack.c.l.b16 %v208
      %v797 = vunpack.c.l.b16 %v209
      %v798 = vunpack.c.l.b16 %v210
      %v799 = vunpack.c.l.b16 %v211
      %v800 = vunpack.c.l.b16 %v212
      %v801 = vunpack.c.l.b16 %v213
      %v802 = vunpack.c.l.b16 %v214
      %v803 = vunpack.c.l.b16 %v215
      %v804 = vunpack.c.l.b16 %v216
      %v805 = vunpack.c.l.b16 %v217
      %v806 = vunpack.c.l.b16 %v218
      %v807 = vunpack.c.l.b16 %v219
      %v808 = vunpack.c.l.b16 %v220
      %v809 = vunpack.c.l.b16 %v221
      %v810 = vunpack.c.l.b16 %v222
      %v811 = vunpack.c.l.b16 %v223
      %v812 = vunpack.c.l.b16 %v224
      %v813 = vunpack.c.l.b16 %v225
      %v814 = vunpack.c.l.b16 %v226
      %v815 = vunpack.c.l.b16 %v227
      %v816 = vunpack.c.l.b16 %v228
      %v817 = vunpack.c.l.b16 %v229
      %v818 = vunpack.c.l.b16 %v230
      %v819 = vunpack.c.l.b16 %v231
      %v820 = vunpack.c.l.b16 %v232
      %v821 = vunpack.c.l.b16 %v233
      %v822 = vunpack.c.l.b16 %v234
      %v823 = vunpack.c.l.b16 %v235
      %v824 = vunpack.c.l.b16 %v236
      %v825 = vunpack.c.l.b16 %v237
      %v826 = vunpack.c.l.b16 %v238
      %v827 = vunpack.c.l.b16 %v239
      %v828 = vunpack.c.l.b16 %v240
      %v829 = vunpack.c.l.b16 %v241
      %v830 = vunpack.c.l.b16 %v242
      %v831 = vunpack.c.l.b16 %v243
      %v832 = vunpack.c.l.b16 %v244
      %v833 = vunpack.c.l.b16 %v245
      %v834 = vunpack.c.l.b16 %v246
      %v835 = vunpack.c.l.b16 %v247
      %v836 = vunpack.c.l.b16 %v248
      %v837 = vunpack.c.l.b16 %v249
      %v838 = vunpack.c.l.b16 %v250
      %v839 = vunpack.c.l.b16 %v251
      %v840 = vunpack.c.l.b16 %v252
      %v841 = vunpack.c.l.b16 %v253
      %v842 = vunpack.c.l.b16 %v254
      %v843 = vunpack.c.l.b16 %v255
      %v844 = vunpack.c.l.b16 %v256
      %v845 = vunpack.c.l.b16 %v257
      %v846 = vunpack.c.l.b16 %v258
      %v847 = vunpack.c.l.b16 %v259
      %v848 = vunpack.c.l.b16 %v260
      %v849 = vunpack.c.l.b16 %v261
      %v850 = vunpack.c.l.b16 %v262
      %v851 = vunpack.c.l.b16 %v263
      %v852 = vunpack.c.l.b16 %v264
      %v853 = vunpack.c.l.b16 %v265
      %v854 = vunpack.c.l.b16 %v266
      %v855 = vunpack.c.l.b16 %v267
      %v856 = vunpack.c.l.b16 %v268
      %v857 = vunpack.c.l.b16 %v269
      %v858 = vunpack.c.l.b16 %v270
      %v859 = vunpack.c.l.b16 %v271
      %v860 = vunpack.c.l.b16 %v272
      %v861 = vunpack.c.l.b16 %v273
      %v862 = vunpack.c.l.b16 %v274
      %v863 = vunpack.c.l.b16 %v275
      %v864 = vunpack.c.l.b16 %v276
      %v865 = vunpack.c.l.b16 %v277
      %v866 = vunpack.c.l.b16 %v278
      %v867 = vunpack.c.l.b16 %v279
      %v868 = vunpack.c.l.b16 %v280
      %v869 = vunpack.c.l.b16 %v281
      %v870 = vunpack.c.l.b16 %v282
      %v871 = vunpack.c.l.b16 %v283
      %v872 = vunpack.c.l.b16 %v284
      %v873 = vunpack.c.l.b16 %v285
      %v874 = vunpack.c.l.b16 %v286
      %v875 = vunpack.c.l.b16 %v287
      %v876 = vunpack.c.l.b16 %v288
      %v877 = vunpack.c.l.b16 %v289
      %v878 = vunpack.c.l.b16 %v290
      %v879 = vunpack.c.l.b16 %v291
      %v880 = vunpack.c.l.b16 %v292
      %v881 = vunpack.c.l.b16 %v293
      %v882 = vunpack.c.l.b16 %v294
      %v883 = vunpack.c.l.b16 %v295
      %v884 = vunpack.c.l.b16 %v296
      %v885 = vunpack.c.l.b16 %v297
      %v886 = vunpack.c.l.b16 %v298
      %v887 = vunpack.c.l.b16 %v299
      %v888 = vunpack.c.l.b16 %v300
      %v889 = vunpack.c.l.b16 %v301
      %v890 = vunpack.c.l.b16 %v302
      %v891 = vunpack.c.l.b16 %v303
      %v892 = vunpack.c.l.b16 %v304
      %v893 = vunpack.c.l.b16 %v305
      %v894 = vunpack.c.l.b16 %v306
      %v895 = vunpack.c.l.b16 %v307
      %v896 = vunpack.c.l.b16 %v308
      %v897 = vunpack.c.l.b16 %v309
      %v898 = vunpack.c.l.b16 %v310
      %v899 = vunpack.c.l.b16 %v311
      %v900 = vunpack.c.l.b16 %v312
      %v901 = vunpack.c.l.b16 %v313
      %v902 = vunpack.c.l.b16 %v314
      %v903 = vunpack.c.l.b16 %v315
      %v904 = vunpack.c.l.b16 %v316
      %v905 = vunpack.c.l.b16 %v317
      %v906 = vunpack.c.l.b16 %v318
      %v907 = vunpack.c.l.b16 %v319
      %v908 = vunpack.c.l.b16 %v320
      %v909 = vunpack.c.l.b16 %v321
      %v910 = vunpack.c.l.b16 %v322
      %v911 = vunpack.c.l.b16 %v323
      %v912 = vunpack.c.l.b16 %v324
      %v913 = vunpack.c.l.b16 %v325
      %v914 = vunpack.c.l.b16 %v326
      %v915 = vunpack.c.l.b16 %v327
      %v916 = vunpack.c.l.b16 %v328
      %v917 = vunpack.c.l.b16 %v329
      %v918 = vunpack.c.l.b16 %v330
      %v919 = vunpack.c.l.b16 %v331
      %v920 = vunpack.c.l.b16 %v332
      %v921 = vunpack.c.l.b16 %v333
      %v922 = vunpack.c.l.b16 %v334
      %v923 = vunpack.c.l.b16 %v335
      %v924 = vunpack.c.l.b16 %v336
      %v925 = vunpack.c.l.b16 %v337
      %v926 = vunpack.c.l.b16 %v338
      %v927 = vunpack.c.l.b16 %v339
      %v928 = vunpack.c.l.b16 %v340
      %v929 = vunpack.c.l.b16 %v341
      %v930 = vunpack.c.l.b16 %v342
      %v931 = vunpack.c.l.b16 %v343
      %v932 = vunpack.c.l.b16 %v344
      %v933 = vunpack.c.l.b16 %v345
      %v934 = vunpack.c.l.b16 %v346
      %v935 = vunpack.c.l.b16 %v347
      %v936 = vunpack.c.l.b16 %v348
      %v937 = vunpack.c.l.b16 %v349
      %v938 = vunpack.c.l.b16 %v350
      %v939 = vunpack.c.l.b16 %v351
      %v940 = vunpack.c.l.b16 %v352
      %v941 = vunpack.c.l.b16 %v353
      %v942 = vunpack.c.l.b16 %v354
      %v943 = vunpack.c.l.b16 %v355
      %v944 = vunpack.c.l.b16 %v356
      %v945 = vunpack.c.l.b16 %v357
      %v946 = vunpack.c.l.b16 %v358
      %v947 = vunpack.c.l.b16 %v359
      %v948 = vunpack.c.l.b16 %v360
      %v949 = vunpack.c.l.b16 %v361
      %v950 = vunpack.c.l.b16 %v362
      %v951 = vunpack.c.l.b16 %v363
      %v952 = vunpack.c.l.b16 %v364
      %v953 = vunpack.c.l.b16 %v365
      %v954 = vunpack.c.l.b16 %v366
      %v955 = vunpack.c.l.b16 %v367
      %v956 = vunpack.c.l.b16 %v368
      %v957 = vunpack.c.l.b16 %v369
      %v958 = vunpack.c.l.b16 %v370
      %v959 = vunpack.c.l.b16 %v371
      %v960 = vunpack.c.l.b16 %v372
      %v961 = vunpack.c.l.b16 %v373
      %v962 = vunpack.c.l.b16 %v374
      %v963 = vunpack.c.l.b16 %v375
      %v964 = vunpack.c.l.b16 %v376
      %v965 = vunpack.c.l.b16 %v377
      %v966 = vunpack.c.l.b16 %v378
      %v967 = vunpack.c.l.b16 %v379
      %v968 = vunpack.c.l.b16 %v380
      %v969 = vunpack.c.l.b16 %v381
      %v970 = vunpack.c.l.b16 %v382
      %v971 = vunpack.c.l.b16 %v383
      %v972 = vunpack.c.l.b16 %v384
      %v973 = vunpack.c.l.b16 %v385
      %v974 = vunpack.c.l.b16 %v386
      %v975 = vunpack.c.l.b16 %v387
      %v976 = vunpack.c.l.b16 %v388
      %v977 = vunpack.c.l.b16 %v389
      %v978 = vunpack.c.l.b16 %v390
      %v979 = vunpack.c.l.b16 %v391
      %v980 = vunpack.c.l.b16 %v392
      %v981 = vunpack.c.l.b16 %v393
      %v982 = vunpack.c.l.b16 %v394
      %v983 = vunpack.c.l.b16 %v395
      %v984 = vunpack.c.l.b16 %v396
      %v985 = vunpack.c.l.b16 %v397
      %v986 = vunpack.c.l.b16 %v398
      %v987 = vunpack.c.l.b16 %v399
      %v988 = vunpack.c.l.b16 %v400
      %v989 = vunpack.c.l.b16 %v401
      %v990 = vunpack.c.l.b16 %v402
      %v991 = vunpack.c.l.b16 %v403
      %v992 = vunpack.c.l.b16 %v404
      %v993 = vunpack.c.l.b16 %v405
      %v994 = vunpack.c.l.b16 %v406
      %v995 = vunpack.c.l.b16 %v407
      %v996 = vunpack.c.l.b16 %v408
      %v997 = vunpack.c.l.b16 %v409
      %v998 = vunpack.c.l.b16 %v410
      %v999 = vunpack.c.l.b16 %v411
      %v1000 = vunpack.c.l.b16 %v412
      %v1001 = vunpack.c.l.b16 %v413
      %v1002 = vunpack.c.l.b16 %v414
      %v1003 = vunpack.c.l.b16 %v415
      %v1004 = vunpack.c.l.b16 %v416
      %v1005 = vunpack.c.l.b16 %v417
      %v1006 = vunpack.c.l.b16 %v418
      %v1007 = vunpack.c.l.b16 %v419
      %v1008 = vunpack.c.l.b16 %v420
      %v1009 = vunpack.c.l.b16 %v421
      %v1010 = vunpack.c.l.b16 %v422
      %v1011 = vunpack.c.l.b16 %v423
      %v1012 = vunpack.c.l.b16 %v424
      %v1013 = vunpack.c.l.b16 %v425
      %v1014 = vunpack.c.l.b16 %v426
      %v1015 = vunpack.c.l.b16 %v427
      %v1016 = vunpack.c.l.b16 %v428
      %v1017 = vunpack.c.l.b16 %v429
      %v1018 = vunpack.c.l.b16 %v430
      %v1019 = vunpack.c.l.b16 %v431
      %v1020 = vunpack.c.l.b16 %v432
      %v1021 = vunpack.c.l.b16 %v433
      %v1022 = vunpack.c.l.b16 %v434
      %v1023 = vunpack.c.l.b16 %v435
      %v1024 = vunpack.c.l.b16 %v436
      %v1025 = vunpack.c.l.b16 %v437
      %v1026 = vunpack.c.l.b16 %v438
      %v1027 = vunpack.c.l.b16 %v439
      %v1028 = vunpack.c.l.b16 %v440
      %v1029 = vunpack.c.l.b16 %v441
      %v1030 = vunpack.c.l.b16 %v442
      %v1031 = vunpack.c.l.b16 %v443
      %v1032 = vunpack.c.l.b16 %v444
      %v1033 = vunpack.c.l.b16 %v445
      %v1034 = vunpack.c.l.b16 %v446
      %v1035 = vunpack.c.l.b16 %v447
      %v1036 = vunpack.c.l.b16 %v448
      %v1037 = vunpack.c.l.b16 %v449
      %v1038 = vunpack.c.l.b16 %v450
      %v1039 = vunpack.c.l.b16 %v451
      %v1040 = vunpack.c.l.b16 %v452
      %v1041 = vunpack.c.l.b16 %v453
      %v1042 = vunpack.c.l.b16 %v454
      %v1043 = vunpack.c.l.b16 %v455
      %v1044 = vunpack.c.l.b16 %v456
      %v1045 = vunpack.c.l.b16 %v457
      %v1046 = vunpack.c.l.b16 %v458
      %v1047 = vunpack.c.l.b16 %v459
      %v1048 = vunpack.c.l.b16 %v460
      %v1049 = vunpack.c.l.b16 %v461
      %v1050 = vunpack.c.l.b16 %v462
      %v1051 = vpack.c.b16 %v764, %v763
      %v1052 = vpack.c.b16 %v766, %v765
      %v1053 = vpack.c.b16 %v768, %v767
      %v1054 = vpack.c.b16 %v770, %v769
      %v1055 = vpack.c.b16 %v772, %v771
      %v1056 = vpack.c.b16 %v774, %v773
      %v1057 = vpack.c.b16 %v776, %v775
      %v1058 = vpack.c.b16 %v778, %v777
      %v1059 = vpack.c.b16 %v780, %v779
      %v1060 = vpack.c.b16 %v782, %v781
      %v1061 = vpack.c.b16 %v784, %v783
      %v1062 = vpack.c.b16 %v786, %v785
      %v1063 = vpack.c.b16 %v788, %v787
      %v1064 = vpack.c.b16 %v790, %v789
      %v1065 = vpack.c.b16 %v792, %v791
      %v1066 = vpack.c.b16 %v794, %v793
      %v1067 = vpack.c.b16 %v796, %v795
      %v1068 = vpack.c.b16 %v798, %v797
      %v1069 = vpack.c.b16 %v800, %v799
      %v1070 = vpack.c.b16 %v802, %v801
      %v1071 = vpack.c.b16 %v804, %v803
      %v1072 = vpack.c.b16 %v806, %v805
      %v1073 = vpack.c.b16 %v808, %v807
      %v1074 = vpack.c.b16 %v810, %v809
      %v1075 = vpack.c.b16 %v812, %v811
      %v1076 = vpack.c.b16 %v814, %v813
      %v1077 = vpack.c.b16 %v816, %v815
      %v1078 = vpack.c.b16 %v818, %v817
      %v1079 = vpack.c.b16 %v820, %v819
      %v1080 = vpack.c.b16 %v822, %v821
      %v1081 = vpack.c.b16 %v824, %v823
      %v1082 = vpack.c.b16 %v826, %v825
      %v1083 = vpack.c.b16 %v828, %v827
      %v1084 = vpack.c.b16 %v830, %v829
      %v1085 = vpack.c.b16 %v832, %v831
      %v1086 = vpack.c.b16 %v834, %v833
      %v1087 = vpack.c.b16 %v836, %v835
      %v1088 = vpack.c.b16 %v838, %v837
      %v1089 = vpack.c.b16 %v840, %v839
      %v1090 = vpack.c.b16 %v842, %v841
      %v1091 = vpack.c.b16 %v844, %v843
      %v1092 = vpack.c.b16 %v846, %v845
      %v1093 = vpack.c.b16 %v848, %v847
      %v1094 = vpack.c.b16 %v850, %v849
      %v1095 = vpack.c.b16 %v852, %v851
      %v1096 = vpack.c.b16 %v854, %v853
      %v1097 = vpack.c.b16 %v856, %v855
      %v1098 = vpack.c.b16 %v858, %v857
      %v1099 = vpack.c.b16 %v860, %v859
      %v1100 = vpack.c.b16 %v862, %v861
      %v1101 = vpack.c.b16 %v864, %v863
      %v1102 = vpack.c.b16 %v866, %v865
      %v1103 = vpack.c.b16 %v868, %v867
      %v1104 = vpack.c.b16 %v870, %v869
      %v1105 = vpack.c.b16 %v872, %v871
      %v1106 = vpack.c.b16 %v874, %v873
      %v1107 = vpack.c.b16 %v876, %v875
      %v1108 = vpack.c.b16 %v878, %v877
      %v1109 = vpack.c.b16 %v880, %v879
      %v1110 = vpack.c.b16 %v882, %v881
      %v1111 = vpack.c.b16 %v884, %v883
      %v1112 = vpack.c.b16 %v886, %v885
      %v1113 = vpack.c.b16 %v888, %v887
      %v1114 = vpack.c.b16 %v890, %v889
      %v1115 = vpack.c.b16 %v892, %v891
      %v1116 = vpack.c.b16 %v894, %v893
      %v1117 = vpack.c.b16 %v896, %v895
      %v1118 = vpack.c.b16 %v898, %v897
      %v1119 = vpack.c.b16 %v900, %v899
      %v1120 = vpack.c.b16 %v902, %v901
      %v1121 = vpack.c.b16 %v904, %v903
      %v1122 = vpack.c.b16 %v906, %v905
      %v1123 = vpack.c.b16 %v908, %v907
      %v1124 = vpack.c.b16 %v910, %v909
      %v1125 = vpack.c.b16 %v912, %v911
      %v1126 = vpack.c.b16 %v914, %v913
      %v1127 = vpack.c.b16 %v916, %v915
      %v1128 = vpack.c.b16 %v918, %v917
      %v1129 = vpack.c.b16 %v920, %v919
      %v1130 = vpack.c.b16 %v922, %v921
      %v1131 = vpack.c.b16 %v924, %v923
      %v1132 = vpack.c.b16 %v926, %v925
      %v1133 = vpack.c.b16 %v928, %v927
      %v1134 = vpack.c.b16 %v930, %v929
      %v1135 = vpack.c.b16 %v932, %v931
      %v1136 = vpack.c.b16 %v934, %v933
      %v1137 = vpack.c.b16 %v936, %v935
      %v1138 = vpack.c.b16 %v938, %v937
      %v1139 = vpack.c.b16 %v940, %v939
      %v1140 = vpack.c.b16 %v942, %v941
      %v1141 = vpack.c.b16 %v944, %v943
      %v1142 = vpack.c.b16 %v946, %v945
      %v1143 = vpack.c.b16 %v948, %v947
      %v1144 = vpack.c.b16 %v950, %v949
      %v1145 = vpack.c.b16 %v952, %v951
      %v1146 = vpack.c.b16 %v954, %v953
      %v1147 = vpack.c.b16 %v956, %v955
      %v1148 = vpack.c.b16 %v958, %v957
      %v1149 = vpack.c.b16 %v960, %v959
      %v1150 = vpack.c.b16 %v962, %v961
      %v1151 = vpack.c.b16 %v964, %v963
      %v1152 = vpack.c.b16 %v966, %v965
      %v1153 = vpack.c.b16 %v968, %v967
      %v1154 = vpack.c.b16 %v970, %v969
      %v1155 = vpack.c.b16 %v972, %v971
      %v1156 = vpack.c.b16 %v974, %v973
      %v1157 = vpack.c.b16 %v976, %v975
      %v1158 = vpack.c.b16 %v978, %v977
      %v1159 = vpack.c.b16 %v980, %v979
      %v1160 = vpack.c.b16 %v982, %v981
      %v1161 = vpack.c.b16 %v984, %v983
      %v1162 = vpack.c.b16 %v986, %v985
      %v1163 = vpack.c.b16 %v988, %v987
      %v1164 = vpack.c.b16 %v990, %v989
      %v1165 = vpack.c.b16 %v992, %v991
      %v1166 = vpack.c.b16 %v994, %v993
      %v1167 = vpack.c.b16 %v996, %v995
      %v1168 = vpack.c.b16 %v998, %v997
      %v1169 = vpack.c.b16 %v1000, %v999
      %v1170 = vpack.c.b16 %v1002, %v1001
      %v1171 = vpack.c.b16 %v1004, %v1003
      %v1172 = vpack.c.b16 %v1006, %v1005
      %v1173 = vpack.c.b16 %v1008, %v1007
      %v1174 = vpack.c.b16 %v1010, %v1009
      %v1175 = vpack.c.b16 %v1012, %v1011
      %v1176 = vpack.c.b16 %v1014, %v1013
      %v1177 = vpack.c.b16 %v1016, %v1015
      %v1178 = vpack.c.b16 %v1018, %v1017
      %v1179 = vpack.c.b16 %v1020, %v1019
      %v1180 = vpack.c.b16 %v1022, %v1021
      %v1181 = vpack.c.b16 %v1024, %v1023
      %v1182 = vpack.c.b16 %v1026, %v1025
      %v1183 = vpack.c.b16 %v1028, %v1027
      %v1184 = vpack.c.b16 %v1030, %v1029
      %v1185 = vpack.c.b16 %v1032, %v1031
      %v1186 = vpack.c.b16 %v1034, %v1033
      %v1187 = vpack.c.b16 %v1036, %v1035
      %v1188 = vpack.c.b16 %v1038, %v1037
      %v1189 = vpack.c.b16 %v1040, %v1039
      %v1190 = vpack.c.b16 %v1042, %v1041
      %v1191 = vpack.c.b16 %v1044, %v1043
      %v1192 = vpack.c.b16 %v1046, %v1045
      %v1193 = vpack.c.b16 %v1048, %v1047
      %v1194 = vpack.c.b16 %v1050, %v1049
      %v1200 = vunpack.c.l.b16 %v463
      %v1201 = vunpack.c.l.b16 %v464
      %v1202 = vunpack.c.l.b16 %v465
      %v1203 = vunpack.c.l.b16 %v466
      %v1204 = vunpack.c.l.b16 %v467
      %v1205 = vpack.c.b16 %v1201, %v1200
      %v1206 = vpack.c.b16 %v1203, %v1202
      %v1207 = vpack.c.b16 %v1204, %v1204
      %vm1210 = vcmask 293888
      %v1212 = vsel %vm1210, %v1051, 0
      %v1215 = vsel %vm1210, %v1052, 0
      %v1218 = vsel %vm1210, %v1053, 0
      %v1221 = vsel %vm1210, %v1054, 0
      %v1224 = vsel %vm1210, %v1055, 0
      %v1227 = vsel %vm1210, %v1056, 0
      %v1230 = vsel %vm1210, %v1057, 0
      %v1233 = vsel %vm1210, %v1058, 0
      %v1236 = vsel %vm1210, %v1059, 0
      %v1239 = vsel %vm1210, %v1060, 0
      %v1242 = vsel %vm1210, %v1061, 0
      %v1245 = vsel %vm1210, %v1062, 0
      %v1248 = vsel %vm1210, %v1063, 0
      %v1251 = vsel %vm1210, %v1064, 0
      %v1254 = vsel %vm1210, %v1065, 0
      %v1257 = vsel %vm1210, %v1066, 0
      %v1260 = vsel %vm1210, %v1067, 0
      %v1263 = vsel %vm1210, %v1068, 0
      %v1266 = vsel %vm1210, %v1069, 0
      %v1269 = vsel %vm1210, %v1070, 0
      %v1272 = vsel %vm1210, %v1071, 0
      %v1275 = vsel %vm1210, %v1072, 0
      %v1278 = vsel %vm1210, %v1073, 0
      %v1281 = vsel %vm1210, %v1074, 0
      %v1284 = vsel %vm1210, %v1075, 0
      %v1287 = vsel %vm1210, %v1076, 0
      %v1290 = vsel %vm1210, %v1077, 0
      %v1293 = vsel %vm1210, %v1078, 0
      %v1296 = vsel %vm1210, %v1079, 0
      %v1299 = vsel %vm1210, %v1080, 0
      %v1302 = vsel %vm1210, %v1081, 0
      %v1305 = vsel %vm1210, %v1082, 0
      %v1308 = vsel %vm1210, %v1083, 0
      %v1311 = vsel %vm1210, %v1084, 0
      %v1314 = vsel %vm1210, %v1085, 0
      %v1317 = vsel %vm1210, %v1086, 0
      %v1320 = vsel %vm1210, %v1087, 0
      %v1323 = vsel %vm1210, %v1088, 0
      %v1326 = vsel %vm1210, %v1089, 0
      %v1329 = vsel %vm1210, %v1090, 0
      %v1332 = vsel %vm1210, %v1091, 0
      %v1335 = vsel %vm1210, %v1092, 0
      %v1338 = vsel %vm1210, %v1093, 0
      %v1341 = vsel %vm1210, %v1094, 0
      %v1344 = vsel %vm1210, %v1095, 0
      %v1347 = vsel %vm1210, %v1096, 0
      %v1350 = vsel %vm1210, %v1097, 0
      %v1353 = vsel %vm1210, %v1098, 0
      %v1356 = vsel %vm1210, %v1099, 0
      %v1359 = vsel %vm1210, %v1100, 0
      %v1362 = vsel %vm1210, %v1101, 0
      %v1365 = vsel %vm1210, %v1102, 0
      %v1368 = vsel %vm1210, %v1103, 0
      %v1371 = vsel %vm1210, %v1104, 0
      %v1374 = vsel %vm1210, %v1105, 0
      %v1377 = vsel %vm1210, %v1106, 0
      %v1380 = vsel %vm1210, %v1107, 0
      %v1383 = vsel %vm1210, %v1108, 0
      %v1386 = vsel %vm1210, %v1109, 0
      %v1389 = vsel %vm1210, %v1110, 0
      %v1392 = vsel %vm1210, %v1111, 0
      %v1395 = vsel %vm1210, %v1112, 0
      %v1398 = vsel %vm1210, %v1113, 0
      %v1401 = vsel %vm1210, %v1114, 0
      %v1404 = vsel %vm1210, %v1115, 0
      %v1407 = vsel %vm1210, %v1116, 0
      %v1410 = vsel %vm1210, %v1117, 0
      %v1413 = vsel %vm1210, %v1118, 0
      %v1416 = vsel %vm1210, %v1119, 0
      %v1419 = vsel %vm1210, %v1120, 0
      %v1422 = vsel %vm1210, %v1121, 0
      %v1425 = vsel %vm1210, %v1122, 0
      %v1428 = vsel %vm1210, %v1123, 0
      %v1431 = vsel %vm1210, %v1124, 0
      %v1434 = vsel %vm1210, %v1125, 0
      %v1437 = vsel %vm1210, %v1126, 0
      %v1440 = vsel %vm1210, %v1127, 0
      %v1443 = vsel %vm1210, %v1128, 0
      %v1446 = vsel %vm1210, %v1129, 0
      %v1449 = vsel %vm1210, %v1130, 0
      %v1452 = vsel %vm1210, %v1131, 0
      %v1455 = vsel %vm1210, %v1132, 0
      %v1458 = vsel %vm1210, %v1133, 0
      %v1461 = vsel %vm1210, %v1134, 0
      %v1464 = vsel %vm1210, %v1135, 0
      %v1467 = vsel %vm1210, %v1136, 0
      %v1470 = vsel %vm1210, %v1137, 0
      %v1473 = vsel %vm1210, %v1138, 0
      %v1476 = vsel %vm1210, %v1139, 0
      %v1479 = vsel %vm1210, %v1140, 0
      %v1482 = vsel %vm1210, %v1141, 0
      %v1485 = vsel %vm1210, %v1142, 0
      %v1488 = vsel %vm1210, %v1143, 0
      %v1491 = vsel %vm1210, %v1144, 0
      %v1494 = vsel %vm1210, %v1145, 0
      %v1497 = vsel %vm1210, %v1146, 0
      %v1500 = vsel %vm1210, %v1147, 0
      %v1503 = vsel %vm1210, %v1148, 0
      %v1506 = vsel %vm1210, %v1149, 0
      %v1509 = vsel %vm1210, %v1150, 0
      %v1512 = vsel %vm1210, %v1151, 0
      %v1515 = vsel %vm1210, %v1152, 0
      %v1518 = vsel %vm1210, %v1153, 0
      %v1521 = vsel %vm1210, %v1154, 0
      %v1524 = vsel %vm1210, %v1155, 0
      %v1527 = vsel %vm1210, %v1156, 0
      %v1530 = vsel %vm1210, %v1157, 0
      %v1533 = vsel %vm1210, %v1158, 0
      %v1536 = vsel %vm1210, %v1159, 0
      %v1539 = vsel %vm1210, %v1160, 0
      %v1542 = vsel %vm1210, %v1161, 0
      %v1545 = vsel %vm1210, %v1162, 0
      %v1548 = vsel %vm1210, %v1163, 0
      %v1551 = vsel %vm1210, %v1164, 0
      %v1554 = vsel %vm1210, %v1165, 0
      %v1557 = vsel %vm1210, %v1166, 0
      %v1560 = vsel %vm1210, %v1167, 0
      %v1563 = vsel %vm1210, %v1168, 0
      %v1566 = vsel %vm1210, %v1169, 0
      %v1569 = vsel %vm1210, %v1170, 0
      %v1572 = vsel %vm1210, %v1171, 0
      %v1575 = vsel %vm1210, %v1172, 0
      %v1578 = vsel %vm1210, %v1173, 0
      %v1581 = vsel %vm1210, %v1174, 0
      %v1584 = vsel %vm1210, %v1175, 0
      %v1587 = vsel %vm1210, %v1176, 0
      %v1590 = vsel %vm1210, %v1177, 0
      %v1593 = vsel %vm1210, %v1178, 0
      %v1596 = vsel %vm1210, %v1179, 0
      %v1599 = vsel %vm1210, %v1180, 0
      %v1602 = vsel %vm1210, %v1181, 0
      %v1605 = vsel %vm1210, %v1182, 0
      %v1608 = vsel %vm1210, %v1183, 0
      %v1611 = vsel %vm1210, %v1184, 0
      %v1614 = vsel %vm1210, %v1185, 0
      %v1617 = vsel %vm1210, %v1186, 0
      %v1620 = vsel %vm1210, %v1187, 0
      %v1623 = vsel %vm1210, %v1188, 0
      %v1626 = vsel %vm1210, %v1189, 0
      %v1629 = vsel %vm1210, %v1190, 0
      %v1632 = vsel %vm1210, %v1191, 0
      %v1635 = vsel %vm1210, %v1192, 0
      %v1638 = vsel %vm1210, %v1193, 0
      %v1641 = vsel %vm1210, %v1194, 0
      %vm1643 = vcmask 1041408
      %v1645 = vsel %vm1643, %v1207, 0
      %1647 = vmatprep.subr.bf16.mxu0 0
      %1648 = vmatpush1.bf16.msra.mxu0 %v1205
      %1649 = vmatprep.subr.bf16.mxu0 0
      %1650 = vmatpush1.bf16.msra.mxu0 %v1206
      %1651 = vmatprep.subr.bf16.mxu0 0
      %1652 = vmatpush1.bf16.msra.mxu0 %v1645
      %1653 = vmatprep.subr.bf16.mxu0 0
      %1654 = vmatpush1.bf16.msra.mxu0 0
      %1655 = vmatprep.subr.bf16.mxu0 0
      %1656 = vmatpush1.bf16.msra.mxu0 0
      %1657 = vmatprep.subr.bf16.mxu0 0
      %1658 = vmatpush1.bf16.msra.mxu0 0
      %1659 = vmatprep.subr.bf16.mxu0 0
      %1660 = vmatpush1.bf16.msra.mxu0 0
      %1661 = vmatprep.subr.bf16.mxu0 0
      %1662 = vmatpush1.bf16.msra.mxu0 0
      %1663 = vmatprep.subr.bf16.mxu0 0
      %1664 = vmatpush1.bf16.msra.mxu0 0
      %1665 = vmatprep.subr.bf16.mxu0 0
      %1666 = vmatpush1.bf16.msra.mxu0 0
      %1667 = vmatprep.subr.bf16.mxu0 0
      %1668 = vmatpush1.bf16.msra.mxu0 0
      %1669 = vmatprep.subr.bf16.mxu0 0
      %1670 = vmatpush1.bf16.msra.mxu0 0
      %1671 = vmatprep.subr.bf16.mxu0 0
      %1672 = vmatpush1.bf16.msra.mxu0 0
      %1673 = vmatprep.subr.bf16.mxu0 0
      %1674 = vmatpush1.bf16.msra.mxu0 0
      %1675 = vmatprep.subr.bf16.mxu0 0
      %1676 = vmatpush1.bf16.msra.mxu0 0
      %1677 = vmatprep.subr.bf16.mxu0 0
      %1678 = vmatpush1.bf16.msra.mxu0 0
      %1679 = vmatprep.mubr.bf16.mxu0 0
      %1680 = vmatmul.mubr.bf16.gmra.mrb[0].mxu0 %v1212
      %v1681 = vpop.f32.mrb[0].mxu0
      %v1682 = vadd.f32 %v473, %v1681
      %v1683 = vpop.f32.mrb[0].mxu0
      %v1684 = vpop.f32.mrb[0].mxu0
      %v1685 = vadd.f32 %v473, %v1684
      %v1686 = vpop.f32.mrb[0].mxu0
      %1687 = vmatprep.mubr.bf16.mxu0 0
      %1688 = vmatmul.mubr.bf16.gmra.mrb[0].mxu0 %v1215
      %v1689 = vpop.f32.mrb[0].mxu0
      %v1690 = vadd.f32 %v473, %v1689
      %v1691 = vpop.f32.mrb[0].mxu0
      %v1692 = vpop.f32.mrb[0].mxu0
      %v1693 = vadd.f32 %v473, %v1692
      %v1694 = vpop.f32.mrb[0].mxu0
      %1695 = vmatprep.mubr.bf16.mxu0 0
      %1696 = vmatmul.mubr.bf16.gmra.mrb[0].mxu0 %v1218
      %v1697 = vpop.f32.mrb[0].mxu0
      %v1698 = vadd.f32 %v473, %v1697
      %v1699 = vpop.f32.mrb[0].mxu0
      %v1700 = vpop.f32.mrb[0].mxu0
      %v1701 = vadd.f32 %v473, %v1700
      %v1702 = vpop.f32.mrb[0].mxu0
      %1703 = vmatprep.mubr.bf16.mxu0 0
      %1704 = vmatmul.mubr.bf16.gmra.mrb[0].mxu0 %v1221
      %v1705 = vpop.f32.mrb[0].mxu0
      %v1706 = vadd.f32 %v473, %v1705
      %v1707 = vpop.f32.mrb[0].mxu0
      %v1708 = vpop.f32.mrb[0].mxu0
      %v1709 = vadd.f32 %v473, %v1708
      %v1710 = vpop.f32.mrb[0].mxu0
      %1711 = vmatprep.mubr.bf16.mxu0 0
      %1712 = vmatmul.mubr.bf16.gmra.mrb[0].mxu0 %v1224
      %v1713 = vpop.f32.mrb[0].mxu0
      %v1714 = vadd.f32 %v473, %v1713
      %v1715 = vpop.f32.mrb[0].mxu0
      %v1716 = vpop.f32.mrb[0].mxu0
      %v1717 = vadd.f32 %v473, %v1716
      %v1718 = vpop.f32.mrb[0].mxu0
      %1719 = vmatprep.mubr.bf16.mxu0 0
      %1720 = vmatmul.mubr.bf16.gmra.mrb[0].mxu0 %v1227
      %v1721 = vpop.f32.mrb[0].mxu0
      %v1722 = vadd.f32 %v473, %v1721
      %v1723 = vpop.f32.mrb[0].mxu0
      %v1724 = vpop.f32.mrb[0].mxu0
      %v1725 = vadd.f32 %v473, %v1724
      %v1726 = vpop.f32.mrb[0].mxu0
      %1727 = vmatprep.mubr.bf16.mxu0 0
      %1728 = vmatmul.mubr.bf16.gmra.mrb[0].mxu0 %v1230
      %v1729 = vpop.f32.mrb[0].mxu0
      %v1730 = vadd.f32 %v473, %v1729
      %v1731 = vpop.f32.mrb[0].mxu0
      %v1732 = vpop.f32.mrb[0].mxu0
      %v1733 = vadd.f32 %v473, %v1732
      %v1734 = vpop.f32.mrb[0].mxu0
      %1735 = vmatprep.mubr.bf16.mxu0 0
      %1736 = vmatmul.mubr.bf16.gmra.mrb[0].mxu0 %v1233
      %v1737 = vpop.f32.mrb[0].mxu0
      %v1738 = vadd.f32 %v473, %v1737
      %v1739 = vpop.f32.mrb[0].mxu0
      %v1740 = vpop.f32.mrb[0].mxu0
      %v1741 = vadd.f32 %v473, %v1740
      %v1742 = vpop.f32.mrb[0].mxu0
      %1743 = vmatprep.mubr.bf16.mxu0 0
      %1744 = vmatmul.mubr.bf16.gmra.mrb[0].mxu0 %v1236
      %v1745 = vpop.f32.mrb[0].mxu0
      %v1746 = vadd.f32 %v473, %v1745
      %v1747 = vpop.f32.mrb[0].mxu0
      %v1748 = vpop.f32.mrb[0].mxu0
      %v1749 = vadd.f32 %v473, %v1748
      %v1750 = vpop.f32.mrb[0].mxu0
      %1751 = vmatprep.mubr.bf16.mxu0 0
      %1752 = vmatmul.mubr.bf16.gmra.mrb[0].mxu0 %v1239
      %v1753 = vpop.f32.mrb[0].mxu0
      %v1754 = vadd.f32 %v473, %v1753
      %v1755 = vpop.f32.mrb[0].mxu0
      %v1756 = vpop.f32.mrb[0].mxu0
      %v1757 = vadd.f32 %v473, %v1756
      %v1758 = vpop.f32.mrb[0].mxu0
      %1759 = vmatprep.mubr.bf16.mxu0 0
      %1760 = vmatmul.mubr.bf16.gmra.mrb[0].mxu0 %v1242
      %v1761 = vpop.f32.mrb[0].mxu0
      %v1762 = vadd.f32 %v473, %v1761
      %v1763 = vpop.f32.mrb[0].mxu0
      %v1764 = vpop.f32.mrb[0].mxu0
      %v1765 = vadd.f32 %v473, %v1764
      %v1766 = vpop.f32.mrb[0].mxu0
      %1767 = vmatprep.mubr.bf16.mxu0 0
      %1768 = vmatmul.mubr.bf16.gmra.mrb[0].mxu0 %v1245
      %v1769 = vpop.f32.mrb[0].mxu0
      %v1770 = vadd.f32 %v473, %v1769
      %v1771 = vpop.f32.mrb[0].mxu0
      %v1772 = vpop.f32.mrb[0].mxu0
      %v1773 = vadd.f32 %v473, %v1772
      %v1774 = vpop.f32.mrb[0].mxu0
      %1775 = vmatprep.mubr.bf16.mxu0 0
      %1776 = vmatmul.mubr.bf16.gmra.mrb[0].mxu0 %v1248
      %v1777 = vpop.f32.mrb[0].mxu0
      %v1778 = vadd.f32 %v473, %v1777
      %v1779 = vpop.f32.mrb[0].mxu0
      %v1780 = vpop.f32.mrb[0].mxu0
      %v1781 = vadd.f32 %v473, %v1780
      %v1782 = vpop.f32.mrb[0].mxu0
      %1783 = vmatprep.mubr.bf16.mxu0 0
      %1784 = vmatmul.mubr.bf16.gmra.mrb[0].mxu0 %v1251
      %v1785 = vpop.f32.mrb[0].mxu0
      %v1786 = vadd.f32 %v473, %v1785
      %v1787 = vpop.f32.mrb[0].mxu0
      %v1788 = vpop.f32.mrb[0].mxu0
      %v1789 = vadd.f32 %v473, %v1788
      %v1790 = vpop.f32.mrb[0].mxu0
      %1791 = vmatprep.mubr.bf16.mxu0 0
      %1792 = vmatmul.mubr.bf16.gmra.mrb[0].mxu0 %v1254
      %v1793 = vpop.f32.mrb[0].mxu0
      %v1794 = vadd.f32 %v473, %v1793
      %v1795 = vpop.f32.mrb[0].mxu0
      %v1796 = vpop.f32.mrb[0].mxu0
      %v1797 = vadd.f32 %v473, %v1796
      %v1798 = vpop.f32.mrb[0].mxu0
      %1799 = vmatprep.mubr.bf16.mxu0 0
      %1800 = vmatmul.mubr.bf16.gmra.mrb[0].mxu0 %v1257
      %v1801 = vpop.f32.mrb[0].mxu0
      %v1802 = vadd.f32 %v473, %v1801
      %v1803 = vpop.f32.mrb[0].mxu0
      %v1804 = vpop.f32.mrb[0].mxu0
      %v1805 = vadd.f32 %v473, %v1804
      %v1806 = vpop.f32.mrb[0].mxu0
      %1807 = vmatprep.mubr.bf16.mxu0 0
      %1808 = vmatmul.mubr.bf16.gmra.mrb[0].mxu0 %v1260
      %v1809 = vpop.f32.mrb[0].mxu0
      %v1810 = vadd.f32 %v473, %v1809
      %v1811 = vpop.f32.mrb[0].mxu0
      %v1812 = vpop.f32.mrb[0].mxu0
      %v1813 = vadd.f32 %v473, %v1812
      %v1814 = vpop.f32.mrb[0].mxu0
      %1815 = vmatprep.mubr.bf16.mxu0 0
      %1816 = vmatmul.mubr.bf16.gmra.mrb[0].mxu0 %v1263
      %v1817 = vpop.f32.mrb[0].mxu0
      %v1818 = vadd.f32 %v473, %v1817
      %v1819 = vpop.f32.mrb[0].mxu0
      %v1820 = vpop.f32.mrb[0].mxu0
      %v1821 = vadd.f32 %v473, %v1820
      %v1822 = vpop.f32.mrb[0].mxu0
      %1823 = vmatprep.mubr.bf16.mxu0 0
      %1824 = vmatmul.mubr.bf16.gmra.mrb[0].mxu0 %v1266
      %v1825 = vpop.f32.mrb[0].mxu0
      %v1826 = vadd.f32 %v473, %v1825
      %v1827 = vpop.f32.mrb[0].mxu0
      %v1828 = vpop.f32.mrb[0].mxu0
      %v1829 = vadd.f32 %v473, %v1828
      %v1830 = vpop.f32.mrb[0].mxu0
      %1831 = vmatprep.mubr.bf16.mxu0 0
      %1832 = vmatmul.mubr.bf16.gmra.mrb[0].mxu0 %v1269
      %v1833 = vpop.f32.mrb[0].mxu0
      %v1834 = vadd.f32 %v473, %v1833
      %v1835 = vpop.f32.mrb[0].mxu0
      %v1836 = vpop.f32.mrb[0].mxu0
      %v1837 = vadd.f32 %v473, %v1836
      %v1838 = vpop.f32.mrb[0].mxu0
      %1839 = vmatprep.mubr.bf16.mxu0 0
      %1840 = vmatmul.mubr.bf16.gmra.mrb[0].mxu0 %v1272
      %v1841 = vpop.f32.mrb[0].mxu0
      %v1842 = vadd.f32 %v473, %v1841
      %v1843 = vpop.f32.mrb[0].mxu0
      %v1844 = vpop.f32.mrb[0].mxu0
      %v1845 = vadd.f32 %v473, %v1844
      %v1846 = vpop.f32.mrb[0].mxu0
      %1847 = vmatprep.mubr.bf16.mxu0 0
      %1848 = vmatmul.mubr.bf16.gmra.mrb[0].mxu0 %v1275
      %v1849 = vpop.f32.mrb[0].mxu0
      %v1850 = vadd.f32 %v473, %v1849
      %v1851 = vpop.f32.mrb[0].mxu0
      %v1852 = vpop.f32.mrb[0].mxu0
      %v1853 = vadd.f32 %v473, %v1852
      %v1854 = vpop.f32.mrb[0].mxu0
      %1855 = vmatprep.mubr.bf16.mxu0 0
      %1856 = vmatmul.mubr.bf16.gmra.mrb[0].mxu0 %v1278
      %v1857 = vpop.f32.mrb[0].mxu0
      %v1858 = vadd.f32 %v473, %v1857
      %v1859 = vpop.f32.mrb[0].mxu0
      %v1860 = vpop.f32.mrb[0].mxu0
      %v1861 = vadd.f32 %v473, %v1860
      %v1862 = vpop.f32.mrb[0].mxu0
      %1863 = vmatprep.mubr.bf16.mxu0 0
      %1864 = vmatmul.mubr.bf16.gmra.mrb[0].mxu0 %v1281
      %v1865 = vpop.f32.mrb[0].mxu0
      %v1866 = vadd.f32 %v473, %v1865
      %v1867 = vpop.f32.mrb[0].mxu0
      %v1868 = vpop.f32.mrb[0].mxu0
      %v1869 = vadd.f32 %v473, %v1868
      %v1870 = vpop.f32.mrb[0].mxu0
      %1871 = vmatprep.mubr.bf16.mxu0 0
      %1872 = vmatmul.mubr.bf16.gmra.mrb[0].mxu0 %v1284
      %v1873 = vpop.f32.mrb[0].mxu0
      %v1874 = vadd.f32 %v473, %v1873
      %v1875 = vpop.f32.mrb[0].mxu0
      %v1876 = vpop.f32.mrb[0].mxu0
      %v1877 = vadd.f32 %v473, %v1876
      %v1878 = vpop.f32.mrb[0].mxu0
      %1879 = vmatprep.mubr.bf16.mxu0 0
      %1880 = vmatmul.mubr.bf16.gmra.mrb[0].mxu0 %v1287
      %v1881 = vpop.f32.mrb[0].mxu0
      %v1882 = vadd.f32 %v473, %v1881
      %v1883 = vpop.f32.mrb[0].mxu0
      %v1884 = vpop.f32.mrb[0].mxu0
      %v1885 = vadd.f32 %v473, %v1884
      %v1886 = vpop.f32.mrb[0].mxu0
      %1887 = vmatprep.mubr.bf16.mxu0 0
      %1888 = vmatmul.mubr.bf16.gmra.mrb[0].mxu0 %v1290
      %v1889 = vpop.f32.mrb[0].mxu0
      %v1890 = vadd.f32 %v473, %v1889
      %v1891 = vpop.f32.mrb[0].mxu0
      %v1892 = vpop.f32.mrb[0].mxu0
      %v1893 = vadd.f32 %v473, %v1892
      %v1894 = vpop.f32.mrb[0].mxu0
      %1895 = vmatprep.mubr.bf16.mxu0 0
      %1896 = vmatmul.mubr.bf16.gmra.mrb[0].mxu0 %v1293
      %v1897 = vpop.f32.mrb[0].mxu0
      %v1898 = vadd.f32 %v473, %v1897
      %v1899 = vpop.f32.mrb[0].mxu0
      %v1900 = vpop.f32.mrb[0].mxu0
      %v1901 = vadd.f32 %v473, %v1900
      %v1902 = vpop.f32.mrb[0].mxu0
      %1903 = vmatprep.mubr.bf16.mxu0 0
      %1904 = vmatmul.mubr.bf16.gmra.mrb[0].mxu0 %v1296
      %v1905 = vpop.f32.mrb[0].mxu0
      %v1906 = vadd.f32 %v473, %v1905
      %v1907 = vpop.f32.mrb[0].mxu0
      %v1908 = vpop.f32.mrb[0].mxu0
      %v1909 = vadd.f32 %v473, %v1908
      %v1910 = vpop.f32.mrb[0].mxu0
      %1911 = vmatprep.mubr.bf16.mxu0 0
      %1912 = vmatmul.mubr.bf16.gmra.mrb[0].mxu0 %v1299
      %v1913 = vpop.f32.mrb[0].mxu0
      %v1914 = vadd.f32 %v473, %v1913
      %v1915 = vpop.f32.mrb[0].mxu0
      %v1916 = vpop.f32.mrb[0].mxu0
      %v1917 = vadd.f32 %v473, %v1916
      %v1918 = vpop.f32.mrb[0].mxu0
      %1919 = vmatprep.mubr.bf16.mxu0 0
      %1920 = vmatmul.mubr.bf16.gmra.mrb[0].mxu0 %v1302
      %v1921 = vpop.f32.mrb[0].mxu0
      %v1922 = vadd.f32 %v473, %v1921
      %v1923 = vpop.f32.mrb[0].mxu0
      %v1924 = vpop.f32.mrb[0].mxu0
      %v1925 = vadd.f32 %v473, %v1924
      %v1926 = vpop.f32.mrb[0].mxu0
      %1927 = vmatprep.mubr.bf16.mxu0 0
      %1928 = vmatmul.mubr.bf16.gmra.mrb[0].mxu0 %v1305
      %v1929 = vpop.f32.mrb[0].mxu0
      %v1930 = vadd.f32 %v473, %v1929
      %v1931 = vpop.f32.mrb[0].mxu0
      %v1932 = vpop.f32.mrb[0].mxu0
      %v1933 = vadd.f32 %v473, %v1932
      %v1934 = vpop.f32.mrb[0].mxu0
      %1935 = vmatprep.mubr.bf16.mxu0 0
      %1936 = vmatmul.mubr.bf16.gmra.mrb[0].mxu0 %v1308
      %v1937 = vpop.f32.mrb[0].mxu0
      %v1938 = vadd.f32 %v473, %v1937
      %v1939 = vpop.f32.mrb[0].mxu0
      %v1940 = vpop.f32.mrb[0].mxu0
      %v1941 = vadd.f32 %v473, %v1940
      %v1942 = vpop.f32.mrb[0].mxu0
      %1943 = vmatprep.mubr.bf16.mxu0 0
      %1944 = vmatmul.mubr.bf16.gmra.mrb[0].mxu0 %v1311
      %v1945 = vpop.f32.mrb[0].mxu0
      %v1946 = vadd.f32 %v473, %v1945
      %v1947 = vpop.f32.mrb[0].mxu0
      %v1948 = vpop.f32.mrb[0].mxu0
      %v1949 = vadd.f32 %v473, %v1948
      %v1950 = vpop.f32.mrb[0].mxu0
      %1951 = vmatprep.mubr.bf16.mxu0 0
      %1952 = vmatmul.mubr.bf16.gmra.mrb[0].mxu0 %v1314
      %v1953 = vpop.f32.mrb[0].mxu0
      %v1954 = vadd.f32 %v473, %v1953
      %v1955 = vpop.f32.mrb[0].mxu0
      %v1956 = vpop.f32.mrb[0].mxu0
      %v1957 = vadd.f32 %v473, %v1956
      %v1958 = vpop.f32.mrb[0].mxu0
      %1959 = vmatprep.mubr.bf16.mxu0 0
      %1960 = vmatmul.mubr.bf16.gmra.mrb[0].mxu0 %v1317
      %v1961 = vpop.f32.mrb[0].mxu0
      %v1962 = vadd.f32 %v473, %v1961
      %v1963 = vpop.f32.mrb[0].mxu0
      %v1964 = vpop.f32.mrb[0].mxu0
      %v1965 = vadd.f32 %v473, %v1964
      %v1966 = vpop.f32.mrb[0].mxu0
      %1967 = vmatprep.mubr.bf16.mxu0 0
      %1968 = vmatmul.mubr.bf16.gmra.mrb[0].mxu0 %v1320
      %v1969 = vpop.f32.mrb[0].mxu0
      %v1970 = vadd.f32 %v473, %v1969
      %v1971 = vpop.f32.mrb[0].mxu0
      %v1972 = vpop.f32.mrb[0].mxu0
      %v1973 = vadd.f32 %v473, %v1972
      %v1974 = vpop.f32.mrb[0].mxu0
      %1975 = vmatprep.mubr.bf16.mxu0 0
      %1976 = vmatmul.mubr.bf16.gmra.mrb[0].mxu0 %v1323
      %v1977 = vpop.f32.mrb[0].mxu0
      %v1978 = vadd.f32 %v473, %v1977
      %v1979 = vpop.f32.mrb[0].mxu0
      %v1980 = vpop.f32.mrb[0].mxu0
      %v1981 = vadd.f32 %v473, %v1980
      %v1982 = vpop.f32.mrb[0].mxu0
      %1983 = vmatprep.mubr.bf16.mxu0 0
      %1984 = vmatmul.mubr.bf16.gmra.mrb[0].mxu0 %v1326
      %v1985 = vpop.f32.mrb[0].mxu0
      %v1986 = vadd.f32 %v473, %v1985
      %v1987 = vpop.f32.mrb[0].mxu0
      %v1988 = vpop.f32.mrb[0].mxu0
      %v1989 = vadd.f32 %v473, %v1988
      %v1990 = vpop.f32.mrb[0].mxu0
      %1991 = vmatprep.mubr.bf16.mxu0 0
      %1992 = vmatmul.mubr.bf16.gmra.mrb[0].mxu0 %v1329
      %v1993 = vpop.f32.mrb[0].mxu0
      %v1994 = vadd.f32 %v473, %v1993
      %v1995 = vpop.f32.mrb[0].mxu0
      %v1996 = vpop.f32.mrb[0].mxu0
      %v1997 = vadd.f32 %v473, %v1996
      %v1998 = vpop.f32.mrb[0].mxu0
      %1999 = vmatprep.mubr.bf16.mxu0 0
      %2000 = vmatmul.mubr.bf16.gmra.mrb[0].mxu0 %v1332
      %v2001 = vpop.f32.mrb[0].mxu0
      %v2002 = vadd.f32 %v473, %v2001
      %v2003 = vpop.f32.mrb[0].mxu0
      %v2004 = vpop.f32.mrb[0].mxu0
      %v2005 = vadd.f32 %v473, %v2004
      %v2006 = vpop.f32.mrb[0].mxu0
      %2007 = vmatprep.mubr.bf16.mxu0 0
      %2008 = vmatmul.mubr.bf16.gmra.mrb[0].mxu0 %v1335
      %v2009 = vpop.f32.mrb[0].mxu0
      %v2010 = vadd.f32 %v473, %v2009
      %v2011 = vpop.f32.mrb[0].mxu0
      %v2012 = vpop.f32.mrb[0].mxu0
      %v2013 = vadd.f32 %v473, %v2012
      %v2014 = vpop.f32.mrb[0].mxu0
      %2015 = vmatprep.mubr.bf16.mxu0 0
      %2016 = vmatmul.mubr.bf16.gmra.mrb[0].mxu0 %v1338
      %v2017 = vpop.f32.mrb[0].mxu0
      %v2018 = vadd.f32 %v473, %v2017
      %v2019 = vpop.f32.mrb[0].mxu0
      %v2020 = vpop.f32.mrb[0].mxu0
      %v2021 = vadd.f32 %v473, %v2020
      %v2022 = vpop.f32.mrb[0].mxu0
      %2023 = vmatprep.mubr.bf16.mxu0 0
      %2024 = vmatmul.mubr.bf16.gmra.mrb[0].mxu0 %v1341
      %v2025 = vpop.f32.mrb[0].mxu0
      %v2026 = vadd.f32 %v473, %v2025
      %v2027 = vpop.f32.mrb[0].mxu0
      %v2028 = vpop.f32.mrb[0].mxu0
      %v2029 = vadd.f32 %v473, %v2028
      %v2030 = vpop.f32.mrb[0].mxu0
      %2031 = vmatprep.mubr.bf16.mxu0 0
      %2032 = vmatmul.mubr.bf16.gmra.mrb[0].mxu0 %v1344
      %v2033 = vpop.f32.mrb[0].mxu0
      %v2034 = vadd.f32 %v473, %v2033
      %v2035 = vpop.f32.mrb[0].mxu0
      %v2036 = vpop.f32.mrb[0].mxu0
      %v2037 = vadd.f32 %v473, %v2036
      %v2038 = vpop.f32.mrb[0].mxu0
      %2039 = vmatprep.mubr.bf16.mxu0 0
      %2040 = vmatmul.mubr.bf16.gmra.mrb[0].mxu0 %v1347
      %v2041 = vpop.f32.mrb[0].mxu0
      %v2042 = vadd.f32 %v473, %v2041
      %v2043 = vpop.f32.mrb[0].mxu0
      %v2044 = vpop.f32.mrb[0].mxu0
      %v2045 = vadd.f32 %v473, %v2044
      %v2046 = vpop.f32.mrb[0].mxu0
      %2047 = vmatprep.mubr.bf16.mxu0 0
      %2048 = vmatmul.mubr.bf16.gmra.mrb[0].mxu0 %v1350
      %v2049 = vpop.f32.mrb[0].mxu0
      %v2050 = vadd.f32 %v473, %v2049
      %v2051 = vpop.f32.mrb[0].mxu0
      %v2052 = vpop.f32.mrb[0].mxu0
      %v2053 = vadd.f32 %v473, %v2052
      %v2054 = vpop.f32.mrb[0].mxu0
      %2055 = vmatprep.mubr.bf16.mxu0 0
      %2056 = vmatmul.mubr.bf16.gmra.mrb[0].mxu0 %v1353
      %v2057 = vpop.f32.mrb[0].mxu0
      %v2058 = vadd.f32 %v473, %v2057
      %v2059 = vpop.f32.mrb[0].mxu0
      %v2060 = vpop.f32.mrb[0].mxu0
      %v2061 = vadd.f32 %v473, %v2060
      %v2062 = vpop.f32.mrb[0].mxu0
      %2063 = vmatprep.mubr.bf16.mxu0 0
      %2064 = vmatmul.mubr.bf16.gmra.mrb[0].mxu0 %v1356
      %v2065 = vpop.f32.mrb[0].mxu0
      %v2066 = vadd.f32 %v473, %v2065
      %v2067 = vpop.f32.mrb[0].mxu0
      %v2068 = vpop.f32.mrb[0].mxu0
      %v2069 = vadd.f32 %v473, %v2068
      %v2070 = vpop.f32.mrb[0].mxu0
      %2071 = vmatprep.mubr.bf16.mxu0 0
      %2072 = vmatmul.mubr.bf16.gmra.mrb[0].mxu0 %v1359
      %v2073 = vpop.f32.mrb[0].mxu0
      %v2074 = vadd.f32 %v473, %v2073
      %v2075 = vpop.f32.mrb[0].mxu0
      %v2076 = vpop.f32.mrb[0].mxu0
      %v2077 = vadd.f32 %v473, %v2076
      %v2078 = vpop.f32.mrb[0].mxu0
      %2079 = vmatprep.mubr.bf16.mxu0 0
      %2080 = vmatmul.mubr.bf16.gmra.mrb[0].mxu0 %v1362
      %v2081 = vpop.f32.mrb[0].mxu0
      %v2082 = vadd.f32 %v473, %v2081
      %v2083 = vpop.f32.mrb[0].mxu0
      %v2084 = vpop.f32.mrb[0].mxu0
      %v2085 = vadd.f32 %v473, %v2084
      %v2086 = vpop.f32.mrb[0].mxu0
      %2087 = vmatprep.mubr.bf16.mxu0 0
      %2088 = vmatmul.mubr.bf16.gmra.mrb[0].mxu0 %v1365
      %v2089 = vpop.f32.mrb[0].mxu0
      %v2090 = vadd.f32 %v473, %v2089
      %v2091 = vpop.f32.mrb[0].mxu0
      %v2092 = vpop.f32.mrb[0].mxu0
      %v2093 = vadd.f32 %v473, %v2092
      %v2094 = vpop.f32.mrb[0].mxu0
      %2095 = vmatprep.mubr.bf16.mxu0 0
      %2096 = vmatmul.mubr.bf16.gmra.mrb[0].mxu0 %v1368
      %v2097 = vpop.f32.mrb[0].mxu0
      %v2098 = vadd.f32 %v473, %v2097
      %v2099 = vpop.f32.mrb[0].mxu0
      %v2100 = vpop.f32.mrb[0].mxu0
      %v2101 = vadd.f32 %v473, %v2100
      %v2102 = vpop.f32.mrb[0].mxu0
      %2103 = vmatprep.mubr.bf16.mxu0 0
      %2104 = vmatmul.mubr.bf16.gmra.mrb[0].mxu0 %v1371
      %v2105 = vpop.f32.mrb[0].mxu0
      %v2106 = vadd.f32 %v473, %v2105
      %v2107 = vpop.f32.mrb[0].mxu0
      %v2108 = vpop.f32.mrb[0].mxu0
      %v2109 = vadd.f32 %v473, %v2108
      %v2110 = vpop.f32.mrb[0].mxu0
      %2111 = vmatprep.mubr.bf16.mxu0 0
      %2112 = vmatmul.mubr.bf16.gmra.mrb[0].mxu0 %v1374
      %v2113 = vpop.f32.mrb[0].mxu0
      %v2114 = vadd.f32 %v473, %v2113
      %v2115 = vpop.f32.mrb[0].mxu0
      %v2116 = vpop.f32.mrb[0].mxu0
      %v2117 = vadd.f32 %v473, %v2116
      %v2118 = vpop.f32.mrb[0].mxu0
      %2119 = vmatprep.mubr.bf16.mxu0 0
      %2120 = vmatmul.mubr.bf16.gmra.mrb[0].mxu0 %v1377
      %v2121 = vpop.f32.mrb[0].mxu0
      %v2122 = vadd.f32 %v473, %v2121
      %v2123 = vpop.f32.mrb[0].mxu0
      %v2124 = vpop.f32.mrb[0].mxu0
      %v2125 = vadd.f32 %v473, %v2124
      %v2126 = vpop.f32.mrb[0].mxu0
      %2127 = vmatprep.mubr.bf16.mxu0 0
      %2128 = vmatmul.mubr.bf16.gmra.mrb[0].mxu0 %v1380
      %v2129 = vpop.f32.mrb[0].mxu0
      %v2130 = vadd.f32 %v473, %v2129
      %v2131 = vpop.f32.mrb[0].mxu0
      %v2132 = vpop.f32.mrb[0].mxu0
      %v2133 = vadd.f32 %v473, %v2132
      %v2134 = vpop.f32.mrb[0].mxu0
      %2135 = vmatprep.mubr.bf16.mxu0 0
      %2136 = vmatmul.mubr.bf16.gmra.mrb[0].mxu0 %v1383
      %v2137 = vpop.f32.mrb[0].mxu0
      %v2138 = vadd.f32 %v473, %v2137
      %v2139 = vpop.f32.mrb[0].mxu0
      %v2140 = vpop.f32.mrb[0].mxu0
      %v2141 = vadd.f32 %v473, %v2140
      %v2142 = vpop.f32.mrb[0].mxu0
      %2143 = vmatprep.mubr.bf16.mxu0 0
      %2144 = vmatmul.mubr.bf16.gmra.mrb[0].mxu0 %v1386
      %v2145 = vpop.f32.mrb[0].mxu0
      %v2146 = vadd.f32 %v473, %v2145
      %v2147 = vpop.f32.mrb[0].mxu0
      %v2148 = vpop.f32.mrb[0].mxu0
      %v2149 = vadd.f32 %v473, %v2148
      %v2150 = vpop.f32.mrb[0].mxu0
      %2151 = vmatprep.mubr.bf16.mxu0 0
      %2152 = vmatmul.mubr.bf16.gmra.mrb[0].mxu0 %v1389
      %v2153 = vpop.f32.mrb[0].mxu0
      %v2154 = vadd.f32 %v473, %v2153
      %v2155 = vpop.f32.mrb[0].mxu0
      %v2156 = vpop.f32.mrb[0].mxu0
      %v2157 = vadd.f32 %v473, %v2156
      %v2158 = vpop.f32.mrb[0].mxu0
      %2159 = vmatprep.mubr.bf16.mxu0 0
      %2160 = vmatmul.mubr.bf16.gmra.mrb[0].mxu0 %v1392
      %v2161 = vpop.f32.mrb[0].mxu0
      %v2162 = vadd.f32 %v473, %v2161
      %v2163 = vpop.f32.mrb[0].mxu0
      %v2164 = vpop.f32.mrb[0].mxu0
      %v2165 = vadd.f32 %v473, %v2164
      %v2166 = vpop.f32.mrb[0].mxu0
      %2167 = vmatprep.mubr.bf16.mxu0 0
      %2168 = vmatmul.mubr.bf16.gmra.mrb[0].mxu0 %v1395
      %v2169 = vpop.f32.mrb[0].mxu0
      %v2170 = vadd.f32 %v473, %v2169
      %v2171 = vpop.f32.mrb[0].mxu0
      %v2172 = vpop.f32.mrb[0].mxu0
      %v2173 = vadd.f32 %v473, %v2172
      %v2174 = vpop.f32.mrb[0].mxu0
      %2175 = vmatprep.mubr.bf16.mxu0 0
      %2176 = vmatmul.mubr.bf16.gmra.mrb[0].mxu0 %v1398
      %v2177 = vpop.f32.mrb[0].mxu0
      %v2178 = vadd.f32 %v473, %v2177
      %v2179 = vpop.f32.mrb[0].mxu0
      %v2180 = vpop.f32.mrb[0].mxu0
      %v2181 = vadd.f32 %v473, %v2180
      %v2182 = vpop.f32.mrb[0].mxu0
      %2183 = vmatprep.mubr.bf16.mxu0 0
      %2184 = vmatmul.mubr.bf16.gmra.mrb[0].mxu0 %v1401
      %v2185 = vpop.f32.mrb[0].mxu0
      %v2186 = vadd.f32 %v473, %v2185
      %v2187 = vpop.f32.mrb[0].mxu0
      %v2188 = vpop.f32.mrb[0].mxu0
      %v2189 = vadd.f32 %v473, %v2188
      %v2190 = vpop.f32.mrb[0].mxu0
      %2191 = vmatprep.mubr.bf16.mxu0 0
      %2192 = vmatmul.mubr.bf16.gmra.mrb[0].mxu0 %v1404
      %v2193 = vpop.f32.mrb[0].mxu0
      %v2194 = vadd.f32 %v473, %v2193
      %v2195 = vpop.f32.mrb[0].mxu0
      %v2196 = vpop.f32.mrb[0].mxu0
      %v2197 = vadd.f32 %v473, %v2196
      %v2198 = vpop.f32.mrb[0].mxu0
      %2199 = vmatprep.mubr.bf16.mxu0 0
      %2200 = vmatmul.mubr.bf16.gmra.mrb[0].mxu0 %v1407
      %v2201 = vpop.f32.mrb[0].mxu0
      %v2202 = vadd.f32 %v473, %v2201
      %v2203 = vpop.f32.mrb[0].mxu0
      %v2204 = vpop.f32.mrb[0].mxu0
      %v2205 = vadd.f32 %v473, %v2204
      %v2206 = vpop.f32.mrb[0].mxu0
      %2207 = vmatprep.mubr.bf16.mxu0 0
      %2208 = vmatmul.mubr.bf16.gmra.mrb[0].mxu0 %v1410
      %v2209 = vpop.f32.mrb[0].mxu0
      %v2210 = vadd.f32 %v473, %v2209
      %v2211 = vpop.f32.mrb[0].mxu0
      %v2212 = vpop.f32.mrb[0].mxu0
      %v2213 = vadd.f32 %v473, %v2212
      %v2214 = vpop.f32.mrb[0].mxu0
      %2215 = vmatprep.mubr.bf16.mxu0 0
      %2216 = vmatmul.mubr.bf16.gmra.mrb[0].mxu0 %v1413
      %v2217 = vpop.f32.mrb[0].mxu0
      %v2218 = vadd.f32 %v473, %v2217
      %v2219 = vpop.f32.mrb[0].mxu0
      %v2220 = vpop.f32.mrb[0].mxu0
      %v2221 = vadd.f32 %v473, %v2220
      %v2222 = vpop.f32.mrb[0].mxu0
      %2223 = vmatprep.mubr.bf16.mxu0 0
      %2224 = vmatmul.mubr.bf16.gmra.mrb[0].mxu0 %v1416
      %v2225 = vpop.f32.mrb[0].mxu0
      %v2226 = vadd.f32 %v473, %v2225
      %v2227 = vpop.f32.mrb[0].mxu0
      %v2228 = vpop.f32.mrb[0].mxu0
      %v2229 = vadd.f32 %v473, %v2228
      %v2230 = vpop.f32.mrb[0].mxu0
      %2231 = vmatprep.mubr.bf16.mxu0 0
      %2232 = vmatmul.mubr.bf16.gmra.mrb[0].mxu0 %v1419
      %v2233 = vpop.f32.mrb[0].mxu0
      %v2234 = vadd.f32 %v473, %v2233
      %v2235 = vpop.f32.mrb[0].mxu0
      %v2236 = vpop.f32.mrb[0].mxu0
      %v2237 = vadd.f32 %v473, %v2236
      %v2238 = vpop.f32.mrb[0].mxu0
      %2239 = vmatprep.mubr.bf16.mxu0 0
      %2240 = vmatmul.mubr.bf16.gmra.mrb[0].mxu0 %v1422
      %v2241 = vpop.f32.mrb[0].mxu0
      %v2242 = vadd.f32 %v473, %v2241
      %v2243 = vpop.f32.mrb[0].mxu0
      %v2244 = vpop.f32.mrb[0].mxu0
      %v2245 = vadd.f32 %v473, %v2244
      %v2246 = vpop.f32.mrb[0].mxu0
      %2247 = vmatprep.mubr.bf16.mxu0 0
      %2248 = vmatmul.mubr.bf16.gmra.mrb[0].mxu0 %v1425
      %v2249 = vpop.f32.mrb[0].mxu0
      %v2250 = vadd.f32 %v473, %v2249
      %v2251 = vpop.f32.mrb[0].mxu0
      %v2252 = vpop.f32.mrb[0].mxu0
      %v2253 = vadd.f32 %v473, %v2252
      %v2254 = vpop.f32.mrb[0].mxu0
      %2255 = vmatprep.mubr.bf16.mxu0 0
      %2256 = vmatmul.mubr.bf16.gmra.mrb[0].mxu0 %v1428
      %v2257 = vpop.f32.mrb[0].mxu0
      %v2258 = vadd.f32 %v473, %v2257
      %v2259 = vpop.f32.mrb[0].mxu0
      %v2260 = vpop.f32.mrb[0].mxu0
      %v2261 = vadd.f32 %v473, %v2260
      %v2262 = vpop.f32.mrb[0].mxu0
      %2263 = vmatprep.mubr.bf16.mxu0 0
      %2264 = vmatmul.mubr.bf16.gmra.mrb[0].mxu0 %v1431
      %v2265 = vpop.f32.mrb[0].mxu0
      %v2266 = vadd.f32 %v473, %v2265
      %v2267 = vpop.f32.mrb[0].mxu0
      %v2268 = vpop.f32.mrb[0].mxu0
      %v2269 = vadd.f32 %v473, %v2268
      %v2270 = vpop.f32.mrb[0].mxu0
      %2271 = vmatprep.mubr.bf16.mxu0 0
      %2272 = vmatmul.mubr.bf16.gmra.mrb[0].mxu0 %v1434
      %v2273 = vpop.f32.mrb[0].mxu0
      %v2274 = vadd.f32 %v473, %v2273
      %v2275 = vpop.f32.mrb[0].mxu0
      %v2276 = vpop.f32.mrb[0].mxu0
      %v2277 = vadd.f32 %v473, %v2276
      %v2278 = vpop.f32.mrb[0].mxu0
      %2279 = vmatprep.mubr.bf16.mxu0 0
      %2280 = vmatmul.mubr.bf16.gmra.mrb[0].mxu0 %v1437
      %v2281 = vpop.f32.mrb[0].mxu0
      %v2282 = vadd.f32 %v473, %v2281
      %v2283 = vpop.f32.mrb[0].mxu0
      %v2284 = vpop.f32.mrb[0].mxu0
      %v2285 = vadd.f32 %v473, %v2284
      %v2286 = vpop.f32.mrb[0].mxu0
      %2287 = vmatprep.mubr.bf16.mxu0 0
      %2288 = vmatmul.mubr.bf16.gmra.mrb[0].mxu0 %v1440
      %v2289 = vpop.f32.mrb[0].mxu0
      %v2290 = vadd.f32 %v473, %v2289
      %v2291 = vpop.f32.mrb[0].mxu0
      %v2292 = vpop.f32.mrb[0].mxu0
      %v2293 = vadd.f32 %v473, %v2292
      %v2294 = vpop.f32.mrb[0].mxu0
      %2295 = vmatprep.mubr.bf16.mxu0 0
      %2296 = vmatmul.mubr.bf16.gmra.mrb[0].mxu0 %v1443
      %v2297 = vpop.f32.mrb[0].mxu0
      %v2298 = vadd.f32 %v473, %v2297
      %v2299 = vpop.f32.mrb[0].mxu0
      %v2300 = vpop.f32.mrb[0].mxu0
      %v2301 = vadd.f32 %v473, %v2300
      %v2302 = vpop.f32.mrb[0].mxu0
      %2303 = vmatprep.mubr.bf16.mxu0 0
      %2304 = vmatmul.mubr.bf16.gmra.mrb[0].mxu0 %v1446
      %v2305 = vpop.f32.mrb[0].mxu0
      %v2306 = vadd.f32 %v473, %v2305
      %v2307 = vpop.f32.mrb[0].mxu0
      %v2308 = vpop.f32.mrb[0].mxu0
      %v2309 = vadd.f32 %v473, %v2308
      %v2310 = vpop.f32.mrb[0].mxu0
      %2311 = vmatprep.mubr.bf16.mxu0 0
      %2312 = vmatmul.mubr.bf16.gmra.mrb[0].mxu0 %v1449
      %v2313 = vpop.f32.mrb[0].mxu0
      %v2314 = vadd.f32 %v473, %v2313
      %v2315 = vpop.f32.mrb[0].mxu0
      %v2316 = vpop.f32.mrb[0].mxu0
      %v2317 = vadd.f32 %v473, %v2316
      %v2318 = vpop.f32.mrb[0].mxu0
      %2319 = vmatprep.mubr.bf16.mxu0 0
      %2320 = vmatmul.mubr.bf16.gmra.mrb[0].mxu0 %v1452
      %v2321 = vpop.f32.mrb[0].mxu0
      %v2322 = vadd.f32 %v473, %v2321
      %v2323 = vpop.f32.mrb[0].mxu0
      %v2324 = vpop.f32.mrb[0].mxu0
      %v2325 = vadd.f32 %v473, %v2324
      %v2326 = vpop.f32.mrb[0].mxu0
      %2327 = vmatprep.mubr.bf16.mxu0 0
      %2328 = vmatmul.mubr.bf16.gmra.mrb[0].mxu0 %v1455
      %v2329 = vpop.f32.mrb[0].mxu0
      %v2330 = vadd.f32 %v473, %v2329
      %v2331 = vpop.f32.mrb[0].mxu0
      %v2332 = vpop.f32.mrb[0].mxu0
      %v2333 = vadd.f32 %v473, %v2332
      %v2334 = vpop.f32.mrb[0].mxu0
      %2335 = vmatprep.mubr.bf16.mxu0 0
      %2336 = vmatmul.mubr.bf16.gmra.mrb[0].mxu0 %v1458
      %v2337 = vpop.f32.mrb[0].mxu0
      %v2338 = vadd.f32 %v473, %v2337
      %v2339 = vpop.f32.mrb[0].mxu0
      %v2340 = vpop.f32.mrb[0].mxu0
      %v2341 = vadd.f32 %v473, %v2340
      %v2342 = vpop.f32.mrb[0].mxu0
      %2343 = vmatprep.mubr.bf16.mxu0 0
      %2344 = vmatmul.mubr.bf16.gmra.mrb[0].mxu0 %v1461
      %v2345 = vpop.f32.mrb[0].mxu0
      %v2346 = vadd.f32 %v473, %v2345
      %v2347 = vpop.f32.mrb[0].mxu0
      %v2348 = vpop.f32.mrb[0].mxu0
      %v2349 = vadd.f32 %v473, %v2348
      %v2350 = vpop.f32.mrb[0].mxu0
      %2351 = vmatprep.mubr.bf16.mxu0 0
      %2352 = vmatmul.mubr.bf16.gmra.mrb[0].mxu0 %v1464
      %v2353 = vpop.f32.mrb[0].mxu0
      %v2354 = vadd.f32 %v473, %v2353
      %v2355 = vpop.f32.mrb[0].mxu0
      %v2356 = vpop.f32.mrb[0].mxu0
      %v2357 = vadd.f32 %v473, %v2356
      %v2358 = vpop.f32.mrb[0].mxu0
      %2359 = vmatprep.mubr.bf16.mxu0 0
      %2360 = vmatmul.mubr.bf16.gmra.mrb[0].mxu0 %v1467
      %v2361 = vpop.f32.mrb[0].mxu0
      %v2362 = vadd.f32 %v473, %v2361
      %v2363 = vpop.f32.mrb[0].mxu0
      %v2364 = vpop.f32.mrb[0].mxu0
      %v2365 = vadd.f32 %v473, %v2364
      %v2366 = vpop.f32.mrb[0].mxu0
      %2367 = vmatprep.mubr.bf16.mxu0 0
      %2368 = vmatmul.mubr.bf16.gmra.mrb[0].mxu0 %v1470
      %v2369 = vpop.f32.mrb[0].mxu0
      %v2370 = vadd.f32 %v473, %v2369
      %v2371 = vpop.f32.mrb[0].mxu0
      %v2372 = vpop.f32.mrb[0].mxu0
      %v2373 = vadd.f32 %v473, %v2372
      %v2374 = vpop.f32.mrb[0].mxu0
      %2375 = vmatprep.mubr.bf16.mxu0 0
      %2376 = vmatmul.mubr.bf16.gmra.mrb[0].mxu0 %v1473
      %v2377 = vpop.f32.mrb[0].mxu0
      %v2378 = vadd.f32 %v473, %v2377
      %v2379 = vpop.f32.mrb[0].mxu0
      %v2380 = vpop.f32.mrb[0].mxu0
      %v2381 = vadd.f32 %v473, %v2380
      %v2382 = vpop.f32.mrb[0].mxu0
      %2383 = vmatprep.mubr.bf16.mxu0 0
      %2384 = vmatmul.mubr.bf16.gmra.mrb[0].mxu0 %v1476
      %v2385 = vpop.f32.mrb[0].mxu0
      %v2386 = vadd.f32 %v473, %v2385
      %v2387 = vpop.f32.mrb[0].mxu0
      %v2388 = vpop.f32.mrb[0].mxu0
      %v2389 = vadd.f32 %v473, %v2388
      %v2390 = vpop.f32.mrb[0].mxu0
      %2391 = vmatprep.mubr.bf16.mxu0 0
      %2392 = vmatmul.mubr.bf16.gmra.mrb[0].mxu0 %v1479
      %v2393 = vpop.f32.mrb[0].mxu0
      %v2394 = vadd.f32 %v473, %v2393
      %v2395 = vpop.f32.mrb[0].mxu0
      %v2396 = vpop.f32.mrb[0].mxu0
      %v2397 = vadd.f32 %v473, %v2396
      %v2398 = vpop.f32.mrb[0].mxu0
      %2399 = vmatprep.mubr.bf16.mxu0 0
      %2400 = vmatmul.mubr.bf16.gmra.mrb[0].mxu0 %v1482
      %v2401 = vpop.f32.mrb[0].mxu0
      %v2402 = vadd.f32 %v473, %v2401
      %v2403 = vpop.f32.mrb[0].mxu0
      %v2404 = vpop.f32.mrb[0].mxu0
      %v2405 = vadd.f32 %v473, %v2404
      %v2406 = vpop.f32.mrb[0].mxu0
      %2407 = vmatprep.mubr.bf16.mxu0 0
      %2408 = vmatmul.mubr.bf16.gmra.mrb[0].mxu0 %v1485
      %v2409 = vpop.f32.mrb[0].mxu0
      %v2410 = vadd.f32 %v473, %v2409
      %v2411 = vpop.f32.mrb[0].mxu0
      %v2412 = vpop.f32.mrb[0].mxu0
      %v2413 = vadd.f32 %v473, %v2412
      %v2414 = vpop.f32.mrb[0].mxu0
      %2415 = vmatprep.mubr.bf16.mxu0 0
      %2416 = vmatmul.mubr.bf16.gmra.mrb[0].mxu0 %v1488
      %v2417 = vpop.f32.mrb[0].mxu0
      %v2418 = vadd.f32 %v473, %v2417
      %v2419 = vpop.f32.mrb[0].mxu0
      %v2420 = vpop.f32.mrb[0].mxu0
      %v2421 = vadd.f32 %v473, %v2420
      %v2422 = vpop.f32.mrb[0].mxu0
      %2423 = vmatprep.mubr.bf16.mxu0 0
      %2424 = vmatmul.mubr.bf16.gmra.mrb[0].mxu0 %v1491
      %v2425 = vpop.f32.mrb[0].mxu0
      %v2426 = vadd.f32 %v473, %v2425
      %v2427 = vpop.f32.mrb[0].mxu0
      %v2428 = vpop.f32.mrb[0].mxu0
      %v2429 = vadd.f32 %v473, %v2428
      %v2430 = vpop.f32.mrb[0].mxu0
      %2431 = vmatprep.mubr.bf16.mxu0 0
      %2432 = vmatmul.mubr.bf16.gmra.mrb[0].mxu0 %v1494
      %v2433 = vpop.f32.mrb[0].mxu0
      %v2434 = vadd.f32 %v473, %v2433
      %v2435 = vpop.f32.mrb[0].mxu0
      %v2436 = vpop.f32.mrb[0].mxu0
      %v2437 = vadd.f32 %v473, %v2436
      %v2438 = vpop.f32.mrb[0].mxu0
      %2439 = vmatprep.mubr.bf16.mxu0 0
      %2440 = vmatmul.mubr.bf16.gmra.mrb[0].mxu0 %v1497
      %v2441 = vpop.f32.mrb[0].mxu0
      %v2442 = vadd.f32 %v473, %v2441
      %v2443 = vpop.f32.mrb[0].mxu0
      %v2444 = vpop.f32.mrb[0].mxu0
      %v2445 = vadd.f32 %v473, %v2444
      %v2446 = vpop.f32.mrb[0].mxu0
      %2447 = vmatprep.mubr.bf16.mxu0 0
      %2448 = vmatmul.mubr.bf16.gmra.mrb[0].mxu0 %v1500
      %v2449 = vpop.f32.mrb[0].mxu0
      %v2450 = vadd.f32 %v473, %v2449
      %v2451 = vpop.f32.mrb[0].mxu0
      %v2452 = vpop.f32.mrb[0].mxu0
      %v2453 = vadd.f32 %v473, %v2452
      %v2454 = vpop.f32.mrb[0].mxu0
      %2455 = vmatprep.mubr.bf16.mxu0 0
      %2456 = vmatmul.mubr.bf16.gmra.mrb[0].mxu0 %v1503
      %v2457 = vpop.f32.mrb[0].mxu0
      %v2458 = vadd.f32 %v473, %v2457
      %v2459 = vpop.f32.mrb[0].mxu0
      %v2460 = vpop.f32.mrb[0].mxu0
      %v2461 = vadd.f32 %v473, %v2460
      %v2462 = vpop.f32.mrb[0].mxu0
      %2463 = vmatprep.mubr.bf16.mxu0 0
      %2464 = vmatmul.mubr.bf16.gmra.mrb[0].mxu0 %v1506
      %v2465 = vpop.f32.mrb[0].mxu0
      %v2466 = vadd.f32 %v473, %v2465
      %v2467 = vpop.f32.mrb[0].mxu0
      %v2468 = vpop.f32.mrb[0].mxu0
      %v2469 = vadd.f32 %v473, %v2468
      %v2470 = vpop.f32.mrb[0].mxu0
      %2471 = vmatprep.mubr.bf16.mxu0 0
      %2472 = vmatmul.mubr.bf16.gmra.mrb[0].mxu0 %v1509
      %v2473 = vpop.f32.mrb[0].mxu0
      %v2474 = vadd.f32 %v473, %v2473
      %v2475 = vpop.f32.mrb[0].mxu0
      %v2476 = vpop.f32.mrb[0].mxu0
      %v2477 = vadd.f32 %v473, %v2476
      %v2478 = vpop.f32.mrb[0].mxu0
      %2479 = vmatprep.mubr.bf16.mxu0 0
      %2480 = vmatmul.mubr.bf16.gmra.mrb[0].mxu0 %v1512
      %v2481 = vpop.f32.mrb[0].mxu0
      %v2482 = vadd.f32 %v473, %v2481
      %v2483 = vpop.f32.mrb[0].mxu0
      %v2484 = vpop.f32.mrb[0].mxu0
      %v2485 = vadd.f32 %v473, %v2484
      %v2486 = vpop.f32.mrb[0].mxu0
      %2487 = vmatprep.mubr.bf16.mxu0 0
      %2488 = vmatmul.mubr.bf16.gmra.mrb[0].mxu0 %v1515
      %v2489 = vpop.f32.mrb[0].mxu0
      %v2490 = vadd.f32 %v473, %v2489
      %v2491 = vpop.f32.mrb[0].mxu0
      %v2492 = vpop.f32.mrb[0].mxu0
      %v2493 = vadd.f32 %v473, %v2492
      %v2494 = vpop.f32.mrb[0].mxu0
      %2495 = vmatprep.mubr.bf16.mxu0 0
      %2496 = vmatmul.mubr.bf16.gmra.mrb[0].mxu0 %v1518
      %v2497 = vpop.f32.mrb[0].mxu0
      %v2498 = vadd.f32 %v473, %v2497
      %v2499 = vpop.f32.mrb[0].mxu0
      %v2500 = vpop.f32.mrb[0].mxu0
      %v2501 = vadd.f32 %v473, %v2500
      %v2502 = vpop.f32.mrb[0].mxu0
      %2503 = vmatprep.mubr.bf16.mxu0 0
      %2504 = vmatmul.mubr.bf16.gmra.mrb[0].mxu0 %v1521
      %v2505 = vpop.f32.mrb[0].mxu0
      %v2506 = vadd.f32 %v473, %v2505
      %v2507 = vpop.f32.mrb[0].mxu0
      %v2508 = vpop.f32.mrb[0].mxu0
      %v2509 = vadd.f32 %v473, %v2508
      %v2510 = vpop.f32.mrb[0].mxu0
      %2511 = vmatprep.mubr.bf16.mxu0 0
      %2512 = vmatmul.mubr.bf16.gmra.mrb[0].mxu0 %v1524
      %v2513 = vpop.f32.mrb[0].mxu0
      %v2514 = vadd.f32 %v473, %v2513
      %v2515 = vpop.f32.mrb[0].mxu0
      %v2516 = vpop.f32.mrb[0].mxu0
      %v2517 = vadd.f32 %v473, %v2516
      %v2518 = vpop.f32.mrb[0].mxu0
      %2519 = vmatprep.mubr.bf16.mxu0 0
      %2520 = vmatmul.mubr.bf16.gmra.mrb[0].mxu0 %v1527
      %v2521 = vpop.f32.mrb[0].mxu0
      %v2522 = vadd.f32 %v473, %v2521
      %v2523 = vpop.f32.mrb[0].mxu0
      %v2524 = vpop.f32.mrb[0].mxu0
      %v2525 = vadd.f32 %v473, %v2524
      %v2526 = vpop.f32.mrb[0].mxu0
      %2527 = vmatprep.mubr.bf16.mxu0 0
      %2528 = vmatmul.mubr.bf16.gmra.mrb[0].mxu0 %v1530
      %v2529 = vpop.f32.mrb[0].mxu0
      %v2530 = vadd.f32 %v473, %v2529
      %v2531 = vpop.f32.mrb[0].mxu0
      %v2532 = vpop.f32.mrb[0].mxu0
      %v2533 = vadd.f32 %v473, %v2532
      %v2534 = vpop.f32.mrb[0].mxu0
      %2535 = vmatprep.mubr.bf16.mxu0 0
      %2536 = vmatmul.mubr.bf16.gmra.mrb[0].mxu0 %v1533
      %v2537 = vpop.f32.mrb[0].mxu0
      %v2538 = vadd.f32 %v473, %v2537
      %v2539 = vpop.f32.mrb[0].mxu0
      %v2540 = vpop.f32.mrb[0].mxu0
      %v2541 = vadd.f32 %v473, %v2540
      %v2542 = vpop.f32.mrb[0].mxu0
      %2543 = vmatprep.mubr.bf16.mxu0 0
      %2544 = vmatmul.mubr.bf16.gmra.mrb[0].mxu0 %v1536
      %v2545 = vpop.f32.mrb[0].mxu0
      %v2546 = vadd.f32 %v473, %v2545
      %v2547 = vpop.f32.mrb[0].mxu0
      %v2548 = vpop.f32.mrb[0].mxu0
      %v2549 = vadd.f32 %v473, %v2548
      %v2550 = vpop.f32.mrb[0].mxu0
      %2551 = vmatprep.mubr.bf16.mxu0 0
      %2552 = vmatmul.mubr.bf16.gmra.mrb[0].mxu0 %v1539
      %v2553 = vpop.f32.mrb[0].mxu0
      %v2554 = vadd.f32 %v473, %v2553
      %v2555 = vpop.f32.mrb[0].mxu0
      %v2556 = vpop.f32.mrb[0].mxu0
      %v2557 = vadd.f32 %v473, %v2556
      %v2558 = vpop.f32.mrb[0].mxu0
      %2559 = vmatprep.mubr.bf16.mxu0 0
      %2560 = vmatmul.mubr.bf16.gmra.mrb[0].mxu0 %v1542
      %v2561 = vpop.f32.mrb[0].mxu0
      %v2562 = vadd.f32 %v473, %v2561
      %v2563 = vpop.f32.mrb[0].mxu0
      %v2564 = vpop.f32.mrb[0].mxu0
      %v2565 = vadd.f32 %v473, %v2564
      %v2566 = vpop.f32.mrb[0].mxu0
      %2567 = vmatprep.mubr.bf16.mxu0 0
      %2568 = vmatmul.mubr.bf16.gmra.mrb[0].mxu0 %v1545
      %v2569 = vpop.f32.mrb[0].mxu0
      %v2570 = vadd.f32 %v473, %v2569
      %v2571 = vpop.f32.mrb[0].mxu0
      %v2572 = vpop.f32.mrb[0].mxu0
      %v2573 = vadd.f32 %v473, %v2572
      %v2574 = vpop.f32.mrb[0].mxu0
      %2575 = vmatprep.mubr.bf16.mxu0 0
      %2576 = vmatmul.mubr.bf16.gmra.mrb[0].mxu0 %v1548
      %v2577 = vpop.f32.mrb[0].mxu0
      %v2578 = vadd.f32 %v473, %v2577
      %v2579 = vpop.f32.mrb[0].mxu0
      %v2580 = vpop.f32.mrb[0].mxu0
      %v2581 = vadd.f32 %v473, %v2580
      %v2582 = vpop.f32.mrb[0].mxu0
      %2583 = vmatprep.mubr.bf16.mxu0 0
      %2584 = vmatmul.mubr.bf16.gmra.mrb[0].mxu0 %v1551
      %v2585 = vpop.f32.mrb[0].mxu0
      %v2586 = vadd.f32 %v473, %v2585
      %v2587 = vpop.f32.mrb[0].mxu0
      %v2588 = vpop.f32.mrb[0].mxu0
      %v2589 = vadd.f32 %v473, %v2588
      %v2590 = vpop.f32.mrb[0].mxu0
      %2591 = vmatprep.mubr.bf16.mxu0 0
      %2592 = vmatmul.mubr.bf16.gmra.mrb[0].mxu0 %v1554
      %v2593 = vpop.f32.mrb[0].mxu0
      %v2594 = vadd.f32 %v473, %v2593
      %v2595 = vpop.f32.mrb[0].mxu0
      %v2596 = vpop.f32.mrb[0].mxu0
      %v2597 = vadd.f32 %v473, %v2596
      %v2598 = vpop.f32.mrb[0].mxu0
      %2599 = vmatprep.mubr.bf16.mxu0 0
      %2600 = vmatmul.mubr.bf16.gmra.mrb[0].mxu0 %v1557
      %v2601 = vpop.f32.mrb[0].mxu0
      %v2602 = vadd.f32 %v473, %v2601
      %v2603 = vpop.f32.mrb[0].mxu0
      %v2604 = vpop.f32.mrb[0].mxu0
      %v2605 = vadd.f32 %v473, %v2604
      %v2606 = vpop.f32.mrb[0].mxu0
      %2607 = vmatprep.mubr.bf16.mxu0 0
      %2608 = vmatmul.mubr.bf16.gmra.mrb[0].mxu0 %v1560
      %v2609 = vpop.f32.mrb[0].mxu0
      %v2610 = vadd.f32 %v473, %v2609
      %v2611 = vpop.f32.mrb[0].mxu0
      %v2612 = vpop.f32.mrb[0].mxu0
      %v2613 = vadd.f32 %v473, %v2612
      %v2614 = vpop.f32.mrb[0].mxu0
      %2615 = vmatprep.mubr.bf16.mxu0 0
      %2616 = vmatmul.mubr.bf16.gmra.mrb[0].mxu0 %v1563
      %v2617 = vpop.f32.mrb[0].mxu0
      %v2618 = vadd.f32 %v473, %v2617
      %v2619 = vpop.f32.mrb[0].mxu0
      %v2620 = vpop.f32.mrb[0].mxu0
      %v2621 = vadd.f32 %v473, %v2620
      %v2622 = vpop.f32.mrb[0].mxu0
      %2623 = vmatprep.mubr.bf16.mxu0 0
      %2624 = vmatmul.mubr.bf16.gmra.mrb[0].mxu0 %v1566
      %v2625 = vpop.f32.mrb[0].mxu0
      %v2626 = vadd.f32 %v473, %v2625
      %v2627 = vpop.f32.mrb[0].mxu0
      %v2628 = vpop.f32.mrb[0].mxu0
      %v2629 = vadd.f32 %v473, %v2628
      %v2630 = vpop.f32.mrb[0].mxu0
      %2631 = vmatprep.mubr.bf16.mxu0 0
      %2632 = vmatmul.mubr.bf16.gmra.mrb[0].mxu0 %v1569
      %v2633 = vpop.f32.mrb[0].mxu0
      %v2634 = vadd.f32 %v473, %v2633
      %v2635 = vpop.f32.mrb[0].mxu0
      %v2636 = vpop.f32.mrb[0].mxu0
      %v2637 = vadd.f32 %v473, %v2636
      %v2638 = vpop.f32.mrb[0].mxu0
      %2639 = vmatprep.mubr.bf16.mxu0 0
      %2640 = vmatmul.mubr.bf16.gmra.mrb[0].mxu0 %v1572
      %v2641 = vpop.f32.mrb[0].mxu0
      %v2642 = vadd.f32 %v473, %v2641
      %v2643 = vpop.f32.mrb[0].mxu0
      %v2644 = vpop.f32.mrb[0].mxu0
      %v2645 = vadd.f32 %v473, %v2644
      %v2646 = vpop.f32.mrb[0].mxu0
      %2647 = vmatprep.mubr.bf16.mxu0 0
      %2648 = vmatmul.mubr.bf16.gmra.mrb[0].mxu0 %v1575
      %v2649 = vpop.f32.mrb[0].mxu0
      %v2650 = vadd.f32 %v473, %v2649
      %v2651 = vpop.f32.mrb[0].mxu0
      %v2652 = vpop.f32.mrb[0].mxu0
      %v2653 = vadd.f32 %v473, %v2652
      %v2654 = vpop.f32.mrb[0].mxu0
      %2655 = vmatprep.mubr.bf16.mxu0 0
      %2656 = vmatmul.mubr.bf16.gmra.mrb[0].mxu0 %v1578
      %v2657 = vpop.f32.mrb[0].mxu0
      %v2658 = vadd.f32 %v473, %v2657
      %v2659 = vpop.f32.mrb[0].mxu0
      %v2660 = vpop.f32.mrb[0].mxu0
      %v2661 = vadd.f32 %v473, %v2660
      %v2662 = vpop.f32.mrb[0].mxu0
      %2663 = vmatprep.mubr.bf16.mxu0 0
      %2664 = vmatmul.mubr.bf16.gmra.mrb[0].mxu0 %v1581
      %v2665 = vpop.f32.mrb[0].mxu0
      %v2666 = vadd.f32 %v473, %v2665
      %v2667 = vpop.f32.mrb[0].mxu0
      %v2668 = vpop.f32.mrb[0].mxu0
      %v2669 = vadd.f32 %v473, %v2668
      %v2670 = vpop.f32.mrb[0].mxu0
      %2671 = vmatprep.mubr.bf16.mxu0 0
      %2672 = vmatmul.mubr.bf16.gmra.mrb[0].mxu0 %v1584
      %v2673 = vpop.f32.mrb[0].mxu0
      %v2674 = vadd.f32 %v473, %v2673
      %v2675 = vpop.f32.mrb[0].mxu0
      %v2676 = vpop.f32.mrb[0].mxu0
      %v2677 = vadd.f32 %v473, %v2676
      %v2678 = vpop.f32.mrb[0].mxu0
      %2679 = vmatprep.mubr.bf16.mxu0 0
      %2680 = vmatmul.mubr.bf16.gmra.mrb[0].mxu0 %v1587
      %v2681 = vpop.f32.mrb[0].mxu0
      %v2682 = vadd.f32 %v473, %v2681
      %v2683 = vpop.f32.mrb[0].mxu0
      %v2684 = vpop.f32.mrb[0].mxu0
      %v2685 = vadd.f32 %v473, %v2684
      %v2686 = vpop.f32.mrb[0].mxu0
      %2687 = vmatprep.mubr.bf16.mxu0 0
      %2688 = vmatmul.mubr.bf16.gmra.mrb[0].mxu0 %v1590
      %v2689 = vpop.f32.mrb[0].mxu0
      %v2690 = vadd.f32 %v473, %v2689
      %v2691 = vpop.f32.mrb[0].mxu0
      %v2692 = vpop.f32.mrb[0].mxu0
      %v2693 = vadd.f32 %v473, %v2692
      %v2694 = vpop.f32.mrb[0].mxu0
      %2695 = vmatprep.mubr.bf16.mxu0 0
      %2696 = vmatmul.mubr.bf16.gmra.mrb[0].mxu0 %v1593
      %v2697 = vpop.f32.mrb[0].mxu0
      %v2698 = vadd.f32 %v473, %v2697
      %v2699 = vpop.f32.mrb[0].mxu0
      %v2700 = vpop.f32.mrb[0].mxu0
      %v2701 = vadd.f32 %v473, %v2700
      %v2702 = vpop.f32.mrb[0].mxu0
      %2703 = vmatprep.mubr.bf16.mxu0 0
      %2704 = vmatmul.mubr.bf16.gmra.mrb[0].mxu0 %v1596
      %v2705 = vpop.f32.mrb[0].mxu0
      %v2706 = vadd.f32 %v473, %v2705
      %v2707 = vpop.f32.mrb[0].mxu0
      %v2708 = vpop.f32.mrb[0].mxu0
      %v2709 = vadd.f32 %v473, %v2708
      %v2710 = vpop.f32.mrb[0].mxu0
      %2711 = vmatprep.mubr.bf16.mxu0 0
      %2712 = vmatmul.mubr.bf16.gmra.mrb[0].mxu0 %v1599
      %v2713 = vpop.f32.mrb[0].mxu0
      %v2714 = vadd.f32 %v473, %v2713
      %v2715 = vpop.f32.mrb[0].mxu0
      %v2716 = vpop.f32.mrb[0].mxu0
      %v2717 = vadd.f32 %v473, %v2716
      %v2718 = vpop.f32.mrb[0].mxu0
      %2719 = vmatprep.mubr.bf16.mxu0 0
      %2720 = vmatmul.mubr.bf16.gmra.mrb[0].mxu0 %v1602
      %v2721 = vpop.f32.mrb[0].mxu0
      %v2722 = vadd.f32 %v473, %v2721
      %v2723 = vpop.f32.mrb[0].mxu0
      %v2724 = vpop.f32.mrb[0].mxu0
      %v2725 = vadd.f32 %v473, %v2724
      %v2726 = vpop.f32.mrb[0].mxu0
      %2727 = vmatprep.mubr.bf16.mxu0 0
      %2728 = vmatmul.mubr.bf16.gmra.mrb[0].mxu0 %v1605
      %v2729 = vpop.f32.mrb[0].mxu0
      %v2730 = vadd.f32 %v473, %v2729
      %v2731 = vpop.f32.mrb[0].mxu0
      %v2732 = vpop.f32.mrb[0].mxu0
      %v2733 = vadd.f32 %v473, %v2732
      %v2734 = vpop.f32.mrb[0].mxu0
      %2735 = vmatprep.mubr.bf16.mxu0 0
      %2736 = vmatmul.mubr.bf16.gmra.mrb[0].mxu0 %v1608
      %v2737 = vpop.f32.mrb[0].mxu0
      %v2738 = vadd.f32 %v473, %v2737
      %v2739 = vpop.f32.mrb[0].mxu0
      %v2740 = vpop.f32.mrb[0].mxu0
      %v2741 = vadd.f32 %v473, %v2740
      %v2742 = vpop.f32.mrb[0].mxu0
      %2743 = vmatprep.mubr.bf16.mxu0 0
      %2744 = vmatmul.mubr.bf16.gmra.mrb[0].mxu0 %v1611
      %v2745 = vpop.f32.mrb[0].mxu0
      %v2746 = vadd.f32 %v473, %v2745
      %v2747 = vpop.f32.mrb[0].mxu0
      %v2748 = vpop.f32.mrb[0].mxu0
      %v2749 = vadd.f32 %v473, %v2748
      %v2750 = vpop.f32.mrb[0].mxu0
      %2751 = vmatprep.mubr.bf16.mxu0 0
      %2752 = vmatmul.mubr.bf16.gmra.mrb[0].mxu0 %v1614
      %v2753 = vpop.f32.mrb[0].mxu0
      %v2754 = vadd.f32 %v473, %v2753
      %v2755 = vpop.f32.mrb[0].mxu0
      %v2756 = vpop.f32.mrb[0].mxu0
      %v2757 = vadd.f32 %v473, %v2756
      %v2758 = vpop.f32.mrb[0].mxu0
      %2759 = vmatprep.mubr.bf16.mxu0 0
      %2760 = vmatmul.mubr.bf16.gmra.mrb[0].mxu0 %v1617
      %v2761 = vpop.f32.mrb[0].mxu0
      %v2762 = vadd.f32 %v473, %v2761
      %v2763 = vpop.f32.mrb[0].mxu0
      %v2764 = vpop.f32.mrb[0].mxu0
      %v2765 = vadd.f32 %v473, %v2764
      %v2766 = vpop.f32.mrb[0].mxu0
      %2767 = vmatprep.mubr.bf16.mxu0 0
      %2768 = vmatmul.mubr.bf16.gmra.mrb[0].mxu0 %v1620
      %v2769 = vpop.f32.mrb[0].mxu0
      %v2770 = vadd.f32 %v473, %v2769
      %v2771 = vpop.f32.mrb[0].mxu0
      %v2772 = vpop.f32.mrb[0].mxu0
      %v2773 = vadd.f32 %v473, %v2772
      %v2774 = vpop.f32.mrb[0].mxu0
      %2775 = vmatprep.mubr.bf16.mxu0 0
      %2776 = vmatmul.mubr.bf16.gmra.mrb[0].mxu0 %v1623
      %v2777 = vpop.f32.mrb[0].mxu0
      %v2778 = vadd.f32 %v473, %v2777
      %v2779 = vpop.f32.mrb[0].mxu0
      %v2780 = vpop.f32.mrb[0].mxu0
      %v2781 = vadd.f32 %v473, %v2780
      %v2782 = vpop.f32.mrb[0].mxu0
      %2783 = vmatprep.mubr.bf16.mxu0 0
      %2784 = vmatmul.mubr.bf16.gmra.mrb[0].mxu0 %v1626
      %v2785 = vpop.f32.mrb[0].mxu0
      %v2786 = vadd.f32 %v473, %v2785
      %v2787 = vpop.f32.mrb[0].mxu0
      %v2788 = vpop.f32.mrb[0].mxu0
      %v2789 = vadd.f32 %v473, %v2788
      %v2790 = vpop.f32.mrb[0].mxu0
      %2791 = vmatprep.mubr.bf16.mxu0 0
      %2792 = vmatmul.mubr.bf16.gmra.mrb[0].mxu0 %v1629
      %v2793 = vpop.f32.mrb[0].mxu0
      %v2794 = vadd.f32 %v473, %v2793
      %v2795 = vpop.f32.mrb[0].mxu0
      %v2796 = vpop.f32.mrb[0].mxu0
      %v2797 = vadd.f32 %v473, %v2796
      %v2798 = vpop.f32.mrb[0].mxu0
      %2799 = vmatprep.mubr.bf16.mxu0 0
      %2800 = vmatmul.mubr.bf16.gmra.mrb[0].mxu0 %v1632
      %v2801 = vpop.f32.mrb[0].mxu0
      %v2802 = vadd.f32 %v473, %v2801
      %v2803 = vpop.f32.mrb[0].mxu0
      %v2804 = vpop.f32.mrb[0].mxu0
      %v2805 = vadd.f32 %v473, %v2804
      %v2806 = vpop.f32.mrb[0].mxu0
      %2807 = vmatprep.mubr.bf16.mxu0 0
      %2808 = vmatmul.mubr.bf16.gmra.mrb[0].mxu0 %v1635
      %v2809 = vpop.f32.mrb[0].mxu0
      %v2810 = vadd.f32 %v473, %v2809
      %v2811 = vpop.f32.mrb[0].mxu0
      %v2812 = vpop.f32.mrb[0].mxu0
      %v2813 = vadd.f32 %v473, %v2812
      %v2814 = vpop.f32.mrb[0].mxu0
      %2815 = vmatprep.mubr.bf16.mxu0 0
      %2816 = vmatmul.mubr.bf16.gmra.mrb[0].mxu0 %v1638
      %v2817 = vpop.f32.mrb[0].mxu0
      %v2818 = vadd.f32 %v473, %v2817
      %v2819 = vpop.f32.mrb[0].mxu0
      %v2820 = vpop.f32.mrb[0].mxu0
      %v2821 = vadd.f32 %v473, %v2820
      %v2822 = vpop.f32.mrb[0].mxu0
      %2823 = vmatprep.mubr.bf16.mxu0 0
      %2824 = vmatmul.mubr.bf16.gmra.mrb[0].mxu0 %v1641
      %v2825 = vpop.f32.mrb[0].mxu0
      %v2826 = vadd.f32 %v473, %v2825
      %v2827 = vpop.f32.mrb[0].mxu0
      %v2828 = vpop.f32.mrb[0].mxu0
      %v2829 = vadd.f32 %v473, %v2828
      %v2830 = vpop.f32.mrb[0].mxu0
      %2831 = vdwg.mxu0
      %v2832 = vmax.f32 %v1682, 0.0
      %v2833 = vmax.f32 %v1685, 0.0
      %v2834 = vmax.f32 %v1690, 0.0
      %v2835 = vmax.f32 %v1693, 0.0
      %v2836 = vmax.f32 %v1698, 0.0
      %v2837 = vmax.f32 %v1701, 0.0
      %v2838 = vmax.f32 %v1706, 0.0
      %v2839 = vmax.f32 %v1709, 0.0
      %v2840 = vmax.f32 %v1714, 0.0
      %v2841 = vmax.f32 %v1717, 0.0
      %v2842 = vmax.f32 %v1722, 0.0
      %v2843 = vmax.f32 %v1725, 0.0
      %v2844 = vmax.f32 %v1730, 0.0
      %v2845 = vmax.f32 %v1733, 0.0
      %v2846 = vmax.f32 %v1738, 0.0
      %v2847 = vmax.f32 %v1741, 0.0
      %v2848 = vmax.f32 %v1746, 0.0
      %v2849 = vmax.f32 %v1749, 0.0
      %v2850 = vmax.f32 %v1754, 0.0
      %v2851 = vmax.f32 %v1757, 0.0
      %v2852 = vmax.f32 %v1762, 0.0
      %v2853 = vmax.f32 %v1765, 0.0
      %v2854 = vmax.f32 %v1770, 0.0
      %v2855 = vmax.f32 %v1773, 0.0
      %v2856 = vmax.f32 %v1778, 0.0
      %v2857 = vmax.f32 %v1781, 0.0
      %v2858 = vmax.f32 %v1786, 0.0
      %v2859 = vmax.f32 %v1789, 0.0
      %v2860 = vmax.f32 %v1794, 0.0
      %v2861 = vmax.f32 %v1797, 0.0
      %v2862 = vmax.f32 %v1802, 0.0
      %v2863 = vmax.f32 %v1805, 0.0
      %v2864 = vmax.f32 %v1810, 0.0
      %v2865 = vmax.f32 %v1813, 0.0
      %v2866 = vmax.f32 %v1818, 0.0
      %v2867 = vmax.f32 %v1821, 0.0
      %v2868 = vmax.f32 %v1826, 0.0
      %v2869 = vmax.f32 %v1829, 0.0
      %v2870 = vmax.f32 %v1834, 0.0
      %v2871 = vmax.f32 %v1837, 0.0
      %v2872 = vmax.f32 %v1842, 0.0
      %v2873 = vmax.f32 %v1845, 0.0
      %v2874 = vmax.f32 %v1850, 0.0
      %v2875 = vmax.f32 %v1853, 0.0
      %v2876 = vmax.f32 %v1858, 0.0
      %v2877 = vmax.f32 %v1861, 0.0
      %v2878 = vmax.f32 %v1866, 0.0
      %v2879 = vmax.f32 %v1869, 0.0
      %v2880 = vmax.f32 %v1874, 0.0
      %v2881 = vmax.f32 %v1877, 0.0
      %v2882 = vmax.f32 %v1882, 0.0
      %v2883 = vmax.f32 %v1885, 0.0
      %v2884 = vmax.f32 %v1890, 0.0
      %v2885 = vmax.f32 %v1893, 0.0
      %v2886 = vmax.f32 %v1898, 0.0
      %v2887 = vmax.f32 %v1901, 0.0
      %v2888 = vmax.f32 %v1906, 0.0
      %v2889 = vmax.f32 %v1909, 0.0
      %v2890 = vmax.f32 %v1914, 0.0
      %v2891 = vmax.f32 %v1917, 0.0
      %v2892 = vmax.f32 %v1922, 0.0
      %v2893 = vmax.f32 %v1925, 0.0
      %v2894 = vmax.f32 %v1930, 0.0
      %v2895 = vmax.f32 %v1933, 0.0
      %v2896 = vmax.f32 %v1938, 0.0
      %v2897 = vmax.f32 %v1941, 0.0
      %v2898 = vmax.f32 %v1946, 0.0
      %v2899 = vmax.f32 %v1949, 0.0
      %v2900 = vmax.f32 %v1954, 0.0
      %v2901 = vmax.f32 %v1957, 0.0
      %v2902 = vmax.f32 %v1962, 0.0
      %v2903 = vmax.f32 %v1965, 0.0
      %v2904 = vmax.f32 %v1970, 0.0
      %v2905 = vmax.f32 %v1973, 0.0
      %v2906 = vmax.f32 %v1978, 0.0
      %v2907 = vmax.f32 %v1981, 0.0
      %v2908 = vmax.f32 %v1986, 0.0
      %v2909 = vmax.f32 %v1989, 0.0
      %v2910 = vmax.f32 %v1994, 0.0
      %v2911 = vmax.f32 %v1997, 0.0
      %v2912 = vmax.f32 %v2002, 0.0
      %v2913 = vmax.f32 %v2005, 0.0
      %v2914 = vmax.f32 %v2010, 0.0
      %v2915 = vmax.f32 %v2013, 0.0
      %v2916 = vmax.f32 %v2018, 0.0
      %v2917 = vmax.f32 %v2021, 0.0
      %v2918 = vmax.f32 %v2026, 0.0
      %v2919 = vmax.f32 %v2029, 0.0
      %v2920 = vmax.f32 %v2034, 0.0
      %v2921 = vmax.f32 %v2037, 0.0
      %v2922 = vmax.f32 %v2042, 0.0
      %v2923 = vmax.f32 %v2045, 0.0
      %v2924 = vmax.f32 %v2050, 0.0
      %v2925 = vmax.f32 %v2053, 0.0
      %v2926 = vmax.f32 %v2058, 0.0
      %v2927 = vmax.f32 %v2061, 0.0
      %v2928 = vmax.f32 %v2066, 0.0
      %v2929 = vmax.f32 %v2069, 0.0
      %v2930 = vmax.f32 %v2074, 0.0
      %v2931 = vmax.f32 %v2077, 0.0
      %v2932 = vmax.f32 %v2082, 0.0
      %v2933 = vmax.f32 %v2085, 0.0
      %v2934 = vmax.f32 %v2090, 0.0
      %v2935 = vmax.f32 %v2093, 0.0
      %v2936 = vmax.f32 %v2098, 0.0
      %v2937 = vmax.f32 %v2101, 0.0
      %v2938 = vmax.f32 %v2106, 0.0
      %v2939 = vmax.f32 %v2109, 0.0
      %v2940 = vmax.f32 %v2114, 0.0
      %v2941 = vmax.f32 %v2117, 0.0
      %v2942 = vmax.f32 %v2122, 0.0
      %v2943 = vmax.f32 %v2125, 0.0
      %v2944 = vmax.f32 %v2130, 0.0
      %v2945 = vmax.f32 %v2133, 0.0
      %v2946 = vmax.f32 %v2138, 0.0
      %v2947 = vmax.f32 %v2141, 0.0
      %v2948 = vmax.f32 %v2146, 0.0
      %v2949 = vmax.f32 %v2149, 0.0
      %v2950 = vmax.f32 %v2154, 0.0
      %v2951 = vmax.f32 %v2157, 0.0
      %v2952 = vmax.f32 %v2162, 0.0
      %v2953 = vmax.f32 %v2165, 0.0
      %v2954 = vmax.f32 %v2170, 0.0
      %v2955 = vmax.f32 %v2173, 0.0
      %v2956 = vmax.f32 %v2178, 0.0
      %v2957 = vmax.f32 %v2181, 0.0
      %v2958 = vmax.f32 %v2186, 0.0
      %v2959 = vmax.f32 %v2189, 0.0
      %v2960 = vmax.f32 %v2194, 0.0
      %v2961 = vmax.f32 %v2197, 0.0
      %v2962 = vmax.f32 %v2202, 0.0
      %v2963 = vmax.f32 %v2205, 0.0
      %v2964 = vmax.f32 %v2210, 0.0
      %v2965 = vmax.f32 %v2213, 0.0
      %v2966 = vmax.f32 %v2218, 0.0
      %v2967 = vmax.f32 %v2221, 0.0
      %v2968 = vmax.f32 %v2226, 0.0
      %v2969 = vmax.f32 %v2229, 0.0
      %v2970 = vmax.f32 %v2234, 0.0
      %v2971 = vmax.f32 %v2237, 0.0
      %v2972 = vmax.f32 %v2242, 0.0
      %v2973 = vmax.f32 %v2245, 0.0
      %v2974 = vmax.f32 %v2250, 0.0
      %v2975 = vmax.f32 %v2253, 0.0
      %v2976 = vmax.f32 %v2258, 0.0
      %v2977 = vmax.f32 %v2261, 0.0
      %v2978 = vmax.f32 %v2266, 0.0
      %v2979 = vmax.f32 %v2269, 0.0
      %v2980 = vmax.f32 %v2274, 0.0
      %v2981 = vmax.f32 %v2277, 0.0
      %v2982 = vmax.f32 %v2282, 0.0
      %v2983 = vmax.f32 %v2285, 0.0
      %v2984 = vmax.f32 %v2290, 0.0
      %v2985 = vmax.f32 %v2293, 0.0
      %v2986 = vmax.f32 %v2298, 0.0
      %v2987 = vmax.f32 %v2301, 0.0
      %v2988 = vmax.f32 %v2306, 0.0
      %v2989 = vmax.f32 %v2309, 0.0
      %v2990 = vmax.f32 %v2314, 0.0
      %v2991 = vmax.f32 %v2317, 0.0
      %v2992 = vmax.f32 %v2322, 0.0
      %v2993 = vmax.f32 %v2325, 0.0
      %v2994 = vmax.f32 %v2330, 0.0
      %v2995 = vmax.f32 %v2333, 0.0
      %v2996 = vmax.f32 %v2338, 0.0
      %v2997 = vmax.f32 %v2341, 0.0
      %v2998 = vmax.f32 %v2346, 0.0
      %v2999 = vmax.f32 %v2349, 0.0
      %v3000 = vmax.f32 %v2354, 0.0
      %v3001 = vmax.f32 %v2357, 0.0
      %v3002 = vmax.f32 %v2362, 0.0
      %v3003 = vmax.f32 %v2365, 0.0
      %v3004 = vmax.f32 %v2370, 0.0
      %v3005 = vmax.f32 %v2373, 0.0
      %v3006 = vmax.f32 %v2378, 0.0
      %v3007 = vmax.f32 %v2381, 0.0
      %v3008 = vmax.f32 %v2386, 0.0
      %v3009 = vmax.f32 %v2389, 0.0
      %v3010 = vmax.f32 %v2394, 0.0
      %v3011 = vmax.f32 %v2397, 0.0
      %v3012 = vmax.f32 %v2402, 0.0
      %v3013 = vmax.f32 %v2405, 0.0
      %v3014 = vmax.f32 %v2410, 0.0
      %v3015 = vmax.f32 %v2413, 0.0
      %v3016 = vmax.f32 %v2418, 0.0
      %v3017 = vmax.f32 %v2421, 0.0
      %v3018 = vmax.f32 %v2426, 0.0
      %v3019 = vmax.f32 %v2429, 0.0
      %v3020 = vmax.f32 %v2434, 0.0
      %v3021 = vmax.f32 %v2437, 0.0
      %v3022 = vmax.f32 %v2442, 0.0
      %v3023 = vmax.f32 %v2445, 0.0
      %v3024 = vmax.f32 %v2450, 0.0
      %v3025 = vmax.f32 %v2453, 0.0
      %v3026 = vmax.f32 %v2458, 0.0
      %v3027 = vmax.f32 %v2461, 0.0
      %v3028 = vmax.f32 %v2466, 0.0
      %v3029 = vmax.f32 %v2469, 0.0
      %v3030 = vmax.f32 %v2474, 0.0
      %v3031 = vmax.f32 %v2477, 0.0
      %v3032 = vmax.f32 %v2482, 0.0
      %v3033 = vmax.f32 %v2485, 0.0
      %v3034 = vmax.f32 %v2490, 0.0
      %v3035 = vmax.f32 %v2493, 0.0
      %v3036 = vmax.f32 %v2498, 0.0
      %v3037 = vmax.f32 %v2501, 0.0
      %v3038 = vmax.f32 %v2506, 0.0
      %v3039 = vmax.f32 %v2509, 0.0
      %v3040 = vmax.f32 %v2514, 0.0
      %v3041 = vmax.f32 %v2517, 0.0
      %v3042 = vmax.f32 %v2522, 0.0
      %v3043 = vmax.f32 %v2525, 0.0
      %v3044 = vmax.f32 %v2530, 0.0
      %v3045 = vmax.f32 %v2533, 0.0
      %v3046 = vmax.f32 %v2538, 0.0
      %v3047 = vmax.f32 %v2541, 0.0
      %v3048 = vmax.f32 %v2546, 0.0
      %v3049 = vmax.f32 %v2549, 0.0
      %v3050 = vmax.f32 %v2554, 0.0
      %v3051 = vmax.f32 %v2557, 0.0
      %v3052 = vmax.f32 %v2562, 0.0
      %v3053 = vmax.f32 %v2565, 0.0
      %v3054 = vmax.f32 %v2570, 0.0
      %v3055 = vmax.f32 %v2573, 0.0
      %v3056 = vmax.f32 %v2578, 0.0
      %v3057 = vmax.f32 %v2581, 0.0
      %v3058 = vmax.f32 %v2586, 0.0
      %v3059 = vmax.f32 %v2589, 0.0
      %v3060 = vmax.f32 %v2594, 0.0
      %v3061 = vmax.f32 %v2597, 0.0
      %v3062 = vmax.f32 %v2602, 0.0
      %v3063 = vmax.f32 %v2605, 0.0
      %v3064 = vmax.f32 %v2610, 0.0
      %v3065 = vmax.f32 %v2613, 0.0
      %v3066 = vmax.f32 %v2618, 0.0
      %v3067 = vmax.f32 %v2621, 0.0
      %v3068 = vmax.f32 %v2626, 0.0
      %v3069 = vmax.f32 %v2629, 0.0
      %v3070 = vmax.f32 %v2634, 0.0
      %v3071 = vmax.f32 %v2637, 0.0
      %v3072 = vmax.f32 %v2642, 0.0
      %v3073 = vmax.f32 %v2645, 0.0
      %v3074 = vmax.f32 %v2650, 0.0
      %v3075 = vmax.f32 %v2653, 0.0
      %v3076 = vmax.f32 %v2658, 0.0
      %v3077 = vmax.f32 %v2661, 0.0
      %v3078 = vmax.f32 %v2666, 0.0
      %v3079 = vmax.f32 %v2669, 0.0
      %v3080 = vmax.f32 %v2674, 0.0
      %v3081 = vmax.f32 %v2677, 0.0
      %v3082 = vmax.f32 %v2682, 0.0
      %v3083 = vmax.f32 %v2685, 0.0
      %v3084 = vmax.f32 %v2690, 0.0
      %v3085 = vmax.f32 %v2693, 0.0
      %v3086 = vmax.f32 %v2698, 0.0
      %v3087 = vmax.f32 %v2701, 0.0
      %v3088 = vmax.f32 %v2706, 0.0
      %v3089 = vmax.f32 %v2709, 0.0
      %v3090 = vmax.f32 %v2714, 0.0
      %v3091 = vmax.f32 %v2717, 0.0
      %v3092 = vmax.f32 %v2722, 0.0
      %v3093 = vmax.f32 %v2725, 0.0
      %v3094 = vmax.f32 %v2730, 0.0
      %v3095 = vmax.f32 %v2733, 0.0
      %v3096 = vmax.f32 %v2738, 0.0
      %v3097 = vmax.f32 %v2741, 0.0
      %v3098 = vmax.f32 %v2746, 0.0
      %v3099 = vmax.f32 %v2749, 0.0
      %v3100 = vmax.f32 %v2754, 0.0
      %v3101 = vmax.f32 %v2757, 0.0
      %v3102 = vmax.f32 %v2762, 0.0
      %v3103 = vmax.f32 %v2765, 0.0
      %v3104 = vmax.f32 %v2770, 0.0
      %v3105 = vmax.f32 %v2773, 0.0
      %v3106 = vmax.f32 %v2778, 0.0
      %v3107 = vmax.f32 %v2781, 0.0
      %v3108 = vmax.f32 %v2786, 0.0
      %v3109 = vmax.f32 %v2789, 0.0
      %v3110 = vmax.f32 %v2794, 0.0
      %v3111 = vmax.f32 %v2797, 0.0
      %v3112 = vmax.f32 %v2802, 0.0
      %v3113 = vmax.f32 %v2805, 0.0
      %v3114 = vmax.f32 %v2810, 0.0
      %v3115 = vmax.f32 %v2813, 0.0
      %v3116 = vmax.f32 %v2818, 0.0
      %v3117 = vmax.f32 %v2821, 0.0
      %v3118 = vmax.f32 %v2826, 0.0
      %v3119 = vmax.f32 %v2829, 0.0
      %v3120 = vpack.c.bf16 %v2833, %v2832
      %v3121 = vpack.c.bf16 %v2835, %v2834
      %v3122 = vpack.c.bf16 %v2837, %v2836
      %v3123 = vpack.c.bf16 %v2839, %v2838
      %v3124 = vpack.c.bf16 %v2841, %v2840
      %v3125 = vpack.c.bf16 %v2843, %v2842
      %v3126 = vpack.c.bf16 %v2845, %v2844
      %v3127 = vpack.c.bf16 %v2847, %v2846
      %v3128 = vpack.c.bf16 %v2849, %v2848
      %v3129 = vpack.c.bf16 %v2851, %v2850
      %v3130 = vpack.c.bf16 %v2853, %v2852
      %v3131 = vpack.c.bf16 %v2855, %v2854
      %v3132 = vpack.c.bf16 %v2857, %v2856
      %v3133 = vpack.c.bf16 %v2859, %v2858
      %v3134 = vpack.c.bf16 %v2861, %v2860
      %v3135 = vpack.c.bf16 %v2863, %v2862
      %v3136 = vpack.c.bf16 %v2865, %v2864
      %v3137 = vpack.c.bf16 %v2867, %v2866
      %v3138 = vpack.c.bf16 %v2869, %v2868
      %v3139 = vpack.c.bf16 %v2871, %v2870
      %v3140 = vpack.c.bf16 %v2873, %v2872
      %v3141 = vpack.c.bf16 %v2875, %v2874
      %v3142 = vpack.c.bf16 %v2877, %v2876
      %v3143 = vpack.c.bf16 %v2879, %v2878
      %v3144 = vpack.c.bf16 %v2881, %v2880
      %v3145 = vpack.c.bf16 %v2883, %v2882
      %v3146 = vpack.c.bf16 %v2885, %v2884
      %v3147 = vpack.c.bf16 %v2887, %v2886
      %v3148 = vpack.c.bf16 %v2889, %v2888
      %v3149 = vpack.c.bf16 %v2891, %v2890
      %v3150 = vpack.c.bf16 %v2893, %v2892
      %v3151 = vpack.c.bf16 %v2895, %v2894
      %v3152 = vpack.c.bf16 %v2897, %v2896
      %v3153 = vpack.c.bf16 %v2899, %v2898
      %v3154 = vpack.c.bf16 %v2901, %v2900
      %v3155 = vpack.c.bf16 %v2903, %v2902
      %v3156 = vpack.c.bf16 %v2905, %v2904
      %v3157 = vpack.c.bf16 %v2907, %v2906
      %v3158 = vpack.c.bf16 %v2909, %v2908
      %v3159 = vpack.c.bf16 %v2911, %v2910
      %v3160 = vpack.c.bf16 %v2913, %v2912
      %v3161 = vpack.c.bf16 %v2915, %v2914
      %v3162 = vpack.c.bf16 %v2917, %v2916
      %v3163 = vpack.c.bf16 %v2919, %v2918
      %v3164 = vpack.c.bf16 %v2921, %v2920
      %v3165 = vpack.c.bf16 %v2923, %v2922
      %v3166 = vpack.c.bf16 %v2925, %v2924
      %v3167 = vpack.c.bf16 %v2927, %v2926
      %v3168 = vpack.c.bf16 %v2929, %v2928
      %v3169 = vpack.c.bf16 %v2931, %v2930
      %v3170 = vpack.c.bf16 %v2933, %v2932
      %v3171 = vpack.c.bf16 %v2935, %v2934
      %v3172 = vpack.c.bf16 %v2937, %v2936
      %v3173 = vpack.c.bf16 %v2939, %v2938
      %v3174 = vpack.c.bf16 %v2941, %v2940
      %v3175 = vpack.c.bf16 %v2943, %v2942
      %v3176 = vpack.c.bf16 %v2945, %v2944
      %v3177 = vpack.c.bf16 %v2947, %v2946
      %v3178 = vpack.c.bf16 %v2949, %v2948
      %v3179 = vpack.c.bf16 %v2951, %v2950
      %v3180 = vpack.c.bf16 %v2953, %v2952
      %v3181 = vpack.c.bf16 %v2955, %v2954
      %v3182 = vpack.c.bf16 %v2957, %v2956
      %v3183 = vpack.c.bf16 %v2959, %v2958
      %v3184 = vpack.c.bf16 %v2961, %v2960
      %v3185 = vpack.c.bf16 %v2963, %v2962
      %v3186 = vpack.c.bf16 %v2965, %v2964
      %v3187 = vpack.c.bf16 %v2967, %v2966
      %v3188 = vpack.c.bf16 %v2969, %v2968
      %v3189 = vpack.c.bf16 %v2971, %v2970
      %v3190 = vpack.c.bf16 %v2973, %v2972
      %v3191 = vpack.c.bf16 %v2975, %v2974
      %v3192 = vpack.c.bf16 %v2977, %v2976
      %v3193 = vpack.c.bf16 %v2979, %v2978
      %v3194 = vpack.c.bf16 %v2981, %v2980
      %v3195 = vpack.c.bf16 %v2983, %v2982
      %v3196 = vpack.c.bf16 %v2985, %v2984
      %v3197 = vpack.c.bf16 %v2987, %v2986
      %v3198 = vpack.c.bf16 %v2989, %v2988
      %v3199 = vpack.c.bf16 %v2991, %v2990
      %v3200 = vpack.c.bf16 %v2993, %v2992
      %v3201 = vpack.c.bf16 %v2995, %v2994
      %v3202 = vpack.c.bf16 %v2997, %v2996
      %v3203 = vpack.c.bf16 %v2999, %v2998
      %v3204 = vpack.c.bf16 %v3001, %v3000
      %v3205 = vpack.c.bf16 %v3003, %v3002
      %v3206 = vpack.c.bf16 %v3005, %v3004
      %v3207 = vpack.c.bf16 %v3007, %v3006
      %v3208 = vpack.c.bf16 %v3009, %v3008
      %v3209 = vpack.c.bf16 %v3011, %v3010
      %v3210 = vpack.c.bf16 %v3013, %v3012
      %v3211 = vpack.c.bf16 %v3015, %v3014
      %v3212 = vpack.c.bf16 %v3017, %v3016
      %v3213 = vpack.c.bf16 %v3019, %v3018
      %v3214 = vpack.c.bf16 %v3021, %v3020
      %v3215 = vpack.c.bf16 %v3023, %v3022
      %v3216 = vpack.c.bf16 %v3025, %v3024
      %v3217 = vpack.c.bf16 %v3027, %v3026
      %v3218 = vpack.c.bf16 %v3029, %v3028
      %v3219 = vpack.c.bf16 %v3031, %v3030
      %v3220 = vpack.c.bf16 %v3033, %v3032
      %v3221 = vpack.c.bf16 %v3035, %v3034
      %v3222 = vpack.c.bf16 %v3037, %v3036
      %v3223 = vpack.c.bf16 %v3039, %v3038
      %v3224 = vpack.c.bf16 %v3041, %v3040
      %v3225 = vpack.c.bf16 %v3043, %v3042
      %v3226 = vpack.c.bf16 %v3045, %v3044
      %v3227 = vpack.c.bf16 %v3047, %v3046
      %v3228 = vpack.c.bf16 %v3049, %v3048
      %v3229 = vpack.c.bf16 %v3051, %v3050
      %v3230 = vpack.c.bf16 %v3053, %v3052
      %v3231 = vpack.c.bf16 %v3055, %v3054
      %v3232 = vpack.c.bf16 %v3057, %v3056
      %v3233 = vpack.c.bf16 %v3059, %v3058
      %v3234 = vpack.c.bf16 %v3061, %v3060
      %v3235 = vpack.c.bf16 %v3063, %v3062
      %v3236 = vpack.c.bf16 %v3065, %v3064
      %v3237 = vpack.c.bf16 %v3067, %v3066
      %v3238 = vpack.c.bf16 %v3069, %v3068
      %v3239 = vpack.c.bf16 %v3071, %v3070
      %v3240 = vpack.c.bf16 %v3073, %v3072
      %v3241 = vpack.c.bf16 %v3075, %v3074
      %v3242 = vpack.c.bf16 %v3077, %v3076
      %v3243 = vpack.c.bf16 %v3079, %v3078
      %v3244 = vpack.c.bf16 %v3081, %v3080
      %v3245 = vpack.c.bf16 %v3083, %v3082
      %v3246 = vpack.c.bf16 %v3085, %v3084
      %v3247 = vpack.c.bf16 %v3087, %v3086
      %v3248 = vpack.c.bf16 %v3089, %v3088
      %v3249 = vpack.c.bf16 %v3091, %v3090
      %v3250 = vpack.c.bf16 %v3093, %v3092
      %v3251 = vpack.c.bf16 %v3095, %v3094
      %v3252 = vpack.c.bf16 %v3097, %v3096
      %v3253 = vpack.c.bf16 %v3099, %v3098
      %v3254 = vpack.c.bf16 %v3101, %v3100
      %v3255 = vpack.c.bf16 %v3103, %v3102
      %v3256 = vpack.c.bf16 %v3105, %v3104
      %v3257 = vpack.c.bf16 %v3107, %v3106
      %v3258 = vpack.c.bf16 %v3109, %v3108
      %v3259 = vpack.c.bf16 %v3111, %v3110
      %v3260 = vpack.c.bf16 %v3113, %v3112
      %v3261 = vpack.c.bf16 %v3115, %v3114
      %v3262 = vpack.c.bf16 %v3117, %v3116
      %v3263 = vpack.c.bf16 %v3119, %v3118
      %v3408 = vunpack.c.l.b16 %v3120
      %v3409 = vunpack.c.h.b16 %v3120
      %v3410 = vunpack.c.l.b16 %v3121
      %v3411 = vunpack.c.h.b16 %v3121
      %v3412 = vunpack.c.l.b16 %v3122
      %v3413 = vunpack.c.h.b16 %v3122
      %v3414 = vunpack.c.l.b16 %v3123
      %v3415 = vunpack.c.h.b16 %v3123
      %v3416 = vunpack.c.l.b16 %v3124
      %v3417 = vunpack.c.h.b16 %v3124
      %v3418 = vunpack.c.l.b16 %v3125
      %v3419 = vunpack.c.h.b16 %v3125
      %v3420 = vunpack.c.l.b16 %v3126
      %v3421 = vunpack.c.h.b16 %v3126
      %v3422 = vunpack.c.l.b16 %v3127
      %v3423 = vunpack.c.h.b16 %v3127
      %v3424 = vunpack.c.l.b16 %v3128
      %v3425 = vunpack.c.h.b16 %v3128
      %v3426 = vunpack.c.l.b16 %v3129
      %v3427 = vunpack.c.h.b16 %v3129
      %v3428 = vunpack.c.l.b16 %v3130
      %v3429 = vunpack.c.h.b16 %v3130
      %v3430 = vunpack.c.l.b16 %v3131
      %v3431 = vunpack.c.h.b16 %v3131
      %v3432 = vunpack.c.l.b16 %v3132
      %v3433 = vunpack.c.h.b16 %v3132
      %v3434 = vunpack.c.l.b16 %v3133
      %v3435 = vunpack.c.h.b16 %v3133
      %v3436 = vunpack.c.l.b16 %v3134
      %v3437 = vunpack.c.h.b16 %v3134
      %v3438 = vunpack.c.l.b16 %v3135
      %v3439 = vunpack.c.h.b16 %v3135
      %v3440 = vunpack.c.l.b16 %v3136
      %v3441 = vunpack.c.h.b16 %v3136
      %v3442 = vunpack.c.l.b16 %v3137
      %v3443 = vunpack.c.h.b16 %v3137
      %v3444 = vunpack.c.l.b16 %v3138
      %v3445 = vunpack.c.h.b16 %v3138
      %v3446 = vunpack.c.l.b16 %v3139
      %v3447 = vunpack.c.h.b16 %v3139
      %v3448 = vunpack.c.l.b16 %v3140
      %v3449 = vunpack.c.h.b16 %v3140
      %v3450 = vunpack.c.l.b16 %v3141
      %v3451 = vunpack.c.h.b16 %v3141
      %v3452 = vunpack.c.l.b16 %v3142
      %v3453 = vunpack.c.h.b16 %v3142
      %v3454 = vunpack.c.l.b16 %v3143
      %v3455 = vunpack.c.h.b16 %v3143
      %v3456 = vunpack.c.l.b16 %v3144
      %v3457 = vunpack.c.h.b16 %v3144
      %v3458 = vunpack.c.l.b16 %v3145
      %v3459 = vunpack.c.h.b16 %v3145
      %v3460 = vunpack.c.l.b16 %v3146
      %v3461 = vunpack.c.h.b16 %v3146
      %v3462 = vunpack.c.l.b16 %v3147
      %v3463 = vunpack.c.h.b16 %v3147
      %v3464 = vunpack.c.l.b16 %v3148
      %v3465 = vunpack.c.h.b16 %v3148
      %v3466 = vunpack.c.l.b16 %v3149
      %v3467 = vunpack.c.h.b16 %v3149
      %v3468 = vunpack.c.l.b16 %v3150
      %v3469 = vunpack.c.h.b16 %v3150
      %v3470 = vunpack.c.l.b16 %v3151
      %v3471 = vunpack.c.h.b16 %v3151
      %v3472 = vunpack.c.l.b16 %v3152
      %v3473 = vunpack.c.h.b16 %v3152
      %v3474 = vunpack.c.l.b16 %v3153
      %v3475 = vunpack.c.h.b16 %v3153
      %v3476 = vunpack.c.l.b16 %v3154
      %v3477 = vunpack.c.h.b16 %v3154
      %v3478 = vunpack.c.l.b16 %v3155
      %v3479 = vunpack.c.h.b16 %v3155
      %v3480 = vunpack.c.l.b16 %v3156
      %v3481 = vunpack.c.h.b16 %v3156
      %v3482 = vunpack.c.l.b16 %v3157
      %v3483 = vunpack.c.h.b16 %v3157
      %v3484 = vunpack.c.l.b16 %v3158
      %v3485 = vunpack.c.h.b16 %v3158
      %v3486 = vunpack.c.l.b16 %v3159
      %v3487 = vunpack.c.h.b16 %v3159
      %v3488 = vunpack.c.l.b16 %v3160
      %v3489 = vunpack.c.h.b16 %v3160
      %v3490 = vunpack.c.l.b16 %v3161
      %v3491 = vunpack.c.h.b16 %v3161
      %v3492 = vunpack.c.l.b16 %v3162
      %v3493 = vunpack.c.h.b16 %v3162
      %v3494 = vunpack.c.l.b16 %v3163
      %v3495 = vunpack.c.h.b16 %v3163
      %v3496 = vunpack.c.l.b16 %v3164
      %v3497 = vunpack.c.h.b16 %v3164
      %v3498 = vunpack.c.l.b16 %v3165
      %v3499 = vunpack.c.h.b16 %v3165
      %v3500 = vunpack.c.l.b16 %v3166
      %v3501 = vunpack.c.h.b16 %v3166
      %v3502 = vunpack.c.l.b16 %v3167
      %v3503 = vunpack.c.h.b16 %v3167
      %v3504 = vunpack.c.l.b16 %v3168
      %v3505 = vunpack.c.h.b16 %v3168
      %v3506 = vunpack.c.l.b16 %v3169
      %v3507 = vunpack.c.h.b16 %v3169
      %v3508 = vunpack.c.l.b16 %v3170
      %v3509 = vunpack.c.h.b16 %v3170
      %v3510 = vunpack.c.l.b16 %v3171
      %v3511 = vunpack.c.h.b16 %v3171
      %v3512 = vunpack.c.l.b16 %v3172
      %v3513 = vunpack.c.h.b16 %v3172
      %v3514 = vunpack.c.l.b16 %v3173
      %v3515 = vunpack.c.h.b16 %v3173
      %v3516 = vunpack.c.l.b16 %v3174
      %v3517 = vunpack.c.h.b16 %v3174
      %v3518 = vunpack.c.l.b16 %v3175
      %v3519 = vunpack.c.h.b16 %v3175
      %v3520 = vunpack.c.l.b16 %v3176
      %v3521 = vunpack.c.h.b16 %v3176
      %v3522 = vunpack.c.l.b16 %v3177
      %v3523 = vunpack.c.h.b16 %v3177
      %v3524 = vunpack.c.l.b16 %v3178
      %v3525 = vunpack.c.h.b16 %v3178
      %v3526 = vunpack.c.l.b16 %v3179
      %v3527 = vunpack.c.h.b16 %v3179
      %v3528 = vunpack.c.l.b16 %v3180
      %v3529 = vunpack.c.h.b16 %v3180
      %v3530 = vunpack.c.l.b16 %v3181
      %v3531 = vunpack.c.h.b16 %v3181
      %v3532 = vunpack.c.l.b16 %v3182
      %v3533 = vunpack.c.h.b16 %v3182
      %v3534 = vunpack.c.l.b16 %v3183
      %v3535 = vunpack.c.h.b16 %v3183
      %v3536 = vunpack.c.l.b16 %v3184
      %v3537 = vunpack.c.h.b16 %v3184
      %v3538 = vunpack.c.l.b16 %v3185
      %v3539 = vunpack.c.h.b16 %v3185
      %v3540 = vunpack.c.l.b16 %v3186
      %v3541 = vunpack.c.h.b16 %v3186
      %v3542 = vunpack.c.l.b16 %v3187
      %v3543 = vunpack.c.h.b16 %v3187
      %v3544 = vunpack.c.l.b16 %v3188
      %v3545 = vunpack.c.h.b16 %v3188
      %v3546 = vunpack.c.l.b16 %v3189
      %v3547 = vunpack.c.h.b16 %v3189
      %v3548 = vunpack.c.l.b16 %v3190
      %v3549 = vunpack.c.h.b16 %v3190
      %v3550 = vunpack.c.l.b16 %v3191
      %v3551 = vunpack.c.h.b16 %v3191
      %v3552 = vunpack.c.l.b16 %v3192
      %v3553 = vunpack.c.h.b16 %v3192
      %v3554 = vunpack.c.l.b16 %v3193
      %v3555 = vunpack.c.h.b16 %v3193
      %v3556 = vunpack.c.l.b16 %v3194
      %v3557 = vunpack.c.h.b16 %v3194
      %v3558 = vunpack.c.l.b16 %v3195
      %v3559 = vunpack.c.h.b16 %v3195
      %v3560 = vunpack.c.l.b16 %v3196
      %v3561 = vunpack.c.h.b16 %v3196
      %v3562 = vunpack.c.l.b16 %v3197
      %v3563 = vunpack.c.h.b16 %v3197
      %v3564 = vunpack.c.l.b16 %v3198
      %v3565 = vunpack.c.h.b16 %v3198
      %v3566 = vunpack.c.l.b16 %v3199
      %v3567 = vunpack.c.h.b16 %v3199
      %v3568 = vunpack.c.l.b16 %v3200
      %v3569 = vunpack.c.h.b16 %v3200
      %v3570 = vunpack.c.l.b16 %v3201
      %v3571 = vunpack.c.h.b16 %v3201
      %v3572 = vunpack.c.l.b16 %v3202
      %v3573 = vunpack.c.h.b16 %v3202
      %v3574 = vunpack.c.l.b16 %v3203
      %v3575 = vunpack.c.h.b16 %v3203
      %v3576 = vunpack.c.l.b16 %v3204
      %v3577 = vunpack.c.h.b16 %v3204
      %v3578 = vunpack.c.l.b16 %v3205
      %v3579 = vunpack.c.h.b16 %v3205
      %v3580 = vunpack.c.l.b16 %v3206
      %v3581 = vunpack.c.h.b16 %v3206
      %v3582 = vunpack.c.l.b16 %v3207
      %v3583 = vunpack.c.h.b16 %v3207
      %v3584 = vunpack.c.l.b16 %v3208
      %v3585 = vunpack.c.h.b16 %v3208
      %v3586 = vunpack.c.l.b16 %v3209
      %v3587 = vunpack.c.h.b16 %v3209
      %v3588 = vunpack.c.l.b16 %v3210
      %v3589 = vunpack.c.h.b16 %v3210
      %v3590 = vunpack.c.l.b16 %v3211
      %v3591 = vunpack.c.h.b16 %v3211
      %v3592 = vunpack.c.l.b16 %v3212
      %v3593 = vunpack.c.h.b16 %v3212
      %v3594 = vunpack.c.l.b16 %v3213
      %v3595 = vunpack.c.h.b16 %v3213
      %v3596 = vunpack.c.l.b16 %v3214
      %v3597 = vunpack.c.h.b16 %v3214
      %v3598 = vunpack.c.l.b16 %v3215
      %v3599 = vunpack.c.h.b16 %v3215
      %v3600 = vunpack.c.l.b16 %v3216
      %v3601 = vunpack.c.h.b16 %v3216
      %v3602 = vunpack.c.l.b16 %v3217
      %v3603 = vunpack.c.h.b16 %v3217
      %v3604 = vunpack.c.l.b16 %v3218
      %v3605 = vunpack.c.h.b16 %v3218
      %v3606 = vunpack.c.l.b16 %v3219
      %v3607 = vunpack.c.h.b16 %v3219
      %v3608 = vunpack.c.l.b16 %v3220
      %v3609 = vunpack.c.h.b16 %v3220
      %v3610 = vunpack.c.l.b16 %v3221
      %v3611 = vunpack.c.h.b16 %v3221
      %v3612 = vunpack.c.l.b16 %v3222
      %v3613 = vunpack.c.h.b16 %v3222
      %v3614 = vunpack.c.l.b16 %v3223
      %v3615 = vunpack.c.h.b16 %v3223
      %v3616 = vunpack.c.l.b16 %v3224
      %v3617 = vunpack.c.h.b16 %v3224
      %v3618 = vunpack.c.l.b16 %v3225
      %v3619 = vunpack.c.h.b16 %v3225
      %v3620 = vunpack.c.l.b16 %v3226
      %v3621 = vunpack.c.h.b16 %v3226
      %v3622 = vunpack.c.l.b16 %v3227
      %v3623 = vunpack.c.h.b16 %v3227
      %v3624 = vunpack.c.l.b16 %v3228
      %v3625 = vunpack.c.h.b16 %v3228
      %v3626 = vunpack.c.l.b16 %v3229
      %v3627 = vunpack.c.h.b16 %v3229
      %v3628 = vunpack.c.l.b16 %v3230
      %v3629 = vunpack.c.h.b16 %v3230
      %v3630 = vunpack.c.l.b16 %v3231
      %v3631 = vunpack.c.h.b16 %v3231
      %v3632 = vunpack.c.l.b16 %v3232
      %v3633 = vunpack.c.h.b16 %v3232
      %v3634 = vunpack.c.l.b16 %v3233
      %v3635 = vunpack.c.h.b16 %v3233
      %v3636 = vunpack.c.l.b16 %v3234
      %v3637 = vunpack.c.h.b16 %v3234
      %v3638 = vunpack.c.l.b16 %v3235
      %v3639 = vunpack.c.h.b16 %v3235
      %v3640 = vunpack.c.l.b16 %v3236
      %v3641 = vunpack.c.h.b16 %v3236
      %v3642 = vunpack.c.l.b16 %v3237
      %v3643 = vunpack.c.h.b16 %v3237
      %v3644 = vunpack.c.l.b16 %v3238
      %v3645 = vunpack.c.h.b16 %v3238
      %v3646 = vunpack.c.l.b16 %v3239
      %v3647 = vunpack.c.h.b16 %v3239
      %v3648 = vunpack.c.l.b16 %v3240
      %v3649 = vunpack.c.h.b16 %v3240
      %v3650 = vunpack.c.l.b16 %v3241
      %v3651 = vunpack.c.h.b16 %v3241
      %v3652 = vunpack.c.l.b16 %v3242
      %v3653 = vunpack.c.h.b16 %v3242
      %v3654 = vunpack.c.l.b16 %v3243
      %v3655 = vunpack.c.h.b16 %v3243
      %v3656 = vunpack.c.l.b16 %v3244
      %v3657 = vunpack.c.h.b16 %v3244
      %v3658 = vunpack.c.l.b16 %v3245
      %v3659 = vunpack.c.h.b16 %v3245
      %v3660 = vunpack.c.l.b16 %v3246
      %v3661 = vunpack.c.h.b16 %v3246
      %v3662 = vunpack.c.l.b16 %v3247
      %v3663 = vunpack.c.h.b16 %v3247
      %v3664 = vunpack.c.l.b16 %v3248
      %v3665 = vunpack.c.h.b16 %v3248
      %v3666 = vunpack.c.l.b16 %v3249
      %v3667 = vunpack.c.h.b16 %v3249
      %v3668 = vunpack.c.l.b16 %v3250
      %v3669 = vunpack.c.h.b16 %v3250
      %v3670 = vunpack.c.l.b16 %v3251
      %v3671 = vunpack.c.h.b16 %v3251
      %v3672 = vunpack.c.l.b16 %v3252
      %v3673 = vunpack.c.h.b16 %v3252
      %v3674 = vunpack.c.l.b16 %v3253
      %v3675 = vunpack.c.h.b16 %v3253
      %v3676 = vunpack.c.l.b16 %v3254
      %v3677 = vunpack.c.h.b16 %v3254
      %v3678 = vunpack.c.l.b16 %v3255
      %v3679 = vunpack.c.h.b16 %v3255
      %v3680 = vunpack.c.l.b16 %v3256
      %v3681 = vunpack.c.h.b16 %v3256
      %v3682 = vunpack.c.l.b16 %v3257
      %v3683 = vunpack.c.h.b16 %v3257
      %v3684 = vunpack.c.l.b16 %v3258
      %v3685 = vunpack.c.h.b16 %v3258
      %v3686 = vunpack.c.l.b16 %v3259
      %v3687 = vunpack.c.h.b16 %v3259
      %v3688 = vunpack.c.l.b16 %v3260
      %v3689 = vunpack.c.h.b16 %v3260
      %v3690 = vunpack.c.l.b16 %v3261
      %v3691 = vunpack.c.h.b16 %v3261
      %v3692 = vunpack.c.l.b16 %v3262
      %v3693 = vunpack.c.h.b16 %v3262
      %v3694 = vunpack.c.l.b16 %v3263
      %v3695 = vunpack.c.h.b16 %v3263
      %v3696 = vpack.c.b16 %v3408, %v3408
      %v3697 = vpack.c.b16 %v3409, %v3409
      %v3698 = vpack.c.b16 %v3410, %v3410
      %v3699 = vpack.c.b16 %v3411, %v3411
      %v3700 = vpack.c.b16 %v3412, %v3412
      %v3701 = vpack.c.b16 %v3413, %v3413
      %v3702 = vpack.c.b16 %v3414, %v3414
      %v3703 = vpack.c.b16 %v3415, %v3415
      %v3704 = vpack.c.b16 %v3416, %v3416
      %v3705 = vpack.c.b16 %v3417, %v3417
      %v3706 = vpack.c.b16 %v3418, %v3418
      %v3707 = vpack.c.b16 %v3419, %v3419
      %v3708 = vpack.c.b16 %v3420, %v3420
      %v3709 = vpack.c.b16 %v3421, %v3421
      %v3710 = vpack.c.b16 %v3422, %v3422
      %v3711 = vpack.c.b16 %v3423, %v3423
      %v3712 = vpack.c.b16 %v3424, %v3424
      %v3713 = vpack.c.b16 %v3425, %v3425
      %v3714 = vpack.c.b16 %v3426, %v3426
      %v3715 = vpack.c.b16 %v3427, %v3427
      %v3716 = vpack.c.b16 %v3428, %v3428
      %v3717 = vpack.c.b16 %v3429, %v3429
      %v3718 = vpack.c.b16 %v3430, %v3430
      %v3719 = vpack.c.b16 %v3431, %v3431
      %v3720 = vpack.c.b16 %v3432, %v3432
      %v3721 = vpack.c.b16 %v3433, %v3433
      %v3722 = vpack.c.b16 %v3434, %v3434
      %v3723 = vpack.c.b16 %v3435, %v3435
      %v3724 = vpack.c.b16 %v3436, %v3436
      %v3725 = vpack.c.b16 %v3437, %v3437
      %v3726 = vpack.c.b16 %v3438, %v3438
      %v3727 = vpack.c.b16 %v3439, %v3439
      %v3728 = vpack.c.b16 %v3440, %v3440
      %v3729 = vpack.c.b16 %v3441, %v3441
      %v3730 = vpack.c.b16 %v3442, %v3442
      %v3731 = vpack.c.b16 %v3443, %v3443
      %v3732 = vpack.c.b16 %v3444, %v3444
      %v3733 = vpack.c.b16 %v3445, %v3445
      %v3734 = vpack.c.b16 %v3446, %v3446
      %v3735 = vpack.c.b16 %v3447, %v3447
      %v3736 = vpack.c.b16 %v3448, %v3448
      %v3737 = vpack.c.b16 %v3449, %v3449
      %v3738 = vpack.c.b16 %v3450, %v3450
      %v3739 = vpack.c.b16 %v3451, %v3451
      %v3740 = vpack.c.b16 %v3452, %v3452
      %v3741 = vpack.c.b16 %v3453, %v3453
      %v3742 = vpack.c.b16 %v3454, %v3454
      %v3743 = vpack.c.b16 %v3455, %v3455
      %v3744 = vpack.c.b16 %v3456, %v3456
      %v3745 = vpack.c.b16 %v3457, %v3457
      %v3746 = vpack.c.b16 %v3458, %v3458
      %v3747 = vpack.c.b16 %v3459, %v3459
      %v3748 = vpack.c.b16 %v3460, %v3460
      %v3749 = vpack.c.b16 %v3461, %v3461
      %v3750 = vpack.c.b16 %v3462, %v3462
      %v3751 = vpack.c.b16 %v3463, %v3463
      %v3752 = vpack.c.b16 %v3464, %v3464
      %v3753 = vpack.c.b16 %v3465, %v3465
      %v3754 = vpack.c.b16 %v3466, %v3466
      %v3755 = vpack.c.b16 %v3467, %v3467
      %v3756 = vpack.c.b16 %v3468, %v3468
      %v3757 = vpack.c.b16 %v3469, %v3469
      %v3758 = vpack.c.b16 %v3470, %v3470
      %v3759 = vpack.c.b16 %v3471, %v3471
      %v3760 = vpack.c.b16 %v3472, %v3472
      %v3761 = vpack.c.b16 %v3473, %v3473
      %v3762 = vpack.c.b16 %v3474, %v3474
      %v3763 = vpack.c.b16 %v3475, %v3475
      %v3764 = vpack.c.b16 %v3476, %v3476
      %v3765 = vpack.c.b16 %v3477, %v3477
      %v3766 = vpack.c.b16 %v3478, %v3478
      %v3767 = vpack.c.b16 %v3479, %v3479
      %v3768 = vpack.c.b16 %v3480, %v3480
      %v3769 = vpack.c.b16 %v3481, %v3481
      %v3770 = vpack.c.b16 %v3482, %v3482
      %v3771 = vpack.c.b16 %v3483, %v3483
      %v3772 = vpack.c.b16 %v3484, %v3484
      %v3773 = vpack.c.b16 %v3485, %v3485
      %v3774 = vpack.c.b16 %v3486, %v3486
      %v3775 = vpack.c.b16 %v3487, %v3487
      %v3776 = vpack.c.b16 %v3488, %v3488
      %v3777 = vpack.c.b16 %v3489, %v3489
      %v3778 = vpack.c.b16 %v3490, %v3490
      %v3779 = vpack.c.b16 %v3491, %v3491
      %v3780 = vpack.c.b16 %v3492, %v3492
      %v3781 = vpack.c.b16 %v3493, %v3493
      %v3782 = vpack.c.b16 %v3494, %v3494
      %v3783 = vpack.c.b16 %v3495, %v3495
      %v3784 = vpack.c.b16 %v3496, %v3496
      %v3785 = vpack.c.b16 %v3497, %v3497
      %v3786 = vpack.c.b16 %v3498, %v3498
      %v3787 = vpack.c.b16 %v3499, %v3499
      %v3788 = vpack.c.b16 %v3500, %v3500
      %v3789 = vpack.c.b16 %v3501, %v3501
      %v3790 = vpack.c.b16 %v3502, %v3502
      %v3791 = vpack.c.b16 %v3503, %v3503
      %v3792 = vpack.c.b16 %v3504, %v3504
      %v3793 = vpack.c.b16 %v3505, %v3505
      %v3794 = vpack.c.b16 %v3506, %v3506
      %v3795 = vpack.c.b16 %v3507, %v3507
      %v3796 = vpack.c.b16 %v3508, %v3508
      %v3797 = vpack.c.b16 %v3509, %v3509
      %v3798 = vpack.c.b16 %v3510, %v3510
      %v3799 = vpack.c.b16 %v3511, %v3511
      %v3800 = vpack.c.b16 %v3512, %v3512
      %v3801 = vpack.c.b16 %v3513, %v3513
      %v3802 = vpack.c.b16 %v3514, %v3514
      %v3803 = vpack.c.b16 %v3515, %v3515
      %v3804 = vpack.c.b16 %v3516, %v3516
      %v3805 = vpack.c.b16 %v3517, %v3517
      %v3806 = vpack.c.b16 %v3518, %v3518
      %v3807 = vpack.c.b16 %v3519, %v3519
      %v3808 = vpack.c.b16 %v3520, %v3520
      %v3809 = vpack.c.b16 %v3521, %v3521
      %v3810 = vpack.c.b16 %v3522, %v3522
      %v3811 = vpack.c.b16 %v3523, %v3523
      %v3812 = vpack.c.b16 %v3524, %v3524
      %v3813 = vpack.c.b16 %v3525, %v3525
      %v3814 = vpack.c.b16 %v3526, %v3526
      %v3815 = vpack.c.b16 %v3527, %v3527
      %v3816 = vpack.c.b16 %v3528, %v3528
      %v3817 = vpack.c.b16 %v3529, %v3529
      %v3818 = vpack.c.b16 %v3530, %v3530
      %v3819 = vpack.c.b16 %v3531, %v3531
      %v3820 = vpack.c.b16 %v3532, %v3532
      %v3821 = vpack.c.b16 %v3533, %v3533
      %v3822 = vpack.c.b16 %v3534, %v3534
      %v3823 = vpack.c.b16 %v3535, %v3535
      %v3824 = vpack.c.b16 %v3536, %v3536
      %v3825 = vpack.c.b16 %v3537, %v3537
      %v3826 = vpack.c.b16 %v3538, %v3538
      %v3827 = vpack.c.b16 %v3539, %v3539
      %v3828 = vpack.c.b16 %v3540, %v3540
      %v3829 = vpack.c.b16 %v3541, %v3541
      %v3830 = vpack.c.b16 %v3542, %v3542
      %v3831 = vpack.c.b16 %v3543, %v3543
      %v3832 = vpack.c.b16 %v3544, %v3544
      %v3833 = vpack.c.b16 %v3545, %v3545
      %v3834 = vpack.c.b16 %v3546, %v3546
      %v3835 = vpack.c.b16 %v3547, %v3547
      %v3836 = vpack.c.b16 %v3548, %v3548
      %v3837 = vpack.c.b16 %v3549, %v3549
      %v3838 = vpack.c.b16 %v3550, %v3550
      %v3839 = vpack.c.b16 %v3551, %v3551
      %v3840 = vpack.c.b16 %v3552, %v3552
      %v3841 = vpack.c.b16 %v3553, %v3553
      %v3842 = vpack.c.b16 %v3554, %v3554
      %v3843 = vpack.c.b16 %v3555, %v3555
      %v3844 = vpack.c.b16 %v3556, %v3556
      %v3845 = vpack.c.b16 %v3557, %v3557
      %v3846 = vpack.c.b16 %v3558, %v3558
      %v3847 = vpack.c.b16 %v3559, %v3559
      %v3848 = vpack.c.b16 %v3560, %v3560
      %v3849 = vpack.c.b16 %v3561, %v3561
      %v3850 = vpack.c.b16 %v3562, %v3562
      %v3851 = vpack.c.b16 %v3563, %v3563
      %v3852 = vpack.c.b16 %v3564, %v3564
      %v3853 = vpack.c.b16 %v3565, %v3565
      %v3854 = vpack.c.b16 %v3566, %v3566
      %v3855 = vpack.c.b16 %v3567, %v3567
      %v3856 = vpack.c.b16 %v3568, %v3568
      %v3857 = vpack.c.b16 %v3569, %v3569
      %v3858 = vpack.c.b16 %v3570, %v3570
      %v3859 = vpack.c.b16 %v3571, %v3571
      %v3860 = vpack.c.b16 %v3572, %v3572
      %v3861 = vpack.c.b16 %v3573, %v3573
      %v3862 = vpack.c.b16 %v3574, %v3574
      %v3863 = vpack.c.b16 %v3575, %v3575
      %v3864 = vpack.c.b16 %v3576, %v3576
      %v3865 = vpack.c.b16 %v3577, %v3577
      %v3866 = vpack.c.b16 %v3578, %v3578
      %v3867 = vpack.c.b16 %v3579, %v3579
      %v3868 = vpack.c.b16 %v3580, %v3580
      %v3869 = vpack.c.b16 %v3581, %v3581
      %v3870 = vpack.c.b16 %v3582, %v3582
      %v3871 = vpack.c.b16 %v3583, %v3583
      %v3872 = vpack.c.b16 %v3584, %v3584
      %v3873 = vpack.c.b16 %v3585, %v3585
      %v3874 = vpack.c.b16 %v3586, %v3586
      %v3875 = vpack.c.b16 %v3587, %v3587
      %v3876 = vpack.c.b16 %v3588, %v3588
      %v3877 = vpack.c.b16 %v3589, %v3589
      %v3878 = vpack.c.b16 %v3590, %v3590
      %v3879 = vpack.c.b16 %v3591, %v3591
      %v3880 = vpack.c.b16 %v3592, %v3592
      %v3881 = vpack.c.b16 %v3593, %v3593
      %v3882 = vpack.c.b16 %v3594, %v3594
      %v3883 = vpack.c.b16 %v3595, %v3595
      %v3884 = vpack.c.b16 %v3596, %v3596
      %v3885 = vpack.c.b16 %v3597, %v3597
      %v3886 = vpack.c.b16 %v3598, %v3598
      %v3887 = vpack.c.b16 %v3599, %v3599
      %v3888 = vpack.c.b16 %v3600, %v3600
      %v3889 = vpack.c.b16 %v3601, %v3601
      %v3890 = vpack.c.b16 %v3602, %v3602
      %v3891 = vpack.c.b16 %v3603, %v3603
      %v3892 = vpack.c.b16 %v3604, %v3604
      %v3893 = vpack.c.b16 %v3605, %v3605
      %v3894 = vpack.c.b16 %v3606, %v3606
      %v3895 = vpack.c.b16 %v3607, %v3607
      %v3896 = vpack.c.b16 %v3608, %v3608
      %v3897 = vpack.c.b16 %v3609, %v3609
      %v3898 = vpack.c.b16 %v3610, %v3610
      %v3899 = vpack.c.b16 %v3611, %v3611
      %v3900 = vpack.c.b16 %v3612, %v3612
      %v3901 = vpack.c.b16 %v3613, %v3613
      %v3902 = vpack.c.b16 %v3614, %v3614
      %v3903 = vpack.c.b16 %v3615, %v3615
      %v3904 = vpack.c.b16 %v3616, %v3616
      %v3905 = vpack.c.b16 %v3617, %v3617
      %v3906 = vpack.c.b16 %v3618, %v3618
      %v3907 = vpack.c.b16 %v3619, %v3619
      %v3908 = vpack.c.b16 %v3620, %v3620
      %v3909 = vpack.c.b16 %v3621, %v3621
      %v3910 = vpack.c.b16 %v3622, %v3622
      %v3911 = vpack.c.b16 %v3623, %v3623
      %v3912 = vpack.c.b16 %v3624, %v3624
      %v3913 = vpack.c.b16 %v3625, %v3625
      %v3914 = vpack.c.b16 %v3626, %v3626
      %v3915 = vpack.c.b16 %v3627, %v3627
      %v3916 = vpack.c.b16 %v3628, %v3628
      %v3917 = vpack.c.b16 %v3629, %v3629
      %v3918 = vpack.c.b16 %v3630, %v3630
      %v3919 = vpack.c.b16 %v3631, %v3631
      %v3920 = vpack.c.b16 %v3632, %v3632
      %v3921 = vpack.c.b16 %v3633, %v3633
      %v3922 = vpack.c.b16 %v3634, %v3634
      %v3923 = vpack.c.b16 %v3635, %v3635
      %v3924 = vpack.c.b16 %v3636, %v3636
      %v3925 = vpack.c.b16 %v3637, %v3637
      %v3926 = vpack.c.b16 %v3638, %v3638
      %v3927 = vpack.c.b16 %v3639, %v3639
      %v3928 = vpack.c.b16 %v3640, %v3640
      %v3929 = vpack.c.b16 %v3641, %v3641
      %v3930 = vpack.c.b16 %v3642, %v3642
      %v3931 = vpack.c.b16 %v3643, %v3643
      %v3932 = vpack.c.b16 %v3644, %v3644
      %v3933 = vpack.c.b16 %v3645, %v3645
      %v3934 = vpack.c.b16 %v3646, %v3646
      %v3935 = vpack.c.b16 %v3647, %v3647
      %v3936 = vpack.c.b16 %v3648, %v3648
      %v3937 = vpack.c.b16 %v3649, %v3649
      %v3938 = vpack.c.b16 %v3650, %v3650
      %v3939 = vpack.c.b16 %v3651, %v3651
      %v3940 = vpack.c.b16 %v3652, %v3652
      %v3941 = vpack.c.b16 %v3653, %v3653
      %v3942 = vpack.c.b16 %v3654, %v3654
      %v3943 = vpack.c.b16 %v3655, %v3655
      %v3944 = vpack.c.b16 %v3656, %v3656
      %v3945 = vpack.c.b16 %v3657, %v3657
      %v3946 = vpack.c.b16 %v3658, %v3658
      %v3947 = vpack.c.b16 %v3659, %v3659
      %v3948 = vpack.c.b16 %v3660, %v3660
      %v3949 = vpack.c.b16 %v3661, %v3661
      %v3950 = vpack.c.b16 %v3662, %v3662
      %v3951 = vpack.c.b16 %v3663, %v3663
      %v3952 = vpack.c.b16 %v3664, %v3664
      %v3953 = vpack.c.b16 %v3665, %v3665
      %v3954 = vpack.c.b16 %v3666, %v3666
      %v3955 = vpack.c.b16 %v3667, %v3667
      %v3956 = vpack.c.b16 %v3668, %v3668
      %v3957 = vpack.c.b16 %v3669, %v3669
      %v3958 = vpack.c.b16 %v3670, %v3670
      %v3959 = vpack.c.b16 %v3671, %v3671
      %v3960 = vpack.c.b16 %v3672, %v3672
      %v3961 = vpack.c.b16 %v3673, %v3673
      %v3962 = vpack.c.b16 %v3674, %v3674
      %v3963 = vpack.c.b16 %v3675, %v3675
      %v3964 = vpack.c.b16 %v3676, %v3676
      %v3965 = vpack.c.b16 %v3677, %v3677
      %v3966 = vpack.c.b16 %v3678, %v3678
      %v3967 = vpack.c.b16 %v3679, %v3679
      %v3968 = vpack.c.b16 %v3680, %v3680
      %v3969 = vpack.c.b16 %v3681, %v3681
      %v3970 = vpack.c.b16 %v3682, %v3682
      %v3971 = vpack.c.b16 %v3683, %v3683
      %v3972 = vpack.c.b16 %v3684, %v3684
      %v3973 = vpack.c.b16 %v3685, %v3685
      %v3974 = vpack.c.b16 %v3686, %v3686
      %v3975 = vpack.c.b16 %v3687, %v3687
      %v3976 = vpack.c.b16 %v3688, %v3688
      %v3977 = vpack.c.b16 %v3689, %v3689
      %v3978 = vpack.c.b16 %v3690, %v3690
      %v3979 = vpack.c.b16 %v3691, %v3691
      %v3980 = vpack.c.b16 %v3692, %v3692
      %v3981 = vpack.c.b16 %v3693, %v3693
      %v3982 = vpack.c.b16 %v3694, %v3694
      %v3983 = vpack.c.b16 %v3695, %v3695
      %vm4272 = vcmask 257024
      %4273 = vst.msk [vmem:[%s172] sm:$0xf] %vm4272, %v3696
      %4274 = vst.msk [vmem:[%s172 + $0x4] sm:$0xf] %vm4272, %v3697
      %4275 = vst.msk [vmem:[%s172 + $0x8] sm:$0xf] %vm4272, %v3698
      %4276 = vst.msk [vmem:[%s172 + $0xc] sm:$0xf] %vm4272, %v3699
      %4277 = vst.msk [vmem:[%s172 + $0x10] sm:$0xf] %vm4272, %v3700
      %4278 = vst.msk [vmem:[%s172 + $0x14] sm:$0xf] %vm4272, %v3701
      %4279 = vst.msk [vmem:[%s172 + $0x18] sm:$0xf] %vm4272, %v3702
      %4280 = vst.msk [vmem:[%s172 + $0x1c] sm:$0xf] %vm4272, %v3703
      %4281 = vst.msk [vmem:[%s172 + $0x20] sm:$0xf] %vm4272, %v3704
      %4282 = vst.msk [vmem:[%s172 + $0x24] sm:$0xf] %vm4272, %v3705
      %4283 = vst.msk [vmem:[%s172 + $0x28] sm:$0xf] %vm4272, %v3706
      %4284 = vst.msk [vmem:[%s172 + $0x2c] sm:$0xf] %vm4272, %v3707
      %4285 = vst.msk [vmem:[%s172 + $0x30] sm:$0xf] %vm4272, %v3708
      %4286 = vst.msk [vmem:[%s172 + $0x34] sm:$0xf] %vm4272, %v3709
      %4287 = vst.msk [vmem:[%s172 + $0x38] sm:$0xf] %vm4272, %v3710
      %4288 = vst.msk [vmem:[%s172 + $0x3c] sm:$0xf] %vm4272, %v3711
      %4289 = vst.msk [vmem:[%s172 + $0x40] sm:$0xf] %vm4272, %v3712
      %4290 = vst.msk [vmem:[%s172 + $0x44] sm:$0xf] %vm4272, %v3713
      %4291 = vst.msk [vmem:[%s172 + $0x48] sm:$0xf] %vm4272, %v3714
      %4292 = vst.msk [vmem:[%s172 + $0x4c] sm:$0xf] %vm4272, %v3715
      %4293 = vst.msk [vmem:[%s172 + $0x50] sm:$0xf] %vm4272, %v3716
      %4294 = vst.msk [vmem:[%s172 + $0x54] sm:$0xf] %vm4272, %v3717
      %4295 = vst.msk [vmem:[%s172 + $0x58] sm:$0xf] %vm4272, %v3718
      %4296 = vst.msk [vmem:[%s172 + $0x5c] sm:$0xf] %vm4272, %v3719
      %4297 = vst.msk [vmem:[%s172 + $0x60] sm:$0xf] %vm4272, %v3720
      %4298 = vst.msk [vmem:[%s172 + $0x64] sm:$0xf] %vm4272, %v3721
      %4299 = vst.msk [vmem:[%s172 + $0x68] sm:$0xf] %vm4272, %v3722
      %4300 = vst.msk [vmem:[%s172 + $0x6c] sm:$0xf] %vm4272, %v3723
      %4301 = vst.msk [vmem:[%s172 + $0x70] sm:$0xf] %vm4272, %v3724
      %4302 = vst.msk [vmem:[%s172 + $0x74] sm:$0xf] %vm4272, %v3725
      %4303 = vst.msk [vmem:[%s172 + $0x78] sm:$0xf] %vm4272, %v3726
      %4304 = vst.msk [vmem:[%s172 + $0x7c] sm:$0xf] %vm4272, %v3727
      %4305 = vst.msk [vmem:[%s172 + $0x80] sm:$0xf] %vm4272, %v3728
      %4306 = vst.msk [vmem:[%s172 + $0x84] sm:$0xf] %vm4272, %v3729
      %4307 = vst.msk [vmem:[%s172 + $0x88] sm:$0xf] %vm4272, %v3730
      %4308 = vst.msk [vmem:[%s172 + $0x8c] sm:$0xf] %vm4272, %v3731
      %4309 = vst.msk [vmem:[%s172 + $0x90] sm:$0xf] %vm4272, %v3732
      %4310 = vst.msk [vmem:[%s172 + $0x94] sm:$0xf] %vm4272, %v3733
      %4311 = vst.msk [vmem:[%s172 + $0x98] sm:$0xf] %vm4272, %v3734
      %4312 = vst.msk [vmem:[%s172 + $0x9c] sm:$0xf] %vm4272, %v3735
      %4313 = vst.msk [vmem:[%s172 + $0xa0] sm:$0xf] %vm4272, %v3736
      %4314 = vst.msk [vmem:[%s172 + $0xa4] sm:$0xf] %vm4272, %v3737
      %4315 = vst.msk [vmem:[%s172 + $0xa8] sm:$0xf] %vm4272, %v3738
      %4316 = vst.msk [vmem:[%s172 + $0xac] sm:$0xf] %vm4272, %v3739
      %4317 = vst.msk [vmem:[%s172 + $0xb0] sm:$0xf] %vm4272, %v3740
      %4318 = vst.msk [vmem:[%s172 + $0xb4] sm:$0xf] %vm4272, %v3741
      %4319 = vst.msk [vmem:[%s172 + $0xb8] sm:$0xf] %vm4272, %v3742
      %4320 = vst.msk [vmem:[%s172 + $0xbc] sm:$0xf] %vm4272, %v3743
      %4321 = vst.msk [vmem:[%s172 + $0xc0] sm:$0xf] %vm4272, %v3744
      %4322 = vst.msk [vmem:[%s172 + $0xc4] sm:$0xf] %vm4272, %v3745
      %4323 = vst.msk [vmem:[%s172 + $0xc8] sm:$0xf] %vm4272, %v3746
      %4324 = vst.msk [vmem:[%s172 + $0xcc] sm:$0xf] %vm4272, %v3747
      %4325 = vst.msk [vmem:[%s172 + $0xd0] sm:$0xf] %vm4272, %v3748
      %4326 = vst.msk [vmem:[%s172 + $0xd4] sm:$0xf] %vm4272, %v3749
      %4327 = vst.msk [vmem:[%s172 + $0xd8] sm:$0xf] %vm4272, %v3750
      %4328 = vst.msk [vmem:[%s172 + $0xdc] sm:$0xf] %vm4272, %v3751
      %4329 = vst.msk [vmem:[%s172 + $0xe0] sm:$0xf] %vm4272, %v3752
      %4330 = vst.msk [vmem:[%s172 + $0xe4] sm:$0xf] %vm4272, %v3753
      %4331 = vst.msk [vmem:[%s172 + $0xe8] sm:$0xf] %vm4272, %v3754
      %4332 = vst.msk [vmem:[%s172 + $0xec] sm:$0xf] %vm4272, %v3755
      %4333 = vst.msk [vmem:[%s172 + $0xf0] sm:$0xf] %vm4272, %v3756
      %4334 = vst.msk [vmem:[%s172 + $0xf4] sm:$0xf] %vm4272, %v3757
      %4335 = vst.msk [vmem:[%s172 + $0xf8] sm:$0xf] %vm4272, %v3758
      %4336 = vst.msk [vmem:[%s172 + $0xfc] sm:$0xf] %vm4272, %v3759
      %4337 = vst.msk [vmem:[%s172 + $0x100] sm:$0xf] %vm4272, %v3760
      %4338 = vst.msk [vmem:[%s172 + $0x104] sm:$0xf] %vm4272, %v3761
      %4339 = vst.msk [vmem:[%s172 + $0x108] sm:$0xf] %vm4272, %v3762
      %4340 = vst.msk [vmem:[%s172 + $0x10c] sm:$0xf] %vm4272, %v3763
      %4341 = vst.msk [vmem:[%s172 + $0x110] sm:$0xf] %vm4272, %v3764
      %4342 = vst.msk [vmem:[%s172 + $0x114] sm:$0xf] %vm4272, %v3765
      %4343 = vst.msk [vmem:[%s172 + $0x118] sm:$0xf] %vm4272, %v3766
      %4344 = vst.msk [vmem:[%s172 + $0x11c] sm:$0xf] %vm4272, %v3767
      %4345 = vst.msk [vmem:[%s172 + $0x120] sm:$0xf] %vm4272, %v3768
      %4346 = vst.msk [vmem:[%s172 + $0x124] sm:$0xf] %vm4272, %v3769
      %4347 = vst.msk [vmem:[%s172 + $0x128] sm:$0xf] %vm4272, %v3770
      %4348 = vst.msk [vmem:[%s172 + $0x12c] sm:$0xf] %vm4272, %v3771
      %4349 = vst.msk [vmem:[%s172 + $0x130] sm:$0xf] %vm4272, %v3772
      %4350 = vst.msk [vmem:[%s172 + $0x134] sm:$0xf] %vm4272, %v3773
      %4351 = vst.msk [vmem:[%s172 + $0x138] sm:$0xf] %vm4272, %v3774
      %4352 = vst.msk [vmem:[%s172 + $0x13c] sm:$0xf] %vm4272, %v3775
      %4353 = vst.msk [vmem:[%s172 + $0x140] sm:$0xf] %vm4272, %v3776
      %4354 = vst.msk [vmem:[%s172 + $0x144] sm:$0xf] %vm4272, %v3777
      %4355 = vst.msk [vmem:[%s172 + $0x148] sm:$0xf] %vm4272, %v3778
      %4356 = vst.msk [vmem:[%s172 + $0x14c] sm:$0xf] %vm4272, %v3779
      %4357 = vst.msk [vmem:[%s172 + $0x150] sm:$0xf] %vm4272, %v3780
      %4358 = vst.msk [vmem:[%s172 + $0x154] sm:$0xf] %vm4272, %v3781
      %4359 = vst.msk [vmem:[%s172 + $0x158] sm:$0xf] %vm4272, %v3782
      %4360 = vst.msk [vmem:[%s172 + $0x15c] sm:$0xf] %vm4272, %v3783
      %4361 = vst.msk [vmem:[%s172 + $0x160] sm:$0xf] %vm4272, %v3784
      %4362 = vst.msk [vmem:[%s172 + $0x164] sm:$0xf] %vm4272, %v3785
      %4363 = vst.msk [vmem:[%s172 + $0x168] sm:$0xf] %vm4272, %v3786
      %4364 = vst.msk [vmem:[%s172 + $0x16c] sm:$0xf] %vm4272, %v3787
      %4365 = vst.msk [vmem:[%s172 + $0x170] sm:$0xf] %vm4272, %v3788
      %4366 = vst.msk [vmem:[%s172 + $0x174] sm:$0xf] %vm4272, %v3789
      %4367 = vst.msk [vmem:[%s172 + $0x178] sm:$0xf] %vm4272, %v3790
      %4368 = vst.msk [vmem:[%s172 + $0x17c] sm:$0xf] %vm4272, %v3791
      %4369 = vst.msk [vmem:[%s172 + $0x180] sm:$0xf] %vm4272, %v3792
      %4370 = vst.msk [vmem:[%s172 + $0x184] sm:$0xf] %vm4272, %v3793
      %4371 = vst.msk [vmem:[%s172 + $0x188] sm:$0xf] %vm4272, %v3794
      %4372 = vst.msk [vmem:[%s172 + $0x18c] sm:$0xf] %vm4272, %v3795
      %4373 = vst.msk [vmem:[%s172 + $0x190] sm:$0xf] %vm4272, %v3796
      %4374 = vst.msk [vmem:[%s172 + $0x194] sm:$0xf] %vm4272, %v3797
      %4375 = vst.msk [vmem:[%s172 + $0x198] sm:$0xf] %vm4272, %v3798
      %4376 = vst.msk [vmem:[%s172 + $0x19c] sm:$0xf] %vm4272, %v3799
      %4377 = vst.msk [vmem:[%s172 + $0x1a0] sm:$0xf] %vm4272, %v3800
      %4378 = vst.msk [vmem:[%s172 + $0x1a4] sm:$0xf] %vm4272, %v3801
      %4379 = vst.msk [vmem:[%s172 + $0x1a8] sm:$0xf] %vm4272, %v3802
      %4380 = vst.msk [vmem:[%s172 + $0x1ac] sm:$0xf] %vm4272, %v3803
      %4381 = vst.msk [vmem:[%s172 + $0x1b0] sm:$0xf] %vm4272, %v3804
      %4382 = vst.msk [vmem:[%s172 + $0x1b4] sm:$0xf] %vm4272, %v3805
      %4383 = vst.msk [vmem:[%s172 + $0x1b8] sm:$0xf] %vm4272, %v3806
      %4384 = vst.msk [vmem:[%s172 + $0x1bc] sm:$0xf] %vm4272, %v3807
      %4385 = vst.msk [vmem:[%s172 + $0x1c0] sm:$0xf] %vm4272, %v3808
      %4386 = vst.msk [vmem:[%s172 + $0x1c4] sm:$0xf] %vm4272, %v3809
      %4387 = vst.msk [vmem:[%s172 + $0x1c8] sm:$0xf] %vm4272, %v3810
      %4388 = vst.msk [vmem:[%s172 + $0x1cc] sm:$0xf] %vm4272, %v3811
      %4389 = vst.msk [vmem:[%s172 + $0x1d0] sm:$0xf] %vm4272, %v3812
      %4390 = vst.msk [vmem:[%s172 + $0x1d4] sm:$0xf] %vm4272, %v3813
      %4391 = vst.msk [vmem:[%s172 + $0x1d8] sm:$0xf] %vm4272, %v3814
      %4392 = vst.msk [vmem:[%s172 + $0x1dc] sm:$0xf] %vm4272, %v3815
      %4393 = vst.msk [vmem:[%s172 + $0x1e0] sm:$0xf] %vm4272, %v3816
      %4394 = vst.msk [vmem:[%s172 + $0x1e4] sm:$0xf] %vm4272, %v3817
      %4395 = vst.msk [vmem:[%s172 + $0x1e8] sm:$0xf] %vm4272, %v3818
      %4396 = vst.msk [vmem:[%s172 + $0x1ec] sm:$0xf] %vm4272, %v3819
      %4397 = vst.msk [vmem:[%s172 + $0x1f0] sm:$0xf] %vm4272, %v3820
      %4398 = vst.msk [vmem:[%s172 + $0x1f4] sm:$0xf] %vm4272, %v3821
      %4399 = vst.msk [vmem:[%s172 + $0x1f8] sm:$0xf] %vm4272, %v3822
      %4400 = vst.msk [vmem:[%s172 + $0x1fc] sm:$0xf] %vm4272, %v3823
      %4401 = vst.msk [vmem:[%s172 + $0x200] sm:$0xf] %vm4272, %v3824
      %4402 = vst.msk [vmem:[%s172 + $0x204] sm:$0xf] %vm4272, %v3825
      %4403 = vst.msk [vmem:[%s172 + $0x208] sm:$0xf] %vm4272, %v3826
      %4404 = vst.msk [vmem:[%s172 + $0x20c] sm:$0xf] %vm4272, %v3827
      %4405 = vst.msk [vmem:[%s172 + $0x210] sm:$0xf] %vm4272, %v3828
      %4406 = vst.msk [vmem:[%s172 + $0x214] sm:$0xf] %vm4272, %v3829
      %4407 = vst.msk [vmem:[%s172 + $0x218] sm:$0xf] %vm4272, %v3830
      %4408 = vst.msk [vmem:[%s172 + $0x21c] sm:$0xf] %vm4272, %v3831
      %4409 = vst.msk [vmem:[%s172 + $0x220] sm:$0xf] %vm4272, %v3832
      %4410 = vst.msk [vmem:[%s172 + $0x224] sm:$0xf] %vm4272, %v3833
      %4411 = vst.msk [vmem:[%s172 + $0x228] sm:$0xf] %vm4272, %v3834
      %4412 = vst.msk [vmem:[%s172 + $0x22c] sm:$0xf] %vm4272, %v3835
      %4413 = vst.msk [vmem:[%s172 + $0x230] sm:$0xf] %vm4272, %v3836
      %4414 = vst.msk [vmem:[%s172 + $0x234] sm:$0xf] %vm4272, %v3837
      %4415 = vst.msk [vmem:[%s172 + $0x238] sm:$0xf] %vm4272, %v3838
      %4416 = vst.msk [vmem:[%s172 + $0x23c] sm:$0xf] %vm4272, %v3839
      %4417 = vst.msk [vmem:[%s172 + $0x240] sm:$0xf] %vm4272, %v3840
      %4418 = vst.msk [vmem:[%s172 + $0x244] sm:$0xf] %vm4272, %v3841
      %4419 = vst.msk [vmem:[%s172 + $0x248] sm:$0xf] %vm4272, %v3842
      %4420 = vst.msk [vmem:[%s172 + $0x24c] sm:$0xf] %vm4272, %v3843
      %4421 = vst.msk [vmem:[%s172 + $0x250] sm:$0xf] %vm4272, %v3844
      %4422 = vst.msk [vmem:[%s172 + $0x254] sm:$0xf] %vm4272, %v3845
      %4423 = vst.msk [vmem:[%s172 + $0x258] sm:$0xf] %vm4272, %v3846
      %4424 = vst.msk [vmem:[%s172 + $0x25c] sm:$0xf] %vm4272, %v3847
      %4425 = vst.msk [vmem:[%s172 + $0x260] sm:$0xf] %vm4272, %v3848
      %4426 = vst.msk [vmem:[%s172 + $0x264] sm:$0xf] %vm4272, %v3849
      %4427 = vst.msk [vmem:[%s172 + $0x268] sm:$0xf] %vm4272, %v3850
      %4428 = vst.msk [vmem:[%s172 + $0x26c] sm:$0xf] %vm4272, %v3851
      %4429 = vst.msk [vmem:[%s172 + $0x270] sm:$0xf] %vm4272, %v3852
      %4430 = vst.msk [vmem:[%s172 + $0x274] sm:$0xf] %vm4272, %v3853
      %4431 = vst.msk [vmem:[%s172 + $0x278] sm:$0xf] %vm4272, %v3854
      %4432 = vst.msk [vmem:[%s172 + $0x27c] sm:$0xf] %vm4272, %v3855
      %4433 = vst.msk [vmem:[%s172 + $0x280] sm:$0xf] %vm4272, %v3856
      %4434 = vst.msk [vmem:[%s172 + $0x284] sm:$0xf] %vm4272, %v3857
      %4435 = vst.msk [vmem:[%s172 + $0x288] sm:$0xf] %vm4272, %v3858
      %4436 = vst.msk [vmem:[%s172 + $0x28c] sm:$0xf] %vm4272, %v3859
      %4437 = vst.msk [vmem:[%s172 + $0x290] sm:$0xf] %vm4272, %v3860
      %4438 = vst.msk [vmem:[%s172 + $0x294] sm:$0xf] %vm4272, %v3861
      %4439 = vst.msk [vmem:[%s172 + $0x298] sm:$0xf] %vm4272, %v3862
      %4440 = vst.msk [vmem:[%s172 + $0x29c] sm:$0xf] %vm4272, %v3863
      %4441 = vst.msk [vmem:[%s172 + $0x2a0] sm:$0xf] %vm4272, %v3864
      %4442 = vst.msk [vmem:[%s172 + $0x2a4] sm:$0xf] %vm4272, %v3865
      %4443 = vst.msk [vmem:[%s172 + $0x2a8] sm:$0xf] %vm4272, %v3866
      %4444 = vst.msk [vmem:[%s172 + $0x2ac] sm:$0xf] %vm4272, %v3867
      %4445 = vst.msk [vmem:[%s172 + $0x2b0] sm:$0xf] %vm4272, %v3868
      %4446 = vst.msk [vmem:[%s172 + $0x2b4] sm:$0xf] %vm4272, %v3869
      %4447 = vst.msk [vmem:[%s172 + $0x2b8] sm:$0xf] %vm4272, %v3870
      %4448 = vst.msk [vmem:[%s172 + $0x2bc] sm:$0xf] %vm4272, %v3871
      %4449 = vst.msk [vmem:[%s172 + $0x2c0] sm:$0xf] %vm4272, %v3872
      %4450 = vst.msk [vmem:[%s172 + $0x2c4] sm:$0xf] %vm4272, %v3873
      %4451 = vst.msk [vmem:[%s172 + $0x2c8] sm:$0xf] %vm4272, %v3874
      %4452 = vst.msk [vmem:[%s172 + $0x2cc] sm:$0xf] %vm4272, %v3875
      %4453 = vst.msk [vmem:[%s172 + $0x2d0] sm:$0xf] %vm4272, %v3876
      %4454 = vst.msk [vmem:[%s172 + $0x2d4] sm:$0xf] %vm4272, %v3877
      %4455 = vst.msk [vmem:[%s172 + $0x2d8] sm:$0xf] %vm4272, %v3878
      %4456 = vst.msk [vmem:[%s172 + $0x2dc] sm:$0xf] %vm4272, %v3879
      %4457 = vst.msk [vmem:[%s172 + $0x2e0] sm:$0xf] %vm4272, %v3880
      %4458 = vst.msk [vmem:[%s172 + $0x2e4] sm:$0xf] %vm4272, %v3881
      %4459 = vst.msk [vmem:[%s172 + $0x2e8] sm:$0xf] %vm4272, %v3882
      %4460 = vst.msk [vmem:[%s172 + $0x2ec] sm:$0xf] %vm4272, %v3883
      %4461 = vst.msk [vmem:[%s172 + $0x2f0] sm:$0xf] %vm4272, %v3884
      %4462 = vst.msk [vmem:[%s172 + $0x2f4] sm:$0xf] %vm4272, %v3885
      %4463 = vst.msk [vmem:[%s172 + $0x2f8] sm:$0xf] %vm4272, %v3886
      %4464 = vst.msk [vmem:[%s172 + $0x2fc] sm:$0xf] %vm4272, %v3887
      %4465 = vst.msk [vmem:[%s172 + $0x300] sm:$0xf] %vm4272, %v3888
      %4466 = vst.msk [vmem:[%s172 + $0x304] sm:$0xf] %vm4272, %v3889
      %4467 = vst.msk [vmem:[%s172 + $0x308] sm:$0xf] %vm4272, %v3890
      %4468 = vst.msk [vmem:[%s172 + $0x30c] sm:$0xf] %vm4272, %v3891
      %4469 = vst.msk [vmem:[%s172 + $0x310] sm:$0xf] %vm4272, %v3892
      %4470 = vst.msk [vmem:[%s172 + $0x314] sm:$0xf] %vm4272, %v3893
      %4471 = vst.msk [vmem:[%s172 + $0x318] sm:$0xf] %vm4272, %v3894
      %4472 = vst.msk [vmem:[%s172 + $0x31c] sm:$0xf] %vm4272, %v3895
      %4473 = vst.msk [vmem:[%s172 + $0x320] sm:$0xf] %vm4272, %v3896
      %4474 = vst.msk [vmem:[%s172 + $0x324] sm:$0xf] %vm4272, %v3897
      %4475 = vst.msk [vmem:[%s172 + $0x328] sm:$0xf] %vm4272, %v3898
      %4476 = vst.msk [vmem:[%s172 + $0x32c] sm:$0xf] %vm4272, %v3899
      %4477 = vst.msk [vmem:[%s172 + $0x330] sm:$0xf] %vm4272, %v3900
      %4478 = vst.msk [vmem:[%s172 + $0x334] sm:$0xf] %vm4272, %v3901
      %4479 = vst.msk [vmem:[%s172 + $0x338] sm:$0xf] %vm4272, %v3902
      %4480 = vst.msk [vmem:[%s172 + $0x33c] sm:$0xf] %vm4272, %v3903
      %4481 = vst.msk [vmem:[%s172 + $0x340] sm:$0xf] %vm4272, %v3904
      %4482 = vst.msk [vmem:[%s172 + $0x344] sm:$0xf] %vm4272, %v3905
      %4483 = vst.msk [vmem:[%s172 + $0x348] sm:$0xf] %vm4272, %v3906
      %4484 = vst.msk [vmem:[%s172 + $0x34c] sm:$0xf] %vm4272, %v3907
      %4485 = vst.msk [vmem:[%s172 + $0x350] sm:$0xf] %vm4272, %v3908
      %4486 = vst.msk [vmem:[%s172 + $0x354] sm:$0xf] %vm4272, %v3909
      %4487 = vst.msk [vmem:[%s172 + $0x358] sm:$0xf] %vm4272, %v3910
      %4488 = vst.msk [vmem:[%s172 + $0x35c] sm:$0xf] %vm4272, %v3911
      %4489 = vst.msk [vmem:[%s172 + $0x360] sm:$0xf] %vm4272, %v3912
      %4490 = vst.msk [vmem:[%s172 + $0x364] sm:$0xf] %vm4272, %v3913
      %4491 = vst.msk [vmem:[%s172 + $0x368] sm:$0xf] %vm4272, %v3914
      %4492 = vst.msk [vmem:[%s172 + $0x36c] sm:$0xf] %vm4272, %v3915
      %4493 = vst.msk [vmem:[%s172 + $0x370] sm:$0xf] %vm4272, %v3916
      %4494 = vst.msk [vmem:[%s172 + $0x374] sm:$0xf] %vm4272, %v3917
      %4495 = vst.msk [vmem:[%s172 + $0x378] sm:$0xf] %vm4272, %v3918
      %4496 = vst.msk [vmem:[%s172 + $0x37c] sm:$0xf] %vm4272, %v3919
      %4497 = vst.msk [vmem:[%s172 + $0x380] sm:$0xf] %vm4272, %v3920
      %4498 = vst.msk [vmem:[%s172 + $0x384] sm:$0xf] %vm4272, %v3921
      %4499 = vst.msk [vmem:[%s172 + $0x388] sm:$0xf] %vm4272, %v3922
      %4500 = vst.msk [vmem:[%s172 + $0x38c] sm:$0xf] %vm4272, %v3923
      %4501 = vst.msk [vmem:[%s172 + $0x390] sm:$0xf] %vm4272, %v3924
      %4502 = vst.msk [vmem:[%s172 + $0x394] sm:$0xf] %vm4272, %v3925
      %4503 = vst.msk [vmem:[%s172 + $0x398] sm:$0xf] %vm4272, %v3926
      %4504 = vst.msk [vmem:[%s172 + $0x39c] sm:$0xf] %vm4272, %v3927
      %4505 = vst.msk [vmem:[%s172 + $0x3a0] sm:$0xf] %vm4272, %v3928
      %4506 = vst.msk [vmem:[%s172 + $0x3a4] sm:$0xf] %vm4272, %v3929
      %4507 = vst.msk [vmem:[%s172 + $0x3a8] sm:$0xf] %vm4272, %v3930
      %4508 = vst.msk [vmem:[%s172 + $0x3ac] sm:$0xf] %vm4272, %v3931
      %4509 = vst.msk [vmem:[%s172 + $0x3b0] sm:$0xf] %vm4272, %v3932
      %4510 = vst.msk [vmem:[%s172 + $0x3b4] sm:$0xf] %vm4272, %v3933
      %4511 = vst.msk [vmem:[%s172 + $0x3b8] sm:$0xf] %vm4272, %v3934
      %4512 = vst.msk [vmem:[%s172 + $0x3bc] sm:$0xf] %vm4272, %v3935
      %4513 = vst.msk [vmem:[%s172 + $0x3c0] sm:$0xf] %vm4272, %v3936
      %4514 = vst.msk [vmem:[%s172 + $0x3c4] sm:$0xf] %vm4272, %v3937
      %4515 = vst.msk [vmem:[%s172 + $0x3c8] sm:$0xf] %vm4272, %v3938
      %4516 = vst.msk [vmem:[%s172 + $0x3cc] sm:$0xf] %vm4272, %v3939
      %4517 = vst.msk [vmem:[%s172 + $0x3d0] sm:$0xf] %vm4272, %v3940
      %4518 = vst.msk [vmem:[%s172 + $0x3d4] sm:$0xf] %vm4272, %v3941
      %4519 = vst.msk [vmem:[%s172 + $0x3d8] sm:$0xf] %vm4272, %v3942
      %4520 = vst.msk [vmem:[%s172 + $0x3dc] sm:$0xf] %vm4272, %v3943
      %4521 = vst.msk [vmem:[%s172 + $0x3e0] sm:$0xf] %vm4272, %v3944
      %4522 = vst.msk [vmem:[%s172 + $0x3e4] sm:$0xf] %vm4272, %v3945
      %4523 = vst.msk [vmem:[%s172 + $0x3e8] sm:$0xf] %vm4272, %v3946
      %4524 = vst.msk [vmem:[%s172 + $0x3ec] sm:$0xf] %vm4272, %v3947
      %4525 = vst.msk [vmem:[%s172 + $0x3f0] sm:$0xf] %vm4272, %v3948
      %4526 = vst.msk [vmem:[%s172 + $0x3f4] sm:$0xf] %vm4272, %v3949
      %4527 = vst.msk [vmem:[%s172 + $0x3f8] sm:$0xf] %vm4272, %v3950
      %4528 = vst.msk [vmem:[%s172 + $0x3fc] sm:$0xf] %vm4272, %v3951
      %4529 = vst.msk [vmem:[%s172 + $0x400] sm:$0xf] %vm4272, %v3952
      %4530 = vst.msk [vmem:[%s172 + $0x404] sm:$0xf] %vm4272, %v3953
      %4531 = vst.msk [vmem:[%s172 + $0x408] sm:$0xf] %vm4272, %v3954
      %4532 = vst.msk [vmem:[%s172 + $0x40c] sm:$0xf] %vm4272, %v3955
      %4533 = vst.msk [vmem:[%s172 + $0x410] sm:$0xf] %vm4272, %v3956
      %4534 = vst.msk [vmem:[%s172 + $0x414] sm:$0xf] %vm4272, %v3957
      %4535 = vst.msk [vmem:[%s172 + $0x418] sm:$0xf] %vm4272, %v3958
      %4536 = vst.msk [vmem:[%s172 + $0x41c] sm:$0xf] %vm4272, %v3959
      %4537 = vst.msk [vmem:[%s172 + $0x420] sm:$0xf] %vm4272, %v3960
      %4538 = vst.msk [vmem:[%s172 + $0x424] sm:$0xf] %vm4272, %v3961
      %4539 = vst.msk [vmem:[%s172 + $0x428] sm:$0xf] %vm4272, %v3962
      %4540 = vst.msk [vmem:[%s172 + $0x42c] sm:$0xf] %vm4272, %v3963
      %4541 = vst.msk [vmem:[%s172 + $0x430] sm:$0xf] %vm4272, %v3964
      %4542 = vst.msk [vmem:[%s172 + $0x434] sm:$0xf] %vm4272, %v3965
      %4543 = vst.msk [vmem:[%s172 + $0x438] sm:$0xf] %vm4272, %v3966
      %4544 = vst.msk [vmem:[%s172 + $0x43c] sm:$0xf] %vm4272, %v3967
      %4545 = vst.msk [vmem:[%s172 + $0x440] sm:$0xf] %vm4272, %v3968
      %4546 = vst.msk [vmem:[%s172 + $0x444] sm:$0xf] %vm4272, %v3969
      %4547 = vst.msk [vmem:[%s172 + $0x448] sm:$0xf] %vm4272, %v3970
      %4548 = vst.msk [vmem:[%s172 + $0x44c] sm:$0xf] %vm4272, %v3971
      %4549 = vst.msk [vmem:[%s172 + $0x450] sm:$0xf] %vm4272, %v3972
      %4550 = vst.msk [vmem:[%s172 + $0x454] sm:$0xf] %vm4272, %v3973
      %4551 = vst.msk [vmem:[%s172 + $0x458] sm:$0xf] %vm4272, %v3974
      %4552 = vst.msk [vmem:[%s172 + $0x45c] sm:$0xf] %vm4272, %v3975
      %4553 = vst.msk [vmem:[%s172 + $0x460] sm:$0xf] %vm4272, %v3976
      %4554 = vst.msk [vmem:[%s172 + $0x464] sm:$0xf] %vm4272, %v3977
      %4555 = vst.msk [vmem:[%s172 + $0x468] sm:$0xf] %vm4272, %v3978
      %4556 = vst.msk [vmem:[%s172 + $0x46c] sm:$0xf] %vm4272, %v3979
      %4557 = vst.msk [vmem:[%s172 + $0x470] sm:$0xf] %vm4272, %v3980
      %4558 = vst.msk [vmem:[%s172 + $0x474] sm:$0xf] %vm4272, %v3981
      %4559 = vst.msk [vmem:[%s172 + $0x478] sm:$0xf] %vm4272, %v3982
      %4560 = vst.msk [vmem:[%s172 + $0x47c] sm:$0xf] %vm4272, %v3983
      %s4561 = smul.u32 288, %s14
      %p4562 = scmp.lt.s32.totalorder %s4561, 575
      %s4563 = scalar_select %p4562, %s4561, 575
      %s4564 = smul.addr %s4563, 4
      %s4565 = scalar_lea.vmem %s3, %s4564
      // Predicated region
      $region33: #{ppo_forward.5} parent=31 // pred_check
        %p4566 = pneg %p100
      $region34: #{ppo_forward.5} parent=31 // pred_check_branch
        %4568 = sbr.rel (%p4566) target = $region36
      $region35: #{ppo_forward.5} parent=31 // pred_region
        %s4569 = smul.u32 288, %s14
      $region36: #{ppo_forward.5} parent=31 // pred_fallthru
        _
    $region32: #{ppo_forward.5} parent=5 // pred_fallthru
      _
    %p4570 = scmp.le.s32.totalorder 2, %s9
    // Predicated region
    $region37: #{ppo_forward.5} parent=5 // pred_check
      %p4571 = pneg %p4570
    $region38: #{ppo_forward.5} parent=5 // pred_check_branch
      %4573 = sbr.rel (%p4571) target = $region40
    $region39: #{ppo_forward.5} parent=5 // pred_region
      %s4574 = ssub.s32 %s9, 2
      // Predicated region
      $region41: #{ppo_forward.5} parent=39 // pred_check
        %p4575 = pneg %p106
      $region42: #{ppo_forward.5} parent=39 // pred_check_branch
        %4577 = sbr.rel (%p4575) target = $region44
      $region43: #{ppo_forward.5} parent=39 // pred_region
        %s4578 = smul.u32 288, %s15
        %p4579 = scmp.lt.s32.totalorder %s4578, 575
        %s4580 = scalar_select %p4579, %s4578, 575
        %s4581 = smul.addr %s4580, 4
        %s4582 = scalar_lea.vmem %s3, %s4581
      $region44: #{ppo_forward.5} parent=39 // pred_fallthru
        _
    $region40: #{ppo_forward.5} parent=5 // pred_fallthru
      _
  $region6: #{ppo_forward.5} parent=0 // loop_footer
    %s13 = sadd.s32 1, %s9
  $region7: #{ppo_forward.5} parent=0 // loop_footer_branch
    %8 = sbr.rel target = $region3
  $region8: #{ppo_forward.5} parent=0 // loop_exit
    _

// kernel: ppo_forward.6
$region0: #{ppo_forward.6}
  #allocation0 [shape = 'u32[]', space=smem, size = 0x4, offset = 0x4, fixed_abs, tag = 'smem constant byte address 0x4 - core index']
  #allocation1 [shape = 'u32[144,128]{1,0:T(1,128)}', space=vmem, size = 0x12000, scoped, tag = 'internal scratch']
  %s0 = inlined_call_operand.vmem [shape: bf16[1152,288], index: 0, kind: input, shape index: {}]
  %s1 = inlined_call_operand.vmem [shape: bf16[288,32], index: 1, kind: input, shape index: {}]
  %s2 = inlined_call_operand.vmem [shape: f32[1,32], index: 2, kind: input, shape index: {}]
  %s3 = inlined_call_operand.vmem [shape: bf16[1152,32], index: 3, kind: output, shape index: {}]
  %s4 = sld [smem:[#allocation0]]
  $region45: #{ppo_forward.6} parent=0
    _
  %s6 = ssub.s32 1, %s4
  %s7 = scalar_select 0, %s6, %s4
  loop: start=0, step=1, limit=4
  $region2: #{ppo_forward.6} parent=0 // loop_pre_header
    _
  $region3: #{ppo_forward.6} parent=0 // loop_header
    %s9 = sphi 0, %s13
    %p10 = scmp.ge.s32.totalorder %s9, 4
    %s19 = sphi 0, %s21
    %s22 = sphi 0, %s19
    %s23 = sphi 0, %s22
    %s39 = sphi 0, %s23
    %s43 = sphi 0, %s43
    %s45 = sphi 0, %s43
    %s46 = sphi 0, %s45
    %s60 = sphi 0, %s46
    %s64 = sphi 0, %s64
    %s66 = sphi 0, %s64
    %s67 = sphi 0, %s66
    %s81 = sphi 0, %s67
    %s87 = sphi 0, %s89
    %s90 = sphi 0, %s87
    %s91 = sphi 0, %s90
    %s107 = sphi 0, %s91
  $region4: #{ppo_forward.6} parent=0 // loop_header_branch
    %12 = sbr.rel (%p10) target = $region8
  $region5: #{ppo_forward.6} parent=0 // loop_body
    %s14 = ssub.s32 %s9, 1
    %s15 = ssub.s32 %s9, 2
    %s16 = sadd.s32 %s9, 1
    %s17 = ssub.s32 %s9, %s16
    %p18 = scmp.eq.s32.totalorder %s17, 0
    %s20 = sadd.s32 %s19, 1
    %s21 = scalar_select %p18, %s19, %s20
    %p24 = pneg %p18
    %p25 = scmp.eq.s32.totalorder %s9, 1
    %p26 = por %p24, %p25
    %p27 = scmp.ne.s32.totalorder %s19, %s22
    %p28 = scmp.eq.s32.totalorder %s9, 0
    %p29 = por %p27, %p28
    %p30 = scmp.ne.s32.totalorder %s19, %s22
    %p31 = scmp.eq.s32.totalorder %s14, 1
    %p32 = por %p30, %p31
    %p33 = scmp.ne.s32.totalorder %s22, %s23
    %p34 = scmp.eq.s32.totalorder %s14, 0
    %p35 = por %p33, %p34
    %p36 = scmp.ne.s32.totalorder %s22, %s23
    %p37 = scmp.eq.s32.totalorder %s15, 1
    %p38 = por %p36, %p37
    %p40 = scmp.ne.s32.totalorder %s23, %s39
    %p41 = scmp.eq.s32.totalorder %s15, 0
    %p42 = por %p40, %p41
    %s44 = sadd.s32 %s43, 1
    %p47 = scmp.eq.s32.totalorder %s9, 1
    %p48 = scmp.ne.s32.totalorder %s43, %s45
    %p49 = scmp.eq.s32.totalorder %s9, 0
    %p50 = por %p48, %p49
    %p51 = scmp.ne.s32.totalorder %s43, %s45
    %p52 = scmp.eq.s32.totalorder %s14, 1
    %p53 = por %p51, %p52
    %p54 = scmp.ne.s32.totalorder %s45, %s46
    %p55 = scmp.eq.s32.totalorder %s14, 0
    %p56 = por %p54, %p55
    %p57 = scmp.ne.s32.totalorder %s45, %s46
    %p58 = scmp.eq.s32.totalorder %s15, 1
    %p59 = por %p57, %p58
    %p61 = scmp.ne.s32.totalorder %s46, %s60
    %p62 = scmp.eq.s32.totalorder %s15, 0
    %p63 = por %p61, %p62
    %s65 = sadd.s32 %s64, 1
    %p68 = scmp.eq.s32.totalorder %s9, 1
    %p69 = scmp.ne.s32.totalorder %s64, %s66
    %p70 = scmp.eq.s32.totalorder %s9, 0
    %p71 = por %p69, %p70
    %p72 = scmp.ne.s32.totalorder %s64, %s66
    %p73 = scmp.eq.s32.totalorder %s14, 1
    %p74 = por %p72, %p73
    %p75 = scmp.ne.s32.totalorder %s66, %s67
    %p76 = scmp.eq.s32.totalorder %s14, 0
    %p77 = por %p75, %p76
    %p78 = scmp.ne.s32.totalorder %s66, %s67
    %p79 = scmp.eq.s32.totalorder %s15, 1
    %p80 = por %p78, %p79
    %p82 = scmp.ne.s32.totalorder %s67, %s81
    %p83 = scmp.eq.s32.totalorder %s15, 0
    %p84 = por %p82, %p83
    %s85 = ssub.s32 %s9, %s16
    %p86 = scmp.eq.s32.totalorder %s85, 0
    %s88 = sadd.s32 %s87, 1
    %s89 = scalar_select %p86, %s87, %s88
    %p92 = pneg %p86
    %p93 = scmp.eq.s32.totalorder %s9, 1
    %p94 = por %p92, %p93
    %p95 = scmp.ne.s32.totalorder %s87, %s90
    %p96 = scmp.eq.s32.totalorder %s9, 0
    %p97 = por %p95, %p96
    %p98 = scmp.ne.s32.totalorder %s87, %s90
    %p99 = scmp.eq.s32.totalorder %s14, 1
    %p100 = por %p98, %p99
    %p101 = scmp.ne.s32.totalorder %s90, %s91
    %p102 = scmp.eq.s32.totalorder %s14, 0
    %p103 = por %p101, %p102
    %p104 = scmp.ne.s32.totalorder %s90, %s91
    %p105 = scmp.eq.s32.totalorder %s15, 1
    %p106 = por %p104, %p105
    %p108 = scmp.ne.s32.totalorder %s91, %s107
    %p109 = scmp.eq.s32.totalorder %s15, 0
    %p110 = por %p108, %p109
    %p111 = scmp.le.s32.totalorder 1, %s9
    %p112 = scmp.lt.s32.totalorder %s9, 3
    %p113 = pnand %p111, %p112
    %p114 = pneg %p113
    // Predicated region
    $region9: #{ppo_forward.6} parent=5 // pred_check
      _
    $region10: #{ppo_forward.6} parent=5 // pred_check_branch
      %116 = sbr.rel (%p113) target = $region12
    $region11: #{ppo_forward.6} parent=5 // pred_region
      %s117 = ssub.s32 %s9, 1
      // Predicated region
      $region13: #{ppo_forward.6} parent=11 // pred_check
        %p118 = pneg %p56
      $region14: #{ppo_forward.6} parent=11 // pred_check_branch
        %120 = sbr.rel (%p118) target = $region16
      $region15: #{ppo_forward.6} parent=11 // pred_region
        _
      $region16: #{ppo_forward.6} parent=11 // pred_fallthru
        _
      // Predicated region
      $region17: #{ppo_forward.6} parent=11 // pred_check
        %p121 = pneg %p77
      $region18: #{ppo_forward.6} parent=11 // pred_check_branch
        %123 = sbr.rel (%p121) target = $region20
      $region19: #{ppo_forward.6} parent=11 // pred_region
        _
      $region20: #{ppo_forward.6} parent=11 // pred_fallthru
        _
    $region12: #{ppo_forward.6} parent=5 // pred_fallthru
      _
    %p124 = scmp.lt.s32.totalorder %s9, 2
    // Predicated region
    $region21: #{ppo_forward.6} parent=5 // pred_check
      %p125 = pneg %p124
    $region22: #{ppo_forward.6} parent=5 // pred_check_branch
      %127 = sbr.rel (%p125) target = $region24
    $region23: #{ppo_forward.6} parent=5 // pred_region
      // Predicated region
      $region25: #{ppo_forward.6} parent=23 // pred_check
        %p128 = pneg %p29
      $region26: #{ppo_forward.6} parent=23 // pred_check_branch
        %130 = sbr.rel (%p128) target = $region28
      $region27: #{ppo_forward.6} parent=23 // pred_region
        %s131 = smul.u32 72, %s9
        %p132 = scmp.lt.s32.totalorder %s131, 143
        %s133 = scalar_select %p132, %s131, 143
        %s134 = smul.addr %s133, 3
        %s135 = smul.addr %s134, 4
        %s136 = scalar_lea.vmem %s0, %s135
        %s137 = smul.u32 72, %s9
      $region28: #{ppo_forward.6} parent=23 // pred_fallthru
        _
    $region24: #{ppo_forward.6} parent=5 // pred_fallthru
      _
    %p138 = scmp.le.s32.totalorder 1, %s9
    %p139 = scmp.lt.s32.totalorder %s9, 3
    %p140 = pnand %p138, %p139
    %p141 = pneg %p140
    // Predicated region
    $region29: #{ppo_forward.6} parent=5 // pred_check
      _
    $region30: #{ppo_forward.6} parent=5 // pred_check_branch
      %143 = sbr.rel (%p140) target = $region32
    $region31: #{ppo_forward.6} parent=5 // pred_region
      %s144 = ssub.s32 %s9, 1
      %s145 = smul.u32 72, %s14
      %p146 = scmp.lt.s32.totalorder %s145, 143
      %s147 = scalar_select %p146, %s145, 143
      %s148 = smul.addr %s147, 3
      %s149 = smul.addr %s148, 4
      %s150 = scalar_lea.vmem %s0, %s149
      %p151 = pneg %p35
      %p152 = pneg %p32
      %p153 = pneg %p56
      %p154 = pneg %p53
      %p155 = pneg %p77
      %p156 = pneg %p74
      %p157 = pneg %p103
      %p158 = pneg %p100
      %s159 = smul.u32 72, %s14
      %p160 = scmp.lt.s32.totalorder %s159, 143
      %s161 = scalar_select %p160, %s159, 143
      %s162 = smul.addr %s161, 4
      %s163 = scalar_lea.vmem %s3, %s162
      %s164 = smul.u32 72, %s14
      %p165 = scmp.lt.s32.totalorder %s164, 143
      %s166 = scalar_select %p165, %s164, 143
      %s167 = smul.addr %s166, 3
      %s168 = smul.addr %s167, 4
      %s169 = scalar_lea.vmem %s0, %s168
      %s170 = smul.u32 72, %s14
      %s171 = smul.u32 72, %s14
      %p172 = scmp.lt.s32.totalorder %s171, 143
      %s173 = scalar_select %p172, %s171, 143
      %s174 = smul.addr %s173, 4
      %s175 = scalar_lea.vmem %s3, %s174
      %s176 = smul.u32 72, %s14
      %v178 = vld [vmem:[%s169] sm:$0xff]
      %v179 = vld [vmem:[%s169 + $0x8] sm:$0xf]
      %v180 = vld [vmem:[%s169 + $0xc] sm:$0xff]
      %v181 = vld [vmem:[%s169 + $0x14] sm:$0xf]
      %v182 = vld [vmem:[%s169 + $0x18] sm:$0xff]
      %v183 = vld [vmem:[%s169 + $0x20] sm:$0xf]
      %v184 = vld [vmem:[%s169 + $0x24] sm:$0xff]
      %v185 = vld [vmem:[%s169 + $0x2c] sm:$0xf]
      %v186 = vld [vmem:[%s169 + $0x30] sm:$0xff]
      %v187 = vld [vmem:[%s169 + $0x38] sm:$0xf]
      %v188 = vld [vmem:[%s169 + $0x3c] sm:$0xff]
      %v189 = vld [vmem:[%s169 + $0x44] sm:$0xf]
      %v190 = vld [vmem:[%s169 + $0x48] sm:$0xff]
      %v191 = vld [vmem:[%s169 + $0x50] sm:$0xf]
      %v192 = vld [vmem:[%s169 + $0x54] sm:$0xff]
      %v193 = vld [vmem:[%s169 + $0x5c] sm:$0xf]
      %v194 = vld [vmem:[%s169 + $0x60] sm:$0xff]
      %v195 = vld [vmem:[%s169 + $0x68] sm:$0xf]
      %v196 = vld [vmem:[%s169 + $0x6c] sm:$0xff]
      %v197 = vld [vmem:[%s169 + $0x74] sm:$0xf]
      %v198 = vld [vmem:[%s169 + $0x78] sm:$0xff]
      %v199 = vld [vmem:[%s169 + $0x80] sm:$0xf]
      %v200 = vld [vmem:[%s169 + $0x84] sm:$0xff]
      %v201 = vld [vmem:[%s169 + $0x8c] sm:$0xf]
      %v202 = vld [vmem:[%s169 + $0x90] sm:$0xff]
      %v203 = vld [vmem:[%s169 + $0x98] sm:$0xf]
      %v204 = vld [vmem:[%s169 + $0x9c] sm:$0xff]
      %v205 = vld [vmem:[%s169 + $0xa4] sm:$0xf]
      %v206 = vld [vmem:[%s169 + $0xa8] sm:$0xff]
      %v207 = vld [vmem:[%s169 + $0xb0] sm:$0xf]
      %v208 = vld [vmem:[%s169 + $0xb4] sm:$0xff]
      %v209 = vld [vmem:[%s169 + $0xbc] sm:$0xf]
      %v210 = vld [vmem:[%s169 + $0xc0] sm:$0xff]
      %v211 = vld [vmem:[%s169 + $0xc8] sm:$0xf]
      %v212 = vld [vmem:[%s169 + $0xcc] sm:$0xff]
      %v213 = vld [vmem:[%s169 + $0xd4] sm:$0xf]
      %v214 = vld [vmem:[%s169 + $0xd8] sm:$0xff]
      %v215 = vld [vmem:[%s169 + $0xe0] sm:$0xf]
      %v216 = vld [vmem:[%s169 + $0xe4] sm:$0xff]
      %v217 = vld [vmem:[%s169 + $0xec] sm:$0xf]
      %v218 = vld [vmem:[%s169 + $0xf0] sm:$0xff]
      %v219 = vld [vmem:[%s169 + $0xf8] sm:$0xf]
      %v220 = vld [vmem:[%s169 + $0xfc] sm:$0xff]
      %v221 = vld [vmem:[%s169 + $0x104] sm:$0xf]
      %v222 = vld [vmem:[%s169 + $0x108] sm:$0xff]
      %v223 = vld [vmem:[%s169 + $0x110] sm:$0xf]
      %v224 = vld [vmem:[%s169 + $0x114] sm:$0xff]
      %v225 = vld [vmem:[%s169 + $0x11c] sm:$0xf]
      %v226 = vld [vmem:[%s169 + $0x120] sm:$0xff]
      %v227 = vld [vmem:[%s169 + $0x128] sm:$0xf]
      %v228 = vld [vmem:[%s169 + $0x12c] sm:$0xff]
      %v229 = vld [vmem:[%s169 + $0x134] sm:$0xf]
      %v230 = vld [vmem:[%s169 + $0x138] sm:$0xff]
      %v231 = vld [vmem:[%s169 + $0x140] sm:$0xf]
      %v232 = vld [vmem:[%s169 + $0x144] sm:$0xff]
      %v233 = vld [vmem:[%s169 + $0x14c] sm:$0xf]
      %v234 = vld [vmem:[%s169 + $0x150] sm:$0xff]
      %v235 = vld [vmem:[%s169 + $0x158] sm:$0xf]
      %v236 = vld [vmem:[%s169 + $0x15c] sm:$0xff]
      %v237 = vld [vmem:[%s169 + $0x164] sm:$0xf]
      %v238 = vld [vmem:[%s169 + $0x168] sm:$0xff]
      %v239 = vld [vmem:[%s169 + $0x170] sm:$0xf]
      %v240 = vld [vmem:[%s169 + $0x174] sm:$0xff]
      %v241 = vld [vmem:[%s169 + $0x17c] sm:$0xf]
      %v242 = vld [vmem:[%s169 + $0x180] sm:$0xff]
      %v243 = vld [vmem:[%s169 + $0x188] sm:$0xf]
      %v244 = vld [vmem:[%s169 + $0x18c] sm:$0xff]
      %v245 = vld [vmem:[%s169 + $0x194] sm:$0xf]
      %v246 = vld [vmem:[%s169 + $0x198] sm:$0xff]
      %v247 = vld [vmem:[%s169 + $0x1a0] sm:$0xf]
      %v248 = vld [vmem:[%s169 + $0x1a4] sm:$0xff]
      %v249 = vld [vmem:[%s169 + $0x1ac] sm:$0xf]
      %v250 = vld [vmem:[%s169 + $0x1b0] sm:$0xff]
      %v251 = vld [vmem:[%s169 + $0x1b8] sm:$0xf]
      %v252 = vld [vmem:[%s169 + $0x1bc] sm:$0xff]
      %v253 = vld [vmem:[%s169 + $0x1c4] sm:$0xf]
      %v254 = vld [vmem:[%s169 + $0x1c8] sm:$0xff]
      %v255 = vld [vmem:[%s169 + $0x1d0] sm:$0xf]
      %v256 = vld [vmem:[%s169 + $0x1d4] sm:$0xff]
      %v257 = vld [vmem:[%s169 + $0x1dc] sm:$0xf]
      %v258 = vld [vmem:[%s169 + $0x1e0] sm:$0xff]
      %v259 = vld [vmem:[%s169 + $0x1e8] sm:$0xf]
      %v260 = vld [vmem:[%s169 + $0x1ec] sm:$0xff]
      %v261 = vld [vmem:[%s169 + $0x1f4] sm:$0xf]
      %v262 = vld [vmem:[%s169 + $0x1f8] sm:$0xff]
      %v263 = vld [vmem:[%s169 + $0x200] sm:$0xf]
      %v264 = vld [vmem:[%s169 + $0x204] sm:$0xff]
      %v265 = vld [vmem:[%s169 + $0x20c] sm:$0xf]
      %v266 = vld [vmem:[%s169 + $0x210] sm:$0xff]
      %v267 = vld [vmem:[%s169 + $0x218] sm:$0xf]
      %v268 = vld [vmem:[%s169 + $0x21c] sm:$0xff]
      %v269 = vld [vmem:[%s169 + $0x224] sm:$0xf]
      %v270 = vld [vmem:[%s169 + $0x228] sm:$0xff]
      %v271 = vld [vmem:[%s169 + $0x230] sm:$0xf]
      %v272 = vld [vmem:[%s169 + $0x234] sm:$0xff]
      %v273 = vld [vmem:[%s169 + $0x23c] sm:$0xf]
      %v274 = vld [vmem:[%s169 + $0x240] sm:$0xff]
      %v275 = vld [vmem:[%s169 + $0x248] sm:$0xf]
      %v276 = vld [vmem:[%s169 + $0x24c] sm:$0xff]
      %v277 = vld [vmem:[%s169 + $0x254] sm:$0xf]
      %v278 = vld [vmem:[%s169 + $0x258] sm:$0xff]
      %v279 = vld [vmem:[%s169 + $0x260] sm:$0xf]
      %v280 = vld [vmem:[%s169 + $0x264] sm:$0xff]
      %v281 = vld [vmem:[%s169 + $0x26c] sm:$0xf]
      %v282 = vld [vmem:[%s169 + $0x270] sm:$0xff]
      %v283 = vld [vmem:[%s169 + $0x278] sm:$0xf]
      %v284 = vld [vmem:[%s169 + $0x27c] sm:$0xff]
      %v285 = vld [vmem:[%s169 + $0x284] sm:$0xf]
      %v286 = vld [vmem:[%s169 + $0x288] sm:$0xff]
      %v287 = vld [vmem:[%s169 + $0x290] sm:$0xf]
      %v288 = vld [vmem:[%s169 + $0x294] sm:$0xff]
      %v289 = vld [vmem:[%s169 + $0x29c] sm:$0xf]
      %v290 = vld [vmem:[%s169 + $0x2a0] sm:$0xff]
      %v291 = vld [vmem:[%s169 + $0x2a8] sm:$0xf]
      %v292 = vld [vmem:[%s169 + $0x2ac] sm:$0xff]
      %v293 = vld [vmem:[%s169 + $0x2b4] sm:$0xf]
      %v294 = vld [vmem:[%s169 + $0x2b8] sm:$0xff]
      %v295 = vld [vmem:[%s169 + $0x2c0] sm:$0xf]
      %v296 = vld [vmem:[%s169 + $0x2c4] sm:$0xff]
      %v297 = vld [vmem:[%s169 + $0x2cc] sm:$0xf]
      %v298 = vld [vmem:[%s169 + $0x2d0] sm:$0xff]
      %v299 = vld [vmem:[%s169 + $0x2d8] sm:$0xf]
      %v300 = vld [vmem:[%s169 + $0x2dc] sm:$0xff]
      %v301 = vld [vmem:[%s169 + $0x2e4] sm:$0xf]
      %v302 = vld [vmem:[%s169 + $0x2e8] sm:$0xff]
      %v303 = vld [vmem:[%s169 + $0x2f0] sm:$0xf]
      %v304 = vld [vmem:[%s169 + $0x2f4] sm:$0xff]
      %v305 = vld [vmem:[%s169 + $0x2fc] sm:$0xf]
      %v306 = vld [vmem:[%s169 + $0x300] sm:$0xff]
      %v307 = vld [vmem:[%s169 + $0x308] sm:$0xf]
      %v308 = vld [vmem:[%s169 + $0x30c] sm:$0xff]
      %v309 = vld [vmem:[%s169 + $0x314] sm:$0xf]
      %v310 = vld [vmem:[%s169 + $0x318] sm:$0xff]
      %v311 = vld [vmem:[%s169 + $0x320] sm:$0xf]
      %v312 = vld [vmem:[%s169 + $0x324] sm:$0xff]
      %v313 = vld [vmem:[%s169 + $0x32c] sm:$0xf]
      %v314 = vld [vmem:[%s169 + $0x330] sm:$0xff]
      %v315 = vld [vmem:[%s169 + $0x338] sm:$0xf]
      %v316 = vld [vmem:[%s169 + $0x33c] sm:$0xff]
      %v317 = vld [vmem:[%s169 + $0x344] sm:$0xf]
      %v318 = vld [vmem:[%s169 + $0x348] sm:$0xff]
      %v319 = vld [vmem:[%s169 + $0x350] sm:$0xf]
      %v320 = vld [vmem:[%s169 + $0x354] sm:$0xff]
      %v321 = vld [vmem:[%s169 + $0x35c] sm:$0xf]
      %v322 = vld [vmem:[%s1] sm:$0xf]
      %v323 = vld [vmem:[%s1 + $0x4] sm:$0xf]
      %v324 = vld [vmem:[%s1 + $0x8] sm:$0xf]
      %v325 = vld [vmem:[%s1 + $0xc] sm:$0xf]
      %v326 = vld [vmem:[%s1 + $0x10] sm:$0xf]
      %v327 = vld [vmem:[%s1 + $0x14] sm:$0xf]
      %v328 = vld [vmem:[%s1 + $0x18] sm:$0xf]
      %v329 = vld [vmem:[%s1 + $0x1c] sm:$0xf]
      %v330 = vld [vmem:[%s1 + $0x20] sm:$0xf]
      %v331 = vld [vmem:[%s1 + $0x24] sm:$0xf]
      %v332 = vld [vmem:[%s1 + $0x28] sm:$0xf]
      %v333 = vld [vmem:[%s1 + $0x2c] sm:$0xf]
      %v334 = vld [vmem:[%s1 + $0x30] sm:$0xf]
      %v335 = vld [vmem:[%s1 + $0x34] sm:$0xf]
      %v336 = vld [vmem:[%s1 + $0x38] sm:$0xf]
      %v337 = vld [vmem:[%s1 + $0x3c] sm:$0xf]
      %v338 = vld [vmem:[%s1 + $0x40] sm:$0xf]
      %v339 = vld [vmem:[%s1 + $0x44] sm:$0xf]
      %v340 = vld [vmem:[%s1 + $0x48] sm:$0xf]
      %v341 = vld [vmem:[%s1 + $0x4c] sm:$0xf]
      %v342 = vld [vmem:[%s1 + $0x50] sm:$0xf]
      %v343 = vld [vmem:[%s1 + $0x54] sm:$0xf]
      %v344 = vld [vmem:[%s1 + $0x58] sm:$0xf]
      %v345 = vld [vmem:[%s1 + $0x5c] sm:$0xf]
      %v346 = vld [vmem:[%s1 + $0x60] sm:$0xf]
      %v347 = vld [vmem:[%s1 + $0x64] sm:$0xf]
      %v348 = vld [vmem:[%s1 + $0x68] sm:$0xf]
      %v349 = vld [vmem:[%s1 + $0x6c] sm:$0xf]
      %v350 = vld [vmem:[%s1 + $0x70] sm:$0xf]
      %v351 = vld [vmem:[%s1 + $0x74] sm:$0xf]
      %v352 = vld [vmem:[%s1 + $0x78] sm:$0xf]
      %v353 = vld [vmem:[%s1 + $0x7c] sm:$0xf]
      %v354 = vld [vmem:[%s1 + $0x80] sm:$0xf]
      %v355 = vld [vmem:[%s1 + $0x84] sm:$0xf]
      %v356 = vld [vmem:[%s1 + $0x88] sm:$0xf]
      %v357 = vld [vmem:[%s1 + $0x8c] sm:$0xf]
      %v358 = vld [vmem:[%s2] sm:$0x1]
      %v360 = vlaneseq
      %v361 = vshrl.u32 %v360, 7
      %v362 = vsub.s32 0, %v361
      %v363 = vrot.slane %v358, %v362
      %v509 = vunpack.c.l.b16 %v178
      %v510 = vunpack.c.h.b16 %v178
      %v511 = vunpack.c.l.b16 %v179
      %v512 = vunpack.c.l.b16 %v180
      %v513 = vunpack.c.h.b16 %v180
      %v514 = vunpack.c.l.b16 %v181
      %v515 = vunpack.c.l.b16 %v182
      %v516 = vunpack.c.h.b16 %v182
      %v517 = vunpack.c.l.b16 %v183
      %v518 = vunpack.c.l.b16 %v184
      %v519 = vunpack.c.h.b16 %v184
      %v520 = vunpack.c.l.b16 %v185
      %v521 = vunpack.c.l.b16 %v186
      %v522 = vunpack.c.h.b16 %v186
      %v523 = vunpack.c.l.b16 %v187
      %v524 = vunpack.c.l.b16 %v188
      %v525 = vunpack.c.h.b16 %v188
      %v526 = vunpack.c.l.b16 %v189
      %v527 = vunpack.c.l.b16 %v190
      %v528 = vunpack.c.h.b16 %v190
      %v529 = vunpack.c.l.b16 %v191
      %v530 = vunpack.c.l.b16 %v192
      %v531 = vunpack.c.h.b16 %v192
      %v532 = vunpack.c.l.b16 %v193
      %v533 = vunpack.c.l.b16 %v194
      %v534 = vunpack.c.h.b16 %v194
      %v535 = vunpack.c.l.b16 %v195
      %v536 = vunpack.c.l.b16 %v196
      %v537 = vunpack.c.h.b16 %v196
      %v538 = vunpack.c.l.b16 %v197
      %v539 = vunpack.c.l.b16 %v198
      %v540 = vunpack.c.h.b16 %v198
      %v541 = vunpack.c.l.b16 %v199
      %v542 = vunpack.c.l.b16 %v200
      %v543 = vunpack.c.h.b16 %v200
      %v544 = vunpack.c.l.b16 %v201
      %v545 = vunpack.c.l.b16 %v202
      %v546 = vunpack.c.h.b16 %v202
      %v547 = vunpack.c.l.b16 %v203
      %v548 = vunpack.c.l.b16 %v204
      %v549 = vunpack.c.h.b16 %v204
      %v550 = vunpack.c.l.b16 %v205
      %v551 = vunpack.c.l.b16 %v206
      %v552 = vunpack.c.h.b16 %v206
      %v553 = vunpack.c.l.b16 %v207
      %v554 = vunpack.c.l.b16 %v208
      %v555 = vunpack.c.h.b16 %v208
      %v556 = vunpack.c.l.b16 %v209
      %v557 = vunpack.c.l.b16 %v210
      %v558 = vunpack.c.h.b16 %v210
      %v559 = vunpack.c.l.b16 %v211
      %v560 = vunpack.c.l.b16 %v212
      %v561 = vunpack.c.h.b16 %v212
      %v562 = vunpack.c.l.b16 %v213
      %v563 = vunpack.c.l.b16 %v214
      %v564 = vunpack.c.h.b16 %v214
      %v565 = vunpack.c.l.b16 %v215
      %v566 = vunpack.c.l.b16 %v216
      %v567 = vunpack.c.h.b16 %v216
      %v568 = vunpack.c.l.b16 %v217
      %v569 = vunpack.c.l.b16 %v218
      %v570 = vunpack.c.h.b16 %v218
      %v571 = vunpack.c.l.b16 %v219
      %v572 = vunpack.c.l.b16 %v220
      %v573 = vunpack.c.h.b16 %v220
      %v574 = vunpack.c.l.b16 %v221
      %v575 = vunpack.c.l.b16 %v222
      %v576 = vunpack.c.h.b16 %v222
      %v577 = vunpack.c.l.b16 %v223
      %v578 = vunpack.c.l.b16 %v224
      %v579 = vunpack.c.h.b16 %v224
      %v580 = vunpack.c.l.b16 %v225
      %v581 = vunpack.c.l.b16 %v226
      %v582 = vunpack.c.h.b16 %v226
      %v583 = vunpack.c.l.b16 %v227
      %v584 = vunpack.c.l.b16 %v228
      %v585 = vunpack.c.h.b16 %v228
      %v586 = vunpack.c.l.b16 %v229
      %v587 = vunpack.c.l.b16 %v230
      %v588 = vunpack.c.h.b16 %v230
      %v589 = vunpack.c.l.b16 %v231
      %v590 = vunpack.c.l.b16 %v232
      %v591 = vunpack.c.h.b16 %v232
      %v592 = vunpack.c.l.b16 %v233
      %v593 = vunpack.c.l.b16 %v234
      %v594 = vunpack.c.h.b16 %v234
      %v595 = vunpack.c.l.b16 %v235
      %v596 = vunpack.c.l.b16 %v236
      %v597 = vunpack.c.h.b16 %v236
      %v598 = vunpack.c.l.b16 %v237
      %v599 = vunpack.c.l.b16 %v238
      %v600 = vunpack.c.h.b16 %v238
      %v601 = vunpack.c.l.b16 %v239
      %v602 = vunpack.c.l.b16 %v240
      %v603 = vunpack.c.h.b16 %v240
      %v604 = vunpack.c.l.b16 %v241
      %v605 = vunpack.c.l.b16 %v242
      %v606 = vunpack.c.h.b16 %v242
      %v607 = vunpack.c.l.b16 %v243
      %v608 = vunpack.c.l.b16 %v244
      %v609 = vunpack.c.h.b16 %v244
      %v610 = vunpack.c.l.b16 %v245
      %v611 = vunpack.c.l.b16 %v246
      %v612 = vunpack.c.h.b16 %v246
      %v613 = vunpack.c.l.b16 %v247
      %v614 = vunpack.c.l.b16 %v248
      %v615 = vunpack.c.h.b16 %v248
      %v616 = vunpack.c.l.b16 %v249
      %v617 = vunpack.c.l.b16 %v250
      %v618 = vunpack.c.h.b16 %v250
      %v619 = vunpack.c.l.b16 %v251
      %v620 = vunpack.c.l.b16 %v252
      %v621 = vunpack.c.h.b16 %v252
      %v622 = vunpack.c.l.b16 %v253
      %v623 = vunpack.c.l.b16 %v254
      %v624 = vunpack.c.h.b16 %v254
      %v625 = vunpack.c.l.b16 %v255
      %v626 = vunpack.c.l.b16 %v256
      %v627 = vunpack.c.h.b16 %v256
      %v628 = vunpack.c.l.b16 %v257
      %v629 = vunpack.c.l.b16 %v258
      %v630 = vunpack.c.h.b16 %v258
      %v631 = vunpack.c.l.b16 %v259
      %v632 = vunpack.c.l.b16 %v260
      %v633 = vunpack.c.h.b16 %v260
      %v634 = vunpack.c.l.b16 %v261
      %v635 = vunpack.c.l.b16 %v262
      %v636 = vunpack.c.h.b16 %v262
      %v637 = vunpack.c.l.b16 %v263
      %v638 = vunpack.c.l.b16 %v264
      %v639 = vunpack.c.h.b16 %v264
      %v640 = vunpack.c.l.b16 %v265
      %v641 = vunpack.c.l.b16 %v266
      %v642 = vunpack.c.h.b16 %v266
      %v643 = vunpack.c.l.b16 %v267
      %v644 = vunpack.c.l.b16 %v268
      %v645 = vunpack.c.h.b16 %v268
      %v646 = vunpack.c.l.b16 %v269
      %v647 = vunpack.c.l.b16 %v270
      %v648 = vunpack.c.h.b16 %v270
      %v649 = vunpack.c.l.b16 %v271
      %v650 = vunpack.c.l.b16 %v272
      %v651 = vunpack.c.h.b16 %v272
      %v652 = vunpack.c.l.b16 %v273
      %v653 = vunpack.c.l.b16 %v274
      %v654 = vunpack.c.h.b16 %v274
      %v655 = vunpack.c.l.b16 %v275
      %v656 = vunpack.c.l.b16 %v276
      %v657 = vunpack.c.h.b16 %v276
      %v658 = vunpack.c.l.b16 %v277
      %v659 = vunpack.c.l.b16 %v278
      %v660 = vunpack.c.h.b16 %v278
      %v661 = vunpack.c.l.b16 %v279
      %v662 = vunpack.c.l.b16 %v280
      %v663 = vunpack.c.h.b16 %v280
      %v664 = vunpack.c.l.b16 %v281
      %v665 = vunpack.c.l.b16 %v282
      %v666 = vunpack.c.h.b16 %v282
      %v667 = vunpack.c.l.b16 %v283
      %v668 = vunpack.c.l.b16 %v284
      %v669 = vunpack.c.h.b16 %v284
      %v670 = vunpack.c.l.b16 %v285
      %v671 = vunpack.c.l.b16 %v286
      %v672 = vunpack.c.h.b16 %v286
      %v673 = vunpack.c.l.b16 %v287
      %v674 = vunpack.c.l.b16 %v288
      %v675 = vunpack.c.h.b16 %v288
      %v676 = vunpack.c.l.b16 %v289
      %v677 = vunpack.c.l.b16 %v290
      %v678 = vunpack.c.h.b16 %v290
      %v679 = vunpack.c.l.b16 %v291
      %v680 = vunpack.c.l.b16 %v292
      %v681 = vunpack.c.h.b16 %v292
      %v682 = vunpack.c.l.b16 %v293
      %v683 = vunpack.c.l.b16 %v294
      %v684 = vunpack.c.h.b16 %v294
      %v685 = vunpack.c.l.b16 %v295
      %v686 = vunpack.c.l.b16 %v296
      %v687 = vunpack.c.h.b16 %v296
      %v688 = vunpack.c.l.b16 %v297
      %v689 = vunpack.c.l.b16 %v298
      %v690 = vunpack.c.h.b16 %v298
      %v691 = vunpack.c.l.b16 %v299
      %v692 = vunpack.c.l.b16 %v300
      %v693 = vunpack.c.h.b16 %v300
      %v694 = vunpack.c.l.b16 %v301
      %v695 = vunpack.c.l.b16 %v302
      %v696 = vunpack.c.h.b16 %v302
      %v697 = vunpack.c.l.b16 %v303
      %v698 = vunpack.c.l.b16 %v304
      %v699 = vunpack.c.h.b16 %v304
      %v700 = vunpack.c.l.b16 %v305
      %v701 = vunpack.c.l.b16 %v306
      %v702 = vunpack.c.h.b16 %v306
      %v703 = vunpack.c.l.b16 %v307
      %v704 = vunpack.c.l.b16 %v308
      %v705 = vunpack.c.h.b16 %v308
      %v706 = vunpack.c.l.b16 %v309
      %v707 = vunpack.c.l.b16 %v310
      %v708 = vunpack.c.h.b16 %v310
      %v709 = vunpack.c.l.b16 %v311
      %v710 = vunpack.c.l.b16 %v312
      %v711 = vunpack.c.h.b16 %v312
      %v712 = vunpack.c.l.b16 %v313
      %v713 = vunpack.c.l.b16 %v314
      %v714 = vunpack.c.h.b16 %v314
      %v715 = vunpack.c.l.b16 %v315
      %v716 = vunpack.c.l.b16 %v316
      %v717 = vunpack.c.h.b16 %v316
      %v718 = vunpack.c.l.b16 %v317
      %v719 = vunpack.c.l.b16 %v318
      %v720 = vunpack.c.h.b16 %v318
      %v721 = vunpack.c.l.b16 %v319
      %v722 = vunpack.c.l.b16 %v320
      %v723 = vunpack.c.h.b16 %v320
      %v724 = vunpack.c.l.b16 %v321
      %v725 = vpack.c.b16 %v512, %v509
      %v726 = vpack.c.b16 %v513, %v510
      %v727 = vpack.c.b16 %v514, %v511
      %v728 = vpack.c.b16 %v518, %v515
      %v729 = vpack.c.b16 %v519, %v516
      %v730 = vpack.c.b16 %v520, %v517
      %v731 = vpack.c.b16 %v524, %v521
      %v732 = vpack.c.b16 %v525, %v522
      %v733 = vpack.c.b16 %v526, %v523
      %v734 = vpack.c.b16 %v530, %v527
      %v735 = vpack.c.b16 %v531, %v528
      %v736 = vpack.c.b16 %v532, %v529
      %v737 = vpack.c.b16 %v536, %v533
      %v738 = vpack.c.b16 %v537, %v534
      %v739 = vpack.c.b16 %v538, %v535
      %v740 = vpack.c.b16 %v542, %v539
      %v741 = vpack.c.b16 %v543, %v540
      %v742 = vpack.c.b16 %v544, %v541
      %v743 = vpack.c.b16 %v548, %v545
      %v744 = vpack.c.b16 %v549, %v546
      %v745 = vpack.c.b16 %v550, %v547
      %v746 = vpack.c.b16 %v554, %v551
      %v747 = vpack.c.b16 %v555, %v552
      %v748 = vpack.c.b16 %v556, %v553
      %v749 = vpack.c.b16 %v560, %v557
      %v750 = vpack.c.b16 %v561, %v558
      %v751 = vpack.c.b16 %v562, %v559
      %v752 = vpack.c.b16 %v566, %v563
      %v753 = vpack.c.b16 %v567, %v564
      %v754 = vpack.c.b16 %v568, %v565
      %v755 = vpack.c.b16 %v572, %v569
      %v756 = vpack.c.b16 %v573, %v570
      %v757 = vpack.c.b16 %v574, %v571
      %v758 = vpack.c.b16 %v578, %v575
      %v759 = vpack.c.b16 %v579, %v576
      %v760 = vpack.c.b16 %v580, %v577
      %v761 = vpack.c.b16 %v584, %v581
      %v762 = vpack.c.b16 %v585, %v582
      %v763 = vpack.c.b16 %v586, %v583
      %v764 = vpack.c.b16 %v590, %v587
      %v765 = vpack.c.b16 %v591, %v588
      %v766 = vpack.c.b16 %v592, %v589
      %v767 = vpack.c.b16 %v596, %v593
      %v768 = vpack.c.b16 %v597, %v594
      %v769 = vpack.c.b16 %v598, %v595
      %v770 = vpack.c.b16 %v602, %v599
      %v771 = vpack.c.b16 %v603, %v600
      %v772 = vpack.c.b16 %v604, %v601
      %v773 = vpack.c.b16 %v608, %v605
      %v774 = vpack.c.b16 %v609, %v606
      %v775 = vpack.c.b16 %v610, %v607
      %v776 = vpack.c.b16 %v614, %v611
      %v777 = vpack.c.b16 %v615, %v612
      %v778 = vpack.c.b16 %v616, %v613
      %v779 = vpack.c.b16 %v620, %v617
      %v780 = vpack.c.b16 %v621, %v618
      %v781 = vpack.c.b16 %v622, %v619
      %v782 = vpack.c.b16 %v626, %v623
      %v783 = vpack.c.b16 %v627, %v624
      %v784 = vpack.c.b16 %v628, %v625
      %v785 = vpack.c.b16 %v632, %v629
      %v786 = vpack.c.b16 %v633, %v630
      %v787 = vpack.c.b16 %v634, %v631
      %v788 = vpack.c.b16 %v638, %v635
      %v789 = vpack.c.b16 %v639, %v636
      %v790 = vpack.c.b16 %v640, %v637
      %v791 = vpack.c.b16 %v644, %v641
      %v792 = vpack.c.b16 %v645, %v642
      %v793 = vpack.c.b16 %v646, %v643
      %v794 = vpack.c.b16 %v650, %v647
      %v795 = vpack.c.b16 %v651, %v648
      %v796 = vpack.c.b16 %v652, %v649
      %v797 = vpack.c.b16 %v656, %v653
      %v798 = vpack.c.b16 %v657, %v654
      %v799 = vpack.c.b16 %v658, %v655
      %v800 = vpack.c.b16 %v662, %v659
      %v801 = vpack.c.b16 %v663, %v660
      %v802 = vpack.c.b16 %v664, %v661
      %v803 = vpack.c.b16 %v668, %v665
      %v804 = vpack.c.b16 %v669, %v666
      %v805 = vpack.c.b16 %v670, %v667
      %v806 = vpack.c.b16 %v674, %v671
      %v807 = vpack.c.b16 %v675, %v672
      %v808 = vpack.c.b16 %v676, %v673
      %v809 = vpack.c.b16 %v680, %v677
      %v810 = vpack.c.b16 %v681, %v678
      %v811 = vpack.c.b16 %v682, %v679
      %v812 = vpack.c.b16 %v686, %v683
      %v813 = vpack.c.b16 %v687, %v684
      %v814 = vpack.c.b16 %v688, %v685
      %v815 = vpack.c.b16 %v692, %v689
      %v816 = vpack.c.b16 %v693, %v690
      %v817 = vpack.c.b16 %v694, %v691
      %v818 = vpack.c.b16 %v698, %v695
      %v819 = vpack.c.b16 %v699, %v696
      %v820 = vpack.c.b16 %v700, %v697
      %v821 = vpack.c.b16 %v704, %v701
      %v822 = vpack.c.b16 %v705, %v702
      %v823 = vpack.c.b16 %v706, %v703
      %v824 = vpack.c.b16 %v710, %v707
      %v825 = vpack.c.b16 %v711, %v708
      %v826 = vpack.c.b16 %v712, %v709
      %v827 = vpack.c.b16 %v716, %v713
      %v828 = vpack.c.b16 %v717, %v714
      %v829 = vpack.c.b16 %v718, %v715
      %v830 = vpack.c.b16 %v722, %v719
      %v831 = vpack.c.b16 %v723, %v720
      %v832 = vpack.c.b16 %v724, %v721
      %v941 = vunpack.c.l.b16 %v322
      %v942 = vunpack.c.l.b16 %v323
      %v943 = vunpack.c.l.b16 %v324
      %v944 = vunpack.c.l.b16 %v325
      %v945 = vunpack.c.l.b16 %v326
      %v946 = vunpack.c.l.b16 %v327
      %v947 = vunpack.c.l.b16 %v328
      %v948 = vunpack.c.l.b16 %v329
      %v949 = vunpack.c.l.b16 %v330
      %v950 = vunpack.c.l.b16 %v331
      %v951 = vunpack.c.l.b16 %v332
      %v952 = vunpack.c.l.b16 %v333
      %v953 = vunpack.c.l.b16 %v334
      %v954 = vunpack.c.l.b16 %v335
      %v955 = vunpack.c.l.b16 %v336
      %v956 = vunpack.c.l.b16 %v337
      %v957 = vunpack.c.l.b16 %v338
      %v958 = vunpack.c.l.b16 %v339
      %v959 = vunpack.c.l.b16 %v340
      %v960 = vunpack.c.l.b16 %v341
      %v961 = vunpack.c.l.b16 %v342
      %v962 = vunpack.c.l.b16 %v343
      %v963 = vunpack.c.l.b16 %v344
      %v964 = vunpack.c.l.b16 %v345
      %v965 = vunpack.c.l.b16 %v346
      %v966 = vunpack.c.l.b16 %v347
      %v967 = vunpack.c.l.b16 %v348
      %v968 = vunpack.c.l.b16 %v349
      %v969 = vunpack.c.l.b16 %v350
      %v970 = vunpack.c.l.b16 %v351
      %v971 = vunpack.c.l.b16 %v352
      %v972 = vunpack.c.l.b16 %v353
      %v973 = vunpack.c.l.b16 %v354
      %v974 = vunpack.c.l.b16 %v355
      %v975 = vunpack.c.l.b16 %v356
      %v976 = vunpack.c.l.b16 %v357
      %v977 = vpack.c.b16 %v942, %v941
      %v978 = vpack.c.b16 %v944, %v943
      %v979 = vpack.c.b16 %v946, %v945
      %v980 = vpack.c.b16 %v948, %v947
      %v981 = vpack.c.b16 %v950, %v949
      %v982 = vpack.c.b16 %v952, %v951
      %v983 = vpack.c.b16 %v954, %v953
      %v984 = vpack.c.b16 %v956, %v955
      %v985 = vpack.c.b16 %v958, %v957
      %v986 = vpack.c.b16 %v960, %v959
      %v987 = vpack.c.b16 %v962, %v961
      %v988 = vpack.c.b16 %v964, %v963
      %v989 = vpack.c.b16 %v966, %v965
      %v990 = vpack.c.b16 %v968, %v967
      %v991 = vpack.c.b16 %v970, %v969
      %v992 = vpack.c.b16 %v972, %v971
      %v993 = vpack.c.b16 %v974, %v973
      %v994 = vpack.c.b16 %v976, %v975
      %vm1013 = vcmask 261120
      %v1015 = vsel %vm1013, %v727, 0
      %v1018 = vsel %vm1013, %v730, 0
      %v1021 = vsel %vm1013, %v733, 0
      %v1024 = vsel %vm1013, %v736, 0
      %v1027 = vsel %vm1013, %v739, 0
      %v1030 = vsel %vm1013, %v742, 0
      %v1033 = vsel %vm1013, %v745, 0
      %v1036 = vsel %vm1013, %v748, 0
      %v1039 = vsel %vm1013, %v751, 0
      %v1042 = vsel %vm1013, %v754, 0
      %v1045 = vsel %vm1013, %v757, 0
      %v1048 = vsel %vm1013, %v760, 0
      %v1051 = vsel %vm1013, %v763, 0
      %v1054 = vsel %vm1013, %v766, 0
      %v1057 = vsel %vm1013, %v769, 0
      %v1060 = vsel %vm1013, %v772, 0
      %v1063 = vsel %vm1013, %v775, 0
      %v1066 = vsel %vm1013, %v778, 0
      %v1069 = vsel %vm1013, %v781, 0
      %v1072 = vsel %vm1013, %v784, 0
      %v1075 = vsel %vm1013, %v787, 0
      %v1078 = vsel %vm1013, %v790, 0
      %v1081 = vsel %vm1013, %v793, 0
      %v1084 = vsel %vm1013, %v796, 0
      %v1087 = vsel %vm1013, %v799, 0
      %v1090 = vsel %vm1013, %v802, 0
      %v1093 = vsel %vm1013, %v805, 0
      %v1096 = vsel %vm1013, %v808, 0
      %v1099 = vsel %vm1013, %v811, 0
      %v1102 = vsel %vm1013, %v814, 0
      %v1105 = vsel %vm1013, %v817, 0
      %v1108 = vsel %vm1013, %v820, 0
      %v1111 = vsel %vm1013, %v823, 0
      %v1114 = vsel %vm1013, %v826, 0
      %v1117 = vsel %vm1013, %v829, 0
      %v1120 = vsel %vm1013, %v832, 0
      %1122 = vmatprep.subr.bf16.mxu0 0
      %1123 = vmatpush1.bf16.msra.mxu0 %v977
      %1124 = vmatprep.subr.bf16.mxu0 0
      %1125 = vmatpush1.bf16.msra.mxu0 %v978
      %1126 = vmatprep.subr.bf16.mxu0 0
      %1127 = vmatpush1.bf16.msra.mxu0 %v979
      %1128 = vmatprep.subr.bf16.mxu0 0
      %1129 = vmatpush1.bf16.msra.mxu0 %v980
      %1130 = vmatprep.subr.bf16.mxu0 0
      %1131 = vmatpush1.bf16.msra.mxu0 %v981
      %1132 = vmatprep.subr.bf16.mxu0 0
      %1133 = vmatpush1.bf16.msra.mxu0 %v982
      %1134 = vmatprep.subr.bf16.mxu0 0
      %1135 = vmatpush1.bf16.msra.mxu0 %v983
      %1136 = vmatprep.subr.bf16.mxu0 0
      %1137 = vmatpush1.bf16.msra.mxu0 %v984
      %1138 = vmatprep.subr.bf16.mxu0 0
      %1139 = vmatpush1.bf16.msra.mxu0 %v985
      %1140 = vmatprep.subr.bf16.mxu0 0
      %1141 = vmatpush1.bf16.msra.mxu0 %v986
      %1142 = vmatprep.subr.bf16.mxu0 0
      %1143 = vmatpush1.bf16.msra.mxu0 %v987
      %1144 = vmatprep.subr.bf16.mxu0 0
      %1145 = vmatpush1.bf16.msra.mxu0 %v988
      %1146 = vmatprep.subr.bf16.mxu0 0
      %1147 = vmatpush1.bf16.msra.mxu0 %v989
      %1148 = vmatprep.subr.bf16.mxu0 0
      %1149 = vmatpush1.bf16.msra.mxu0 %v990
      %1150 = vmatprep.subr.bf16.mxu0 0
      %1151 = vmatpush1.bf16.msra.mxu0 %v991
      %1152 = vmatprep.subr.bf16.mxu0 0
      %1153 = vmatpush1.bf16.msra.mxu0 %v992
      %1154 = vmatprep.mubr.bf16.mxu0 %v726
      %1155 = vmatmul.mubr.bf16.gmra.mrb[0].mxu0 %v725
      %v1156 = vpop.f32.mrb[0].mxu0
      %v1157 = vadd.f32 %v363, %v1156
      %v1158 = vpop.f32.mrb[0].mxu0
      %v1159 = vpop.f32.mrb[0].mxu0
      %v1160 = vadd.f32 %v363, %v1159
      %v1161 = vpop.f32.mrb[0].mxu0
      %1162 = vmatprep.mubr.bf16.mxu0 %v729
      %1163 = vmatmul.mubr.bf16.gmra.mrb[0].mxu0 %v728
      %v1164 = vpop.f32.mrb[0].mxu0
      %v1165 = vadd.f32 %v363, %v1164
      %v1166 = vpop.f32.mrb[0].mxu0
      %v1167 = vpop.f32.mrb[0].mxu0
      %v1168 = vadd.f32 %v363, %v1167
      %v1169 = vpop.f32.mrb[0].mxu0
      %1170 = vmatprep.mubr.bf16.mxu0 %v732
      %1171 = vmatmul.mubr.bf16.gmra.mrb[0].mxu0 %v731
      %v1172 = vpop.f32.mrb[0].mxu0
      %v1173 = vadd.f32 %v363, %v1172
      %v1174 = vpop.f32.mrb[0].mxu0
      %v1175 = vpop.f32.mrb[0].mxu0
      %v1176 = vadd.f32 %v363, %v1175
      %v1177 = vpop.f32.mrb[0].mxu0
      %1178 = vmatprep.mubr.bf16.mxu0 %v735
      %1179 = vmatmul.mubr.bf16.gmra.mrb[0].mxu0 %v734
      %v1180 = vpop.f32.mrb[0].mxu0
      %v1181 = vadd.f32 %v363, %v1180
      %v1182 = vpop.f32.mrb[0].mxu0
      %v1183 = vpop.f32.mrb[0].mxu0
      %v1184 = vadd.f32 %v363, %v1183
      %v1185 = vpop.f32.mrb[0].mxu0
      %1186 = vmatprep.mubr.bf16.mxu0 %v738
      %1187 = vmatmul.mubr.bf16.gmra.mrb[0].mxu0 %v737
      %v1188 = vpop.f32.mrb[0].mxu0
      %v1189 = vadd.f32 %v363, %v1188
      %v1190 = vpop.f32.mrb[0].mxu0
      %v1191 = vpop.f32.mrb[0].mxu0
      %v1192 = vadd.f32 %v363, %v1191
      %v1193 = vpop.f32.mrb[0].mxu0
      %1194 = vmatprep.mubr.bf16.mxu0 %v741
      %1195 = vmatmul.mubr.bf16.gmra.mrb[0].mxu0 %v740
      %v1196 = vpop.f32.mrb[0].mxu0
      %v1197 = vadd.f32 %v363, %v1196
      %v1198 = vpop.f32.mrb[0].mxu0
      %v1199 = vpop.f32.mrb[0].mxu0
      %v1200 = vadd.f32 %v363, %v1199
      %v1201 = vpop.f32.mrb[0].mxu0
      %1202 = vmatprep.mubr.bf16.mxu0 %v744
      %1203 = vmatmul.mubr.bf16.gmra.mrb[0].mxu0 %v743
      %v1204 = vpop.f32.mrb[0].mxu0
      %v1205 = vadd.f32 %v363, %v1204
      %v1206 = vpop.f32.mrb[0].mxu0
      %v1207 = vpop.f32.mrb[0].mxu0
      %v1208 = vadd.f32 %v363, %v1207
      %v1209 = vpop.f32.mrb[0].mxu0
      %1210 = vmatprep.mubr.bf16.mxu0 %v747
      %1211 = vmatmul.mubr.bf16.gmra.mrb[0].mxu0 %v746
      %v1212 = vpop.f32.mrb[0].mxu0
      %v1213 = vadd.f32 %v363, %v1212
      %v1214 = vpop.f32.mrb[0].mxu0
      %v1215 = vpop.f32.mrb[0].mxu0
      %v1216 = vadd.f32 %v363, %v1215
      %v1217 = vpop.f32.mrb[0].mxu0
      %1218 = vmatprep.mubr.bf16.mxu0 %v750
      %1219 = vmatmul.mubr.bf16.gmra.mrb[0].mxu0 %v749
      %v1220 = vpop.f32.mrb[0].mxu0
      %v1221 = vadd.f32 %v363, %v1220
      %v1222 = vpop.f32.mrb[0].mxu0
      %v1223 = vpop.f32.mrb[0].mxu0
      %v1224 = vadd.f32 %v363, %v1223
      %v1225 = vpop.f32.mrb[0].mxu0
      %1226 = vmatprep.mubr.bf16.mxu0 %v753
      %1227 = vmatmul.mubr.bf16.gmra.mrb[0].mxu0 %v752
      %v1228 = vpop.f32.mrb[0].mxu0
      %v1229 = vadd.f32 %v363, %v1228
      %v1230 = vpop.f32.mrb[0].mxu0
      %v1231 = vpop.f32.mrb[0].mxu0
      %v1232 = vadd.f32 %v363, %v1231
      %v1233 = vpop.f32.mrb[0].mxu0
      %1234 = vmatprep.mubr.bf16.mxu0 %v756
      %1235 = vmatmul.mubr.bf16.gmra.mrb[0].mxu0 %v755
      %v1236 = vpop.f32.mrb[0].mxu0
      %v1237 = vadd.f32 %v363, %v1236
      %v1238 = vpop.f32.mrb[0].mxu0
      %v1239 = vpop.f32.mrb[0].mxu0
      %v1240 = vadd.f32 %v363, %v1239
      %v1241 = vpop.f32.mrb[0].mxu0
      %1242 = vmatprep.mubr.bf16.mxu0 %v759
      %1243 = vmatmul.mubr.bf16.gmra.mrb[0].mxu0 %v758
      %v1244 = vpop.f32.mrb[0].mxu0
      %v1245 = vadd.f32 %v363, %v1244
      %v1246 = vpop.f32.mrb[0].mxu0
      %v1247 = vpop.f32.mrb[0].mxu0
      %v1248 = vadd.f32 %v363, %v1247
      %v1249 = vpop.f32.mrb[0].mxu0
      %1250 = vmatprep.mubr.bf16.mxu0 %v762
      %1251 = vmatmul.mubr.bf16.gmra.mrb[0].mxu0 %v761
      %v1252 = vpop.f32.mrb[0].mxu0
      %v1253 = vadd.f32 %v363, %v1252
      %v1254 = vpop.f32.mrb[0].mxu0
      %v1255 = vpop.f32.mrb[0].mxu0
      %v1256 = vadd.f32 %v363, %v1255
      %v1257 = vpop.f32.mrb[0].mxu0
      %1258 = vmatprep.mubr.bf16.mxu0 %v765
      %1259 = vmatmul.mubr.bf16.gmra.mrb[0].mxu0 %v764
      %v1260 = vpop.f32.mrb[0].mxu0
      %v1261 = vadd.f32 %v363, %v1260
      %v1262 = vpop.f32.mrb[0].mxu0
      %v1263 = vpop.f32.mrb[0].mxu0
      %v1264 = vadd.f32 %v363, %v1263
      %v1265 = vpop.f32.mrb[0].mxu0
      %1266 = vmatprep.mubr.bf16.mxu0 %v768
      %1267 = vmatmul.mubr.bf16.gmra.mrb[0].mxu0 %v767
      %v1268 = vpop.f32.mrb[0].mxu0
      %v1269 = vadd.f32 %v363, %v1268
      %v1270 = vpop.f32.mrb[0].mxu0
      %v1271 = vpop.f32.mrb[0].mxu0
      %v1272 = vadd.f32 %v363, %v1271
      %v1273 = vpop.f32.mrb[0].mxu0
      %1274 = vmatprep.mubr.bf16.mxu0 %v771
      %1275 = vmatmul.mubr.bf16.gmra.mrb[0].mxu0 %v770
      %v1276 = vpop.f32.mrb[0].mxu0
      %v1277 = vadd.f32 %v363, %v1276
      %v1278 = vpop.f32.mrb[0].mxu0
      %v1279 = vpop.f32.mrb[0].mxu0
      %v1280 = vadd.f32 %v363, %v1279
      %v1281 = vpop.f32.mrb[0].mxu0
      %1282 = vmatprep.mubr.bf16.mxu0 %v774
      %1283 = vmatmul.mubr.bf16.gmra.mrb[0].mxu0 %v773
      %v1284 = vpop.f32.mrb[0].mxu0
      %v1285 = vadd.f32 %v363, %v1284
      %v1286 = vpop.f32.mrb[0].mxu0
      %v1287 = vpop.f32.mrb[0].mxu0
      %v1288 = vadd.f32 %v363, %v1287
      %v1289 = vpop.f32.mrb[0].mxu0
      %1290 = vmatprep.mubr.bf16.mxu0 %v777
      %1291 = vmatmul.mubr.bf16.gmra.mrb[0].mxu0 %v776
      %v1292 = vpop.f32.mrb[0].mxu0
      %v1293 = vadd.f32 %v363, %v1292
      %v1294 = vpop.f32.mrb[0].mxu0
      %v1295 = vpop.f32.mrb[0].mxu0
      %v1296 = vadd.f32 %v363, %v1295
      %v1297 = vpop.f32.mrb[0].mxu0
      %1298 = vmatprep.mubr.bf16.mxu0 %v780
      %1299 = vmatmul.mubr.bf16.gmra.mrb[0].mxu0 %v779
      %v1300 = vpop.f32.mrb[0].mxu0
      %v1301 = vadd.f32 %v363, %v1300
      %v1302 = vpop.f32.mrb[0].mxu0
      %v1303 = vpop.f32.mrb[0].mxu0
      %v1304 = vadd.f32 %v363, %v1303
      %v1305 = vpop.f32.mrb[0].mxu0
      %1306 = vmatprep.mubr.bf16.mxu0 %v783
      %1307 = vmatmul.mubr.bf16.gmra.mrb[0].mxu0 %v782
      %v1308 = vpop.f32.mrb[0].mxu0
      %v1309 = vadd.f32 %v363, %v1308
      %v1310 = vpop.f32.mrb[0].mxu0
      %v1311 = vpop.f32.mrb[0].mxu0
      %v1312 = vadd.f32 %v363, %v1311
      %v1313 = vpop.f32.mrb[0].mxu0
      %1314 = vmatprep.mubr.bf16.mxu0 %v786
      %1315 = vmatmul.mubr.bf16.gmra.mrb[0].mxu0 %v785
      %v1316 = vpop.f32.mrb[0].mxu0
      %v1317 = vadd.f32 %v363, %v1316
      %v1318 = vpop.f32.mrb[0].mxu0
      %v1319 = vpop.f32.mrb[0].mxu0
      %v1320 = vadd.f32 %v363, %v1319
      %v1321 = vpop.f32.mrb[0].mxu0
      %1322 = vmatprep.mubr.bf16.mxu0 %v789
      %1323 = vmatmul.mubr.bf16.gmra.mrb[0].mxu0 %v788
      %v1324 = vpop.f32.mrb[0].mxu0
      %v1325 = vadd.f32 %v363, %v1324
      %v1326 = vpop.f32.mrb[0].mxu0
      %v1327 = vpop.f32.mrb[0].mxu0
      %v1328 = vadd.f32 %v363, %v1327
      %v1329 = vpop.f32.mrb[0].mxu0
      %1330 = vmatprep.mubr.bf16.mxu0 %v792
      %1331 = vmatmul.mubr.bf16.gmra.mrb[0].mxu0 %v791
      %v1332 = vpop.f32.mrb[0].mxu0
      %v1333 = vadd.f32 %v363, %v1332
      %v1334 = vpop.f32.mrb[0].mxu0
      %v1335 = vpop.f32.mrb[0].mxu0
      %v1336 = vadd.f32 %v363, %v1335
      %v1337 = vpop.f32.mrb[0].mxu0
      %1338 = vmatprep.mubr.bf16.mxu0 %v795
      %1339 = vmatmul.mubr.bf16.gmra.mrb[0].mxu0 %v794
      %v1340 = vpop.f32.mrb[0].mxu0
      %v1341 = vadd.f32 %v363, %v1340
      %v1342 = vpop.f32.mrb[0].mxu0
      %v1343 = vpop.f32.mrb[0].mxu0
      %v1344 = vadd.f32 %v363, %v1343
      %v1345 = vpop.f32.mrb[0].mxu0
      %1346 = vmatprep.mubr.bf16.mxu0 %v798
      %1347 = vmatmul.mubr.bf16.gmra.mrb[0].mxu0 %v797
      %v1348 = vpop.f32.mrb[0].mxu0
      %v1349 = vadd.f32 %v363, %v1348
      %v1350 = vpop.f32.mrb[0].mxu0
      %v1351 = vpop.f32.mrb[0].mxu0
      %v1352 = vadd.f32 %v363, %v1351
      %v1353 = vpop.f32.mrb[0].mxu0
      %1354 = vmatprep.mubr.bf16.mxu0 %v801
      %1355 = vmatmul.mubr.bf16.gmra.mrb[0].mxu0 %v800
      %v1356 = vpop.f32.mrb[0].mxu0
      %v1357 = vadd.f32 %v363, %v1356
      %v1358 = vpop.f32.mrb[0].mxu0
      %v1359 = vpop.f32.mrb[0].mxu0
      %v1360 = vadd.f32 %v363, %v1359
      %v1361 = vpop.f32.mrb[0].mxu0
      %1362 = vmatprep.mubr.bf16.mxu0 %v804
      %1363 = vmatmul.mubr.bf16.gmra.mrb[0].mxu0 %v803
      %v1364 = vpop.f32.mrb[0].mxu0
      %v1365 = vadd.f32 %v363, %v1364
      %v1366 = vpop.f32.mrb[0].mxu0
      %v1367 = vpop.f32.mrb[0].mxu0
      %v1368 = vadd.f32 %v363, %v1367
      %v1369 = vpop.f32.mrb[0].mxu0
      %1370 = vmatprep.mubr.bf16.mxu0 %v807
      %1371 = vmatmul.mubr.bf16.gmra.mrb[0].mxu0 %v806
      %v1372 = vpop.f32.mrb[0].mxu0
      %v1373 = vadd.f32 %v363, %v1372
      %v1374 = vpop.f32.mrb[0].mxu0
      %v1375 = vpop.f32.mrb[0].mxu0
      %v1376 = vadd.f32 %v363, %v1375
      %v1377 = vpop.f32.mrb[0].mxu0
      %1378 = vmatprep.mubr.bf16.mxu0 %v810
      %1379 = vmatmul.mubr.bf16.gmra.mrb[0].mxu0 %v809
      %v1380 = vpop.f32.mrb[0].mxu0
      %v1381 = vadd.f32 %v363, %v1380
      %v1382 = vpop.f32.mrb[0].mxu0
      %v1383 = vpop.f32.mrb[0].mxu0
      %v1384 = vadd.f32 %v363, %v1383
      %v1385 = vpop.f32.mrb[0].mxu0
      %1386 = vmatprep.mubr.bf16.mxu0 %v813
      %1387 = vmatmul.mubr.bf16.gmra.mrb[0].mxu0 %v812
      %v1388 = vpop.f32.mrb[0].mxu0
      %v1389 = vadd.f32 %v363, %v1388
      %v1390 = vpop.f32.mrb[0].mxu0
      %v1391 = vpop.f32.mrb[0].mxu0
      %v1392 = vadd.f32 %v363, %v1391
      %v1393 = vpop.f32.mrb[0].mxu0
      %1394 = vmatprep.mubr.bf16.mxu0 %v816
      %1395 = vmatmul.mubr.bf16.gmra.mrb[0].mxu0 %v815
      %v1396 = vpop.f32.mrb[0].mxu0
      %v1397 = vadd.f32 %v363, %v1396
      %v1398 = vpop.f32.mrb[0].mxu0
      %v1399 = vpop.f32.mrb[0].mxu0
      %v1400 = vadd.f32 %v363, %v1399
      %v1401 = vpop.f32.mrb[0].mxu0
      %1402 = vmatprep.mubr.bf16.mxu0 %v819
      %1403 = vmatmul.mubr.bf16.gmra.mrb[0].mxu0 %v818
      %v1404 = vpop.f32.mrb[0].mxu0
      %v1405 = vadd.f32 %v363, %v1404
      %v1406 = vpop.f32.mrb[0].mxu0
      %v1407 = vpop.f32.mrb[0].mxu0
      %v1408 = vadd.f32 %v363, %v1407
      %v1409 = vpop.f32.mrb[0].mxu0
      %1410 = vmatprep.mubr.bf16.mxu0 %v822
      %1411 = vmatmul.mubr.bf16.gmra.mrb[0].mxu0 %v821
      %v1412 = vpop.f32.mrb[0].mxu0
      %v1413 = vadd.f32 %v363, %v1412
      %v1414 = vpop.f32.mrb[0].mxu0
      %v1415 = vpop.f32.mrb[0].mxu0
      %v1416 = vadd.f32 %v363, %v1415
      %v1417 = vpop.f32.mrb[0].mxu0
      %1418 = vmatprep.mubr.bf16.mxu0 %v825
      %1419 = vmatmul.mubr.bf16.gmra.mrb[0].mxu0 %v824
      %v1420 = vpop.f32.mrb[0].mxu0
      %v1421 = vadd.f32 %v363, %v1420
      %v1422 = vpop.f32.mrb[0].mxu0
      %v1423 = vpop.f32.mrb[0].mxu0
      %v1424 = vadd.f32 %v363, %v1423
      %v1425 = vpop.f32.mrb[0].mxu0
      %1426 = vmatprep.mubr.bf16.mxu0 %v828
      %1427 = vmatmul.mubr.bf16.gmra.mrb[0].mxu0 %v827
      %v1428 = vpop.f32.mrb[0].mxu0
      %v1429 = vadd.f32 %v363, %v1428
      %v1430 = vpop.f32.mrb[0].mxu0
      %v1431 = vpop.f32.mrb[0].mxu0
      %v1432 = vadd.f32 %v363, %v1431
      %v1433 = vpop.f32.mrb[0].mxu0
      %1434 = vmatprep.mubr.bf16.mxu0 %v831
      %1435 = vmatmul.mubr.bf16.gmra.mrb[0].mxu0 %v830
      %v1436 = vpop.f32.mrb[0].mxu0
      %v1437 = vadd.f32 %v363, %v1436
      %v1438 = vpop.f32.mrb[0].mxu0
      %v1439 = vpop.f32.mrb[0].mxu0
      %v1440 = vadd.f32 %v363, %v1439
      %v1441 = vpop.f32.mrb[0].mxu0
      %1442 = vdwg.mxu0
      %1443 = vmatprep.subr.bf16.mxu0 0
      %1444 = vmatpush1.bf16.msra.mxu0 %v993
      %1445 = vmatprep.subr.bf16.mxu0 0
      %1446 = vmatpush1.bf16.msra.mxu0 %v994
      %1447 = vmatprep.subr.bf16.mxu0 0
      %1448 = vmatpush1.bf16.msra.mxu0 0
      %1449 = vmatprep.subr.bf16.mxu0 0
      %1450 = vmatpush1.bf16.msra.mxu0 0
      %1451 = vmatprep.subr.bf16.mxu0 0
      %1452 = vmatpush1.bf16.msra.mxu0 0
      %1453 = vmatprep.subr.bf16.mxu0 0
      %1454 = vmatpush1.bf16.msra.mxu0 0
      %1455 = vmatprep.subr.bf16.mxu0 0
      %1456 = vmatpush1.bf16.msra.mxu0 0
      %1457 = vmatprep.subr.bf16.mxu0 0
      %1458 = vmatpush1.bf16.msra.mxu0 0
      %1459 = vmatprep.subr.bf16.mxu0 0
      %1460 = vmatpush1.bf16.msra.mxu0 0
      %1461 = vmatprep.subr.bf16.mxu0 0
      %1462 = vmatpush1.bf16.msra.mxu0 0
      %1463 = vmatprep.subr.bf16.mxu0 0
      %1464 = vmatpush1.bf16.msra.mxu0 0
      %1465 = vmatprep.subr.bf16.mxu0 0
      %1466 = vmatpush1.bf16.msra.mxu0 0
      %1467 = vmatprep.subr.bf16.mxu0 0
      %1468 = vmatpush1.bf16.msra.mxu0 0
      %1469 = vmatprep.subr.bf16.mxu0 0
      %1470 = vmatpush1.bf16.msra.mxu0 0
      %1471 = vmatprep.subr.bf16.mxu0 0
      %1472 = vmatpush1.bf16.msra.mxu0 0
      %1473 = vmatprep.subr.bf16.mxu0 0
      %1474 = vmatpush1.bf16.msra.mxu0 0
      %1475 = vmatprep.mubr.bf16.mxu0 0
      %1476 = vmatmul.mubr.bf16.gmra.mrb[0].mxu0 %v1015
      %v1477 = vpop.f32.mrb[0].mxu0
      %v1478 = vadd.f32 %v1157, %v1477
      %v1479 = vpop.f32.mrb[0].mxu0
      %v1480 = vpop.f32.mrb[0].mxu0
      %v1481 = vadd.f32 %v1160, %v1480
      %v1482 = vpop.f32.mrb[0].mxu0
      %1483 = vmatprep.mubr.bf16.mxu0 0
      %1484 = vmatmul.mubr.bf16.gmra.mrb[0].mxu0 %v1018
      %v1485 = vpop.f32.mrb[0].mxu0
      %v1486 = vadd.f32 %v1165, %v1485
      %v1487 = vpop.f32.mrb[0].mxu0
      %v1488 = vpop.f32.mrb[0].mxu0
      %v1489 = vadd.f32 %v1168, %v1488
      %v1490 = vpop.f32.mrb[0].mxu0
      %1491 = vmatprep.mubr.bf16.mxu0 0
      %1492 = vmatmul.mubr.bf16.gmra.mrb[0].mxu0 %v1021
      %v1493 = vpop.f32.mrb[0].mxu0
      %v1494 = vadd.f32 %v1173, %v1493
      %v1495 = vpop.f32.mrb[0].mxu0
      %v1496 = vpop.f32.mrb[0].mxu0
      %v1497 = vadd.f32 %v1176, %v1496
      %v1498 = vpop.f32.mrb[0].mxu0
      %1499 = vmatprep.mubr.bf16.mxu0 0
      %1500 = vmatmul.mubr.bf16.gmra.mrb[0].mxu0 %v1024
      %v1501 = vpop.f32.mrb[0].mxu0
      %v1502 = vadd.f32 %v1181, %v1501
      %v1503 = vpop.f32.mrb[0].mxu0
      %v1504 = vpop.f32.mrb[0].mxu0
      %v1505 = vadd.f32 %v1184, %v1504
      %v1506 = vpop.f32.mrb[0].mxu0
      %1507 = vmatprep.mubr.bf16.mxu0 0
      %1508 = vmatmul.mubr.bf16.gmra.mrb[0].mxu0 %v1027
      %v1509 = vpop.f32.mrb[0].mxu0
      %v1510 = vadd.f32 %v1189, %v1509
      %v1511 = vpop.f32.mrb[0].mxu0
      %v1512 = vpop.f32.mrb[0].mxu0
      %v1513 = vadd.f32 %v1192, %v1512
      %v1514 = vpop.f32.mrb[0].mxu0
      %1515 = vmatprep.mubr.bf16.mxu0 0
      %1516 = vmatmul.mubr.bf16.gmra.mrb[0].mxu0 %v1030
      %v1517 = vpop.f32.mrb[0].mxu0
      %v1518 = vadd.f32 %v1197, %v1517
      %v1519 = vpop.f32.mrb[0].mxu0
      %v1520 = vpop.f32.mrb[0].mxu0
      %v1521 = vadd.f32 %v1200, %v1520
      %v1522 = vpop.f32.mrb[0].mxu0
      %1523 = vmatprep.mubr.bf16.mxu0 0
      %1524 = vmatmul.mubr.bf16.gmra.mrb[0].mxu0 %v1033
      %v1525 = vpop.f32.mrb[0].mxu0
      %v1526 = vadd.f32 %v1205, %v1525
      %v1527 = vpop.f32.mrb[0].mxu0
      %v1528 = vpop.f32.mrb[0].mxu0
      %v1529 = vadd.f32 %v1208, %v1528
      %v1530 = vpop.f32.mrb[0].mxu0
      %1531 = vmatprep.mubr.bf16.mxu0 0
      %1532 = vmatmul.mubr.bf16.gmra.mrb[0].mxu0 %v1036
      %v1533 = vpop.f32.mrb[0].mxu0
      %v1534 = vadd.f32 %v1213, %v1533
      %v1535 = vpop.f32.mrb[0].mxu0
      %v1536 = vpop.f32.mrb[0].mxu0
      %v1537 = vadd.f32 %v1216, %v1536
      %v1538 = vpop.f32.mrb[0].mxu0
      %1539 = vmatprep.mubr.bf16.mxu0 0
      %1540 = vmatmul.mubr.bf16.gmra.mrb[0].mxu0 %v1039
      %v1541 = vpop.f32.mrb[0].mxu0
      %v1542 = vadd.f32 %v1221, %v1541
      %v1543 = vpop.f32.mrb[0].mxu0
      %v1544 = vpop.f32.mrb[0].mxu0
      %v1545 = vadd.f32 %v1224, %v1544
      %v1546 = vpop.f32.mrb[0].mxu0
      %1547 = vmatprep.mubr.bf16.mxu0 0
      %1548 = vmatmul.mubr.bf16.gmra.mrb[0].mxu0 %v1042
      %v1549 = vpop.f32.mrb[0].mxu0
      %v1550 = vadd.f32 %v1229, %v1549
      %v1551 = vpop.f32.mrb[0].mxu0
      %v1552 = vpop.f32.mrb[0].mxu0
      %v1553 = vadd.f32 %v1232, %v1552
      %v1554 = vpop.f32.mrb[0].mxu0
      %1555 = vmatprep.mubr.bf16.mxu0 0
      %1556 = vmatmul.mubr.bf16.gmra.mrb[0].mxu0 %v1045
      %v1557 = vpop.f32.mrb[0].mxu0
      %v1558 = vadd.f32 %v1237, %v1557
      %v1559 = vpop.f32.mrb[0].mxu0
      %v1560 = vpop.f32.mrb[0].mxu0
      %v1561 = vadd.f32 %v1240, %v1560
      %v1562 = vpop.f32.mrb[0].mxu0
      %1563 = vmatprep.mubr.bf16.mxu0 0
      %1564 = vmatmul.mubr.bf16.gmra.mrb[0].mxu0 %v1048
      %v1565 = vpop.f32.mrb[0].mxu0
      %v1566 = vadd.f32 %v1245, %v1565
      %v1567 = vpop.f32.mrb[0].mxu0
      %v1568 = vpop.f32.mrb[0].mxu0
      %v1569 = vadd.f32 %v1248, %v1568
      %v1570 = vpop.f32.mrb[0].mxu0
      %1571 = vmatprep.mubr.bf16.mxu0 0
      %1572 = vmatmul.mubr.bf16.gmra.mrb[0].mxu0 %v1051
      %v1573 = vpop.f32.mrb[0].mxu0
      %v1574 = vadd.f32 %v1253, %v1573
      %v1575 = vpop.f32.mrb[0].mxu0
      %v1576 = vpop.f32.mrb[0].mxu0
      %v1577 = vadd.f32 %v1256, %v1576
      %v1578 = vpop.f32.mrb[0].mxu0
      %1579 = vmatprep.mubr.bf16.mxu0 0
      %1580 = vmatmul.mubr.bf16.gmra.mrb[0].mxu0 %v1054
      %v1581 = vpop.f32.mrb[0].mxu0
      %v1582 = vadd.f32 %v1261, %v1581
      %v1583 = vpop.f32.mrb[0].mxu0
      %v1584 = vpop.f32.mrb[0].mxu0
      %v1585 = vadd.f32 %v1264, %v1584
      %v1586 = vpop.f32.mrb[0].mxu0
      %1587 = vmatprep.mubr.bf16.mxu0 0
      %1588 = vmatmul.mubr.bf16.gmra.mrb[0].mxu0 %v1057
      %v1589 = vpop.f32.mrb[0].mxu0
      %v1590 = vadd.f32 %v1269, %v1589
      %v1591 = vpop.f32.mrb[0].mxu0
      %v1592 = vpop.f32.mrb[0].mxu0
      %v1593 = vadd.f32 %v1272, %v1592
      %v1594 = vpop.f32.mrb[0].mxu0
      %1595 = vmatprep.mubr.bf16.mxu0 0
      %1596 = vmatmul.mubr.bf16.gmra.mrb[0].mxu0 %v1060
      %v1597 = vpop.f32.mrb[0].mxu0
      %v1598 = vadd.f32 %v1277, %v1597
      %v1599 = vpop.f32.mrb[0].mxu0
      %v1600 = vpop.f32.mrb[0].mxu0
      %v1601 = vadd.f32 %v1280, %v1600
      %v1602 = vpop.f32.mrb[0].mxu0
      %1603 = vmatprep.mubr.bf16.mxu0 0
      %1604 = vmatmul.mubr.bf16.gmra.mrb[0].mxu0 %v1063
      %v1605 = vpop.f32.mrb[0].mxu0
      %v1606 = vadd.f32 %v1285, %v1605
      %v1607 = vpop.f32.mrb[0].mxu0
      %v1608 = vpop.f32.mrb[0].mxu0
      %v1609 = vadd.f32 %v1288, %v1608
      %v1610 = vpop.f32.mrb[0].mxu0
      %1611 = vmatprep.mubr.bf16.mxu0 0
      %1612 = vmatmul.mubr.bf16.gmra.mrb[0].mxu0 %v1066
      %v1613 = vpop.f32.mrb[0].mxu0
      %v1614 = vadd.f32 %v1293, %v1613
      %v1615 = vpop.f32.mrb[0].mxu0
      %v1616 = vpop.f32.mrb[0].mxu0
      %v1617 = vadd.f32 %v1296, %v1616
      %v1618 = vpop.f32.mrb[0].mxu0
      %1619 = vmatprep.mubr.bf16.mxu0 0
      %1620 = vmatmul.mubr.bf16.gmra.mrb[0].mxu0 %v1069
      %v1621 = vpop.f32.mrb[0].mxu0
      %v1622 = vadd.f32 %v1301, %v1621
      %v1623 = vpop.f32.mrb[0].mxu0
      %v1624 = vpop.f32.mrb[0].mxu0
      %v1625 = vadd.f32 %v1304, %v1624
      %v1626 = vpop.f32.mrb[0].mxu0
      %1627 = vmatprep.mubr.bf16.mxu0 0
      %1628 = vmatmul.mubr.bf16.gmra.mrb[0].mxu0 %v1072
      %v1629 = vpop.f32.mrb[0].mxu0
      %v1630 = vadd.f32 %v1309, %v1629
      %v1631 = vpop.f32.mrb[0].mxu0
      %v1632 = vpop.f32.mrb[0].mxu0
      %v1633 = vadd.f32 %v1312, %v1632
      %v1634 = vpop.f32.mrb[0].mxu0
      %1635 = vmatprep.mubr.bf16.mxu0 0
      %1636 = vmatmul.mubr.bf16.gmra.mrb[0].mxu0 %v1075
      %v1637 = vpop.f32.mrb[0].mxu0
      %v1638 = vadd.f32 %v1317, %v1637
      %v1639 = vpop.f32.mrb[0].mxu0
      %v1640 = vpop.f32.mrb[0].mxu0
      %v1641 = vadd.f32 %v1320, %v1640
      %v1642 = vpop.f32.mrb[0].mxu0
      %1643 = vmatprep.mubr.bf16.mxu0 0
      %1644 = vmatmul.mubr.bf16.gmra.mrb[0].mxu0 %v1078
      %v1645 = vpop.f32.mrb[0].mxu0
      %v1646 = vadd.f32 %v1325, %v1645
      %v1647 = vpop.f32.mrb[0].mxu0
      %v1648 = vpop.f32.mrb[0].mxu0
      %v1649 = vadd.f32 %v1328, %v1648
      %v1650 = vpop.f32.mrb[0].mxu0
      %1651 = vmatprep.mubr.bf16.mxu0 0
      %1652 = vmatmul.mubr.bf16.gmra.mrb[0].mxu0 %v1081
      %v1653 = vpop.f32.mrb[0].mxu0
      %v1654 = vadd.f32 %v1333, %v1653
      %v1655 = vpop.f32.mrb[0].mxu0
      %v1656 = vpop.f32.mrb[0].mxu0
      %v1657 = vadd.f32 %v1336, %v1656
      %v1658 = vpop.f32.mrb[0].mxu0
      %1659 = vmatprep.mubr.bf16.mxu0 0
      %1660 = vmatmul.mubr.bf16.gmra.mrb[0].mxu0 %v1084
      %v1661 = vpop.f32.mrb[0].mxu0
      %v1662 = vadd.f32 %v1341, %v1661
      %v1663 = vpop.f32.mrb[0].mxu0
      %v1664 = vpop.f32.mrb[0].mxu0
      %v1665 = vadd.f32 %v1344, %v1664
      %v1666 = vpop.f32.mrb[0].mxu0
      %1667 = vmatprep.mubr.bf16.mxu0 0
      %1668 = vmatmul.mubr.bf16.gmra.mrb[0].mxu0 %v1087
      %v1669 = vpop.f32.mrb[0].mxu0
      %v1670 = vadd.f32 %v1349, %v1669
      %v1671 = vpop.f32.mrb[0].mxu0
      %v1672 = vpop.f32.mrb[0].mxu0
      %v1673 = vadd.f32 %v1352, %v1672
      %v1674 = vpop.f32.mrb[0].mxu0
      %1675 = vmatprep.mubr.bf16.mxu0 0
      %1676 = vmatmul.mubr.bf16.gmra.mrb[0].mxu0 %v1090
      %v1677 = vpop.f32.mrb[0].mxu0
      %v1678 = vadd.f32 %v1357, %v1677
      %v1679 = vpop.f32.mrb[0].mxu0
      %v1680 = vpop.f32.mrb[0].mxu0
      %v1681 = vadd.f32 %v1360, %v1680
      %v1682 = vpop.f32.mrb[0].mxu0
      %1683 = vmatprep.mubr.bf16.mxu0 0
      %1684 = vmatmul.mubr.bf16.gmra.mrb[0].mxu0 %v1093
      %v1685 = vpop.f32.mrb[0].mxu0
      %v1686 = vadd.f32 %v1365, %v1685
      %v1687 = vpop.f32.mrb[0].mxu0
      %v1688 = vpop.f32.mrb[0].mxu0
      %v1689 = vadd.f32 %v1368, %v1688
      %v1690 = vpop.f32.mrb[0].mxu0
      %1691 = vmatprep.mubr.bf16.mxu0 0
      %1692 = vmatmul.mubr.bf16.gmra.mrb[0].mxu0 %v1096
      %v1693 = vpop.f32.mrb[0].mxu0
      %v1694 = vadd.f32 %v1373, %v1693
      %v1695 = vpop.f32.mrb[0].mxu0
      %v1696 = vpop.f32.mrb[0].mxu0
      %v1697 = vadd.f32 %v1376, %v1696
      %v1698 = vpop.f32.mrb[0].mxu0
      %1699 = vmatprep.mubr.bf16.mxu0 0
      %1700 = vmatmul.mubr.bf16.gmra.mrb[0].mxu0 %v1099
      %v1701 = vpop.f32.mrb[0].mxu0
      %v1702 = vadd.f32 %v1381, %v1701
      %v1703 = vpop.f32.mrb[0].mxu0
      %v1704 = vpop.f32.mrb[0].mxu0
      %v1705 = vadd.f32 %v1384, %v1704
      %v1706 = vpop.f32.mrb[0].mxu0
      %1707 = vmatprep.mubr.bf16.mxu0 0
      %1708 = vmatmul.mubr.bf16.gmra.mrb[0].mxu0 %v1102
      %v1709 = vpop.f32.mrb[0].mxu0
      %v1710 = vadd.f32 %v1389, %v1709
      %v1711 = vpop.f32.mrb[0].mxu0
      %v1712 = vpop.f32.mrb[0].mxu0
      %v1713 = vadd.f32 %v1392, %v1712
      %v1714 = vpop.f32.mrb[0].mxu0
      %1715 = vmatprep.mubr.bf16.mxu0 0
      %1716 = vmatmul.mubr.bf16.gmra.mrb[0].mxu0 %v1105
      %v1717 = vpop.f32.mrb[0].mxu0
      %v1718 = vadd.f32 %v1397, %v1717
      %v1719 = vpop.f32.mrb[0].mxu0
      %v1720 = vpop.f32.mrb[0].mxu0
      %v1721 = vadd.f32 %v1400, %v1720
      %v1722 = vpop.f32.mrb[0].mxu0
      %1723 = vmatprep.mubr.bf16.mxu0 0
      %1724 = vmatmul.mubr.bf16.gmra.mrb[0].mxu0 %v1108
      %v1725 = vpop.f32.mrb[0].mxu0
      %v1726 = vadd.f32 %v1405, %v1725
      %v1727 = vpop.f32.mrb[0].mxu0
      %v1728 = vpop.f32.mrb[0].mxu0
      %v1729 = vadd.f32 %v1408, %v1728
      %v1730 = vpop.f32.mrb[0].mxu0
      %1731 = vmatprep.mubr.bf16.mxu0 0
      %1732 = vmatmul.mubr.bf16.gmra.mrb[0].mxu0 %v1111
      %v1733 = vpop.f32.mrb[0].mxu0
      %v1734 = vadd.f32 %v1413, %v1733
      %v1735 = vpop.f32.mrb[0].mxu0
      %v1736 = vpop.f32.mrb[0].mxu0
      %v1737 = vadd.f32 %v1416, %v1736
      %v1738 = vpop.f32.mrb[0].mxu0
      %1739 = vmatprep.mubr.bf16.mxu0 0
      %1740 = vmatmul.mubr.bf16.gmra.mrb[0].mxu0 %v1114
      %v1741 = vpop.f32.mrb[0].mxu0
      %v1742 = vadd.f32 %v1421, %v1741
      %v1743 = vpop.f32.mrb[0].mxu0
      %v1744 = vpop.f32.mrb[0].mxu0
      %v1745 = vadd.f32 %v1424, %v1744
      %v1746 = vpop.f32.mrb[0].mxu0
      %1747 = vmatprep.mubr.bf16.mxu0 0
      %1748 = vmatmul.mubr.bf16.gmra.mrb[0].mxu0 %v1117
      %v1749 = vpop.f32.mrb[0].mxu0
      %v1750 = vadd.f32 %v1429, %v1749
      %v1751 = vpop.f32.mrb[0].mxu0
      %v1752 = vpop.f32.mrb[0].mxu0
      %v1753 = vadd.f32 %v1432, %v1752
      %v1754 = vpop.f32.mrb[0].mxu0
      %1755 = vmatprep.mubr.bf16.mxu0 0
      %1756 = vmatmul.mubr.bf16.gmra.mrb[0].mxu0 %v1120
      %v1757 = vpop.f32.mrb[0].mxu0
      %v1758 = vadd.f32 %v1437, %v1757
      %v1759 = vpop.f32.mrb[0].mxu0
      %v1760 = vpop.f32.mrb[0].mxu0
      %v1761 = vadd.f32 %v1440, %v1760
      %v1762 = vpop.f32.mrb[0].mxu0
      %1763 = vdwg.mxu0
      %v1764 = vmax.f32 %v1478, 0.0
      %v1765 = vmax.f32 %v1481, 0.0
      %v1766 = vmax.f32 %v1486, 0.0
      %v1767 = vmax.f32 %v1489, 0.0
      %v1768 = vmax.f32 %v1494, 0.0
      %v1769 = vmax.f32 %v1497, 0.0
      %v1770 = vmax.f32 %v1502, 0.0
      %v1771 = vmax.f32 %v1505, 0.0
      %v1772 = vmax.f32 %v1510, 0.0
      %v1773 = vmax.f32 %v1513, 0.0
      %v1774 = vmax.f32 %v1518, 0.0
      %v1775 = vmax.f32 %v1521, 0.0
      %v1776 = vmax.f32 %v1526, 0.0
      %v1777 = vmax.f32 %v1529, 0.0
      %v1778 = vmax.f32 %v1534, 0.0
      %v1779 = vmax.f32 %v1537, 0.0
      %v1780 = vmax.f32 %v1542, 0.0
      %v1781 = vmax.f32 %v1545, 0.0
      %v1782 = vmax.f32 %v1550, 0.0
      %v1783 = vmax.f32 %v1553, 0.0
      %v1784 = vmax.f32 %v1558, 0.0
      %v1785 = vmax.f32 %v1561, 0.0
      %v1786 = vmax.f32 %v1566, 0.0
      %v1787 = vmax.f32 %v1569, 0.0
      %v1788 = vmax.f32 %v1574, 0.0
      %v1789 = vmax.f32 %v1577, 0.0
      %v1790 = vmax.f32 %v1582, 0.0
      %v1791 = vmax.f32 %v1585, 0.0
      %v1792 = vmax.f32 %v1590, 0.0
      %v1793 = vmax.f32 %v1593, 0.0
      %v1794 = vmax.f32 %v1598, 0.0
      %v1795 = vmax.f32 %v1601, 0.0
      %v1796 = vmax.f32 %v1606, 0.0
      %v1797 = vmax.f32 %v1609, 0.0
      %v1798 = vmax.f32 %v1614, 0.0
      %v1799 = vmax.f32 %v1617, 0.0
      %v1800 = vmax.f32 %v1622, 0.0
      %v1801 = vmax.f32 %v1625, 0.0
      %v1802 = vmax.f32 %v1630, 0.0
      %v1803 = vmax.f32 %v1633, 0.0
      %v1804 = vmax.f32 %v1638, 0.0
      %v1805 = vmax.f32 %v1641, 0.0
      %v1806 = vmax.f32 %v1646, 0.0
      %v1807 = vmax.f32 %v1649, 0.0
      %v1808 = vmax.f32 %v1654, 0.0
      %v1809 = vmax.f32 %v1657, 0.0
      %v1810 = vmax.f32 %v1662, 0.0
      %v1811 = vmax.f32 %v1665, 0.0
      %v1812 = vmax.f32 %v1670, 0.0
      %v1813 = vmax.f32 %v1673, 0.0
      %v1814 = vmax.f32 %v1678, 0.0
      %v1815 = vmax.f32 %v1681, 0.0
      %v1816 = vmax.f32 %v1686, 0.0
      %v1817 = vmax.f32 %v1689, 0.0
      %v1818 = vmax.f32 %v1694, 0.0
      %v1819 = vmax.f32 %v1697, 0.0
      %v1820 = vmax.f32 %v1702, 0.0
      %v1821 = vmax.f32 %v1705, 0.0
      %v1822 = vmax.f32 %v1710, 0.0
      %v1823 = vmax.f32 %v1713, 0.0
      %v1824 = vmax.f32 %v1718, 0.0
      %v1825 = vmax.f32 %v1721, 0.0
      %v1826 = vmax.f32 %v1726, 0.0
      %v1827 = vmax.f32 %v1729, 0.0
      %v1828 = vmax.f32 %v1734, 0.0
      %v1829 = vmax.f32 %v1737, 0.0
      %v1830 = vmax.f32 %v1742, 0.0
      %v1831 = vmax.f32 %v1745, 0.0
      %v1832 = vmax.f32 %v1750, 0.0
      %v1833 = vmax.f32 %v1753, 0.0
      %v1834 = vmax.f32 %v1758, 0.0
      %v1835 = vmax.f32 %v1761, 0.0
      %v1836 = vpack.c.bf16 %v1765, %v1764
      %v1837 = vpack.c.bf16 %v1767, %v1766
      %v1838 = vpack.c.bf16 %v1769, %v1768
      %v1839 = vpack.c.bf16 %v1771, %v1770
      %v1840 = vpack.c.bf16 %v1773, %v1772
      %v1841 = vpack.c.bf16 %v1775, %v1774
      %v1842 = vpack.c.bf16 %v1777, %v1776
      %v1843 = vpack.c.bf16 %v1779, %v1778
      %v1844 = vpack.c.bf16 %v1781, %v1780
      %v1845 = vpack.c.bf16 %v1783, %v1782
      %v1846 = vpack.c.bf16 %v1785, %v1784
      %v1847 = vpack.c.bf16 %v1787, %v1786
      %v1848 = vpack.c.bf16 %v1789, %v1788
      %v1849 = vpack.c.bf16 %v1791, %v1790
      %v1850 = vpack.c.bf16 %v1793, %v1792
      %v1851 = vpack.c.bf16 %v1795, %v1794
      %v1852 = vpack.c.bf16 %v1797, %v1796
      %v1853 = vpack.c.bf16 %v1799, %v1798
      %v1854 = vpack.c.bf16 %v1801, %v1800
      %v1855 = vpack.c.bf16 %v1803, %v1802
      %v1856 = vpack.c.bf16 %v1805, %v1804
      %v1857 = vpack.c.bf16 %v1807, %v1806
      %v1858 = vpack.c.bf16 %v1809, %v1808
      %v1859 = vpack.c.bf16 %v1811, %v1810
      %v1860 = vpack.c.bf16 %v1813, %v1812
      %v1861 = vpack.c.bf16 %v1815, %v1814
      %v1862 = vpack.c.bf16 %v1817, %v1816
      %v1863 = vpack.c.bf16 %v1819, %v1818
      %v1864 = vpack.c.bf16 %v1821, %v1820
      %v1865 = vpack.c.bf16 %v1823, %v1822
      %v1866 = vpack.c.bf16 %v1825, %v1824
      %v1867 = vpack.c.bf16 %v1827, %v1826
      %v1868 = vpack.c.bf16 %v1829, %v1828
      %v1869 = vpack.c.bf16 %v1831, %v1830
      %v1870 = vpack.c.bf16 %v1833, %v1832
      %v1871 = vpack.c.bf16 %v1835, %v1834
      %v1908 = vunpack.c.l.b16 %v1836
      %v1909 = vunpack.c.h.b16 %v1836
      %v1910 = vunpack.c.l.b16 %v1837
      %v1911 = vunpack.c.h.b16 %v1837
      %v1912 = vunpack.c.l.b16 %v1838
      %v1913 = vunpack.c.h.b16 %v1838
      %v1914 = vunpack.c.l.b16 %v1839
      %v1915 = vunpack.c.h.b16 %v1839
      %v1916 = vunpack.c.l.b16 %v1840
      %v1917 = vunpack.c.h.b16 %v1840
      %v1918 = vunpack.c.l.b16 %v1841
      %v1919 = vunpack.c.h.b16 %v1841
      %v1920 = vunpack.c.l.b16 %v1842
      %v1921 = vunpack.c.h.b16 %v1842
      %v1922 = vunpack.c.l.b16 %v1843
      %v1923 = vunpack.c.h.b16 %v1843
      %v1924 = vunpack.c.l.b16 %v1844
      %v1925 = vunpack.c.h.b16 %v1844
      %v1926 = vunpack.c.l.b16 %v1845
      %v1927 = vunpack.c.h.b16 %v1845
      %v1928 = vunpack.c.l.b16 %v1846
      %v1929 = vunpack.c.h.b16 %v1846
      %v1930 = vunpack.c.l.b16 %v1847
      %v1931 = vunpack.c.h.b16 %v1847
      %v1932 = vunpack.c.l.b16 %v1848
      %v1933 = vunpack.c.h.b16 %v1848
      %v1934 = vunpack.c.l.b16 %v1849
      %v1935 = vunpack.c.h.b16 %v1849
      %v1936 = vunpack.c.l.b16 %v1850
      %v1937 = vunpack.c.h.b16 %v1850
      %v1938 = vunpack.c.l.b16 %v1851
      %v1939 = vunpack.c.h.b16 %v1851
      %v1940 = vunpack.c.l.b16 %v1852
      %v1941 = vunpack.c.h.b16 %v1852
      %v1942 = vunpack.c.l.b16 %v1853
      %v1943 = vunpack.c.h.b16 %v1853
      %v1944 = vunpack.c.l.b16 %v1854
      %v1945 = vunpack.c.h.b16 %v1854
      %v1946 = vunpack.c.l.b16 %v1855
      %v1947 = vunpack.c.h.b16 %v1855
      %v1948 = vunpack.c.l.b16 %v1856
      %v1949 = vunpack.c.h.b16 %v1856
      %v1950 = vunpack.c.l.b16 %v1857
      %v1951 = vunpack.c.h.b16 %v1857
      %v1952 = vunpack.c.l.b16 %v1858
      %v1953 = vunpack.c.h.b16 %v1858
      %v1954 = vunpack.c.l.b16 %v1859
      %v1955 = vunpack.c.h.b16 %v1859
      %v1956 = vunpack.c.l.b16 %v1860
      %v1957 = vunpack.c.h.b16 %v1860
      %v1958 = vunpack.c.l.b16 %v1861
      %v1959 = vunpack.c.h.b16 %v1861
      %v1960 = vunpack.c.l.b16 %v1862
      %v1961 = vunpack.c.h.b16 %v1862
      %v1962 = vunpack.c.l.b16 %v1863
      %v1963 = vunpack.c.h.b16 %v1863
      %v1964 = vunpack.c.l.b16 %v1864
      %v1965 = vunpack.c.h.b16 %v1864
      %v1966 = vunpack.c.l.b16 %v1865
      %v1967 = vunpack.c.h.b16 %v1865
      %v1968 = vunpack.c.l.b16 %v1866
      %v1969 = vunpack.c.h.b16 %v1866
      %v1970 = vunpack.c.l.b16 %v1867
      %v1971 = vunpack.c.h.b16 %v1867
      %v1972 = vunpack.c.l.b16 %v1868
      %v1973 = vunpack.c.h.b16 %v1868
      %v1974 = vunpack.c.l.b16 %v1869
      %v1975 = vunpack.c.h.b16 %v1869
      %v1976 = vunpack.c.l.b16 %v1870
      %v1977 = vunpack.c.h.b16 %v1870
      %v1978 = vunpack.c.l.b16 %v1871
      %v1979 = vunpack.c.h.b16 %v1871
      %v1980 = vpack.c.b16 %v1908, %v1908
      %v1981 = vpack.c.b16 %v1909, %v1909
      %v1982 = vpack.c.b16 %v1910, %v1910
      %v1983 = vpack.c.b16 %v1911, %v1911
      %v1984 = vpack.c.b16 %v1912, %v1912
      %v1985 = vpack.c.b16 %v1913, %v1913
      %v1986 = vpack.c.b16 %v1914, %v1914
      %v1987 = vpack.c.b16 %v1915, %v1915
      %v1988 = vpack.c.b16 %v1916, %v1916
      %v1989 = vpack.c.b16 %v1917, %v1917
      %v1990 = vpack.c.b16 %v1918, %v1918
      %v1991 = vpack.c.b16 %v1919, %v1919
      %v1992 = vpack.c.b16 %v1920, %v1920
      %v1993 = vpack.c.b16 %v1921, %v1921
      %v1994 = vpack.c.b16 %v1922, %v1922
      %v1995 = vpack.c.b16 %v1923, %v1923
      %v1996 = vpack.c.b16 %v1924, %v1924
      %v1997 = vpack.c.b16 %v1925, %v1925
      %v1998 = vpack.c.b16 %v1926, %v1926
      %v1999 = vpack.c.b16 %v1927, %v1927
      %v2000 = vpack.c.b16 %v1928, %v1928
      %v2001 = vpack.c.b16 %v1929, %v1929
      %v2002 = vpack.c.b16 %v1930, %v1930
      %v2003 = vpack.c.b16 %v1931, %v1931
      %v2004 = vpack.c.b16 %v1932, %v1932
      %v2005 = vpack.c.b16 %v1933, %v1933
      %v2006 = vpack.c.b16 %v1934, %v1934
      %v2007 = vpack.c.b16 %v1935, %v1935
      %v2008 = vpack.c.b16 %v1936, %v1936
      %v2009 = vpack.c.b16 %v1937, %v1937
      %v2010 = vpack.c.b16 %v1938, %v1938
      %v2011 = vpack.c.b16 %v1939, %v1939
      %v2012 = vpack.c.b16 %v1940, %v1940
      %v2013 = vpack.c.b16 %v1941, %v1941
      %v2014 = vpack.c.b16 %v1942, %v1942
      %v2015 = vpack.c.b16 %v1943, %v1943
      %v2016 = vpack.c.b16 %v1944, %v1944
      %v2017 = vpack.c.b16 %v1945, %v1945
      %v2018 = vpack.c.b16 %v1946, %v1946
      %v2019 = vpack.c.b16 %v1947, %v1947
      %v2020 = vpack.c.b16 %v1948, %v1948
      %v2021 = vpack.c.b16 %v1949, %v1949
      %v2022 = vpack.c.b16 %v1950, %v1950
      %v2023 = vpack.c.b16 %v1951, %v1951
      %v2024 = vpack.c.b16 %v1952, %v1952
      %v2025 = vpack.c.b16 %v1953, %v1953
      %v2026 = vpack.c.b16 %v1954, %v1954
      %v2027 = vpack.c.b16 %v1955, %v1955
      %v2028 = vpack.c.b16 %v1956, %v1956
      %v2029 = vpack.c.b16 %v1957, %v1957
      %v2030 = vpack.c.b16 %v1958, %v1958
      %v2031 = vpack.c.b16 %v1959, %v1959
      %v2032 = vpack.c.b16 %v1960, %v1960
      %v2033 = vpack.c.b16 %v1961, %v1961
      %v2034 = vpack.c.b16 %v1962, %v1962
      %v2035 = vpack.c.b16 %v1963, %v1963
      %v2036 = vpack.c.b16 %v1964, %v1964
      %v2037 = vpack.c.b16 %v1965, %v1965
      %v2038 = vpack.c.b16 %v1966, %v1966
      %v2039 = vpack.c.b16 %v1967, %v1967
      %v2040 = vpack.c.b16 %v1968, %v1968
      %v2041 = vpack.c.b16 %v1969, %v1969
      %v2042 = vpack.c.b16 %v1970, %v1970
      %v2043 = vpack.c.b16 %v1971, %v1971
      %v2044 = vpack.c.b16 %v1972, %v1972
      %v2045 = vpack.c.b16 %v1973, %v1973
      %v2046 = vpack.c.b16 %v1974, %v1974
      %v2047 = vpack.c.b16 %v1975, %v1975
      %v2048 = vpack.c.b16 %v1976, %v1976
      %v2049 = vpack.c.b16 %v1977, %v1977
      %v2050 = vpack.c.b16 %v1978, %v1978
      %v2051 = vpack.c.b16 %v1979, %v1979
      %vm2124 = vcmask 257024
      %2125 = vst.msk [vmem:[%s175] sm:$0xf] %vm2124, %v1980
      %2126 = vst.msk [vmem:[%s175 + $0x4] sm:$0xf] %vm2124, %v1981
      %2127 = vst.msk [vmem:[%s175 + $0x8] sm:$0xf] %vm2124, %v1982
      %2128 = vst.msk [vmem:[%s175 + $0xc] sm:$0xf] %vm2124, %v1983
      %2129 = vst.msk [vmem:[%s175 + $0x10] sm:$0xf] %vm2124, %v1984
      %2130 = vst.msk [vmem:[%s175 + $0x14] sm:$0xf] %vm2124, %v1985
      %2131 = vst.msk [vmem:[%s175 + $0x18] sm:$0xf] %vm2124, %v1986
      %2132 = vst.msk [vmem:[%s175 + $0x1c] sm:$0xf] %vm2124, %v1987
      %2133 = vst.msk [vmem:[%s175 + $0x20] sm:$0xf] %vm2124, %v1988
      %2134 = vst.msk [vmem:[%s175 + $0x24] sm:$0xf] %vm2124, %v1989
      %2135 = vst.msk [vmem:[%s175 + $0x28] sm:$0xf] %vm2124, %v1990
      %2136 = vst.msk [vmem:[%s175 + $0x2c] sm:$0xf] %vm2124, %v1991
      %2137 = vst.msk [vmem:[%s175 + $0x30] sm:$0xf] %vm2124, %v1992
      %2138 = vst.msk [vmem:[%s175 + $0x34] sm:$0xf] %vm2124, %v1993
      %2139 = vst.msk [vmem:[%s175 + $0x38] sm:$0xf] %vm2124, %v1994
      %2140 = vst.msk [vmem:[%s175 + $0x3c] sm:$0xf] %vm2124, %v1995
      %2141 = vst.msk [vmem:[%s175 + $0x40] sm:$0xf] %vm2124, %v1996
      %2142 = vst.msk [vmem:[%s175 + $0x44] sm:$0xf] %vm2124, %v1997
      %2143 = vst.msk [vmem:[%s175 + $0x48] sm:$0xf] %vm2124, %v1998
      %2144 = vst.msk [vmem:[%s175 + $0x4c] sm:$0xf] %vm2124, %v1999
      %2145 = vst.msk [vmem:[%s175 + $0x50] sm:$0xf] %vm2124, %v2000
      %2146 = vst.msk [vmem:[%s175 + $0x54] sm:$0xf] %vm2124, %v2001
      %2147 = vst.msk [vmem:[%s175 + $0x58] sm:$0xf] %vm2124, %v2002
      %2148 = vst.msk [vmem:[%s175 + $0x5c] sm:$0xf] %vm2124, %v2003
      %2149 = vst.msk [vmem:[%s175 + $0x60] sm:$0xf] %vm2124, %v2004
      %2150 = vst.msk [vmem:[%s175 + $0x64] sm:$0xf] %vm2124, %v2005
      %2151 = vst.msk [vmem:[%s175 + $0x68] sm:$0xf] %vm2124, %v2006
      %2152 = vst.msk [vmem:[%s175 + $0x6c] sm:$0xf] %vm2124, %v2007
      %2153 = vst.msk [vmem:[%s175 + $0x70] sm:$0xf] %vm2124, %v2008
      %2154 = vst.msk [vmem:[%s175 + $0x74] sm:$0xf] %vm2124, %v2009
      %2155 = vst.msk [vmem:[%s175 + $0x78] sm:$0xf] %vm2124, %v2010
      %2156 = vst.msk [vmem:[%s175 + $0x7c] sm:$0xf] %vm2124, %v2011
      %2157 = vst.msk [vmem:[%s175 + $0x80] sm:$0xf] %vm2124, %v2012
      %2158 = vst.msk [vmem:[%s175 + $0x84] sm:$0xf] %vm2124, %v2013
      %2159 = vst.msk [vmem:[%s175 + $0x88] sm:$0xf] %vm2124, %v2014
      %2160 = vst.msk [vmem:[%s175 + $0x8c] sm:$0xf] %vm2124, %v2015
      %2161 = vst.msk [vmem:[%s175 + $0x90] sm:$0xf] %vm2124, %v2016
      %2162 = vst.msk [vmem:[%s175 + $0x94] sm:$0xf] %vm2124, %v2017
      %2163 = vst.msk [vmem:[%s175 + $0x98] sm:$0xf] %vm2124, %v2018
      %2164 = vst.msk [vmem:[%s175 + $0x9c] sm:$0xf] %vm2124, %v2019
      %2165 = vst.msk [vmem:[%s175 + $0xa0] sm:$0xf] %vm2124, %v2020
      %2166 = vst.msk [vmem:[%s175 + $0xa4] sm:$0xf] %vm2124, %v2021
      %2167 = vst.msk [vmem:[%s175 + $0xa8] sm:$0xf] %vm2124, %v2022
      %2168 = vst.msk [vmem:[%s175 + $0xac] sm:$0xf] %vm2124, %v2023
      %2169 = vst.msk [vmem:[%s175 + $0xb0] sm:$0xf] %vm2124, %v2024
      %2170 = vst.msk [vmem:[%s175 + $0xb4] sm:$0xf] %vm2124, %v2025
      %2171 = vst.msk [vmem:[%s175 + $0xb8] sm:$0xf] %vm2124, %v2026
      %2172 = vst.msk [vmem:[%s175 + $0xbc] sm:$0xf] %vm2124, %v2027
      %2173 = vst.msk [vmem:[%s175 + $0xc0] sm:$0xf] %vm2124, %v2028
      %2174 = vst.msk [vmem:[%s175 + $0xc4] sm:$0xf] %vm2124, %v2029
      %2175 = vst.msk [vmem:[%s175 + $0xc8] sm:$0xf] %vm2124, %v2030
      %2176 = vst.msk [vmem:[%s175 + $0xcc] sm:$0xf] %vm2124, %v2031
      %2177 = vst.msk [vmem:[%s175 + $0xd0] sm:$0xf] %vm2124, %v2032
      %2178 = vst.msk [vmem:[%s175 + $0xd4] sm:$0xf] %vm2124, %v2033
      %2179 = vst.msk [vmem:[%s175 + $0xd8] sm:$0xf] %vm2124, %v2034
      %2180 = vst.msk [vmem:[%s175 + $0xdc] sm:$0xf] %vm2124, %v2035
      %2181 = vst.msk [vmem:[%s175 + $0xe0] sm:$0xf] %vm2124, %v2036
      %2182 = vst.msk [vmem:[%s175 + $0xe4] sm:$0xf] %vm2124, %v2037
      %2183 = vst.msk [vmem:[%s175 + $0xe8] sm:$0xf] %vm2124, %v2038
      %2184 = vst.msk [vmem:[%s175 + $0xec] sm:$0xf] %vm2124, %v2039
      %2185 = vst.msk [vmem:[%s175 + $0xf0] sm:$0xf] %vm2124, %v2040
      %2186 = vst.msk [vmem:[%s175 + $0xf4] sm:$0xf] %vm2124, %v2041
      %2187 = vst.msk [vmem:[%s175 + $0xf8] sm:$0xf] %vm2124, %v2042
      %2188 = vst.msk [vmem:[%s175 + $0xfc] sm:$0xf] %vm2124, %v2043
      %2189 = vst.msk [vmem:[%s175 + $0x100] sm:$0xf] %vm2124, %v2044
      %2190 = vst.msk [vmem:[%s175 + $0x104] sm:$0xf] %vm2124, %v2045
      %2191 = vst.msk [vmem:[%s175 + $0x108] sm:$0xf] %vm2124, %v2046
      %2192 = vst.msk [vmem:[%s175 + $0x10c] sm:$0xf] %vm2124, %v2047
      %2193 = vst.msk [vmem:[%s175 + $0x110] sm:$0xf] %vm2124, %v2048
      %2194 = vst.msk [vmem:[%s175 + $0x114] sm:$0xf] %vm2124, %v2049
      %2195 = vst.msk [vmem:[%s175 + $0x118] sm:$0xf] %vm2124, %v2050
      %2196 = vst.msk [vmem:[%s175 + $0x11c] sm:$0xf] %vm2124, %v2051
      %s2197 = smul.u32 72, %s14
      %p2198 = scmp.lt.s32.totalorder %s2197, 143
      %s2199 = scalar_select %p2198, %s2197, 143
      %s2200 = smul.addr %s2199, 4
      %s2201 = scalar_lea.vmem %s3, %s2200
      // Predicated region
      $region33: #{ppo_forward.6} parent=31 // pred_check
        %p2202 = pneg %p100
      $region34: #{ppo_forward.6} parent=31 // pred_check_branch
        %2204 = sbr.rel (%p2202) target = $region36
      $region35: #{ppo_forward.6} parent=31 // pred_region
        %s2205 = smul.u32 72, %s14
      $region36: #{ppo_forward.6} parent=31 // pred_fallthru
        _
    $region32: #{ppo_forward.6} parent=5 // pred_fallthru
      _
    %p2206 = scmp.le.s32.totalorder 2, %s9
    // Predicated region
    $region37: #{ppo_forward.6} parent=5 // pred_check
      %p2207 = pneg %p2206
    $region38: #{ppo_forward.6} parent=5 // pred_check_branch
      %2209 = sbr.rel (%p2207) target = $region40
    $region39: #{ppo_forward.6} parent=5 // pred_region
      %s2210 = ssub.s32 %s9, 2
      // Predicated region
      $region41: #{ppo_forward.6} parent=39 // pred_check
        %p2211 = pneg %p106
      $region42: #{ppo_forward.6} parent=39 // pred_check_branch
        %2213 = sbr.rel (%p2211) target = $region44
      $region43: #{ppo_forward.6} parent=39 // pred_region
        %s2214 = smul.u32 72, %s15
        %p2215 = scmp.lt.s32.totalorder %s2214, 143
        %s2216 = scalar_select %p2215, %s2214, 143
        %s2217 = smul.addr %s2216, 4
        %s2218 = scalar_lea.vmem %s3, %s2217
      $region44: #{ppo_forward.6} parent=39 // pred_fallthru
        _
    $region40: #{ppo_forward.6} parent=5 // pred_fallthru
      _
  $region6: #{ppo_forward.6} parent=0 // loop_footer
    %s13 = sadd.s32 1, %s9
  $region7: #{ppo_forward.6} parent=0 // loop_footer_branch
    %8 = sbr.rel target = $region3
  $region8: #{ppo_forward.6} parent=0 // loop_exit
    _

// kernel: ppo_forward.7
$region0: #{ppo_forward.7}
  #allocation0 [shape = 'u32[]', space=smem, size = 0x4, offset = 0x4, fixed_abs, tag = 'smem constant byte address 0x4 - core index']
  #allocation1 [shape = 'u32[144,128]{1,0:T(1,128)}', space=vmem, size = 0x12000, scoped, tag = 'internal scratch']
  %s0 = inlined_call_operand.vmem [shape: bf16[288,288], index: 0, kind: input, shape index: {}]
  %s1 = inlined_call_operand.vmem [shape: bf16[288,32], index: 1, kind: input, shape index: {}]
  %s2 = inlined_call_operand.vmem [shape: f32[1,32], index: 2, kind: input, shape index: {}]
  %s3 = inlined_call_operand.vmem [shape: bf16[288,32], index: 3, kind: output, shape index: {}]
  %s4 = sld [smem:[#allocation0]]
  $region22: #{ppo_forward.7} parent=0
    _
  %s6 = ssub.s32 1, %s4
  %s7 = scalar_select 0, %s6, %s4
  // Predicated region
  $region2: #{ppo_forward.7} parent=0 // pred_check
    _
  $region3: #{ppo_forward.7} parent=0 // pred_check_branch
    %9 = sbr.rel (0) target = $region5
  $region4: #{ppo_forward.7} parent=0 // pred_region
    _
  $region5: #{ppo_forward.7} parent=0 // pred_fallthru
    _
  // Predicated region
  $region6: #{ppo_forward.7} parent=0 // pred_check
    _
  $region7: #{ppo_forward.7} parent=0 // pred_check_branch
    %11 = sbr.rel (0) target = $region9
  $region8: #{ppo_forward.7} parent=0 // pred_region
    _
  $region9: #{ppo_forward.7} parent=0 // pred_fallthru
    _
  // Predicated region
  $region10: #{ppo_forward.7} parent=0 // pred_check
    _
  $region11: #{ppo_forward.7} parent=0 // pred_check_branch
    %13 = sbr.rel (0) target = $region13
  $region12: #{ppo_forward.7} parent=0 // pred_region
    _
  $region13: #{ppo_forward.7} parent=0 // pred_fallthru
    _
  %v15 = vld [vmem:[%s0] sm:$0xff]
  %v16 = vld [vmem:[%s0 + $0x8] sm:$0xf]
  %v17 = vld [vmem:[%s0 + $0xc] sm:$0xff]
  %v18 = vld [vmem:[%s0 + $0x14] sm:$0xf]
  %v19 = vld [vmem:[%s0 + $0x18] sm:$0xff]
  %v20 = vld [vmem:[%s0 + $0x20] sm:$0xf]
  %v21 = vld [vmem:[%s0 + $0x24] sm:$0xff]
  %v22 = vld [vmem:[%s0 + $0x2c] sm:$0xf]
  %v23 = vld [vmem:[%s0 + $0x30] sm:$0xff]
  %v24 = vld [vmem:[%s0 + $0x38] sm:$0xf]
  %v25 = vld [vmem:[%s0 + $0x3c] sm:$0xff]
  %v26 = vld [vmem:[%s0 + $0x44] sm:$0xf]
  %v27 = vld [vmem:[%s0 + $0x48] sm:$0xff]
  %v28 = vld [vmem:[%s0 + $0x50] sm:$0xf]
  %v29 = vld [vmem:[%s0 + $0x54] sm:$0xff]
  %v30 = vld [vmem:[%s0 + $0x5c] sm:$0xf]
  %v31 = vld [vmem:[%s0 + $0x60] sm:$0xff]
  %v32 = vld [vmem:[%s0 + $0x68] sm:$0xf]
  %v33 = vld [vmem:[%s0 + $0x6c] sm:$0xff]
  %v34 = vld [vmem:[%s0 + $0x74] sm:$0xf]
  %v35 = vld [vmem:[%s0 + $0x78] sm:$0xff]
  %v36 = vld [vmem:[%s0 + $0x80] sm:$0xf]
  %v37 = vld [vmem:[%s0 + $0x84] sm:$0xff]
  %v38 = vld [vmem:[%s0 + $0x8c] sm:$0xf]
  %v39 = vld [vmem:[%s0 + $0x90] sm:$0xff]
  %v40 = vld [vmem:[%s0 + $0x98] sm:$0xf]
  %v41 = vld [vmem:[%s0 + $0x9c] sm:$0xff]
  %v42 = vld [vmem:[%s0 + $0xa4] sm:$0xf]
  %v43 = vld [vmem:[%s0 + $0xa8] sm:$0xff]
  %v44 = vld [vmem:[%s0 + $0xb0] sm:$0xf]
  %v45 = vld [vmem:[%s0 + $0xb4] sm:$0xff]
  %v46 = vld [vmem:[%s0 + $0xbc] sm:$0xf]
  %v47 = vld [vmem:[%s0 + $0xc0] sm:$0xff]
  %v48 = vld [vmem:[%s0 + $0xc8] sm:$0xf]
  %v49 = vld [vmem:[%s0 + $0xcc] sm:$0xff]
  %v50 = vld [vmem:[%s0 + $0xd4] sm:$0xf]
  %v51 = vld [vmem:[%s0 + $0xd8] sm:$0xff]
  %v52 = vld [vmem:[%s0 + $0xe0] sm:$0xf]
  %v53 = vld [vmem:[%s0 + $0xe4] sm:$0xff]
  %v54 = vld [vmem:[%s0 + $0xec] sm:$0xf]
  %v55 = vld [vmem:[%s0 + $0xf0] sm:$0xff]
  %v56 = vld [vmem:[%s0 + $0xf8] sm:$0xf]
  %v57 = vld [vmem:[%s0 + $0xfc] sm:$0xff]
  %v58 = vld [vmem:[%s0 + $0x104] sm:$0xf]
  %v59 = vld [vmem:[%s0 + $0x108] sm:$0xff]
  %v60 = vld [vmem:[%s0 + $0x110] sm:$0xf]
  %v61 = vld [vmem:[%s0 + $0x114] sm:$0xff]
  %v62 = vld [vmem:[%s0 + $0x11c] sm:$0xf]
  %v63 = vld [vmem:[%s0 + $0x120] sm:$0xff]
  %v64 = vld [vmem:[%s0 + $0x128] sm:$0xf]
  %v65 = vld [vmem:[%s0 + $0x12c] sm:$0xff]
  %v66 = vld [vmem:[%s0 + $0x134] sm:$0xf]
  %v67 = vld [vmem:[%s0 + $0x138] sm:$0xff]
  %v68 = vld [vmem:[%s0 + $0x140] sm:$0xf]
  %v69 = vld [vmem:[%s0 + $0x144] sm:$0xff]
  %v70 = vld [vmem:[%s0 + $0x14c] sm:$0xf]
  %v71 = vld [vmem:[%s0 + $0x150] sm:$0xff]
  %v72 = vld [vmem:[%s0 + $0x158] sm:$0xf]
  %v73 = vld [vmem:[%s0 + $0x15c] sm:$0xff]
  %v74 = vld [vmem:[%s0 + $0x164] sm:$0xf]
  %v75 = vld [vmem:[%s0 + $0x168] sm:$0xff]
  %v76 = vld [vmem:[%s0 + $0x170] sm:$0xf]
  %v77 = vld [vmem:[%s0 + $0x174] sm:$0xff]
  %v78 = vld [vmem:[%s0 + $0x17c] sm:$0xf]
  %v79 = vld [vmem:[%s0 + $0x180] sm:$0xff]
  %v80 = vld [vmem:[%s0 + $0x188] sm:$0xf]
  %v81 = vld [vmem:[%s0 + $0x18c] sm:$0xff]
  %v82 = vld [vmem:[%s0 + $0x194] sm:$0xf]
  %v83 = vld [vmem:[%s0 + $0x198] sm:$0xff]
  %v84 = vld [vmem:[%s0 + $0x1a0] sm:$0xf]
  %v85 = vld [vmem:[%s0 + $0x1a4] sm:$0xff]
  %v86 = vld [vmem:[%s0 + $0x1ac] sm:$0xf]
  %v87 = vld [vmem:[%s1] sm:$0xf]
  %v88 = vld [vmem:[%s1 + $0x4] sm:$0xf]
  %v89 = vld [vmem:[%s1 + $0x8] sm:$0xf]
  %v90 = vld [vmem:[%s1 + $0xc] sm:$0xf]
  %v91 = vld [vmem:[%s1 + $0x10] sm:$0xf]
  %v92 = vld [vmem:[%s1 + $0x14] sm:$0xf]
  %v93 = vld [vmem:[%s1 + $0x18] sm:$0xf]
  %v94 = vld [vmem:[%s1 + $0x1c] sm:$0xf]
  %v95 = vld [vmem:[%s1 + $0x20] sm:$0xf]
  %v96 = vld [vmem:[%s1 + $0x24] sm:$0xf]
  %v97 = vld [vmem:[%s1 + $0x28] sm:$0xf]
  %v98 = vld [vmem:[%s1 + $0x2c] sm:$0xf]
  %v99 = vld [vmem:[%s1 + $0x30] sm:$0xf]
  %v100 = vld [vmem:[%s1 + $0x34] sm:$0xf]
  %v101 = vld [vmem:[%s1 + $0x38] sm:$0xf]
  %v102 = vld [vmem:[%s1 + $0x3c] sm:$0xf]
  %v103 = vld [vmem:[%s1 + $0x40] sm:$0xf]
  %v104 = vld [vmem:[%s1 + $0x44] sm:$0xf]
  %v105 = vld [vmem:[%s1 + $0x48] sm:$0xf]
  %v106 = vld [vmem:[%s1 + $0x4c] sm:$0xf]
  %v107 = vld [vmem:[%s1 + $0x50] sm:$0xf]
  %v108 = vld [vmem:[%s1 + $0x54] sm:$0xf]
  %v109 = vld [vmem:[%s1 + $0x58] sm:$0xf]
  %v110 = vld [vmem:[%s1 + $0x5c] sm:$0xf]
  %v111 = vld [vmem:[%s1 + $0x60] sm:$0xf]
  %v112 = vld [vmem:[%s1 + $0x64] sm:$0xf]
  %v113 = vld [vmem:[%s1 + $0x68] sm:$0xf]
  %v114 = vld [vmem:[%s1 + $0x6c] sm:$0xf]
  %v115 = vld [vmem:[%s1 + $0x70] sm:$0xf]
  %v116 = vld [vmem:[%s1 + $0x74] sm:$0xf]
  %v117 = vld [vmem:[%s1 + $0x78] sm:$0xf]
  %v118 = vld [vmem:[%s1 + $0x7c] sm:$0xf]
  %v119 = vld [vmem:[%s1 + $0x80] sm:$0xf]
  %v120 = vld [vmem:[%s1 + $0x84] sm:$0xf]
  %v121 = vld [vmem:[%s1 + $0x88] sm:$0xf]
  %v122 = vld [vmem:[%s1 + $0x8c] sm:$0xf]
  %v123 = vld [vmem:[%s2] sm:$0x1]
  %v125 = vlaneseq
  %v126 = vshrl.u32 %v125, 7
  %v127 = vsub.s32 0, %v126
  %v128 = vrot.slane %v123, %v127
  %v202 = vunpack.c.l.b16 %v15
  %v203 = vunpack.c.h.b16 %v15
  %v204 = vunpack.c.l.b16 %v16
  %v205 = vunpack.c.l.b16 %v17
  %v206 = vunpack.c.h.b16 %v17
  %v207 = vunpack.c.l.b16 %v18
  %v208 = vunpack.c.l.b16 %v19
  %v209 = vunpack.c.h.b16 %v19
  %v210 = vunpack.c.l.b16 %v20
  %v211 = vunpack.c.l.b16 %v21
  %v212 = vunpack.c.h.b16 %v21
  %v213 = vunpack.c.l.b16 %v22
  %v214 = vunpack.c.l.b16 %v23
  %v215 = vunpack.c.h.b16 %v23
  %v216 = vunpack.c.l.b16 %v24
  %v217 = vunpack.c.l.b16 %v25
  %v218 = vunpack.c.h.b16 %v25
  %v219 = vunpack.c.l.b16 %v26
  %v220 = vunpack.c.l.b16 %v27
  %v221 = vunpack.c.h.b16 %v27
  %v222 = vunpack.c.l.b16 %v28
  %v223 = vunpack.c.l.b16 %v29
  %v224 = vunpack.c.h.b16 %v29
  %v225 = vunpack.c.l.b16 %v30
  %v226 = vunpack.c.l.b16 %v31
  %v227 = vunpack.c.h.b16 %v31
  %v228 = vunpack.c.l.b16 %v32
  %v229 = vunpack.c.l.b16 %v33
  %v230 = vunpack.c.h.b16 %v33
  %v231 = vunpack.c.l.b16 %v34
  %v232 = vunpack.c.l.b16 %v35
  %v233 = vunpack.c.h.b16 %v35
  %v234 = vunpack.c.l.b16 %v36
  %v235 = vunpack.c.l.b16 %v37
  %v236 = vunpack.c.h.b16 %v37
  %v237 = vunpack.c.l.b16 %v38
  %v238 = vunpack.c.l.b16 %v39
  %v239 = vunpack.c.h.b16 %v39
  %v240 = vunpack.c.l.b16 %v40
  %v241 = vunpack.c.l.b16 %v41
  %v242 = vunpack.c.h.b16 %v41
  %v243 = vunpack.c.l.b16 %v42
  %v244 = vunpack.c.l.b16 %v43
  %v245 = vunpack.c.h.b16 %v43
  %v246 = vunpack.c.l.b16 %v44
  %v247 = vunpack.c.l.b16 %v45
  %v248 = vunpack.c.h.b16 %v45
  %v249 = vunpack.c.l.b16 %v46
  %v250 = vunpack.c.l.b16 %v47
  %v251 = vunpack.c.h.b16 %v47
  %v252 = vunpack.c.l.b16 %v48
  %v253 = vunpack.c.l.b16 %v49
  %v254 = vunpack.c.h.b16 %v49
  %v255 = vunpack.c.l.b16 %v50
  %v256 = vunpack.c.l.b16 %v51
  %v257 = vunpack.c.h.b16 %v51
  %v258 = vunpack.c.l.b16 %v52
  %v259 = vunpack.c.l.b16 %v53
  %v260 = vunpack.c.h.b16 %v53
  %v261 = vunpack.c.l.b16 %v54
  %v262 = vunpack.c.l.b16 %v55
  %v263 = vunpack.c.h.b16 %v55
  %v264 = vunpack.c.l.b16 %v56
  %v265 = vunpack.c.l.b16 %v57
  %v266 = vunpack.c.h.b16 %v57
  %v267 = vunpack.c.l.b16 %v58
  %v268 = vunpack.c.l.b16 %v59
  %v269 = vunpack.c.h.b16 %v59
  %v270 = vunpack.c.l.b16 %v60
  %v271 = vunpack.c.l.b16 %v61
  %v272 = vunpack.c.h.b16 %v61
  %v273 = vunpack.c.l.b16 %v62
  %v274 = vunpack.c.l.b16 %v63
  %v275 = vunpack.c.h.b16 %v63
  %v276 = vunpack.c.l.b16 %v64
  %v277 = vunpack.c.l.b16 %v65
  %v278 = vunpack.c.h.b16 %v65
  %v279 = vunpack.c.l.b16 %v66
  %v280 = vunpack.c.l.b16 %v67
  %v281 = vunpack.c.h.b16 %v67
  %v282 = vunpack.c.l.b16 %v68
  %v283 = vunpack.c.l.b16 %v69
  %v284 = vunpack.c.h.b16 %v69
  %v285 = vunpack.c.l.b16 %v70
  %v286 = vunpack.c.l.b16 %v71
  %v287 = vunpack.c.h.b16 %v71
  %v288 = vunpack.c.l.b16 %v72
  %v289 = vunpack.c.l.b16 %v73
  %v290 = vunpack.c.h.b16 %v73
  %v291 = vunpack.c.l.b16 %v74
  %v292 = vunpack.c.l.b16 %v75
  %v293 = vunpack.c.h.b16 %v75
  %v294 = vunpack.c.l.b16 %v76
  %v295 = vunpack.c.l.b16 %v77
  %v296 = vunpack.c.h.b16 %v77
  %v297 = vunpack.c.l.b16 %v78
  %v298 = vunpack.c.l.b16 %v79
  %v299 = vunpack.c.h.b16 %v79
  %v300 = vunpack.c.l.b16 %v80
  %v301 = vunpack.c.l.b16 %v81
  %v302 = vunpack.c.h.b16 %v81
  %v303 = vunpack.c.l.b16 %v82
  %v304 = vunpack.c.l.b16 %v83
  %v305 = vunpack.c.h.b16 %v83
  %v306 = vunpack.c.l.b16 %v84
  %v307 = vunpack.c.l.b16 %v85
  %v308 = vunpack.c.h.b16 %v85
  %v309 = vunpack.c.l.b16 %v86
  %v310 = vpack.c.b16 %v205, %v202
  %v311 = vpack.c.b16 %v206, %v203
  %v312 = vpack.c.b16 %v207, %v204
  %v313 = vpack.c.b16 %v211, %v208
  %v314 = vpack.c.b16 %v212, %v209
  %v315 = vpack.c.b16 %v213, %v210
  %v316 = vpack.c.b16 %v217, %v214
  %v317 = vpack.c.b16 %v218, %v215
  %v318 = vpack.c.b16 %v219, %v216
  %v319 = vpack.c.b16 %v223, %v220
  %v320 = vpack.c.b16 %v224, %v221
  %v321 = vpack.c.b16 %v225, %v222
  %v322 = vpack.c.b16 %v229, %v226
  %v323 = vpack.c.b16 %v230, %v227
  %v324 = vpack.c.b16 %v231, %v228
  %v325 = vpack.c.b16 %v235, %v232
  %v326 = vpack.c.b16 %v236, %v233
  %v327 = vpack.c.b16 %v237, %v234
  %v328 = vpack.c.b16 %v241, %v238
  %v329 = vpack.c.b16 %v242, %v239
  %v330 = vpack.c.b16 %v243, %v240
  %v331 = vpack.c.b16 %v247, %v244
  %v332 = vpack.c.b16 %v248, %v245
  %v333 = vpack.c.b16 %v249, %v246
  %v334 = vpack.c.b16 %v253, %v250
  %v335 = vpack.c.b16 %v254, %v251
  %v336 = vpack.c.b16 %v255, %v252
  %v337 = vpack.c.b16 %v259, %v256
  %v338 = vpack.c.b16 %v260, %v257
  %v339 = vpack.c.b16 %v261, %v258
  %v340 = vpack.c.b16 %v265, %v262
  %v341 = vpack.c.b16 %v266, %v263
  %v342 = vpack.c.b16 %v267, %v264
  %v343 = vpack.c.b16 %v271, %v268
  %v344 = vpack.c.b16 %v272, %v269
  %v345 = vpack.c.b16 %v273, %v270
  %v346 = vpack.c.b16 %v277, %v274
  %v347 = vpack.c.b16 %v278, %v275
  %v348 = vpack.c.b16 %v279, %v276
  %v349 = vpack.c.b16 %v283, %v280
  %v350 = vpack.c.b16 %v284, %v281
  %v351 = vpack.c.b16 %v285, %v282
  %v352 = vpack.c.b16 %v289, %v286
  %v353 = vpack.c.b16 %v290, %v287
  %v354 = vpack.c.b16 %v291, %v288
  %v355 = vpack.c.b16 %v295, %v292
  %v356 = vpack.c.b16 %v296, %v293
  %v357 = vpack.c.b16 %v297, %v294
  %v358 = vpack.c.b16 %v301, %v298
  %v359 = vpack.c.b16 %v302, %v299
  %v360 = vpack.c.b16 %v303, %v300
  %v361 = vpack.c.b16 %v307, %v304
  %v362 = vpack.c.b16 %v308, %v305
  %v363 = vpack.c.b16 %v309, %v306
  %v436 = vunpack.c.l.b16 %v87
  %v437 = vunpack.c.l.b16 %v88
  %v438 = vunpack.c.l.b16 %v89
  %v439 = vunpack.c.l.b16 %v90
  %v440 = vunpack.c.l.b16 %v91
  %v441 = vunpack.c.l.b16 %v92
  %v442 = vunpack.c.l.b16 %v93
  %v443 = vunpack.c.l.b16 %v94
  %v444 = vunpack.c.l.b16 %v95
  %v445 = vunpack.c.l.b16 %v96
  %v446 = vunpack.c.l.b16 %v97
  %v447 = vunpack.c.l.b16 %v98
  %v448 = vunpack.c.l.b16 %v99
  %v449 = vunpack.c.l.b16 %v100
  %v450 = vunpack.c.l.b16 %v101
  %v451 = vunpack.c.l.b16 %v102
  %v452 = vunpack.c.l.b16 %v103
  %v453 = vunpack.c.l.b16 %v104
  %v454 = vunpack.c.l.b16 %v105
  %v455 = vunpack.c.l.b16 %v106
  %v456 = vunpack.c.l.b16 %v107
  %v457 = vunpack.c.l.b16 %v108
  %v458 = vunpack.c.l.b16 %v109
  %v459 = vunpack.c.l.b16 %v110
  %v460 = vunpack.c.l.b16 %v111
  %v461 = vunpack.c.l.b16 %v112
  %v462 = vunpack.c.l.b16 %v113
  %v463 = vunpack.c.l.b16 %v114
  %v464 = vunpack.c.l.b16 %v115
  %v465 = vunpack.c.l.b16 %v116
  %v466 = vunpack.c.l.b16 %v117
  %v467 = vunpack.c.l.b16 %v118
  %v468 = vunpack.c.l.b16 %v119
  %v469 = vunpack.c.l.b16 %v120
  %v470 = vunpack.c.l.b16 %v121
  %v471 = vunpack.c.l.b16 %v122
  %v472 = vpack.c.b16 %v437, %v436
  %v473 = vpack.c.b16 %v439, %v438
  %v474 = vpack.c.b16 %v441, %v440
  %v475 = vpack.c.b16 %v443, %v442
  %v476 = vpack.c.b16 %v445, %v444
  %v477 = vpack.c.b16 %v447, %v446
  %v478 = vpack.c.b16 %v449, %v448
  %v479 = vpack.c.b16 %v451, %v450
  %v480 = vpack.c.b16 %v453, %v452
  %v481 = vpack.c.b16 %v455, %v454
  %v482 = vpack.c.b16 %v457, %v456
  %v483 = vpack.c.b16 %v459, %v458
  %v484 = vpack.c.b16 %v461, %v460
  %v485 = vpack.c.b16 %v463, %v462
  %v486 = vpack.c.b16 %v465, %v464
  %v487 = vpack.c.b16 %v467, %v466
  %v488 = vpack.c.b16 %v469, %v468
  %v489 = vpack.c.b16 %v471, %v470
  %vm508 = vcmask 261120
  %v510 = vsel %vm508, %v312, 0
  %v513 = vsel %vm508, %v315, 0
  %v516 = vsel %vm508, %v318, 0
  %v519 = vsel %vm508, %v321, 0
  %v522 = vsel %vm508, %v324, 0
  %v525 = vsel %vm508, %v327, 0
  %v528 = vsel %vm508, %v330, 0
  %v531 = vsel %vm508, %v333, 0
  %v534 = vsel %vm508, %v336, 0
  %v537 = vsel %vm508, %v339, 0
  %v540 = vsel %vm508, %v342, 0
  %v543 = vsel %vm508, %v345, 0
  %v546 = vsel %vm508, %v348, 0
  %v549 = vsel %vm508, %v351, 0
  %v552 = vsel %vm508, %v354, 0
  %v555 = vsel %vm508, %v357, 0
  %v558 = vsel %vm508, %v360, 0
  %v561 = vsel %vm508, %v363, 0
  %563 = vmatprep.subr.bf16.mxu0 0
  %564 = vmatpush1.bf16.msra.mxu0 %v472
  %565 = vmatprep.subr.bf16.mxu0 0
  %566 = vmatpush1.bf16.msra.mxu0 %v473
  %567 = vmatprep.subr.bf16.mxu0 0
  %568 = vmatpush1.bf16.msra.mxu0 %v474
  %569 = vmatprep.subr.bf16.mxu0 0
  %570 = vmatpush1.bf16.msra.mxu0 %v475
  %571 = vmatprep.subr.bf16.mxu0 0
  %572 = vmatpush1.bf16.msra.mxu0 %v476
  %573 = vmatprep.subr.bf16.mxu0 0
  %574 = vmatpush1.bf16.msra.mxu0 %v477
  %575 = vmatprep.subr.bf16.mxu0 0
  %576 = vmatpush1.bf16.msra.mxu0 %v478
  %577 = vmatprep.subr.bf16.mxu0 0
  %578 = vmatpush1.bf16.msra.mxu0 %v479
  %579 = vmatprep.subr.bf16.mxu0 0
  %580 = vmatpush1.bf16.msra.mxu0 %v480
  %581 = vmatprep.subr.bf16.mxu0 0
  %582 = vmatpush1.bf16.msra.mxu0 %v481
  %583 = vmatprep.subr.bf16.mxu0 0
  %584 = vmatpush1.bf16.msra.mxu0 %v482
  %585 = vmatprep.subr.bf16.mxu0 0
  %586 = vmatpush1.bf16.msra.mxu0 %v483
  %587 = vmatprep.subr.bf16.mxu0 0
  %588 = vmatpush1.bf16.msra.mxu0 %v484
  %589 = vmatprep.subr.bf16.mxu0 0
  %590 = vmatpush1.bf16.msra.mxu0 %v485
  %591 = vmatprep.subr.bf16.mxu0 0
  %592 = vmatpush1.bf16.msra.mxu0 %v486
  %593 = vmatprep.subr.bf16.mxu0 0
  %594 = vmatpush1.bf16.msra.mxu0 %v487
  %595 = vmatprep.mubr.bf16.mxu0 %v311
  %596 = vmatmul.mubr.bf16.gmra.mrb[0].mxu0 %v310
  %v597 = vpop.f32.mrb[0].mxu0
  %v598 = vadd.f32 %v128, %v597
  %v599 = vpop.f32.mrb[0].mxu0
  %v600 = vpop.f32.mrb[0].mxu0
  %v601 = vadd.f32 %v128, %v600
  %v602 = vpop.f32.mrb[0].mxu0
  %603 = vmatprep.mubr.bf16.mxu0 %v314
  %604 = vmatmul.mubr.bf16.gmra.mrb[0].mxu0 %v313
  %v605 = vpop.f32.mrb[0].mxu0
  %v606 = vadd.f32 %v128, %v605
  %v607 = vpop.f32.mrb[0].mxu0
  %v608 = vpop.f32.mrb[0].mxu0
  %v609 = vadd.f32 %v128, %v608
  %v610 = vpop.f32.mrb[0].mxu0
  %611 = vmatprep.mubr.bf16.mxu0 %v317
  %612 = vmatmul.mubr.bf16.gmra.mrb[0].mxu0 %v316
  %v613 = vpop.f32.mrb[0].mxu0
  %v614 = vadd.f32 %v128, %v613
  %v615 = vpop.f32.mrb[0].mxu0
  %v616 = vpop.f32.mrb[0].mxu0
  %v617 = vadd.f32 %v128, %v616
  %v618 = vpop.f32.mrb[0].mxu0
  %619 = vmatprep.mubr.bf16.mxu0 %v320
  %620 = vmatmul.mubr.bf16.gmra.mrb[0].mxu0 %v319
  %v621 = vpop.f32.mrb[0].mxu0
  %v622 = vadd.f32 %v128, %v621
  %v623 = vpop.f32.mrb[0].mxu0
  %v624 = vpop.f32.mrb[0].mxu0
  %v625 = vadd.f32 %v128, %v624
  %v626 = vpop.f32.mrb[0].mxu0
  %627 = vmatprep.mubr.bf16.mxu0 %v323
  %628 = vmatmul.mubr.bf16.gmra.mrb[0].mxu0 %v322
  %v629 = vpop.f32.mrb[0].mxu0
  %v630 = vadd.f32 %v128, %v629
  %v631 = vpop.f32.mrb[0].mxu0
  %v632 = vpop.f32.mrb[0].mxu0
  %v633 = vadd.f32 %v128, %v632
  %v634 = vpop.f32.mrb[0].mxu0
  %635 = vmatprep.mubr.bf16.mxu0 %v326
  %636 = vmatmul.mubr.bf16.gmra.mrb[0].mxu0 %v325
  %v637 = vpop.f32.mrb[0].mxu0
  %v638 = vadd.f32 %v128, %v637
  %v639 = vpop.f32.mrb[0].mxu0
  %v640 = vpop.f32.mrb[0].mxu0
  %v641 = vadd.f32 %v128, %v640
  %v642 = vpop.f32.mrb[0].mxu0
  %643 = vmatprep.mubr.bf16.mxu0 %v329
  %644 = vmatmul.mubr.bf16.gmra.mrb[0].mxu0 %v328
  %v645 = vpop.f32.mrb[0].mxu0
  %v646 = vadd.f32 %v128, %v645
  %v647 = vpop.f32.mrb[0].mxu0
  %v648 = vpop.f32.mrb[0].mxu0
  %v649 = vadd.f32 %v128, %v648
  %v650 = vpop.f32.mrb[0].mxu0
  %651 = vmatprep.mubr.bf16.mxu0 %v332
  %652 = vmatmul.mubr.bf16.gmra.mrb[0].mxu0 %v331
  %v653 = vpop.f32.mrb[0].mxu0
  %v654 = vadd.f32 %v128, %v653
  %v655 = vpop.f32.mrb[0].mxu0
  %v656 = vpop.f32.mrb[0].mxu0
  %v657 = vadd.f32 %v128, %v656
  %v658 = vpop.f32.mrb[0].mxu0
  %659 = vmatprep.mubr.bf16.mxu0 %v335
  %660 = vmatmul.mubr.bf16.gmra.mrb[0].mxu0 %v334
  %v661 = vpop.f32.mrb[0].mxu0
  %v662 = vadd.f32 %v128, %v661
  %v663 = vpop.f32.mrb[0].mxu0
  %v664 = vpop.f32.mrb[0].mxu0
  %v665 = vadd.f32 %v128, %v664
  %v666 = vpop.f32.mrb[0].mxu0
  %667 = vmatprep.mubr.bf16.mxu0 %v338
  %668 = vmatmul.mubr.bf16.gmra.mrb[0].mxu0 %v337
  %v669 = vpop.f32.mrb[0].mxu0
  %v670 = vadd.f32 %v128, %v669
  %v671 = vpop.f32.mrb[0].mxu0
  %v672 = vpop.f32.mrb[0].mxu0
  %v673 = vadd.f32 %v128, %v672
  %v674 = vpop.f32.mrb[0].mxu0
  %675 = vmatprep.mubr.bf16.mxu0 %v341
  %676 = vmatmul.mubr.bf16.gmra.mrb[0].mxu0 %v340
  %v677 = vpop.f32.mrb[0].mxu0
  %v678 = vadd.f32 %v128, %v677
  %v679 = vpop.f32.mrb[0].mxu0
  %v680 = vpop.f32.mrb[0].mxu0
  %v681 = vadd.f32 %v128, %v680
  %v682 = vpop.f32.mrb[0].mxu0
  %683 = vmatprep.mubr.bf16.mxu0 %v344
  %684 = vmatmul.mubr.bf16.gmra.mrb[0].mxu0 %v343
  %v685 = vpop.f32.mrb[0].mxu0
  %v686 = vadd.f32 %v128, %v685
  %v687 = vpop.f32.mrb[0].mxu0
  %v688 = vpop.f32.mrb[0].mxu0
  %v689 = vadd.f32 %v128, %v688
  %v690 = vpop.f32.mrb[0].mxu0
  %691 = vmatprep.mubr.bf16.mxu0 %v347
  %692 = vmatmul.mubr.bf16.gmra.mrb[0].mxu0 %v346
  %v693 = vpop.f32.mrb[0].mxu0
  %v694 = vadd.f32 %v128, %v693
  %v695 = vpop.f32.mrb[0].mxu0
  %v696 = vpop.f32.mrb[0].mxu0
  %v697 = vadd.f32 %v128, %v696
  %v698 = vpop.f32.mrb[0].mxu0
  %699 = vmatprep.mubr.bf16.mxu0 %v350
  %700 = vmatmul.mubr.bf16.gmra.mrb[0].mxu0 %v349
  %v701 = vpop.f32.mrb[0].mxu0
  %v702 = vadd.f32 %v128, %v701
  %v703 = vpop.f32.mrb[0].mxu0
  %v704 = vpop.f32.mrb[0].mxu0
  %v705 = vadd.f32 %v128, %v704
  %v706 = vpop.f32.mrb[0].mxu0
  %707 = vmatprep.mubr.bf16.mxu0 %v353
  %708 = vmatmul.mubr.bf16.gmra.mrb[0].mxu0 %v352
  %v709 = vpop.f32.mrb[0].mxu0
  %v710 = vadd.f32 %v128, %v709
  %v711 = vpop.f32.mrb[0].mxu0
  %v712 = vpop.f32.mrb[0].mxu0
  %v713 = vadd.f32 %v128, %v712
  %v714 = vpop.f32.mrb[0].mxu0
  %715 = vmatprep.mubr.bf16.mxu0 %v356
  %716 = vmatmul.mubr.bf16.gmra.mrb[0].mxu0 %v355
  %v717 = vpop.f32.mrb[0].mxu0
  %v718 = vadd.f32 %v128, %v717
  %v719 = vpop.f32.mrb[0].mxu0
  %v720 = vpop.f32.mrb[0].mxu0
  %v721 = vadd.f32 %v128, %v720
  %v722 = vpop.f32.mrb[0].mxu0
  %723 = vmatprep.mubr.bf16.mxu0 %v359
  %724 = vmatmul.mubr.bf16.gmra.mrb[0].mxu0 %v358
  %v725 = vpop.f32.mrb[0].mxu0
  %v726 = vadd.f32 %v128, %v725
  %v727 = vpop.f32.mrb[0].mxu0
  %v728 = vpop.f32.mrb[0].mxu0
  %v729 = vadd.f32 %v128, %v728
  %v730 = vpop.f32.mrb[0].mxu0
  %731 = vmatprep.mubr.bf16.mxu0 %v362
  %732 = vmatmul.mubr.bf16.gmra.mrb[0].mxu0 %v361
  %v733 = vpop.f32.mrb[0].mxu0
  %v734 = vadd.f32 %v128, %v733
  %v735 = vpop.f32.mrb[0].mxu0
  %v736 = vpop.f32.mrb[0].mxu0
  %v737 = vadd.f32 %v128, %v736
  %v738 = vpop.f32.mrb[0].mxu0
  %739 = vdwg.mxu0
  %740 = vmatprep.subr.bf16.mxu0 0
  %741 = vmatpush1.bf16.msra.mxu0 %v488
  %742 = vmatprep.subr.bf16.mxu0 0
  %743 = vmatpush1.bf16.msra.mxu0 %v489
  %744 = vmatprep.subr.bf16.mxu0 0
  %745 = vmatpush1.bf16.msra.mxu0 0
  %746 = vmatprep.subr.bf16.mxu0 0
  %747 = vmatpush1.bf16.msra.mxu0 0
  %748 = vmatprep.subr.bf16.mxu0 0
  %749 = vmatpush1.bf16.msra.mxu0 0
  %750 = vmatprep.subr.bf16.mxu0 0
  %751 = vmatpush1.bf16.msra.mxu0 0
  %752 = vmatprep.subr.bf16.mxu0 0
  %753 = vmatpush1.bf16.msra.mxu0 0
  %754 = vmatprep.subr.bf16.mxu0 0
  %755 = vmatpush1.bf16.msra.mxu0 0
  %756 = vmatprep.subr.bf16.mxu0 0
  %757 = vmatpush1.bf16.msra.mxu0 0
  %758 = vmatprep.subr.bf16.mxu0 0
  %759 = vmatpush1.bf16.msra.mxu0 0
  %760 = vmatprep.subr.bf16.mxu0 0
  %761 = vmatpush1.bf16.msra.mxu0 0
  %762 = vmatprep.subr.bf16.mxu0 0
  %763 = vmatpush1.bf16.msra.mxu0 0
  %764 = vmatprep.subr.bf16.mxu0 0
  %765 = vmatpush1.bf16.msra.mxu0 0
  %766 = vmatprep.subr.bf16.mxu0 0
  %767 = vmatpush1.bf16.msra.mxu0 0
  %768 = vmatprep.subr.bf16.mxu0 0
  %769 = vmatpush1.bf16.msra.mxu0 0
  %770 = vmatprep.subr.bf16.mxu0 0
  %771 = vmatpush1.bf16.msra.mxu0 0
  %772 = vmatprep.mubr.bf16.mxu0 0
  %773 = vmatmul.mubr.bf16.gmra.mrb[0].mxu0 %v510
  %v774 = vpop.f32.mrb[0].mxu0
  %v775 = vadd.f32 %v598, %v774
  %v776 = vpop.f32.mrb[0].mxu0
  %v777 = vpop.f32.mrb[0].mxu0
  %v778 = vadd.f32 %v601, %v777
  %v779 = vpop.f32.mrb[0].mxu0
  %780 = vmatprep.mubr.bf16.mxu0 0
  %781 = vmatmul.mubr.bf16.gmra.mrb[0].mxu0 %v513
  %v782 = vpop.f32.mrb[0].mxu0
  %v783 = vadd.f32 %v606, %v782
  %v784 = vpop.f32.mrb[0].mxu0
  %v785 = vpop.f32.mrb[0].mxu0
  %v786 = vadd.f32 %v609, %v785
  %v787 = vpop.f32.mrb[0].mxu0
  %788 = vmatprep.mubr.bf16.mxu0 0
  %789 = vmatmul.mubr.bf16.gmra.mrb[0].mxu0 %v516
  %v790 = vpop.f32.mrb[0].mxu0
  %v791 = vadd.f32 %v614, %v790
  %v792 = vpop.f32.mrb[0].mxu0
  %v793 = vpop.f32.mrb[0].mxu0
  %v794 = vadd.f32 %v617, %v793
  %v795 = vpop.f32.mrb[0].mxu0
  %796 = vmatprep.mubr.bf16.mxu0 0
  %797 = vmatmul.mubr.bf16.gmra.mrb[0].mxu0 %v519
  %v798 = vpop.f32.mrb[0].mxu0
  %v799 = vadd.f32 %v622, %v798
  %v800 = vpop.f32.mrb[0].mxu0
  %v801 = vpop.f32.mrb[0].mxu0
  %v802 = vadd.f32 %v625, %v801
  %v803 = vpop.f32.mrb[0].mxu0
  %804 = vmatprep.mubr.bf16.mxu0 0
  %805 = vmatmul.mubr.bf16.gmra.mrb[0].mxu0 %v522
  %v806 = vpop.f32.mrb[0].mxu0
  %v807 = vadd.f32 %v630, %v806
  %v808 = vpop.f32.mrb[0].mxu0
  %v809 = vpop.f32.mrb[0].mxu0
  %v810 = vadd.f32 %v633, %v809
  %v811 = vpop.f32.mrb[0].mxu0
  %812 = vmatprep.mubr.bf16.mxu0 0
  %813 = vmatmul.mubr.bf16.gmra.mrb[0].mxu0 %v525
  %v814 = vpop.f32.mrb[0].mxu0
  %v815 = vadd.f32 %v638, %v814
  %v816 = vpop.f32.mrb[0].mxu0
  %v817 = vpop.f32.mrb[0].mxu0
  %v818 = vadd.f32 %v641, %v817
  %v819 = vpop.f32.mrb[0].mxu0
  %820 = vmatprep.mubr.bf16.mxu0 0
  %821 = vmatmul.mubr.bf16.gmra.mrb[0].mxu0 %v528
  %v822 = vpop.f32.mrb[0].mxu0
  %v823 = vadd.f32 %v646, %v822
  %v824 = vpop.f32.mrb[0].mxu0
  %v825 = vpop.f32.mrb[0].mxu0
  %v826 = vadd.f32 %v649, %v825
  %v827 = vpop.f32.mrb[0].mxu0
  %828 = vmatprep.mubr.bf16.mxu0 0
  %829 = vmatmul.mubr.bf16.gmra.mrb[0].mxu0 %v531
  %v830 = vpop.f32.mrb[0].mxu0
  %v831 = vadd.f32 %v654, %v830
  %v832 = vpop.f32.mrb[0].mxu0
  %v833 = vpop.f32.mrb[0].mxu0
  %v834 = vadd.f32 %v657, %v833
  %v835 = vpop.f32.mrb[0].mxu0
  %836 = vmatprep.mubr.bf16.mxu0 0
  %837 = vmatmul.mubr.bf16.gmra.mrb[0].mxu0 %v534
  %v838 = vpop.f32.mrb[0].mxu0
  %v839 = vadd.f32 %v662, %v838
  %v840 = vpop.f32.mrb[0].mxu0
  %v841 = vpop.f32.mrb[0].mxu0
  %v842 = vadd.f32 %v665, %v841
  %v843 = vpop.f32.mrb[0].mxu0
  %844 = vmatprep.mubr.bf16.mxu0 0
  %845 = vmatmul.mubr.bf16.gmra.mrb[0].mxu0 %v537
  %v846 = vpop.f32.mrb[0].mxu0
  %v847 = vadd.f32 %v670, %v846
  %v848 = vpop.f32.mrb[0].mxu0
  %v849 = vpop.f32.mrb[0].mxu0
  %v850 = vadd.f32 %v673, %v849
  %v851 = vpop.f32.mrb[0].mxu0
  %852 = vmatprep.mubr.bf16.mxu0 0
  %853 = vmatmul.mubr.bf16.gmra.mrb[0].mxu0 %v540
  %v854 = vpop.f32.mrb[0].mxu0
  %v855 = vadd.f32 %v678, %v854
  %v856 = vpop.f32.mrb[0].mxu0
  %v857 = vpop.f32.mrb[0].mxu0
  %v858 = vadd.f32 %v681, %v857
  %v859 = vpop.f32.mrb[0].mxu0
  %860 = vmatprep.mubr.bf16.mxu0 0
  %861 = vmatmul.mubr.bf16.gmra.mrb[0].mxu0 %v543
  %v862 = vpop.f32.mrb[0].mxu0
  %v863 = vadd.f32 %v686, %v862
  %v864 = vpop.f32.mrb[0].mxu0
  %v865 = vpop.f32.mrb[0].mxu0
  %v866 = vadd.f32 %v689, %v865
  %v867 = vpop.f32.mrb[0].mxu0
  %868 = vmatprep.mubr.bf16.mxu0 0
  %869 = vmatmul.mubr.bf16.gmra.mrb[0].mxu0 %v546
  %v870 = vpop.f32.mrb[0].mxu0
  %v871 = vadd.f32 %v694, %v870
  %v872 = vpop.f32.mrb[0].mxu0
  %v873 = vpop.f32.mrb[0].mxu0
  %v874 = vadd.f32 %v697, %v873
  %v875 = vpop.f32.mrb[0].mxu0
  %876 = vmatprep.mubr.bf16.mxu0 0
  %877 = vmatmul.mubr.bf16.gmra.mrb[0].mxu0 %v549
  %v878 = vpop.f32.mrb[0].mxu0
  %v879 = vadd.f32 %v702, %v878
  %v880 = vpop.f32.mrb[0].mxu0
  %v881 = vpop.f32.mrb[0].mxu0
  %v882 = vadd.f32 %v705, %v881
  %v883 = vpop.f32.mrb[0].mxu0
  %884 = vmatprep.mubr.bf16.mxu0 0
  %885 = vmatmul.mubr.bf16.gmra.mrb[0].mxu0 %v552
  %v886 = vpop.f32.mrb[0].mxu0
  %v887 = vadd.f32 %v710, %v886
  %v888 = vpop.f32.mrb[0].mxu0
  %v889 = vpop.f32.mrb[0].mxu0
  %v890 = vadd.f32 %v713, %v889
  %v891 = vpop.f32.mrb[0].mxu0
  %892 = vmatprep.mubr.bf16.mxu0 0
  %893 = vmatmul.mubr.bf16.gmra.mrb[0].mxu0 %v555
  %v894 = vpop.f32.mrb[0].mxu0
  %v895 = vadd.f32 %v718, %v894
  %v896 = vpop.f32.mrb[0].mxu0
  %v897 = vpop.f32.mrb[0].mxu0
  %v898 = vadd.f32 %v721, %v897
  %v899 = vpop.f32.mrb[0].mxu0
  %900 = vmatprep.mubr.bf16.mxu0 0
  %901 = vmatmul.mubr.bf16.gmra.mrb[0].mxu0 %v558
  %v902 = vpop.f32.mrb[0].mxu0
  %v903 = vadd.f32 %v726, %v902
  %v904 = vpop.f32.mrb[0].mxu0
  %v905 = vpop.f32.mrb[0].mxu0
  %v906 = vadd.f32 %v729, %v905
  %v907 = vpop.f32.mrb[0].mxu0
  %908 = vmatprep.mubr.bf16.mxu0 0
  %909 = vmatmul.mubr.bf16.gmra.mrb[0].mxu0 %v561
  %v910 = vpop.f32.mrb[0].mxu0
  %v911 = vadd.f32 %v734, %v910
  %v912 = vpop.f32.mrb[0].mxu0
  %v913 = vpop.f32.mrb[0].mxu0
  %v914 = vadd.f32 %v737, %v913
  %v915 = vpop.f32.mrb[0].mxu0
  %916 = vdwg.mxu0
  %v917 = vmax.f32 %v775, 0.0
  %v918 = vmax.f32 %v778, 0.0
  %v919 = vmax.f32 %v783, 0.0
  %v920 = vmax.f32 %v786, 0.0
  %v921 = vmax.f32 %v791, 0.0
  %v922 = vmax.f32 %v794, 0.0
  %v923 = vmax.f32 %v799, 0.0
  %v924 = vmax.f32 %v802, 0.0
  %v925 = vmax.f32 %v807, 0.0
  %v926 = vmax.f32 %v810, 0.0
  %v927 = vmax.f32 %v815, 0.0
  %v928 = vmax.f32 %v818, 0.0
  %v929 = vmax.f32 %v823, 0.0
  %v930 = vmax.f32 %v826, 0.0
  %v931 = vmax.f32 %v831, 0.0
  %v932 = vmax.f32 %v834, 0.0
  %v933 = vmax.f32 %v839, 0.0
  %v934 = vmax.f32 %v842, 0.0
  %v935 = vmax.f32 %v847, 0.0
  %v936 = vmax.f32 %v850, 0.0
  %v937 = vmax.f32 %v855, 0.0
  %v938 = vmax.f32 %v858, 0.0
  %v939 = vmax.f32 %v863, 0.0
  %v940 = vmax.f32 %v866, 0.0
  %v941 = vmax.f32 %v871, 0.0
  %v942 = vmax.f32 %v874, 0.0
  %v943 = vmax.f32 %v879, 0.0
  %v944 = vmax.f32 %v882, 0.0
  %v945 = vmax.f32 %v887, 0.0
  %v946 = vmax.f32 %v890, 0.0
  %v947 = vmax.f32 %v895, 0.0
  %v948 = vmax.f32 %v898, 0.0
  %v949 = vmax.f32 %v903, 0.0
  %v950 = vmax.f32 %v906, 0.0
  %v951 = vmax.f32 %v911, 0.0
  %v952 = vmax.f32 %v914, 0.0
  %v953 = vpack.c.bf16 %v918, %v917
  %v954 = vpack.c.bf16 %v920, %v919
  %v955 = vpack.c.bf16 %v922, %v921
  %v956 = vpack.c.bf16 %v924, %v923
  %v957 = vpack.c.bf16 %v926, %v925
  %v958 = vpack.c.bf16 %v928, %v927
  %v959 = vpack.c.bf16 %v930, %v929
  %v960 = vpack.c.bf16 %v932, %v931
  %v961 = vpack.c.bf16 %v934, %v933
  %v962 = vpack.c.bf16 %v936, %v935
  %v963 = vpack.c.bf16 %v938, %v937
  %v964 = vpack.c.bf16 %v940, %v939
  %v965 = vpack.c.bf16 %v942, %v941
  %v966 = vpack.c.bf16 %v944, %v943
  %v967 = vpack.c.bf16 %v946, %v945
  %v968 = vpack.c.bf16 %v948, %v947
  %v969 = vpack.c.bf16 %v950, %v949
  %v970 = vpack.c.bf16 %v952, %v951
  %v989 = vunpack.c.l.b16 %v953
  %v990 = vunpack.c.h.b16 %v953
  %v991 = vunpack.c.l.b16 %v954
  %v992 = vunpack.c.h.b16 %v954
  %v993 = vunpack.c.l.b16 %v955
  %v994 = vunpack.c.h.b16 %v955
  %v995 = vunpack.c.l.b16 %v956
  %v996 = vunpack.c.h.b16 %v956
  %v997 = vunpack.c.l.b16 %v957
  %v998 = vunpack.c.h.b16 %v957
  %v999 = vunpack.c.l.b16 %v958
  %v1000 = vunpack.c.h.b16 %v958
  %v1001 = vunpack.c.l.b16 %v959
  %v1002 = vunpack.c.h.b16 %v959
  %v1003 = vunpack.c.l.b16 %v960
  %v1004 = vunpack.c.h.b16 %v960
  %v1005 = vunpack.c.l.b16 %v961
  %v1006 = vunpack.c.h.b16 %v961
  %v1007 = vunpack.c.l.b16 %v962
  %v1008 = vunpack.c.h.b16 %v962
  %v1009 = vunpack.c.l.b16 %v963
  %v1010 = vunpack.c.h.b16 %v963
  %v1011 = vunpack.c.l.b16 %v964
  %v1012 = vunpack.c.h.b16 %v964
  %v1013 = vunpack.c.l.b16 %v965
  %v1014 = vunpack.c.h.b16 %v965
  %v1015 = vunpack.c.l.b16 %v966
  %v1016 = vunpack.c.h.b16 %v966
  %v1017 = vunpack.c.l.b16 %v967
  %v1018 = vunpack.c.h.b16 %v967
  %v1019 = vunpack.c.l.b16 %v968
  %v1020 = vunpack.c.h.b16 %v968
  %v1021 = vunpack.c.l.b16 %v969
  %v1022 = vunpack.c.h.b16 %v969
  %v1023 = vunpack.c.l.b16 %v970
  %v1024 = vunpack.c.h.b16 %v970
  %v1025 = vpack.c.b16 %v989, %v989
  %v1026 = vpack.c.b16 %v990, %v990
  %v1027 = vpack.c.b16 %v991, %v991
  %v1028 = vpack.c.b16 %v992, %v992
  %v1029 = vpack.c.b16 %v993, %v993
  %v1030 = vpack.c.b16 %v994, %v994
  %v1031 = vpack.c.b16 %v995, %v995
  %v1032 = vpack.c.b16 %v996, %v996
  %v1033 = vpack.c.b16 %v997, %v997
  %v1034 = vpack.c.b16 %v998, %v998
  %v1035 = vpack.c.b16 %v999, %v999
  %v1036 = vpack.c.b16 %v1000, %v1000
  %v1037 = vpack.c.b16 %v1001, %v1001
  %v1038 = vpack.c.b16 %v1002, %v1002
  %v1039 = vpack.c.b16 %v1003, %v1003
  %v1040 = vpack.c.b16 %v1004, %v1004
  %v1041 = vpack.c.b16 %v1005, %v1005
  %v1042 = vpack.c.b16 %v1006, %v1006
  %v1043 = vpack.c.b16 %v1007, %v1007
  %v1044 = vpack.c.b16 %v1008, %v1008
  %v1045 = vpack.c.b16 %v1009, %v1009
  %v1046 = vpack.c.b16 %v1010, %v1010
  %v1047 = vpack.c.b16 %v1011, %v1011
  %v1048 = vpack.c.b16 %v1012, %v1012
  %v1049 = vpack.c.b16 %v1013, %v1013
  %v1050 = vpack.c.b16 %v1014, %v1014
  %v1051 = vpack.c.b16 %v1015, %v1015
  %v1052 = vpack.c.b16 %v1016, %v1016
  %v1053 = vpack.c.b16 %v1017, %v1017
  %v1054 = vpack.c.b16 %v1018, %v1018
  %v1055 = vpack.c.b16 %v1019, %v1019
  %v1056 = vpack.c.b16 %v1020, %v1020
  %v1057 = vpack.c.b16 %v1021, %v1021
  %v1058 = vpack.c.b16 %v1022, %v1022
  %v1059 = vpack.c.b16 %v1023, %v1023
  %v1060 = vpack.c.b16 %v1024, %v1024
  %vm1097 = vcmask 257024
  %1098 = vst.msk [vmem:[%s3] sm:$0xf] %vm1097, %v1025
  %1099 = vst.msk [vmem:[%s3 + $0x4] sm:$0xf] %vm1097, %v1026
  %1100 = vst.msk [vmem:[%s3 + $0x8] sm:$0xf] %vm1097, %v1027
  %1101 = vst.msk [vmem:[%s3 + $0xc] sm:$0xf] %vm1097, %v1028
  %1102 = vst.msk [vmem:[%s3 + $0x10] sm:$0xf] %vm1097, %v1029
  %1103 = vst.msk [vmem:[%s3 + $0x14] sm:$0xf] %vm1097, %v1030
  %1104 = vst.msk [vmem:[%s3 + $0x18] sm:$0xf] %vm1097, %v1031
  %1105 = vst.msk [vmem:[%s3 + $0x1c] sm:$0xf] %vm1097, %v1032
  %1106 = vst.msk [vmem:[%s3 + $0x20] sm:$0xf] %vm1097, %v1033
  %1107 = vst.msk [vmem:[%s3 + $0x24] sm:$0xf] %vm1097, %v1034
  %1108 = vst.msk [vmem:[%s3 + $0x28] sm:$0xf] %vm1097, %v1035
  %1109 = vst.msk [vmem:[%s3 + $0x2c] sm:$0xf] %vm1097, %v1036
  %1110 = vst.msk [vmem:[%s3 + $0x30] sm:$0xf] %vm1097, %v1037
  %1111 = vst.msk [vmem:[%s3 + $0x34] sm:$0xf] %vm1097, %v1038
  %1112 = vst.msk [vmem:[%s3 + $0x38] sm:$0xf] %vm1097, %v1039
  %1113 = vst.msk [vmem:[%s3 + $0x3c] sm:$0xf] %vm1097, %v1040
  %1114 = vst.msk [vmem:[%s3 + $0x40] sm:$0xf] %vm1097, %v1041
  %1115 = vst.msk [vmem:[%s3 + $0x44] sm:$0xf] %vm1097, %v1042
  %1116 = vst.msk [vmem:[%s3 + $0x48] sm:$0xf] %vm1097, %v1043
  %1117 = vst.msk [vmem:[%s3 + $0x4c] sm:$0xf] %vm1097, %v1044
  %1118 = vst.msk [vmem:[%s3 + $0x50] sm:$0xf] %vm1097, %v1045
  %1119 = vst.msk [vmem:[%s3 + $0x54] sm:$0xf] %vm1097, %v1046
  %1120 = vst.msk [vmem:[%s3 + $0x58] sm:$0xf] %vm1097, %v1047
  %1121 = vst.msk [vmem:[%s3 + $0x5c] sm:$0xf] %vm1097, %v1048
  %1122 = vst.msk [vmem:[%s3 + $0x60] sm:$0xf] %vm1097, %v1049
  %1123 = vst.msk [vmem:[%s3 + $0x64] sm:$0xf] %vm1097, %v1050
  %1124 = vst.msk [vmem:[%s3 + $0x68] sm:$0xf] %vm1097, %v1051
  %1125 = vst.msk [vmem:[%s3 + $0x6c] sm:$0xf] %vm1097, %v1052
  %1126 = vst.msk [vmem:[%s3 + $0x70] sm:$0xf] %vm1097, %v1053
  %1127 = vst.msk [vmem:[%s3 + $0x74] sm:$0xf] %vm1097, %v1054
  %1128 = vst.msk [vmem:[%s3 + $0x78] sm:$0xf] %vm1097, %v1055
  %1129 = vst.msk [vmem:[%s3 + $0x7c] sm:$0xf] %vm1097, %v1056
  %1130 = vst.msk [vmem:[%s3 + $0x80] sm:$0xf] %vm1097, %v1057
  %1131 = vst.msk [vmem:[%s3 + $0x84] sm:$0xf] %vm1097, %v1058
  %1132 = vst.msk [vmem:[%s3 + $0x88] sm:$0xf] %vm1097, %v1059
  %1133 = vst.msk [vmem:[%s3 + $0x8c] sm:$0xf] %vm1097, %v1060
  // Predicated region
  $region14: #{ppo_forward.7} parent=0 // pred_check
    _
  $region15: #{ppo_forward.7} parent=0 // pred_check_branch
    %1135 = sbr.rel (0) target = $region17
  $region16: #{ppo_forward.7} parent=0 // pred_region
    _
  $region17: #{ppo_forward.7} parent=0 // pred_fallthru
    _
  // Predicated region
  $region18: #{ppo_forward.7} parent=0 // pred_check
    _
  $region19: #{ppo_forward.7} parent=0 // pred_check_branch
    %1137 = sbr.rel (0) target = $region21
  $region20: #{ppo_forward.7} parent=0 // pred_region
    _
  $region21: #{ppo_forward.7} parent=0 // pred_fallthru
    _

// kernel: ppo_forward.8
$region0: #{ppo_forward.8}
  #allocation0 [shape = 'u32[]', space=smem, size = 0x4, offset = 0x4, fixed_abs, tag = 'smem constant byte address 0x4 - core index']
  #allocation1 [shape = 'u32[144,128]{1,0:T(1,128)}', space=vmem, size = 0x12000, scoped, tag = 'internal scratch']
  %s0 = inlined_call_operand.vmem [shape: bf16[72,288], index: 0, kind: input, shape index: {}]
  %s1 = inlined_call_operand.vmem [shape: bf16[288,32], index: 1, kind: input, shape index: {}]
  %s2 = inlined_call_operand.vmem [shape: f32[1,32], index: 2, kind: input, shape index: {}]
  %s3 = inlined_call_operand.vmem [shape: bf16[72,32], index: 3, kind: output, shape index: {}]
  %s4 = sld [smem:[#allocation0]]
  $region22: #{ppo_forward.8} parent=0
    _
  %s6 = ssub.s32 1, %s4
  %s7 = scalar_select 0, %s6, %s4
  // Predicated region
  $region2: #{ppo_forward.8} parent=0 // pred_check
    _
  $region3: #{ppo_forward.8} parent=0 // pred_check_branch
    %9 = sbr.rel (0) target = $region5
  $region4: #{ppo_forward.8} parent=0 // pred_region
    _
  $region5: #{ppo_forward.8} parent=0 // pred_fallthru
    _
  // Predicated region
  $region6: #{ppo_forward.8} parent=0 // pred_check
    _
  $region7: #{ppo_forward.8} parent=0 // pred_check_branch
    %11 = sbr.rel (0) target = $region9
  $region8: #{ppo_forward.8} parent=0 // pred_region
    _
  $region9: #{ppo_forward.8} parent=0 // pred_fallthru
    _
  // Predicated region
  $region10: #{ppo_forward.8} parent=0 // pred_check
    _
  $region11: #{ppo_forward.8} parent=0 // pred_check_branch
    %13 = sbr.rel (0) target = $region13
  $region12: #{ppo_forward.8} parent=0 // pred_region
    _
  $region13: #{ppo_forward.8} parent=0 // pred_fallthru
    _
  %v15 = vld [vmem:[%s0] sm:$0xff]
  %v16 = vld [vmem:[%s0 + $0x8] sm:$0xf]
  %v17 = vld [vmem:[%s0 + $0xc] sm:$0xff]
  %v18 = vld [vmem:[%s0 + $0x14] sm:$0xf]
  %v19 = vld [vmem:[%s0 + $0x18] sm:$0xff]
  %v20 = vld [vmem:[%s0 + $0x20] sm:$0xf]
  %v21 = vld [vmem:[%s0 + $0x24] sm:$0xff]
  %v22 = vld [vmem:[%s0 + $0x2c] sm:$0xf]
  %v23 = vld [vmem:[%s0 + $0x30] sm:$0xff]
  %v24 = vld [vmem:[%s0 + $0x38] sm:$0xf]
  %v25 = vld [vmem:[%s0 + $0x3c] sm:$0xff]
  %v26 = vld [vmem:[%s0 + $0x44] sm:$0xf]
  %v27 = vld [vmem:[%s0 + $0x48] sm:$0xff]
  %v28 = vld [vmem:[%s0 + $0x50] sm:$0xf]
  %v29 = vld [vmem:[%s0 + $0x54] sm:$0xff]
  %v30 = vld [vmem:[%s0 + $0x5c] sm:$0xf]
  %v31 = vld [vmem:[%s0 + $0x60] sm:$0xff]
  %v32 = vld [vmem:[%s0 + $0x68] sm:$0xf]
  %v33 = vld [vmem:[%s1] sm:$0xf]
  %v34 = vld [vmem:[%s1 + $0x4] sm:$0xf]
  %v35 = vld [vmem:[%s1 + $0x8] sm:$0xf]
  %v36 = vld [vmem:[%s1 + $0xc] sm:$0xf]
  %v37 = vld [vmem:[%s1 + $0x10] sm:$0xf]
  %v38 = vld [vmem:[%s1 + $0x14] sm:$0xf]
  %v39 = vld [vmem:[%s1 + $0x18] sm:$0xf]
  %v40 = vld [vmem:[%s1 + $0x1c] sm:$0xf]
  %v41 = vld [vmem:[%s1 + $0x20] sm:$0xf]
  %v42 = vld [vmem:[%s1 + $0x24] sm:$0xf]
  %v43 = vld [vmem:[%s1 + $0x28] sm:$0xf]
  %v44 = vld [vmem:[%s1 + $0x2c] sm:$0xf]
  %v45 = vld [vmem:[%s1 + $0x30] sm:$0xf]
  %v46 = vld [vmem:[%s1 + $0x34] sm:$0xf]
  %v47 = vld [vmem:[%s1 + $0x38] sm:$0xf]
  %v48 = vld [vmem:[%s1 + $0x3c] sm:$0xf]
  %v49 = vld [vmem:[%s1 + $0x40] sm:$0xf]
  %v50 = vld [vmem:[%s1 + $0x44] sm:$0xf]
  %v51 = vld [vmem:[%s1 + $0x48] sm:$0xf]
  %v52 = vld [vmem:[%s1 + $0x4c] sm:$0xf]
  %v53 = vld [vmem:[%s1 + $0x50] sm:$0xf]
  %v54 = vld [vmem:[%s1 + $0x54] sm:$0xf]
  %v55 = vld [vmem:[%s1 + $0x58] sm:$0xf]
  %v56 = vld [vmem:[%s1 + $0x5c] sm:$0xf]
  %v57 = vld [vmem:[%s1 + $0x60] sm:$0xf]
  %v58 = vld [vmem:[%s1 + $0x64] sm:$0xf]
  %v59 = vld [vmem:[%s1 + $0x68] sm:$0xf]
  %v60 = vld [vmem:[%s1 + $0x6c] sm:$0xf]
  %v61 = vld [vmem:[%s1 + $0x70] sm:$0xf]
  %v62 = vld [vmem:[%s1 + $0x74] sm:$0xf]
  %v63 = vld [vmem:[%s1 + $0x78] sm:$0xf]
  %v64 = vld [vmem:[%s1 + $0x7c] sm:$0xf]
  %v65 = vld [vmem:[%s1 + $0x80] sm:$0xf]
  %v66 = vld [vmem:[%s1 + $0x84] sm:$0xf]
  %v67 = vld [vmem:[%s1 + $0x88] sm:$0xf]
  %v68 = vld [vmem:[%s1 + $0x8c] sm:$0xf]
  %v69 = vld [vmem:[%s2] sm:$0x1]
  %v71 = vlaneseq
  %v72 = vshrl.u32 %v71, 7
  %v73 = vsub.s32 0, %v72
  %v74 = vrot.slane %v69, %v73
  %v94 = vunpack.c.l.b16 %v15
  %v95 = vunpack.c.h.b16 %v15
  %v96 = vunpack.c.l.b16 %v16
  %v97 = vunpack.c.l.b16 %v17
  %v98 = vunpack.c.h.b16 %v17
  %v99 = vunpack.c.l.b16 %v18
  %v100 = vunpack.c.l.b16 %v19
  %v101 = vunpack.c.h.b16 %v19
  %v102 = vunpack.c.l.b16 %v20
  %v103 = vunpack.c.l.b16 %v21
  %v104 = vunpack.c.h.b16 %v21
  %v105 = vunpack.c.l.b16 %v22
  %v106 = vunpack.c.l.b16 %v23
  %v107 = vunpack.c.h.b16 %v23
  %v108 = vunpack.c.l.b16 %v24
  %v109 = vunpack.c.l.b16 %v25
  %v110 = vunpack.c.h.b16 %v25
  %v111 = vunpack.c.l.b16 %v26
  %v112 = vunpack.c.l.b16 %v27
  %v113 = vunpack.c.h.b16 %v27
  %v114 = vunpack.c.l.b16 %v28
  %v115 = vunpack.c.l.b16 %v29
  %v116 = vunpack.c.h.b16 %v29
  %v117 = vunpack.c.l.b16 %v30
  %v118 = vunpack.c.l.b16 %v31
  %v119 = vunpack.c.h.b16 %v31
  %v120 = vunpack.c.l.b16 %v32
  %v121 = vpack.c.b16 %v97, %v94
  %v122 = vpack.c.b16 %v98, %v95
  %v123 = vpack.c.b16 %v99, %v96
  %v124 = vpack.c.b16 %v103, %v100
  %v125 = vpack.c.b16 %v104, %v101
  %v126 = vpack.c.b16 %v105, %v102
  %v127 = vpack.c.b16 %v109, %v106
  %v128 = vpack.c.b16 %v110, %v107
  %v129 = vpack.c.b16 %v111, %v108
  %v130 = vpack.c.b16 %v115, %v112
  %v131 = vpack.c.b16 %v116, %v113
  %v132 = vpack.c.b16 %v117, %v114
  %v133 = vpack.c.b16 %v118, %v118
  %v134 = vpack.c.b16 %v119, %v119
  %v135 = vpack.c.b16 %v120, %v120
  %v182 = vunpack.c.l.b16 %v33
  %v183 = vunpack.c.l.b16 %v34
  %v184 = vunpack.c.l.b16 %v35
  %v185 = vunpack.c.l.b16 %v36
  %v186 = vunpack.c.l.b16 %v37
  %v187 = vunpack.c.l.b16 %v38
  %v188 = vunpack.c.l.b16 %v39
  %v189 = vunpack.c.l.b16 %v40
  %v190 = vunpack.c.l.b16 %v41
  %v191 = vunpack.c.l.b16 %v42
  %v192 = vunpack.c.l.b16 %v43
  %v193 = vunpack.c.l.b16 %v44
  %v194 = vunpack.c.l.b16 %v45
  %v195 = vunpack.c.l.b16 %v46
  %v196 = vunpack.c.l.b16 %v47
  %v197 = vunpack.c.l.b16 %v48
  %v198 = vunpack.c.l.b16 %v49
  %v199 = vunpack.c.l.b16 %v50
  %v200 = vunpack.c.l.b16 %v51
  %v201 = vunpack.c.l.b16 %v52
  %v202 = vunpack.c.l.b16 %v53
  %v203 = vunpack.c.l.b16 %v54
  %v204 = vunpack.c.l.b16 %v55
  %v205 = vunpack.c.l.b16 %v56
  %v206 = vunpack.c.l.b16 %v57
  %v207 = vunpack.c.l.b16 %v58
  %v208 = vunpack.c.l.b16 %v59
  %v209 = vunpack.c.l.b16 %v60
  %v210 = vunpack.c.l.b16 %v61
  %v211 = vunpack.c.l.b16 %v62
  %v212 = vunpack.c.l.b16 %v63
  %v213 = vunpack.c.l.b16 %v64
  %v214 = vunpack.c.l.b16 %v65
  %v215 = vunpack.c.l.b16 %v66
  %v216 = vunpack.c.l.b16 %v67
  %v217 = vunpack.c.l.b16 %v68
  %v218 = vpack.c.b16 %v183, %v182
  %v219 = vpack.c.b16 %v185, %v184
  %v220 = vpack.c.b16 %v187, %v186
  %v221 = vpack.c.b16 %v189, %v188
  %v222 = vpack.c.b16 %v191, %v190
  %v223 = vpack.c.b16 %v193, %v192
  %v224 = vpack.c.b16 %v195, %v194
  %v225 = vpack.c.b16 %v197, %v196
  %v226 = vpack.c.b16 %v199, %v198
  %v227 = vpack.c.b16 %v201, %v200
  %v228 = vpack.c.b16 %v203, %v202
  %v229 = vpack.c.b16 %v205, %v204
  %v230 = vpack.c.b16 %v207, %v206
  %v231 = vpack.c.b16 %v209, %v208
  %v232 = vpack.c.b16 %v211, %v210
  %v233 = vpack.c.b16 %v213, %v212
  %v234 = vpack.c.b16 %v215, %v214
  %v235 = vpack.c.b16 %v217, %v216
  %vm254 = vcmask 261120
  %v256 = vsel %vm254, %v123, 0
  %v259 = vsel %vm254, %v126, 0
  %v262 = vsel %vm254, %v129, 0
  %v265 = vsel %vm254, %v132, 0
  %v268 = vsel %vm254, %v135, 0
  %270 = vmatprep.subr.bf16.mxu0 0
  %271 = vmatpush1.bf16.msra.mxu0 %v218
  %272 = vmatprep.subr.bf16.mxu0 0
  %273 = vmatpush1.bf16.msra.mxu0 %v219
  %274 = vmatprep.subr.bf16.mxu0 0
  %275 = vmatpush1.bf16.msra.mxu0 %v220
  %276 = vmatprep.subr.bf16.mxu0 0
  %277 = vmatpush1.bf16.msra.mxu0 %v221
  %278 = vmatprep.subr.bf16.mxu0 0
  %279 = vmatpush1.bf16.msra.mxu0 %v222
  %280 = vmatprep.subr.bf16.mxu0 0
  %281 = vmatpush1.bf16.msra.mxu0 %v223
  %282 = vmatprep.subr.bf16.mxu0 0
  %283 = vmatpush1.bf16.msra.mxu0 %v224
  %284 = vmatprep.subr.bf16.mxu0 0
  %285 = vmatpush1.bf16.msra.mxu0 %v225
  %286 = vmatprep.subr.bf16.mxu0 0
  %287 = vmatpush1.bf16.msra.mxu0 %v226
  %288 = vmatprep.subr.bf16.mxu0 0
  %289 = vmatpush1.bf16.msra.mxu0 %v227
  %290 = vmatprep.subr.bf16.mxu0 0
  %291 = vmatpush1.bf16.msra.mxu0 %v228
  %292 = vmatprep.subr.bf16.mxu0 0
  %293 = vmatpush1.bf16.msra.mxu0 %v229
  %294 = vmatprep.subr.bf16.mxu0 0
  %295 = vmatpush1.bf16.msra.mxu0 %v230
  %296 = vmatprep.subr.bf16.mxu0 0
  %297 = vmatpush1.bf16.msra.mxu0 %v231
  %298 = vmatprep.subr.bf16.mxu0 0
  %299 = vmatpush1.bf16.msra.mxu0 %v232
  %300 = vmatprep.subr.bf16.mxu0 0
  %301 = vmatpush1.bf16.msra.mxu0 %v233
  %302 = vmatprep.mubr.bf16.mxu0 %v122
  %303 = vmatmul.mubr.bf16.gmra.mrb[0].mxu0 %v121
  %v304 = vpop.f32.mrb[0].mxu0
  %v305 = vadd.f32 %v74, %v304
  %v306 = vpop.f32.mrb[0].mxu0
  %v307 = vpop.f32.mrb[0].mxu0
  %v308 = vadd.f32 %v74, %v307
  %v309 = vpop.f32.mrb[0].mxu0
  %310 = vmatprep.mubr.bf16.mxu0 %v125
  %311 = vmatmul.mubr.bf16.gmra.mrb[0].mxu0 %v124
  %v312 = vpop.f32.mrb[0].mxu0
  %v313 = vadd.f32 %v74, %v312
  %v314 = vpop.f32.mrb[0].mxu0
  %v315 = vpop.f32.mrb[0].mxu0
  %v316 = vadd.f32 %v74, %v315
  %v317 = vpop.f32.mrb[0].mxu0
  %318 = vmatprep.mubr.bf16.mxu0 %v128
  %319 = vmatmul.mubr.bf16.gmra.mrb[0].mxu0 %v127
  %v320 = vpop.f32.mrb[0].mxu0
  %v321 = vadd.f32 %v74, %v320
  %v322 = vpop.f32.mrb[0].mxu0
  %v323 = vpop.f32.mrb[0].mxu0
  %v324 = vadd.f32 %v74, %v323
  %v325 = vpop.f32.mrb[0].mxu0
  %326 = vmatprep.mubr.bf16.mxu0 %v131
  %327 = vmatmul.mubr.bf16.gmra.mrb[0].mxu0 %v130
  %v328 = vpop.f32.mrb[0].mxu0
  %v329 = vadd.f32 %v74, %v328
  %v330 = vpop.f32.mrb[0].mxu0
  %v331 = vpop.f32.mrb[0].mxu0
  %v332 = vadd.f32 %v74, %v331
  %v333 = vpop.f32.mrb[0].mxu0
  %334 = vmatprep.mubr.bf16.mxu0 %v134
  %335 = vmatmul.mubr.bf16.gmra.mrb[0].mxu0 %v133
  %v336 = vpop.f32.mrb[0].mxu0
  %v337 = vadd.f32 %v74, %v336
  %v338 = vpop.f32.mrb[0].mxu0
  %v339 = vpop.f32.mrb[0].mxu0
  %v340 = vpop.f32.mrb[0].mxu0
  %341 = vdwg.mxu0
  %342 = vmatprep.subr.bf16.mxu0 0
  %343 = vmatpush1.bf16.msra.mxu0 %v234
  %344 = vmatprep.subr.bf16.mxu0 0
  %345 = vmatpush1.bf16.msra.mxu0 %v235
  %346 = vmatprep.subr.bf16.mxu0 0
  %347 = vmatpush1.bf16.msra.mxu0 0
  %348 = vmatprep.subr.bf16.mxu0 0
  %349 = vmatpush1.bf16.msra.mxu0 0
  %350 = vmatprep.subr.bf16.mxu0 0
  %351 = vmatpush1.bf16.msra.mxu0 0
  %352 = vmatprep.subr.bf16.mxu0 0
  %353 = vmatpush1.bf16.msra.mxu0 0
  %354 = vmatprep.subr.bf16.mxu0 0
  %355 = vmatpush1.bf16.msra.mxu0 0
  %356 = vmatprep.subr.bf16.mxu0 0
  %357 = vmatpush1.bf16.msra.mxu0 0
  %358 = vmatprep.subr.bf16.mxu0 0
  %359 = vmatpush1.bf16.msra.mxu0 0
  %360 = vmatprep.subr.bf16.mxu0 0
  %361 = vmatpush1.bf16.msra.mxu0 0
  %362 = vmatprep.subr.bf16.mxu0 0
  %363 = vmatpush1.bf16.msra.mxu0 0
  %364 = vmatprep.subr.bf16.mxu0 0
  %365 = vmatpush1.bf16.msra.mxu0 0
  %366 = vmatprep.subr.bf16.mxu0 0
  %367 = vmatpush1.bf16.msra.mxu0 0
  %368 = vmatprep.subr.bf16.mxu0 0
  %369 = vmatpush1.bf16.msra.mxu0 0
  %370 = vmatprep.subr.bf16.mxu0 0
  %371 = vmatpush1.bf16.msra.mxu0 0
  %372 = vmatprep.subr.bf16.mxu0 0
  %373 = vmatpush1.bf16.msra.mxu0 0
  %374 = vmatprep.mubr.bf16.mxu0 0
  %375 = vmatmul.mubr.bf16.gmra.mrb[0].mxu0 %v256
  %v376 = vpop.f32.mrb[0].mxu0
  %v377 = vadd.f32 %v305, %v376
  %v378 = vpop.f32.mrb[0].mxu0
  %v379 = vpop.f32.mrb[0].mxu0
  %v380 = vadd.f32 %v308, %v379
  %v381 = vpop.f32.mrb[0].mxu0
  %382 = vmatprep.mubr.bf16.mxu0 0
  %383 = vmatmul.mubr.bf16.gmra.mrb[0].mxu0 %v259
  %v384 = vpop.f32.mrb[0].mxu0
  %v385 = vadd.f32 %v313, %v384
  %v386 = vpop.f32.mrb[0].mxu0
  %v387 = vpop.f32.mrb[0].mxu0
  %v388 = vadd.f32 %v316, %v387
  %v389 = vpop.f32.mrb[0].mxu0
  %390 = vmatprep.mubr.bf16.mxu0 0
  %391 = vmatmul.mubr.bf16.gmra.mrb[0].mxu0 %v262
  %v392 = vpop.f32.mrb[0].mxu0
  %v393 = vadd.f32 %v321, %v392
  %v394 = vpop.f32.mrb[0].mxu0
  %v395 = vpop.f32.mrb[0].mxu0
  %v396 = vadd.f32 %v324, %v395
  %v397 = vpop.f32.mrb[0].mxu0
  %398 = vmatprep.mubr.bf16.mxu0 0
  %399 = vmatmul.mubr.bf16.gmra.mrb[0].mxu0 %v265
  %v400 = vpop.f32.mrb[0].mxu0
  %v401 = vadd.f32 %v329, %v400
  %v402 = vpop.f32.mrb[0].mxu0
  %v403 = vpop.f32.mrb[0].mxu0
  %v404 = vadd.f32 %v332, %v403
  %v405 = vpop.f32.mrb[0].mxu0
  %406 = vmatprep.mubr.bf16.mxu0 0
  %407 = vmatmul.mubr.bf16.gmra.mrb[0].mxu0 %v268
  %v408 = vpop.f32.mrb[0].mxu0
  %v409 = vadd.f32 %v337, %v408
  %v410 = vpop.f32.mrb[0].mxu0
  %v411 = vpop.f32.mrb[0].mxu0
  %v412 = vpop.f32.mrb[0].mxu0
  %413 = vdwg.mxu0
  %v414 = vmax.f32 %v377, 0.0
  %v415 = vmax.f32 %v380, 0.0
  %v416 = vmax.f32 %v385, 0.0
  %v417 = vmax.f32 %v388, 0.0
  %v418 = vmax.f32 %v393, 0.0
  %v419 = vmax.f32 %v396, 0.0
  %v420 = vmax.f32 %v401, 0.0
  %v421 = vmax.f32 %v404, 0.0
  %v422 = vmax.f32 %v409, 0.0
  %v423 = vpack.c.bf16 %v415, %v414
  %v424 = vpack.c.bf16 %v417, %v416
  %v425 = vpack.c.bf16 %v419, %v418
  %v426 = vpack.c.bf16 %v421, %v420
  %v427 = vpack.c.bf16 %v422, %v422
  %v433 = vunpack.c.l.b16 %v423
  %v434 = vunpack.c.h.b16 %v423
  %v435 = vunpack.c.l.b16 %v424
  %v436 = vunpack.c.h.b16 %v424
  %v437 = vunpack.c.l.b16 %v425
  %v438 = vunpack.c.h.b16 %v425
  %v439 = vunpack.c.l.b16 %v426
  %v440 = vunpack.c.h.b16 %v426
  %v441 = vunpack.c.l.b16 %v427
  %v442 = vpack.c.b16 %v433, %v433
  %v443 = vpack.c.b16 %v434, %v434
  %v444 = vpack.c.b16 %v435, %v435
  %v445 = vpack.c.b16 %v436, %v436
  %v446 = vpack.c.b16 %v437, %v437
  %v447 = vpack.c.b16 %v438, %v438
  %v448 = vpack.c.b16 %v439, %v439
  %v449 = vpack.c.b16 %v440, %v440
  %v450 = vpack.c.b16 %v441, %v441
  %vm460 = vcmask 257024
  %461 = vst.msk [vmem:[%s3] sm:$0xf] %vm460, %v442
  %462 = vst.msk [vmem:[%s3 + $0x4] sm:$0xf] %vm460, %v443
  %463 = vst.msk [vmem:[%s3 + $0x8] sm:$0xf] %vm460, %v444
  %464 = vst.msk [vmem:[%s3 + $0xc] sm:$0xf] %vm460, %v445
  %465 = vst.msk [vmem:[%s3 + $0x10] sm:$0xf] %vm460, %v446
  %466 = vst.msk [vmem:[%s3 + $0x14] sm:$0xf] %vm460, %v447
  %467 = vst.msk [vmem:[%s3 + $0x18] sm:$0xf] %vm460, %v448
  %468 = vst.msk [vmem:[%s3 + $0x1c] sm:$0xf] %vm460, %v449
  %469 = vst.msk [vmem:[%s3 + $0x20] sm:$0xf] %vm460, %v450
  // Predicated region
  $region14: #{ppo_forward.8} parent=0 // pred_check
    _
  $region15: #{ppo_forward.8} parent=0 // pred_check_branch
    %471 = sbr.rel (0) target = $region17
  $region16: #{ppo_forward.8} parent=0 // pred_region
    _
  $region17: #{ppo_forward.8} parent=0 // pred_fallthru
    _
  // Predicated region
  $region18: #{ppo_forward.8} parent=0 // pred_check
    _
  $region19: #{ppo_forward.8} parent=0 // pred_check_branch
    %473 = sbr.rel (0) target = $region21
  $region20: #{ppo_forward.8} parent=0 // pred_region
    _
  $region21: #{ppo_forward.8} parent=0 // pred_fallthru
    _

// kernel: ppo_forward.9
$region0: #{ppo_forward.9}
  #allocation0 [shape = 'u32[]', space=smem, size = 0x4, offset = 0x4, fixed_abs, tag = 'smem constant byte address 0x4 - core index']
  #allocation1 [shape = 'u32[144,128]{1,0:T(1,128)}', space=vmem, size = 0x12000, scoped, tag = 'internal scratch']
  %s0 = inlined_call_operand.vmem [shape: bf16[2,1152], index: 0, kind: input, shape index: {}]
  %s1 = inlined_call_operand.vmem [shape: bf16[1152,512], index: 1, kind: input, shape index: {}]
  %s2 = inlined_call_operand.vmem [shape: f32[1,512], index: 2, kind: input, shape index: {}]
  %s3 = inlined_call_operand.vmem [shape: bf16[512,7], index: 3, kind: input, shape index: {}]
  %s4 = inlined_call_operand.vmem [shape: f32[1,7], index: 4, kind: input, shape index: {}]
  %s5 = inlined_call_operand.vmem [shape: f32[2,7], index: 5, kind: output, shape index: {}]
  %s6 = sld [smem:[#allocation0]]
  $region30: #{ppo_forward.9} parent=0
    _
  %s8 = ssub.s32 1, %s6
  %s9 = scalar_select 0, %s8, %s6
  // Predicated region
  $region2: #{ppo_forward.9} parent=0 // pred_check
    _
  $region3: #{ppo_forward.9} parent=0 // pred_check_branch
    %11 = sbr.rel (0) target = $region5
  $region4: #{ppo_forward.9} parent=0 // pred_region
    _
  $region5: #{ppo_forward.9} parent=0 // pred_fallthru
    _
  // Predicated region
  $region6: #{ppo_forward.9} parent=0 // pred_check
    _
  $region7: #{ppo_forward.9} parent=0 // pred_check_branch
    %13 = sbr.rel (0) target = $region9
  $region8: #{ppo_forward.9} parent=0 // pred_region
    _
  $region9: #{ppo_forward.9} parent=0 // pred_fallthru
    _
  // Predicated region
  $region10: #{ppo_forward.9} parent=0 // pred_check
    _
  $region11: #{ppo_forward.9} parent=0 // pred_check_branch
    %15 = sbr.rel (0) target = $region13
  $region12: #{ppo_forward.9} parent=0 // pred_region
    _
  $region13: #{ppo_forward.9} parent=0 // pred_fallthru
    _
  // Predicated region
  $region14: #{ppo_forward.9} parent=0 // pred_check
    _
  $region15: #{ppo_forward.9} parent=0 // pred_check_branch
    %17 = sbr.rel (0) target = $region17
  $region16: #{ppo_forward.9} parent=0 // pred_region
    _
  $region17: #{ppo_forward.9} parent=0 // pred_fallthru
    _
  // Predicated region
  $region18: #{ppo_forward.9} parent=0 // pred_check
    _
  $region19: #{ppo_forward.9} parent=0 // pred_check_branch
    %19 = sbr.rel (0) target = $region21
  $region20: #{ppo_forward.9} parent=0 // pred_region
    _
  $region21: #{ppo_forward.9} parent=0 // pred_fallthru
    _
  %v21 = vld [vmem:[%s0] sm:$0xff]
  %v22 = vld [vmem:[%s0 + $0x8] sm:$0x1]
  %v23 = vld [vmem:[%s1] sm:$0xff]
  %v24 = vld [vmem:[%s1 + $0x8] sm:$0xff]
  %v25 = vld [vmem:[%s1 + $0x10] sm:$0xff]
  %v26 = vld [vmem:[%s1 + $0x18] sm:$0xff]
  %v27 = vld [vmem:[%s1 + $0x20] sm:$0xff]
  %v28 = vld [vmem:[%s1 + $0x28] sm:$0xff]
  %v29 = vld [vmem:[%s1 + $0x30] sm:$0xff]
  %v30 = vld [vmem:[%s1 + $0x38] sm:$0xff]
  %v31 = vld [vmem:[%s1 + $0x40] sm:$0xff]
  %v32 = vld [vmem:[%s1 + $0x48] sm:$0xff]
  %v33 = vld [vmem:[%s1 + $0x50] sm:$0xff]
  %v34 = vld [vmem:[%s1 + $0x58] sm:$0xff]
  %v35 = vld [vmem:[%s1 + $0x60] sm:$0xff]
  %v36 = vld [vmem:[%s1 + $0x68] sm:$0xff]
  %v37 = vld [vmem:[%s1 + $0x70] sm:$0xff]
  %v38 = vld [vmem:[%s1 + $0x78] sm:$0xff]
  %v39 = vld [vmem:[%s1 + $0x80] sm:$0xff]
  %v40 = vld [vmem:[%s1 + $0x88] sm:$0xff]
  %v41 = vld [vmem:[%s1 + $0x90] sm:$0xff]
  %v42 = vld [vmem:[%s1 + $0x98] sm:$0xff]
  %v43 = vld [vmem:[%s1 + $0xa0] sm:$0xff]
  %v44 = vld [vmem:[%s1 + $0xa8] sm:$0xff]
  %v45 = vld [vmem:[%s1 + $0xb0] sm:$0xff]
  %v46 = vld [vmem:[%s1 + $0xb8] sm:$0xff]
  %v47 = vld [vmem:[%s1 + $0xc0] sm:$0xff]
  %v48 = vld [vmem:[%s1 + $0xc8] sm:$0xff]
  %v49 = vld [vmem:[%s1 + $0xd0] sm:$0xff]
  %v50 = vld [vmem:[%s1 + $0xd8] sm:$0xff]
  %v51 = vld [vmem:[%s1 + $0xe0] sm:$0xff]
  %v52 = vld [vmem:[%s1 + $0xe8] sm:$0xff]
  %v53 = vld [vmem:[%s1 + $0xf0] sm:$0xff]
  %v54 = vld [vmem:[%s1 + $0xf8] sm:$0xff]
  %v55 = vld [vmem:[%s1 + $0x100] sm:$0xff]
  %v56 = vld [vmem:[%s1 + $0x108] sm:$0xff]
  %v57 = vld [vmem:[%s1 + $0x110] sm:$0xff]
  %v58 = vld [vmem:[%s1 + $0x118] sm:$0xff]
  %v59 = vld [vmem:[%s1 + $0x120] sm:$0xff]
  %v60 = vld [vmem:[%s1 + $0x128] sm:$0xff]
  %v61 = vld [vmem:[%s1 + $0x130] sm:$0xff]
  %v62 = vld [vmem:[%s1 + $0x138] sm:$0xff]
  %v63 = vld [vmem:[%s1 + $0x140] sm:$0xff]
  %v64 = vld [vmem:[%s1 + $0x148] sm:$0xff]
  %v65 = vld [vmem:[%s1 + $0x150] sm:$0xff]
  %v66 = vld [vmem:[%s1 + $0x158] sm:$0xff]
  %v67 = vld [vmem:[%s1 + $0x160] sm:$0xff]
  %v68 = vld [vmem:[%s1 + $0x168] sm:$0xff]
  %v69 = vld [vmem:[%s1 + $0x170] sm:$0xff]
  %v70 = vld [vmem:[%s1 + $0x178] sm:$0xff]
  %v71 = vld [vmem:[%s1 + $0x180] sm:$0xff]
  %v72 = vld [vmem:[%s1 + $0x188] sm:$0xff]
  %v73 = vld [vmem:[%s1 + $0x190] sm:$0xff]
  %v74 = vld [vmem:[%s1 + $0x198] sm:$0xff]
  %v75 = vld [vmem:[%s1 + $0x1a0] sm:$0xff]
  %v76 = vld [vmem:[%s1 + $0x1a8] sm:$0xff]
  %v77 = vld [vmem:[%s1 + $0x1b0] sm:$0xff]
  %v78 = vld [vmem:[%s1 + $0x1b8] sm:$0xff]
  %v79 = vld [vmem:[%s1 + $0x1c0] sm:$0xff]
  %v80 = vld [vmem:[%s1 + $0x1c8] sm:$0xff]
  %v81 = vld [vmem:[%s1 + $0x1d0] sm:$0xff]
  %v82 = vld [vmem:[%s1 + $0x1d8] sm:$0xff]
  %v83 = vld [vmem:[%s1 + $0x1e0] sm:$0xff]
  %v84 = vld [vmem:[%s1 + $0x1e8] sm:$0xff]
  %v85 = vld [vmem:[%s1 + $0x1f0] sm:$0xff]
  %v86 = vld [vmem:[%s1 + $0x1f8] sm:$0xff]
  %v87 = vld [vmem:[%s1 + $0x200] sm:$0xff]
  %v88 = vld [vmem:[%s1 + $0x208] sm:$0xff]
  %v89 = vld [vmem:[%s1 + $0x210] sm:$0xff]
  %v90 = vld [vmem:[%s1 + $0x218] sm:$0xff]
  %v91 = vld [vmem:[%s1 + $0x220] sm:$0xff]
  %v92 = vld [vmem:[%s1 + $0x228] sm:$0xff]
  %v93 = vld [vmem:[%s1 + $0x230] sm:$0xff]
  %v94 = vld [vmem:[%s1 + $0x238] sm:$0xff]
  %v95 = vld [vmem:[%s1 + $0x240] sm:$0xff]
  %v96 = vld [vmem:[%s1 + $0x248] sm:$0xff]
  %v97 = vld [vmem:[%s1 + $0x250] sm:$0xff]
  %v98 = vld [vmem:[%s1 + $0x258] sm:$0xff]
  %v99 = vld [vmem:[%s1 + $0x260] sm:$0xff]
  %v100 = vld [vmem:[%s1 + $0x268] sm:$0xff]
  %v101 = vld [vmem:[%s1 + $0x270] sm:$0xff]
  %v102 = vld [vmem:[%s1 + $0x278] sm:$0xff]
  %v103 = vld [vmem:[%s1 + $0x280] sm:$0xff]
  %v104 = vld [vmem:[%s1 + $0x288] sm:$0xff]
  %v105 = vld [vmem:[%s1 + $0x290] sm:$0xff]
  %v106 = vld [vmem:[%s1 + $0x298] sm:$0xff]
  %v107 = vld [vmem:[%s1 + $0x2a0] sm:$0xff]
  %v108 = vld [vmem:[%s1 + $0x2a8] sm:$0xff]
  %v109 = vld [vmem:[%s1 + $0x2b0] sm:$0xff]
  %v110 = vld [vmem:[%s1 + $0x2b8] sm:$0xff]
  %v111 = vld [vmem:[%s1 + $0x2c0] sm:$0xff]
  %v112 = vld [vmem:[%s1 + $0x2c8] sm:$0xff]
  %v113 = vld [vmem:[%s1 + $0x2d0] sm:$0xff]
  %v114 = vld [vmem:[%s1 + $0x2d8] sm:$0xff]
  %v115 = vld [vmem:[%s1 + $0x2e0] sm:$0xff]
  %v116 = vld [vmem:[%s1 + $0x2e8] sm:$0xff]
  %v117 = vld [vmem:[%s1 + $0x2f0] sm:$0xff]
  %v118 = vld [vmem:[%s1 + $0x2f8] sm:$0xff]
  %v119 = vld [vmem:[%s1 + $0x300] sm:$0xff]
  %v120 = vld [vmem:[%s1 + $0x308] sm:$0xff]
  %v121 = vld [vmem:[%s1 + $0x310] sm:$0xff]
  %v122 = vld [vmem:[%s1 + $0x318] sm:$0xff]
  %v123 = vld [vmem:[%s1 + $0x320] sm:$0xff]
  %v124 = vld [vmem:[%s1 + $0x328] sm:$0xff]
  %v125 = vld [vmem:[%s1 + $0x330] sm:$0xff]
  %v126 = vld [vmem:[%s1 + $0x338] sm:$0xff]
  %v127 = vld [vmem:[%s1 + $0x340] sm:$0xff]
  %v128 = vld [vmem:[%s1 + $0x348] sm:$0xff]
  %v129 = vld [vmem:[%s1 + $0x350] sm:$0xff]
  %v130 = vld [vmem:[%s1 + $0x358] sm:$0xff]
  %v131 = vld [vmem:[%s1 + $0x360] sm:$0xff]
  %v132 = vld [vmem:[%s1 + $0x368] sm:$0xff]
  %v133 = vld [vmem:[%s1 + $0x370] sm:$0xff]
  %v134 = vld [vmem:[%s1 + $0x378] sm:$0xff]
  %v135 = vld [vmem:[%s1 + $0x380] sm:$0xff]
  %v136 = vld [vmem:[%s1 + $0x388] sm:$0xff]
  %v137 = vld [vmem:[%s1 + $0x390] sm:$0xff]
  %v138 = vld [vmem:[%s1 + $0x398] sm:$0xff]
  %v139 = vld [vmem:[%s1 + $0x3a0] sm:$0xff]
  %v140 = vld [vmem:[%s1 + $0x3a8] sm:$0xff]
  %v141 = vld [vmem:[%s1 + $0x3b0] sm:$0xff]
  %v142 = vld [vmem:[%s1 + $0x3b8] sm:$0xff]
  %v143 = vld [vmem:[%s1 + $0x3c0] sm:$0xff]
  %v144 = vld [vmem:[%s1 + $0x3c8] sm:$0xff]
  %v145 = vld [vmem:[%s1 + $0x3d0] sm:$0xff]
  %v146 = vld [vmem:[%s1 + $0x3d8] sm:$0xff]
  %v147 = vld [vmem:[%s1 + $0x3e0] sm:$0xff]
  %v148 = vld [vmem:[%s1 + $0x3e8] sm:$0xff]
  %v149 = vld [vmem:[%s1 + $0x3f0] sm:$0xff]
  %v150 = vld [vmem:[%s1 + $0x3f8] sm:$0xff]
  %v151 = vld [vmem:[%s1 + $0x400] sm:$0xff]
  %v152 = vld [vmem:[%s1 + $0x408] sm:$0xff]
  %v153 = vld [vmem:[%s1 + $0x410] sm:$0xff]
  %v154 = vld [vmem:[%s1 + $0x418] sm:$0xff]
  %v155 = vld [vmem:[%s1 + $0x420] sm:$0xff]
  %v156 = vld [vmem:[%s1 + $0x428] sm:$0xff]
  %v157 = vld [vmem:[%s1 + $0x430] sm:$0xff]
  %v158 = vld [vmem:[%s1 + $0x438] sm:$0xff]
  %v159 = vld [vmem:[%s1 + $0x440] sm:$0xff]
  %v160 = vld [vmem:[%s1 + $0x448] sm:$0xff]
  %v161 = vld [vmem:[%s1 + $0x450] sm:$0xff]
  %v162 = vld [vmem:[%s1 + $0x458] sm:$0xff]
  %v163 = vld [vmem:[%s1 + $0x460] sm:$0xff]
  %v164 = vld [vmem:[%s1 + $0x468] sm:$0xff]
  %v165 = vld [vmem:[%s1 + $0x470] sm:$0xff]
  %v166 = vld [vmem:[%s1 + $0x478] sm:$0xff]
  %v167 = vld [vmem:[%s1 + $0x480] sm:$0xff]
  %v168 = vld [vmem:[%s1 + $0x488] sm:$0xff]
  %v169 = vld [vmem:[%s1 + $0x490] sm:$0xff]
  %v170 = vld [vmem:[%s1 + $0x498] sm:$0xff]
  %v171 = vld [vmem:[%s1 + $0x4a0] sm:$0xff]
  %v172 = vld [vmem:[%s1 + $0x4a8] sm:$0xff]
  %v173 = vld [vmem:[%s1 + $0x4b0] sm:$0xff]
  %v174 = vld [vmem:[%s1 + $0x4b8] sm:$0xff]
  %v175 = vld [vmem:[%s1 + $0x4c0] sm:$0xff]
  %v176 = vld [vmem:[%s1 + $0x4c8] sm:$0xff]
  %v177 = vld [vmem:[%s1 + $0x4d0] sm:$0xff]
  %v178 = vld [vmem:[%s1 + $0x4d8] sm:$0xff]
  %v179 = vld [vmem:[%s1 + $0x4e0] sm:$0xff]
  %v180 = vld [vmem:[%s1 + $0x4e8] sm:$0xff]
  %v181 = vld [vmem:[%s1 + $0x4f0] sm:$0xff]
  %v182 = vld [vmem:[%s1 + $0x4f8] sm:$0xff]
  %v183 = vld [vmem:[%s1 + $0x500] sm:$0xff]
  %v184 = vld [vmem:[%s1 + $0x508] sm:$0xff]
  %v185 = vld [vmem:[%s1 + $0x510] sm:$0xff]
  %v186 = vld [vmem:[%s1 + $0x518] sm:$0xff]
  %v187 = vld [vmem:[%s1 + $0x520] sm:$0xff]
  %v188 = vld [vmem:[%s1 + $0x528] sm:$0xff]
  %v189 = vld [vmem:[%s1 + $0x530] sm:$0xff]
  %v190 = vld [vmem:[%s1 + $0x538] sm:$0xff]
  %v191 = vld [vmem:[%s1 + $0x540] sm:$0xff]
  %v192 = vld [vmem:[%s1 + $0x548] sm:$0xff]
  %v193 = vld [vmem:[%s1 + $0x550] sm:$0xff]
  %v194 = vld [vmem:[%s1 + $0x558] sm:$0xff]
  %v195 = vld [vmem:[%s1 + $0x560] sm:$0xff]
  %v196 = vld [vmem:[%s1 + $0x568] sm:$0xff]
  %v197 = vld [vmem:[%s1 + $0x570] sm:$0xff]
  %v198 = vld [vmem:[%s1 + $0x578] sm:$0xff]
  %v199 = vld [vmem:[%s1 + $0x580] sm:$0xff]
  %v200 = vld [vmem:[%s1 + $0x588] sm:$0xff]
  %v201 = vld [vmem:[%s1 + $0x590] sm:$0xff]
  %v202 = vld [vmem:[%s1 + $0x598] sm:$0xff]
  %v203 = vld [vmem:[%s1 + $0x5a0] sm:$0xff]
  %v204 = vld [vmem:[%s1 + $0x5a8] sm:$0xff]
  %v205 = vld [vmem:[%s1 + $0x5b0] sm:$0xff]
  %v206 = vld [vmem:[%s1 + $0x5b8] sm:$0xff]
  %v207 = vld [vmem:[%s1 + $0x5c0] sm:$0xff]
  %v208 = vld [vmem:[%s1 + $0x5c8] sm:$0xff]
  %v209 = vld [vmem:[%s1 + $0x5d0] sm:$0xff]
  %v210 = vld [vmem:[%s1 + $0x5d8] sm:$0xff]
  %v211 = vld [vmem:[%s1 + $0x5e0] sm:$0xff]
  %v212 = vld [vmem:[%s1 + $0x5e8] sm:$0xff]
  %v213 = vld [vmem:[%s1 + $0x5f0] sm:$0xff]
  %v214 = vld [vmem:[%s1 + $0x5f8] sm:$0xff]
  %v215 = vld [vmem:[%s1 + $0x600] sm:$0xff]
  %v216 = vld [vmem:[%s1 + $0x608] sm:$0xff]
  %v217 = vld [vmem:[%s1 + $0x610] sm:$0xff]
  %v218 = vld [vmem:[%s1 + $0x618] sm:$0xff]
  %v219 = vld [vmem:[%s1 + $0x620] sm:$0xff]
  %v220 = vld [vmem:[%s1 + $0x628] sm:$0xff]
  %v221 = vld [vmem:[%s1 + $0x630] sm:$0xff]
  %v222 = vld [vmem:[%s1 + $0x638] sm:$0xff]
  %v223 = vld [vmem:[%s1 + $0x640] sm:$0xff]
  %v224 = vld [vmem:[%s1 + $0x648] sm:$0xff]
  %v225 = vld [vmem:[%s1 + $0x650] sm:$0xff]
  %v226 = vld [vmem:[%s1 + $0x658] sm:$0xff]
  %v227 = vld [vmem:[%s1 + $0x660] sm:$0xff]
  %v228 = vld [vmem:[%s1 + $0x668] sm:$0xff]
  %v229 = vld [vmem:[%s1 + $0x670] sm:$0xff]
  %v230 = vld [vmem:[%s1 + $0x678] sm:$0xff]
  %v231 = vld [vmem:[%s1 + $0x680] sm:$0xff]
  %v232 = vld [vmem:[%s1 + $0x688] sm:$0xff]
  %v233 = vld [vmem:[%s1 + $0x690] sm:$0xff]
  %v234 = vld [vmem:[%s1 + $0x698] sm:$0xff]
  %v235 = vld [vmem:[%s1 + $0x6a0] sm:$0xff]
  %v236 = vld [vmem:[%s1 + $0x6a8] sm:$0xff]
  %v237 = vld [vmem:[%s1 + $0x6b0] sm:$0xff]
  %v238 = vld [vmem:[%s1 + $0x6b8] sm:$0xff]
  %v239 = vld [vmem:[%s1 + $0x6c0] sm:$0xff]
  %v240 = vld [vmem:[%s1 + $0x6c8] sm:$0xff]
  %v241 = vld [vmem:[%s1 + $0x6d0] sm:$0xff]
  %v242 = vld [vmem:[%s1 + $0x6d8] sm:$0xff]
  %v243 = vld [vmem:[%s1 + $0x6e0] sm:$0xff]
  %v244 = vld [vmem:[%s1 + $0x6e8] sm:$0xff]
  %v245 = vld [vmem:[%s1 + $0x6f0] sm:$0xff]
  %v246 = vld [vmem:[%s1 + $0x6f8] sm:$0xff]
  %v247 = vld [vmem:[%s1 + $0x700] sm:$0xff]
  %v248 = vld [vmem:[%s1 + $0x708] sm:$0xff]
  %v249 = vld [vmem:[%s1 + $0x710] sm:$0xff]
  %v250 = vld [vmem:[%s1 + $0x718] sm:$0xff]
  %v251 = vld [vmem:[%s1 + $0x720] sm:$0xff]
  %v252 = vld [vmem:[%s1 + $0x728] sm:$0xff]
  %v253 = vld [vmem:[%s1 + $0x730] sm:$0xff]
  %v254 = vld [vmem:[%s1 + $0x738] sm:$0xff]
  %v255 = vld [vmem:[%s1 + $0x740] sm:$0xff]
  %v256 = vld [vmem:[%s1 + $0x748] sm:$0xff]
  %v257 = vld [vmem:[%s1 + $0x750] sm:$0xff]
  %v258 = vld [vmem:[%s1 + $0x758] sm:$0xff]
  %v259 = vld [vmem:[%s1 + $0x760] sm:$0xff]
  %v260 = vld [vmem:[%s1 + $0x768] sm:$0xff]
  %v261 = vld [vmem:[%s1 + $0x770] sm:$0xff]
  %v262 = vld [vmem:[%s1 + $0x778] sm:$0xff]
  %v263 = vld [vmem:[%s1 + $0x780] sm:$0xff]
  %v264 = vld [vmem:[%s1 + $0x788] sm:$0xff]
  %v265 = vld [vmem:[%s1 + $0x790] sm:$0xff]
  %v266 = vld [vmem:[%s1 + $0x798] sm:$0xff]
  %v267 = vld [vmem:[%s1 + $0x7a0] sm:$0xff]
  %v268 = vld [vmem:[%s1 + $0x7a8] sm:$0xff]
  %v269 = vld [vmem:[%s1 + $0x7b0] sm:$0xff]
  %v270 = vld [vmem:[%s1 + $0x7b8] sm:$0xff]
  %v271 = vld [vmem:[%s1 + $0x7c0] sm:$0xff]
  %v272 = vld [vmem:[%s1 + $0x7c8] sm:$0xff]
  %v273 = vld [vmem:[%s1 + $0x7d0] sm:$0xff]
  %v274 = vld [vmem:[%s1 + $0x7d8] sm:$0xff]
  %v275 = vld [vmem:[%s1 + $0x7e0] sm:$0xff]
  %v276 = vld [vmem:[%s1 + $0x7e8] sm:$0xff]
  %v277 = vld [vmem:[%s1 + $0x7f0] sm:$0xff]
  %v278 = vld [vmem:[%s1 + $0x7f8] sm:$0xff]
  %v279 = vld [vmem:[%s1 + $0x800] sm:$0xff]
  %v280 = vld [vmem:[%s1 + $0x808] sm:$0xff]
  %v281 = vld [vmem:[%s1 + $0x810] sm:$0xff]
  %v282 = vld [vmem:[%s1 + $0x818] sm:$0xff]
  %v283 = vld [vmem:[%s1 + $0x820] sm:$0xff]
  %v284 = vld [vmem:[%s1 + $0x828] sm:$0xff]
  %v285 = vld [vmem:[%s1 + $0x830] sm:$0xff]
  %v286 = vld [vmem:[%s1 + $0x838] sm:$0xff]
  %v287 = vld [vmem:[%s1 + $0x840] sm:$0xff]
  %v288 = vld [vmem:[%s1 + $0x848] sm:$0xff]
  %v289 = vld [vmem:[%s1 + $0x850] sm:$0xff]
  %v290 = vld [vmem:[%s1 + $0x858] sm:$0xff]
  %v291 = vld [vmem:[%s1 + $0x860] sm:$0xff]
  %v292 = vld [vmem:[%s1 + $0x868] sm:$0xff]
  %v293 = vld [vmem:[%s1 + $0x870] sm:$0xff]
  %v294 = vld [vmem:[%s1 + $0x878] sm:$0xff]
  %v295 = vld [vmem:[%s1 + $0x880] sm:$0xff]
  %v296 = vld [vmem:[%s1 + $0x888] sm:$0xff]
  %v297 = vld [vmem:[%s1 + $0x890] sm:$0xff]
  %v298 = vld [vmem:[%s1 + $0x898] sm:$0xff]
  %v299 = vld [vmem:[%s1 + $0x8a0] sm:$0xff]
  %v300 = vld [vmem:[%s1 + $0x8a8] sm:$0xff]
  %v301 = vld [vmem:[%s1 + $0x8b0] sm:$0xff]
  %v302 = vld [vmem:[%s1 + $0x8b8] sm:$0xff]
  %v303 = vld [vmem:[%s1 + $0x8c0] sm:$0xff]
  %v304 = vld [vmem:[%s1 + $0x8c8] sm:$0xff]
  %v305 = vld [vmem:[%s1 + $0x8d0] sm:$0xff]
  %v306 = vld [vmem:[%s1 + $0x8d8] sm:$0xff]
  %v307 = vld [vmem:[%s1 + $0x8e0] sm:$0xff]
  %v308 = vld [vmem:[%s1 + $0x8e8] sm:$0xff]
  %v309 = vld [vmem:[%s1 + $0x8f0] sm:$0xff]
  %v310 = vld [vmem:[%s1 + $0x8f8] sm:$0xff]
  %v311 = vld [vmem:[%s2] sm:$0xf]
  %v313 = vlaneseq
  %v314 = vshrl.u32 %v313, 7
  %v315 = vsub.s32 0, %v314
  %v316 = vrot.slane %v311, %v315
  %v317 = vlaneseq
  %v318 = vshrl.u32 %v317, 7
  %v319 = vsub.s32 1, %v318
  %v320 = vrot.slane %v311, %v319
  %v321 = vlaneseq
  %v322 = vshrl.u32 %v321, 7
  %v323 = vsub.s32 2, %v322
  %v324 = vrot.slane %v311, %v323
  %v325 = vlaneseq
  %v326 = vshrl.u32 %v325, 7
  %v327 = vsub.s32 3, %v326
  %v328 = vrot.slane %v311, %v327
  %v335 = vcombine.high %v21, %v21
  %v337 = vunpack.c.l.s4 1966171168
  %v338 = vunpack.c.0.s8 %v337
  %v339 = vlaneseq
  %v340 = vshrl.u32 %v339, 7
  %v341 = vsub.s32 %v338, %v340
  %v342 = vrot.slane %v21, %v341
  %v344 = vunpack.c.l.s4 1966171168
  %v345 = vunpack.c.0.s8 %v344
  %v346 = vlaneseq
  %v347 = vshrl.u32 %v346, 7
  %v348 = vsub.s32 %v345, %v347
  %v349 = vrot.slane %v335, %v348
  %v350 = vcombine.high %v342, %v342
  %v351 = vcombine.high %v349, %v349
  %v353 = vunpack.c.l.s4 1966171168
  %v354 = vunpack.c.0.s8 %v353
  %v355 = vlaneseq
  %v356 = vshrl.u32 %v355, 7
  %v357 = vsub.s32 %v354, %v356
  %v358 = vrot.slane %v342, %v357
  %v360 = vunpack.c.l.s4 1966171168
  %v361 = vunpack.c.0.s8 %v360
  %v362 = vlaneseq
  %v363 = vshrl.u32 %v362, 7
  %v364 = vsub.s32 %v361, %v363
  %v365 = vrot.slane %v349, %v364
  %v367 = vunpack.c.l.s4 1966171168
  %v368 = vunpack.c.0.s8 %v367
  %v369 = vlaneseq
  %v370 = vshrl.u32 %v369, 7
  %v371 = vsub.s32 %v368, %v370
  %v372 = vrot.slane %v350, %v371
  %v374 = vunpack.c.l.s4 1966171168
  %v375 = vunpack.c.0.s8 %v374
  %v376 = vlaneseq
  %v377 = vshrl.u32 %v376, 7
  %v378 = vsub.s32 %v375, %v377
  %v379 = vrot.slane %v351, %v378
  %v380 = vcombine.high %v358, %v358
  %v381 = vcombine.high %v365, %v365
  %v382 = vcombine.high %v372, %v372
  %v383 = vcombine.high %v379, %v379
  %v385 = vunpack.c.l.s4 1966171168
  %v386 = vunpack.c.0.s8 %v385
  %v387 = vlaneseq
  %v388 = vshrl.u32 %v387, 7
  %v389 = vsub.s32 %v386, %v388
  %v390 = vrot.slane %v22, %v389
  %v392 = vunpack.c.l.s4 1966171168
  %v393 = vunpack.c.0.s8 %v392
  %v394 = vlaneseq
  %v395 = vshrl.u32 %v394, 7
  %v396 = vsub.s32 %v393, %v395
  %v397 = vrot.slane %v390, %v396
  %v695 = vunpack.c.l.b16 %v23
  %v696 = vunpack.c.h.b16 %v23
  %v697 = vunpack.c.l.b16 %v24
  %v698 = vunpack.c.h.b16 %v24
  %v699 = vunpack.c.l.b16 %v25
  %v700 = vunpack.c.h.b16 %v25
  %v701 = vunpack.c.l.b16 %v26
  %v702 = vunpack.c.h.b16 %v26
  %v703 = vunpack.c.l.b16 %v27
  %v704 = vunpack.c.h.b16 %v27
  %v705 = vunpack.c.l.b16 %v28
  %v706 = vunpack.c.h.b16 %v28
  %v707 = vunpack.c.l.b16 %v29
  %v708 = vunpack.c.h.b16 %v29
  %v709 = vunpack.c.l.b16 %v30
  %v710 = vunpack.c.h.b16 %v30
  %v711 = vunpack.c.l.b16 %v31
  %v712 = vunpack.c.h.b16 %v31
  %v713 = vunpack.c.l.b16 %v32
  %v714 = vunpack.c.h.b16 %v32
  %v715 = vunpack.c.l.b16 %v33
  %v716 = vunpack.c.h.b16 %v33
  %v717 = vunpack.c.l.b16 %v34
  %v718 = vunpack.c.h.b16 %v34
  %v719 = vunpack.c.l.b16 %v35
  %v720 = vunpack.c.h.b16 %v35
  %v721 = vunpack.c.l.b16 %v36
  %v722 = vunpack.c.h.b16 %v36
  %v723 = vunpack.c.l.b16 %v37
  %v724 = vunpack.c.h.b16 %v37
  %v725 = vunpack.c.l.b16 %v38
  %v726 = vunpack.c.h.b16 %v38
  %v727 = vunpack.c.l.b16 %v39
  %v728 = vunpack.c.h.b16 %v39
  %v729 = vunpack.c.l.b16 %v40
  %v730 = vunpack.c.h.b16 %v40
  %v731 = vunpack.c.l.b16 %v41
  %v732 = vunpack.c.h.b16 %v41
  %v733 = vunpack.c.l.b16 %v42
  %v734 = vunpack.c.h.b16 %v42
  %v735 = vunpack.c.l.b16 %v43
  %v736 = vunpack.c.h.b16 %v43
  %v737 = vunpack.c.l.b16 %v44
  %v738 = vunpack.c.h.b16 %v44
  %v739 = vunpack.c.l.b16 %v45
  %v740 = vunpack.c.h.b16 %v45
  %v741 = vunpack.c.l.b16 %v46
  %v742 = vunpack.c.h.b16 %v46
  %v743 = vunpack.c.l.b16 %v47
  %v744 = vunpack.c.h.b16 %v47
  %v745 = vunpack.c.l.b16 %v48
  %v746 = vunpack.c.h.b16 %v48
  %v747 = vunpack.c.l.b16 %v49
  %v748 = vunpack.c.h.b16 %v49
  %v749 = vunpack.c.l.b16 %v50
  %v750 = vunpack.c.h.b16 %v50
  %v751 = vunpack.c.l.b16 %v51
  %v752 = vunpack.c.h.b16 %v51
  %v753 = vunpack.c.l.b16 %v52
  %v754 = vunpack.c.h.b16 %v52
  %v755 = vunpack.c.l.b16 %v53
  %v756 = vunpack.c.h.b16 %v53
  %v757 = vunpack.c.l.b16 %v54
  %v758 = vunpack.c.h.b16 %v54
  %v759 = vunpack.c.l.b16 %v55
  %v760 = vunpack.c.h.b16 %v55
  %v761 = vunpack.c.l.b16 %v56
  %v762 = vunpack.c.h.b16 %v56
  %v763 = vunpack.c.l.b16 %v57
  %v764 = vunpack.c.h.b16 %v57
  %v765 = vunpack.c.l.b16 %v58
  %v766 = vunpack.c.h.b16 %v58
  %v767 = vunpack.c.l.b16 %v59
  %v768 = vunpack.c.h.b16 %v59
  %v769 = vunpack.c.l.b16 %v60
  %v770 = vunpack.c.h.b16 %v60
  %v771 = vunpack.c.l.b16 %v61
  %v772 = vunpack.c.h.b16 %v61
  %v773 = vunpack.c.l.b16 %v62
  %v774 = vunpack.c.h.b16 %v62
  %v775 = vunpack.c.l.b16 %v63
  %v776 = vunpack.c.h.b16 %v63
  %v777 = vunpack.c.l.b16 %v64
  %v778 = vunpack.c.h.b16 %v64
  %v779 = vunpack.c.l.b16 %v65
  %v780 = vunpack.c.h.b16 %v65
  %v781 = vunpack.c.l.b16 %v66
  %v782 = vunpack.c.h.b16 %v66
  %v783 = vunpack.c.l.b16 %v67
  %v784 = vunpack.c.h.b16 %v67
  %v785 = vunpack.c.l.b16 %v68
  %v786 = vunpack.c.h.b16 %v68
  %v787 = vunpack.c.l.b16 %v69
  %v788 = vunpack.c.h.b16 %v69
  %v789 = vunpack.c.l.b16 %v70
  %v790 = vunpack.c.h.b16 %v70
  %v791 = vunpack.c.l.b16 %v71
  %v792 = vunpack.c.h.b16 %v71
  %v793 = vunpack.c.l.b16 %v72
  %v794 = vunpack.c.h.b16 %v72
  %v795 = vunpack.c.l.b16 %v73
  %v796 = vunpack.c.h.b16 %v73
  %v797 = vunpack.c.l.b16 %v74
  %v798 = vunpack.c.h.b16 %v74
  %v799 = vunpack.c.l.b16 %v75
  %v800 = vunpack.c.h.b16 %v75
  %v801 = vunpack.c.l.b16 %v76
  %v802 = vunpack.c.h.b16 %v76
  %v803 = vunpack.c.l.b16 %v77
  %v804 = vunpack.c.h.b16 %v77
  %v805 = vunpack.c.l.b16 %v78
  %v806 = vunpack.c.h.b16 %v78
  %v807 = vunpack.c.l.b16 %v79
  %v808 = vunpack.c.h.b16 %v79
  %v809 = vunpack.c.l.b16 %v80
  %v810 = vunpack.c.h.b16 %v80
  %v811 = vunpack.c.l.b16 %v81
  %v812 = vunpack.c.h.b16 %v81
  %v813 = vunpack.c.l.b16 %v82
  %v814 = vunpack.c.h.b16 %v82
  %v815 = vunpack.c.l.b16 %v83
  %v816 = vunpack.c.h.b16 %v83
  %v817 = vunpack.c.l.b16 %v84
  %v818 = vunpack.c.h.b16 %v84
  %v819 = vunpack.c.l.b16 %v85
  %v820 = vunpack.c.h.b16 %v85
  %v821 = vunpack.c.l.b16 %v86
  %v822 = vunpack.c.h.b16 %v86
  %v823 = vunpack.c.l.b16 %v87
  %v824 = vunpack.c.h.b16 %v87
  %v825 = vunpack.c.l.b16 %v88
  %v826 = vunpack.c.h.b16 %v88
  %v827 = vunpack.c.l.b16 %v89
  %v828 = vunpack.c.h.b16 %v89
  %v829 = vunpack.c.l.b16 %v90
  %v830 = vunpack.c.h.b16 %v90
  %v831 = vunpack.c.l.b16 %v91
  %v832 = vunpack.c.h.b16 %v91
  %v833 = vunpack.c.l.b16 %v92
  %v834 = vunpack.c.h.b16 %v92
  %v835 = vunpack.c.l.b16 %v93
  %v836 = vunpack.c.h.b16 %v93
  %v837 = vunpack.c.l.b16 %v94
  %v838 = vunpack.c.h.b16 %v94
  %v839 = vunpack.c.l.b16 %v95
  %v840 = vunpack.c.h.b16 %v95
  %v841 = vunpack.c.l.b16 %v96
  %v842 = vunpack.c.h.b16 %v96
  %v843 = vunpack.c.l.b16 %v97
  %v844 = vunpack.c.h.b16 %v97
  %v845 = vunpack.c.l.b16 %v98
  %v846 = vunpack.c.h.b16 %v98
  %v847 = vunpack.c.l.b16 %v99
  %v848 = vunpack.c.h.b16 %v99
  %v849 = vunpack.c.l.b16 %v100
  %v850 = vunpack.c.h.b16 %v100
  %v851 = vunpack.c.l.b16 %v101
  %v852 = vunpack.c.h.b16 %v101
  %v853 = vunpack.c.l.b16 %v102
  %v854 = vunpack.c.h.b16 %v102
  %v855 = vunpack.c.l.b16 %v103
  %v856 = vunpack.c.h.b16 %v103
  %v857 = vunpack.c.l.b16 %v104
  %v858 = vunpack.c.h.b16 %v104
  %v859 = vunpack.c.l.b16 %v105
  %v860 = vunpack.c.h.b16 %v105
  %v861 = vunpack.c.l.b16 %v106
  %v862 = vunpack.c.h.b16 %v106
  %v863 = vunpack.c.l.b16 %v107
  %v864 = vunpack.c.h.b16 %v107
  %v865 = vunpack.c.l.b16 %v108
  %v866 = vunpack.c.h.b16 %v108
  %v867 = vunpack.c.l.b16 %v109
  %v868 = vunpack.c.h.b16 %v109
  %v869 = vunpack.c.l.b16 %v110
  %v870 = vunpack.c.h.b16 %v110
  %v871 = vunpack.c.l.b16 %v111
  %v872 = vunpack.c.h.b16 %v111
  %v873 = vunpack.c.l.b16 %v112
  %v874 = vunpack.c.h.b16 %v112
  %v875 = vunpack.c.l.b16 %v113
  %v876 = vunpack.c.h.b16 %v113
  %v877 = vunpack.c.l.b16 %v114
  %v878 = vunpack.c.h.b16 %v114
  %v879 = vunpack.c.l.b16 %v115
  %v880 = vunpack.c.h.b16 %v115
  %v881 = vunpack.c.l.b16 %v116
  %v882 = vunpack.c.h.b16 %v116
  %v883 = vunpack.c.l.b16 %v117
  %v884 = vunpack.c.h.b16 %v117
  %v885 = vunpack.c.l.b16 %v118
  %v886 = vunpack.c.h.b16 %v118
  %v887 = vunpack.c.l.b16 %v119
  %v888 = vunpack.c.h.b16 %v119
  %v889 = vunpack.c.l.b16 %v120
  %v890 = vunpack.c.h.b16 %v120
  %v891 = vunpack.c.l.b16 %v121
  %v892 = vunpack.c.h.b16 %v121
  %v893 = vunpack.c.l.b16 %v122
  %v894 = vunpack.c.h.b16 %v122
  %v895 = vunpack.c.l.b16 %v123
  %v896 = vunpack.c.h.b16 %v123
  %v897 = vunpack.c.l.b16 %v124
  %v898 = vunpack.c.h.b16 %v124
  %v899 = vunpack.c.l.b16 %v125
  %v900 = vunpack.c.h.b16 %v125
  %v901 = vunpack.c.l.b16 %v126
  %v902 = vunpack.c.h.b16 %v126
  %v903 = vunpack.c.l.b16 %v127
  %v904 = vunpack.c.h.b16 %v127
  %v905 = vunpack.c.l.b16 %v128
  %v906 = vunpack.c.h.b16 %v128
  %v907 = vunpack.c.l.b16 %v129
  %v908 = vunpack.c.h.b16 %v129
  %v909 = vunpack.c.l.b16 %v130
  %v910 = vunpack.c.h.b16 %v130
  %v911 = vunpack.c.l.b16 %v131
  %v912 = vunpack.c.h.b16 %v131
  %v913 = vunpack.c.l.b16 %v132
  %v914 = vunpack.c.h.b16 %v132
  %v915 = vunpack.c.l.b16 %v133
  %v916 = vunpack.c.h.b16 %v133
  %v917 = vunpack.c.l.b16 %v134
  %v918 = vunpack.c.h.b16 %v134
  %v919 = vunpack.c.l.b16 %v135
  %v920 = vunpack.c.h.b16 %v135
  %v921 = vunpack.c.l.b16 %v136
  %v922 = vunpack.c.h.b16 %v136
  %v923 = vunpack.c.l.b16 %v137
  %v924 = vunpack.c.h.b16 %v137
  %v925 = vunpack.c.l.b16 %v138
  %v926 = vunpack.c.h.b16 %v138
  %v927 = vunpack.c.l.b16 %v139
  %v928 = vunpack.c.h.b16 %v139
  %v929 = vunpack.c.l.b16 %v140
  %v930 = vunpack.c.h.b16 %v140
  %v931 = vunpack.c.l.b16 %v141
  %v932 = vunpack.c.h.b16 %v141
  %v933 = vunpack.c.l.b16 %v142
  %v934 = vunpack.c.h.b16 %v142
  %v935 = vunpack.c.l.b16 %v143
  %v936 = vunpack.c.h.b16 %v143
  %v937 = vunpack.c.l.b16 %v144
  %v938 = vunpack.c.h.b16 %v144
  %v939 = vunpack.c.l.b16 %v145
  %v940 = vunpack.c.h.b16 %v145
  %v941 = vunpack.c.l.b16 %v146
  %v942 = vunpack.c.h.b16 %v146
  %v943 = vunpack.c.l.b16 %v147
  %v944 = vunpack.c.h.b16 %v147
  %v945 = vunpack.c.l.b16 %v148
  %v946 = vunpack.c.h.b16 %v148
  %v947 = vunpack.c.l.b16 %v149
  %v948 = vunpack.c.h.b16 %v149
  %v949 = vunpack.c.l.b16 %v150
  %v950 = vunpack.c.h.b16 %v150
  %v951 = vunpack.c.l.b16 %v151
  %v952 = vunpack.c.h.b16 %v151
  %v953 = vunpack.c.l.b16 %v152
  %v954 = vunpack.c.h.b16 %v152
  %v955 = vunpack.c.l.b16 %v153
  %v956 = vunpack.c.h.b16 %v153
  %v957 = vunpack.c.l.b16 %v154
  %v958 = vunpack.c.h.b16 %v154
  %v959 = vunpack.c.l.b16 %v155
  %v960 = vunpack.c.h.b16 %v155
  %v961 = vunpack.c.l.b16 %v156
  %v962 = vunpack.c.h.b16 %v156
  %v963 = vunpack.c.l.b16 %v157
  %v964 = vunpack.c.h.b16 %v157
  %v965 = vunpack.c.l.b16 %v158
  %v966 = vunpack.c.h.b16 %v158
  %v967 = vunpack.c.l.b16 %v159
  %v968 = vunpack.c.h.b16 %v159
  %v969 = vunpack.c.l.b16 %v160
  %v970 = vunpack.c.h.b16 %v160
  %v971 = vunpack.c.l.b16 %v161
  %v972 = vunpack.c.h.b16 %v161
  %v973 = vunpack.c.l.b16 %v162
  %v974 = vunpack.c.h.b16 %v162
  %v975 = vunpack.c.l.b16 %v163
  %v976 = vunpack.c.h.b16 %v163
  %v977 = vunpack.c.l.b16 %v164
  %v978 = vunpack.c.h.b16 %v164
  %v979 = vunpack.c.l.b16 %v165
  %v980 = vunpack.c.h.b16 %v165
  %v981 = vunpack.c.l.b16 %v166
  %v982 = vunpack.c.h.b16 %v166
  %v983 = vunpack.c.l.b16 %v167
  %v984 = vunpack.c.h.b16 %v167
  %v985 = vunpack.c.l.b16 %v168
  %v986 = vunpack.c.h.b16 %v168
  %v987 = vunpack.c.l.b16 %v169
  %v988 = vunpack.c.h.b16 %v169
  %v989 = vunpack.c.l.b16 %v170
  %v990 = vunpack.c.h.b16 %v170
  %v991 = vunpack.c.l.b16 %v171
  %v992 = vunpack.c.h.b16 %v171
  %v993 = vunpack.c.l.b16 %v172
  %v994 = vunpack.c.h.b16 %v172
  %v995 = vunpack.c.l.b16 %v173
  %v996 = vunpack.c.h.b16 %v173
  %v997 = vunpack.c.l.b16 %v174
  %v998 = vunpack.c.h.b16 %v174
  %v999 = vunpack.c.l.b16 %v175
  %v1000 = vunpack.c.h.b16 %v175
  %v1001 = vunpack.c.l.b16 %v176
  %v1002 = vunpack.c.h.b16 %v176
  %v1003 = vunpack.c.l.b16 %v177
  %v1004 = vunpack.c.h.b16 %v177
  %v1005 = vunpack.c.l.b16 %v178
  %v1006 = vunpack.c.h.b16 %v178
  %v1007 = vunpack.c.l.b16 %v179
  %v1008 = vunpack.c.h.b16 %v179
  %v1009 = vunpack.c.l.b16 %v180
  %v1010 = vunpack.c.h.b16 %v180
  %v1011 = vunpack.c.l.b16 %v181
  %v1012 = vunpack.c.h.b16 %v181
  %v1013 = vunpack.c.l.b16 %v182
  %v1014 = vunpack.c.h.b16 %v182
  %v1015 = vunpack.c.l.b16 %v183
  %v1016 = vunpack.c.h.b16 %v183
  %v1017 = vunpack.c.l.b16 %v184
  %v1018 = vunpack.c.h.b16 %v184
  %v1019 = vunpack.c.l.b16 %v185
  %v1020 = vunpack.c.h.b16 %v185
  %v1021 = vunpack.c.l.b16 %v186
  %v1022 = vunpack.c.h.b16 %v186
  %v1023 = vunpack.c.l.b16 %v187
  %v1024 = vunpack.c.h.b16 %v187
  %v1025 = vunpack.c.l.b16 %v188
  %v1026 = vunpack.c.h.b16 %v188
  %v1027 = vunpack.c.l.b16 %v189
  %v1028 = vunpack.c.h.b16 %v189
  %v1029 = vunpack.c.l.b16 %v190
  %v1030 = vunpack.c.h.b16 %v190
  %v1031 = vunpack.c.l.b16 %v191
  %v1032 = vunpack.c.h.b16 %v191
  %v1033 = vunpack.c.l.b16 %v192
  %v1034 = vunpack.c.h.b16 %v192
  %v1035 = vunpack.c.l.b16 %v193
  %v1036 = vunpack.c.h.b16 %v193
  %v1037 = vunpack.c.l.b16 %v194
  %v1038 = vunpack.c.h.b16 %v194
  %v1039 = vunpack.c.l.b16 %v195
  %v1040 = vunpack.c.h.b16 %v195
  %v1041 = vunpack.c.l.b16 %v196
  %v1042 = vunpack.c.h.b16 %v196
  %v1043 = vunpack.c.l.b16 %v197
  %v1044 = vunpack.c.h.b16 %v197
  %v1045 = vunpack.c.l.b16 %v198
  %v1046 = vunpack.c.h.b16 %v198
  %v1047 = vunpack.c.l.b16 %v199
  %v1048 = vunpack.c.h.b16 %v199
  %v1049 = vunpack.c.l.b16 %v200
  %v1050 = vunpack.c.h.b16 %v200
  %v1051 = vunpack.c.l.b16 %v201
  %v1052 = vunpack.c.h.b16 %v201
  %v1053 = vunpack.c.l.b16 %v202
  %v1054 = vunpack.c.h.b16 %v202
  %v1055 = vunpack.c.l.b16 %v203
  %v1056 = vunpack.c.h.b16 %v203
  %v1057 = vunpack.c.l.b16 %v204
  %v1058 = vunpack.c.h.b16 %v204
  %v1059 = vunpack.c.l.b16 %v205
  %v1060 = vunpack.c.h.b16 %v205
  %v1061 = vunpack.c.l.b16 %v206
  %v1062 = vunpack.c.h.b16 %v206
  %v1063 = vunpack.c.l.b16 %v207
  %v1064 = vunpack.c.h.b16 %v207
  %v1065 = vunpack.c.l.b16 %v208
  %v1066 = vunpack.c.h.b16 %v208
  %v1067 = vunpack.c.l.b16 %v209
  %v1068 = vunpack.c.h.b16 %v209
  %v1069 = vunpack.c.l.b16 %v210
  %v1070 = vunpack.c.h.b16 %v210
  %v1071 = vunpack.c.l.b16 %v211
  %v1072 = vunpack.c.h.b16 %v211
  %v1073 = vunpack.c.l.b16 %v212
  %v1074 = vunpack.c.h.b16 %v212
  %v1075 = vunpack.c.l.b16 %v213
  %v1076 = vunpack.c.h.b16 %v213
  %v1077 = vunpack.c.l.b16 %v214
  %v1078 = vunpack.c.h.b16 %v214
  %v1079 = vunpack.c.l.b16 %v215
  %v1080 = vunpack.c.h.b16 %v215
  %v1081 = vunpack.c.l.b16 %v216
  %v1082 = vunpack.c.h.b16 %v216
  %v1083 = vunpack.c.l.b16 %v217
  %v1084 = vunpack.c.h.b16 %v217
  %v1085 = vunpack.c.l.b16 %v218
  %v1086 = vunpack.c.h.b16 %v218
  %v1087 = vunpack.c.l.b16 %v219
  %v1088 = vunpack.c.h.b16 %v219
  %v1089 = vunpack.c.l.b16 %v220
  %v1090 = vunpack.c.h.b16 %v220
  %v1091 = vunpack.c.l.b16 %v221
  %v1092 = vunpack.c.h.b16 %v221
  %v1093 = vunpack.c.l.b16 %v222
  %v1094 = vunpack.c.h.b16 %v222
  %v1095 = vunpack.c.l.b16 %v223
  %v1096 = vunpack.c.h.b16 %v223
  %v1097 = vunpack.c.l.b16 %v224
  %v1098 = vunpack.c.h.b16 %v224
  %v1099 = vunpack.c.l.b16 %v225
  %v1100 = vunpack.c.h.b16 %v225
  %v1101 = vunpack.c.l.b16 %v226
  %v1102 = vunpack.c.h.b16 %v226
  %v1103 = vunpack.c.l.b16 %v227
  %v1104 = vunpack.c.h.b16 %v227
  %v1105 = vunpack.c.l.b16 %v228
  %v1106 = vunpack.c.h.b16 %v228
  %v1107 = vunpack.c.l.b16 %v229
  %v1108 = vunpack.c.h.b16 %v229
  %v1109 = vunpack.c.l.b16 %v230
  %v1110 = vunpack.c.h.b16 %v230
  %v1111 = vunpack.c.l.b16 %v231
  %v1112 = vunpack.c.h.b16 %v231
  %v1113 = vunpack.c.l.b16 %v232
  %v1114 = vunpack.c.h.b16 %v232
  %v1115 = vunpack.c.l.b16 %v233
  %v1116 = vunpack.c.h.b16 %v233
  %v1117 = vunpack.c.l.b16 %v234
  %v1118 = vunpack.c.h.b16 %v234
  %v1119 = vunpack.c.l.b16 %v235
  %v1120 = vunpack.c.h.b16 %v235
  %v1121 = vunpack.c.l.b16 %v236
  %v1122 = vunpack.c.h.b16 %v236
  %v1123 = vunpack.c.l.b16 %v237
  %v1124 = vunpack.c.h.b16 %v237
  %v1125 = vunpack.c.l.b16 %v238
  %v1126 = vunpack.c.h.b16 %v238
  %v1127 = vunpack.c.l.b16 %v239
  %v1128 = vunpack.c.h.b16 %v239
  %v1129 = vunpack.c.l.b16 %v240
  %v1130 = vunpack.c.h.b16 %v240
  %v1131 = vunpack.c.l.b16 %v241
  %v1132 = vunpack.c.h.b16 %v241
  %v1133 = vunpack.c.l.b16 %v242
  %v1134 = vunpack.c.h.b16 %v242
  %v1135 = vunpack.c.l.b16 %v243
  %v1136 = vunpack.c.h.b16 %v243
  %v1137 = vunpack.c.l.b16 %v244
  %v1138 = vunpack.c.h.b16 %v244
  %v1139 = vunpack.c.l.b16 %v245
  %v1140 = vunpack.c.h.b16 %v245
  %v1141 = vunpack.c.l.b16 %v246
  %v1142 = vunpack.c.h.b16 %v246
  %v1143 = vunpack.c.l.b16 %v247
  %v1144 = vunpack.c.h.b16 %v247
  %v1145 = vunpack.c.l.b16 %v248
  %v1146 = vunpack.c.h.b16 %v248
  %v1147 = vunpack.c.l.b16 %v249
  %v1148 = vunpack.c.h.b16 %v249
  %v1149 = vunpack.c.l.b16 %v250
  %v1150 = vunpack.c.h.b16 %v250
  %v1151 = vunpack.c.l.b16 %v251
  %v1152 = vunpack.c.h.b16 %v251
  %v1153 = vunpack.c.l.b16 %v252
  %v1154 = vunpack.c.h.b16 %v252
  %v1155 = vunpack.c.l.b16 %v253
  %v1156 = vunpack.c.h.b16 %v253
  %v1157 = vunpack.c.l.b16 %v254
  %v1158 = vunpack.c.h.b16 %v254
  %v1159 = vunpack.c.l.b16 %v255
  %v1160 = vunpack.c.h.b16 %v255
  %v1161 = vunpack.c.l.b16 %v256
  %v1162 = vunpack.c.h.b16 %v256
  %v1163 = vunpack.c.l.b16 %v257
  %v1164 = vunpack.c.h.b16 %v257
  %v1165 = vunpack.c.l.b16 %v258
  %v1166 = vunpack.c.h.b16 %v258
  %v1167 = vunpack.c.l.b16 %v259
  %v1168 = vunpack.c.h.b16 %v259
  %v1169 = vunpack.c.l.b16 %v260
  %v1170 = vunpack.c.h.b16 %v260
  %v1171 = vunpack.c.l.b16 %v261
  %v1172 = vunpack.c.h.b16 %v261
  %v1173 = vunpack.c.l.b16 %v262
  %v1174 = vunpack.c.h.b16 %v262
  %v1175 = vunpack.c.l.b16 %v263
  %v1176 = vunpack.c.h.b16 %v263
  %v1177 = vunpack.c.l.b16 %v264
  %v1178 = vunpack.c.h.b16 %v264
  %v1179 = vunpack.c.l.b16 %v265
  %v1180 = vunpack.c.h.b16 %v265
  %v1181 = vunpack.c.l.b16 %v266
  %v1182 = vunpack.c.h.b16 %v266
  %v1183 = vunpack.c.l.b16 %v267
  %v1184 = vunpack.c.h.b16 %v267
  %v1185 = vunpack.c.l.b16 %v268
  %v1186 = vunpack.c.h.b16 %v268
  %v1187 = vunpack.c.l.b16 %v269
  %v1188 = vunpack.c.h.b16 %v269
  %v1189 = vunpack.c.l.b16 %v270
  %v1190 = vunpack.c.h.b16 %v270
  %v1191 = vunpack.c.l.b16 %v271
  %v1192 = vunpack.c.h.b16 %v271
  %v1193 = vunpack.c.l.b16 %v272
  %v1194 = vunpack.c.h.b16 %v272
  %v1195 = vunpack.c.l.b16 %v273
  %v1196 = vunpack.c.h.b16 %v273
  %v1197 = vunpack.c.l.b16 %v274
  %v1198 = vunpack.c.h.b16 %v274
  %v1199 = vunpack.c.l.b16 %v275
  %v1200 = vunpack.c.h.b16 %v275
  %v1201 = vunpack.c.l.b16 %v276
  %v1202 = vunpack.c.h.b16 %v276
  %v1203 = vunpack.c.l.b16 %v277
  %v1204 = vunpack.c.h.b16 %v277
  %v1205 = vunpack.c.l.b16 %v278
  %v1206 = vunpack.c.h.b16 %v278
  %v1207 = vunpack.c.l.b16 %v279
  %v1208 = vunpack.c.h.b16 %v279
  %v1209 = vunpack.c.l.b16 %v280
  %v1210 = vunpack.c.h.b16 %v280
  %v1211 = vunpack.c.l.b16 %v281
  %v1212 = vunpack.c.h.b16 %v281
  %v1213 = vunpack.c.l.b16 %v282
  %v1214 = vunpack.c.h.b16 %v282
  %v1215 = vunpack.c.l.b16 %v283
  %v1216 = vunpack.c.h.b16 %v283
  %v1217 = vunpack.c.l.b16 %v284
  %v1218 = vunpack.c.h.b16 %v284
  %v1219 = vunpack.c.l.b16 %v285
  %v1220 = vunpack.c.h.b16 %v285
  %v1221 = vunpack.c.l.b16 %v286
  %v1222 = vunpack.c.h.b16 %v286
  %v1223 = vunpack.c.l.b16 %v287
  %v1224 = vunpack.c.h.b16 %v287
  %v1225 = vunpack.c.l.b16 %v288
  %v1226 = vunpack.c.h.b16 %v288
  %v1227 = vunpack.c.l.b16 %v289
  %v1228 = vunpack.c.h.b16 %v289
  %v1229 = vunpack.c.l.b16 %v290
  %v1230 = vunpack.c.h.b16 %v290
  %v1231 = vunpack.c.l.b16 %v291
  %v1232 = vunpack.c.h.b16 %v291
  %v1233 = vunpack.c.l.b16 %v292
  %v1234 = vunpack.c.h.b16 %v292
  %v1235 = vunpack.c.l.b16 %v293
  %v1236 = vunpack.c.h.b16 %v293
  %v1237 = vunpack.c.l.b16 %v294
  %v1238 = vunpack.c.h.b16 %v294
  %v1239 = vunpack.c.l.b16 %v295
  %v1240 = vunpack.c.h.b16 %v295
  %v1241 = vunpack.c.l.b16 %v296
  %v1242 = vunpack.c.h.b16 %v296
  %v1243 = vunpack.c.l.b16 %v297
  %v1244 = vunpack.c.h.b16 %v297
  %v1245 = vunpack.c.l.b16 %v298
  %v1246 = vunpack.c.h.b16 %v298
  %v1247 = vunpack.c.l.b16 %v299
  %v1248 = vunpack.c.h.b16 %v299
  %v1249 = vunpack.c.l.b16 %v300
  %v1250 = vunpack.c.h.b16 %v300
  %v1251 = vunpack.c.l.b16 %v301
  %v1252 = vunpack.c.h.b16 %v301
  %v1253 = vunpack.c.l.b16 %v302
  %v1254 = vunpack.c.h.b16 %v302
  %v1255 = vunpack.c.l.b16 %v303
  %v1256 = vunpack.c.h.b16 %v303
  %v1257 = vunpack.c.l.b16 %v304
  %v1258 = vunpack.c.h.b16 %v304
  %v1259 = vunpack.c.l.b16 %v305
  %v1260 = vunpack.c.h.b16 %v305
  %v1261 = vunpack.c.l.b16 %v306
  %v1262 = vunpack.c.h.b16 %v306
  %v1263 = vunpack.c.l.b16 %v307
  %v1264 = vunpack.c.h.b16 %v307
  %v1265 = vunpack.c.l.b16 %v308
  %v1266 = vunpack.c.h.b16 %v308
  %v1267 = vunpack.c.l.b16 %v309
  %v1268 = vunpack.c.h.b16 %v309
  %v1269 = vunpack.c.l.b16 %v310
  %v1270 = vunpack.c.h.b16 %v310
  %v1271 = vpack.c.b16 %v699, %v695
  %v1272 = vpack.c.b16 %v700, %v696
  %v1273 = vpack.c.b16 %v701, %v697
  %v1274 = vpack.c.b16 %v702, %v698
  %v1275 = vpack.c.b16 %v707, %v703
  %v1276 = vpack.c.b16 %v708, %v704
  %v1277 = vpack.c.b16 %v709, %v705
  %v1278 = vpack.c.b16 %v710, %v706
  %v1279 = vpack.c.b16 %v715, %v711
  %v1280 = vpack.c.b16 %v716, %v712
  %v1281 = vpack.c.b16 %v717, %v713
  %v1282 = vpack.c.b16 %v718, %v714
  %v1283 = vpack.c.b16 %v723, %v719
  %v1284 = vpack.c.b16 %v724, %v720
  %v1285 = vpack.c.b16 %v725, %v721
  %v1286 = vpack.c.b16 %v726, %v722
  %v1287 = vpack.c.b16 %v731, %v727
  %v1288 = vpack.c.b16 %v732, %v728
  %v1289 = vpack.c.b16 %v733, %v729
  %v1290 = vpack.c.b16 %v734, %v730
  %v1291 = vpack.c.b16 %v739, %v735
  %v1292 = vpack.c.b16 %v740, %v736
  %v1293 = vpack.c.b16 %v741, %v737
  %v1294 = vpack.c.b16 %v742, %v738
  %v1295 = vpack.c.b16 %v747, %v743
  %v1296 = vpack.c.b16 %v748, %v744
  %v1297 = vpack.c.b16 %v749, %v745
  %v1298 = vpack.c.b16 %v750, %v746
  %v1299 = vpack.c.b16 %v755, %v751
  %v1300 = vpack.c.b16 %v756, %v752
  %v1301 = vpack.c.b16 %v757, %v753
  %v1302 = vpack.c.b16 %v758, %v754
  %v1303 = vpack.c.b16 %v763, %v759
  %v1304 = vpack.c.b16 %v764, %v760
  %v1305 = vpack.c.b16 %v765, %v761
  %v1306 = vpack.c.b16 %v766, %v762
  %v1307 = vpack.c.b16 %v771, %v767
  %v1308 = vpack.c.b16 %v772, %v768
  %v1309 = vpack.c.b16 %v773, %v769
  %v1310 = vpack.c.b16 %v774, %v770
  %v1311 = vpack.c.b16 %v779, %v775
  %v1312 = vpack.c.b16 %v780, %v776
  %v1313 = vpack.c.b16 %v781, %v777
  %v1314 = vpack.c.b16 %v782, %v778
  %v1315 = vpack.c.b16 %v787, %v783
  %v1316 = vpack.c.b16 %v788, %v784
  %v1317 = vpack.c.b16 %v789, %v785
  %v1318 = vpack.c.b16 %v790, %v786
  %v1319 = vpack.c.b16 %v795, %v791
  %v1320 = vpack.c.b16 %v796, %v792
  %v1321 = vpack.c.b16 %v797, %v793
  %v1322 = vpack.c.b16 %v798, %v794
  %v1323 = vpack.c.b16 %v803, %v799
  %v1324 = vpack.c.b16 %v804, %v800
  %v1325 = vpack.c.b16 %v805, %v801
  %v1326 = vpack.c.b16 %v806, %v802
  %v1327 = vpack.c.b16 %v811, %v807
  %v1328 = vpack.c.b16 %v812, %v808
  %v1329 = vpack.c.b16 %v813, %v809
  %v1330 = vpack.c.b16 %v814, %v810
  %v1331 = vpack.c.b16 %v819, %v815
  %v1332 = vpack.c.b16 %v820, %v816
  %v1333 = vpack.c.b16 %v821, %v817
  %v1334 = vpack.c.b16 %v822, %v818
  %v1335 = vpack.c.b16 %v827, %v823
  %v1336 = vpack.c.b16 %v828, %v824
  %v1337 = vpack.c.b16 %v829, %v825
  %v1338 = vpack.c.b16 %v830, %v826
  %v1339 = vpack.c.b16 %v835, %v831
  %v1340 = vpack.c.b16 %v836, %v832
  %v1341 = vpack.c.b16 %v837, %v833
  %v1342 = vpack.c.b16 %v838, %v834
  %v1343 = vpack.c.b16 %v843, %v839
  %v1344 = vpack.c.b16 %v844, %v840
  %v1345 = vpack.c.b16 %v845, %v841
  %v1346 = vpack.c.b16 %v846, %v842
  %v1347 = vpack.c.b16 %v851, %v847
  %v1348 = vpack.c.b16 %v852, %v848
  %v1349 = vpack.c.b16 %v853, %v849
  %v1350 = vpack.c.b16 %v854, %v850
  %v1351 = vpack.c.b16 %v859, %v855
  %v1352 = vpack.c.b16 %v860, %v856
  %v1353 = vpack.c.b16 %v861, %v857
  %v1354 = vpack.c.b16 %v862, %v858
  %v1355 = vpack.c.b16 %v867, %v863
  %v1356 = vpack.c.b16 %v868, %v864
  %v1357 = vpack.c.b16 %v869, %v865
  %v1358 = vpack.c.b16 %v870, %v866
  %v1359 = vpack.c.b16 %v875, %v871
  %v1360 = vpack.c.b16 %v876, %v872
  %v1361 = vpack.c.b16 %v877, %v873
  %v1362 = vpack.c.b16 %v878, %v874
  %v1363 = vpack.c.b16 %v883, %v879
  %v1364 = vpack.c.b16 %v884, %v880
  %v1365 = vpack.c.b16 %v885, %v881
  %v1366 = vpack.c.b16 %v886, %v882
  %v1367 = vpack.c.b16 %v891, %v887
  %v1368 = vpack.c.b16 %v892, %v888
  %v1369 = vpack.c.b16 %v893, %v889
  %v1370 = vpack.c.b16 %v894, %v890
  %v1371 = vpack.c.b16 %v899, %v895
  %v1372 = vpack.c.b16 %v900, %v896
  %v1373 = vpack.c.b16 %v901, %v897
  %v1374 = vpack.c.b16 %v902, %v898
  %v1375 = vpack.c.b16 %v907, %v903
  %v1376 = vpack.c.b16 %v908, %v904
  %v1377 = vpack.c.b16 %v909, %v905
  %v1378 = vpack.c.b16 %v910, %v906
  %v1379 = vpack.c.b16 %v915, %v911
  %v1380 = vpack.c.b16 %v916, %v912
  %v1381 = vpack.c.b16 %v917, %v913
  %v1382 = vpack.c.b16 %v918, %v914
  %v1383 = vpack.c.b16 %v923, %v919
  %v1384 = vpack.c.b16 %v924, %v920
  %v1385 = vpack.c.b16 %v925, %v921
  %v1386 = vpack.c.b16 %v926, %v922
  %v1387 = vpack.c.b16 %v931, %v927
  %v1388 = vpack.c.b16 %v932, %v928
  %v1389 = vpack.c.b16 %v933, %v929
  %v1390 = vpack.c.b16 %v934, %v930
  %v1391 = vpack.c.b16 %v939, %v935
  %v1392 = vpack.c.b16 %v940, %v936
  %v1393 = vpack.c.b16 %v941, %v937
  %v1394 = vpack.c.b16 %v942, %v938
  %v1395 = vpack.c.b16 %v947, %v943
  %v1396 = vpack.c.b16 %v948, %v944
  %v1397 = vpack.c.b16 %v949, %v945
  %v1398 = vpack.c.b16 %v950, %v946
  %v1399 = vpack.c.b16 %v955, %v951
  %v1400 = vpack.c.b16 %v956, %v952
  %v1401 = vpack.c.b16 %v957, %v953
  %v1402 = vpack.c.b16 %v958, %v954
  %v1403 = vpack.c.b16 %v963, %v959
  %v1404 = vpack.c.b16 %v964, %v960
  %v1405 = vpack.c.b16 %v965, %v961
  %v1406 = vpack.c.b16 %v966, %v962
  %v1407 = vpack.c.b16 %v971, %v967
  %v1408 = vpack.c.b16 %v972, %v968
  %v1409 = vpack.c.b16 %v973, %v969
  %v1410 = vpack.c.b16 %v974, %v970
  %v1411 = vpack.c.b16 %v979, %v975
  %v1412 = vpack.c.b16 %v980, %v976
  %v1413 = vpack.c.b16 %v981, %v977
  %v1414 = vpack.c.b16 %v982, %v978
  %v1415 = vpack.c.b16 %v987, %v983
  %v1416 = vpack.c.b16 %v988, %v984
  %v1417 = vpack.c.b16 %v989, %v985
  %v1418 = vpack.c.b16 %v990, %v986
  %v1419 = vpack.c.b16 %v995, %v991
  %v1420 = vpack.c.b16 %v996, %v992
  %v1421 = vpack.c.b16 %v997, %v993
  %v1422 = vpack.c.b16 %v998, %v994
  %v1423 = vpack.c.b16 %v1003, %v999
  %v1424 = vpack.c.b16 %v1004, %v1000
  %v1425 = vpack.c.b16 %v1005, %v1001
  %v1426 = vpack.c.b16 %v1006, %v1002
  %v1427 = vpack.c.b16 %v1011, %v1007
  %v1428 = vpack.c.b16 %v1012, %v1008
  %v1429 = vpack.c.b16 %v1013, %v1009
  %v1430 = vpack.c.b16 %v1014, %v1010
  %v1431 = vpack.c.b16 %v1019, %v1015
  %v1432 = vpack.c.b16 %v1020, %v1016
  %v1433 = vpack.c.b16 %v1021, %v1017
  %v1434 = vpack.c.b16 %v1022, %v1018
  %v1435 = vpack.c.b16 %v1027, %v1023
  %v1436 = vpack.c.b16 %v1028, %v1024
  %v1437 = vpack.c.b16 %v1029, %v1025
  %v1438 = vpack.c.b16 %v1030, %v1026
  %v1439 = vpack.c.b16 %v1035, %v1031
  %v1440 = vpack.c.b16 %v1036, %v1032
  %v1441 = vpack.c.b16 %v1037, %v1033
  %v1442 = vpack.c.b16 %v1038, %v1034
  %v1443 = vpack.c.b16 %v1043, %v1039
  %v1444 = vpack.c.b16 %v1044, %v1040
  %v1445 = vpack.c.b16 %v1045, %v1041
  %v1446 = vpack.c.b16 %v1046, %v1042
  %v1447 = vpack.c.b16 %v1051, %v1047
  %v1448 = vpack.c.b16 %v1052, %v1048
  %v1449 = vpack.c.b16 %v1053, %v1049
  %v1450 = vpack.c.b16 %v1054, %v1050
  %v1451 = vpack.c.b16 %v1059, %v1055
  %v1452 = vpack.c.b16 %v1060, %v1056
  %v1453 = vpack.c.b16 %v1061, %v1057
  %v1454 = vpack.c.b16 %v1062, %v1058
  %v1455 = vpack.c.b16 %v1067, %v1063
  %v1456 = vpack.c.b16 %v1068, %v1064
  %v1457 = vpack.c.b16 %v1069, %v1065
  %v1458 = vpack.c.b16 %v1070, %v1066
  %v1459 = vpack.c.b16 %v1075, %v1071
  %v1460 = vpack.c.b16 %v1076, %v1072
  %v1461 = vpack.c.b16 %v1077, %v1073
  %v1462 = vpack.c.b16 %v1078, %v1074
  %v1463 = vpack.c.b16 %v1083, %v1079
  %v1464 = vpack.c.b16 %v1084, %v1080
  %v1465 = vpack.c.b16 %v1085, %v1081
  %v1466 = vpack.c.b16 %v1086, %v1082
  %v1467 = vpack.c.b16 %v1091, %v1087
  %v1468 = vpack.c.b16 %v1092, %v1088
  %v1469 = vpack.c.b16 %v1093, %v1089
  %v1470 = vpack.c.b16 %v1094, %v1090
  %v1471 = vpack.c.b16 %v1099, %v1095
  %v1472 = vpack.c.b16 %v1100, %v1096
  %v1473 = vpack.c.b16 %v1101, %v1097
  %v1474 = vpack.c.b16 %v1102, %v1098
  %v1475 = vpack.c.b16 %v1107, %v1103
  %v1476 = vpack.c.b16 %v1108, %v1104
  %v1477 = vpack.c.b16 %v1109, %v1105
  %v1478 = vpack.c.b16 %v1110, %v1106
  %v1479 = vpack.c.b16 %v1115, %v1111
  %v1480 = vpack.c.b16 %v1116, %v1112
  %v1481 = vpack.c.b16 %v1117, %v1113
  %v1482 = vpack.c.b16 %v1118, %v1114
  %v1483 = vpack.c.b16 %v1123, %v1119
  %v1484 = vpack.c.b16 %v1124, %v1120
  %v1485 = vpack.c.b16 %v1125, %v1121
  %v1486 = vpack.c.b16 %v1126, %v1122
  %v1487 = vpack.c.b16 %v1131, %v1127
  %v1488 = vpack.c.b16 %v1132, %v1128
  %v1489 = vpack.c.b16 %v1133, %v1129
  %v1490 = vpack.c.b16 %v1134, %v1130
  %v1491 = vpack.c.b16 %v1139, %v1135
  %v1492 = vpack.c.b16 %v1140, %v1136
  %v1493 = vpack.c.b16 %v1141, %v1137
  %v1494 = vpack.c.b16 %v1142, %v1138
  %v1495 = vpack.c.b16 %v1147, %v1143
  %v1496 = vpack.c.b16 %v1148, %v1144
  %v1497 = vpack.c.b16 %v1149, %v1145
  %v1498 = vpack.c.b16 %v1150, %v1146
  %v1499 = vpack.c.b16 %v1155, %v1151
  %v1500 = vpack.c.b16 %v1156, %v1152
  %v1501 = vpack.c.b16 %v1157, %v1153
  %v1502 = vpack.c.b16 %v1158, %v1154
  %v1503 = vpack.c.b16 %v1163, %v1159
  %v1504 = vpack.c.b16 %v1164, %v1160
  %v1505 = vpack.c.b16 %v1165, %v1161
  %v1506 = vpack.c.b16 %v1166, %v1162
  %v1507 = vpack.c.b16 %v1171, %v1167
  %v1508 = vpack.c.b16 %v1172, %v1168
  %v1509 = vpack.c.b16 %v1173, %v1169
  %v1510 = vpack.c.b16 %v1174, %v1170
  %v1511 = vpack.c.b16 %v1179, %v1175
  %v1512 = vpack.c.b16 %v1180, %v1176
  %v1513 = vpack.c.b16 %v1181, %v1177
  %v1514 = vpack.c.b16 %v1182, %v1178
  %v1515 = vpack.c.b16 %v1187, %v1183
  %v1516 = vpack.c.b16 %v1188, %v1184
  %v1517 = vpack.c.b16 %v1189, %v1185
  %v1518 = vpack.c.b16 %v1190, %v1186
  %v1519 = vpack.c.b16 %v1195, %v1191
  %v1520 = vpack.c.b16 %v1196, %v1192
  %v1521 = vpack.c.b16 %v1197, %v1193
  %v1522 = vpack.c.b16 %v1198, %v1194
  %v1523 = vpack.c.b16 %v1203, %v1199
  %v1524 = vpack.c.b16 %v1204, %v1200
  %v1525 = vpack.c.b16 %v1205, %v1201
  %v1526 = vpack.c.b16 %v1206, %v1202
  %v1527 = vpack.c.b16 %v1211, %v1207
  %v1528 = vpack.c.b16 %v1212, %v1208
  %v1529 = vpack.c.b16 %v1213, %v1209
  %v1530 = vpack.c.b16 %v1214, %v1210
  %v1531 = vpack.c.b16 %v1219, %v1215
  %v1532 = vpack.c.b16 %v1220, %v1216
  %v1533 = vpack.c.b16 %v1221, %v1217
  %v1534 = vpack.c.b16 %v1222, %v1218
  %v1535 = vpack.c.b16 %v1227, %v1223
  %v1536 = vpack.c.b16 %v1228, %v1224
  %v1537 = vpack.c.b16 %v1229, %v1225
  %v1538 = vpack.c.b16 %v1230, %v1226
  %v1539 = vpack.c.b16 %v1235, %v1231
  %v1540 = vpack.c.b16 %v1236, %v1232
  %v1541 = vpack.c.b16 %v1237, %v1233
  %v1542 = vpack.c.b16 %v1238, %v1234
  %v1543 = vpack.c.b16 %v1243, %v1239
  %v1544 = vpack.c.b16 %v1244, %v1240
  %v1545 = vpack.c.b16 %v1245, %v1241
  %v1546 = vpack.c.b16 %v1246, %v1242
  %v1547 = vpack.c.b16 %v1251, %v1247
  %v1548 = vpack.c.b16 %v1252, %v1248
  %v1549 = vpack.c.b16 %v1253, %v1249
  %v1550 = vpack.c.b16 %v1254, %v1250
  %v1551 = vpack.c.b16 %v1259, %v1255
  %v1552 = vpack.c.b16 %v1260, %v1256
  %v1553 = vpack.c.b16 %v1261, %v1257
  %v1554 = vpack.c.b16 %v1262, %v1258
  %v1555 = vpack.c.b16 %v1267, %v1263
  %v1556 = vpack.c.b16 %v1268, %v1264
  %v1557 = vpack.c.b16 %v1269, %v1265
  %v1558 = vpack.c.b16 %v1270, %v1266
  %1847 = vmatprep.subr.bf16.mxu0 %v1272
  %1848 = vmatpush1.bf16.msra.mxu0 %v1271
  %1849 = vmatprep.subr.bf16.mxu0 %v1276
  %1850 = vmatpush1.bf16.msra.mxu0 %v1275
  %1851 = vmatprep.subr.bf16.mxu0 %v1280
  %1852 = vmatpush1.bf16.msra.mxu0 %v1279
  %1853 = vmatprep.subr.bf16.mxu0 %v1284
  %1854 = vmatpush1.bf16.msra.mxu0 %v1283
  %1855 = vmatprep.subr.bf16.mxu0 %v1288
  %1856 = vmatpush1.bf16.msra.mxu0 %v1287
  %1857 = vmatprep.subr.bf16.mxu0 %v1292
  %1858 = vmatpush1.bf16.msra.mxu0 %v1291
  %1859 = vmatprep.subr.bf16.mxu0 %v1296
  %1860 = vmatpush1.bf16.msra.mxu0 %v1295
  %1861 = vmatprep.subr.bf16.mxu0 %v1300
  %1862 = vmatpush1.bf16.msra.mxu0 %v1299
  %1863 = vmatprep.subr.bf16.mxu0 %v1304
  %1864 = vmatpush1.bf16.msra.mxu0 %v1303
  %1865 = vmatprep.subr.bf16.mxu0 %v1308
  %1866 = vmatpush1.bf16.msra.mxu0 %v1307
  %1867 = vmatprep.subr.bf16.mxu0 %v1312
  %1868 = vmatpush1.bf16.msra.mxu0 %v1311
  %1869 = vmatprep.subr.bf16.mxu0 %v1316
  %1870 = vmatpush1.bf16.msra.mxu0 %v1315
  %1871 = vmatprep.subr.bf16.mxu0 %v1320
  %1872 = vmatpush1.bf16.msra.mxu0 %v1319
  %1873 = vmatprep.subr.bf16.mxu0 %v1324
  %1874 = vmatpush1.bf16.msra.mxu0 %v1323
  %1875 = vmatprep.subr.bf16.mxu0 %v1328
  %1876 = vmatpush1.bf16.msra.mxu0 %v1327
  %1877 = vmatprep.subr.bf16.mxu0 %v1332
  %1878 = vmatpush1.bf16.msra.mxu0 %v1331
  %1879 = vmatprep.mubr.bf16.mxu0 %v372
  %1880 = vmatmul.mubr.bf16.gmra.mrb[0].mxu0 %v358
  %v1881 = vpop.f32.mrb[0].mxu0
  %v1882 = vadd.f32 %v316, %v1881
  %v1883 = vpop.f32.mrb[0].mxu0
  %v1884 = vadd.f32 %v320, %v1883
  %v1885 = vpop.f32.mrb[0].mxu0
  %v1886 = vpop.f32.mrb[0].mxu0
  %1887 = vdwg.mxu0
  %1888 = vmatprep.subr.bf16.mxu0 %v1336
  %1889 = vmatpush1.bf16.msra.mxu0 %v1335
  %1890 = vmatprep.subr.bf16.mxu0 %v1340
  %1891 = vmatpush1.bf16.msra.mxu0 %v1339
  %1892 = vmatprep.subr.bf16.mxu0 %v1344
  %1893 = vmatpush1.bf16.msra.mxu0 %v1343
  %1894 = vmatprep.subr.bf16.mxu0 %v1348
  %1895 = vmatpush1.bf16.msra.mxu0 %v1347
  %1896 = vmatprep.subr.bf16.mxu0 %v1352
  %1897 = vmatpush1.bf16.msra.mxu0 %v1351
  %1898 = vmatprep.subr.bf16.mxu0 %v1356
  %1899 = vmatpush1.bf16.msra.mxu0 %v1355
  %1900 = vmatprep.subr.bf16.mxu0 %v1360
  %1901 = vmatpush1.bf16.msra.mxu0 %v1359
  %1902 = vmatprep.subr.bf16.mxu0 %v1364
  %1903 = vmatpush1.bf16.msra.mxu0 %v1363
  %1904 = vmatprep.subr.bf16.mxu0 %v1368
  %1905 = vmatpush1.bf16.msra.mxu0 %v1367
  %1906 = vmatprep.subr.bf16.mxu0 %v1372
  %1907 = vmatpush1.bf16.msra.mxu0 %v1371
  %1908 = vmatprep.subr.bf16.mxu0 %v1376
  %1909 = vmatpush1.bf16.msra.mxu0 %v1375
  %1910 = vmatprep.subr.bf16.mxu0 %v1380
  %1911 = vmatpush1.bf16.msra.mxu0 %v1379
  %1912 = vmatprep.subr.bf16.mxu0 %v1384
  %1913 = vmatpush1.bf16.msra.mxu0 %v1383
  %1914 = vmatprep.subr.bf16.mxu0 %v1388
  %1915 = vmatpush1.bf16.msra.mxu0 %v1387
  %1916 = vmatprep.subr.bf16.mxu0 %v1392
  %1917 = vmatpush1.bf16.msra.mxu0 %v1391
  %1918 = vmatprep.subr.bf16.mxu0 %v1396
  %1919 = vmatpush1.bf16.msra.mxu0 %v1395
  %1920 = vmatprep.mubr.bf16.mxu0 %v382
  %1921 = vmatmul.mubr.bf16.gmra.mrb[0].mxu0 %v380
  %v1922 = vpop.f32.mrb[0].mxu0
  %v1923 = vadd.f32 %v1882, %v1922
  %v1924 = vpop.f32.mrb[0].mxu0
  %v1925 = vadd.f32 %v1884, %v1924
  %v1926 = vpop.f32.mrb[0].mxu0
  %v1927 = vpop.f32.mrb[0].mxu0
  %1928 = vdwg.mxu0
  %1929 = vmatprep.subr.bf16.mxu0 %v1400
  %1930 = vmatpush1.bf16.msra.mxu0 %v1399
  %1931 = vmatprep.subr.bf16.mxu0 %v1404
  %1932 = vmatpush1.bf16.msra.mxu0 %v1403
  %1933 = vmatprep.subr.bf16.mxu0 %v1408
  %1934 = vmatpush1.bf16.msra.mxu0 %v1407
  %1935 = vmatprep.subr.bf16.mxu0 %v1412
  %1936 = vmatpush1.bf16.msra.mxu0 %v1411
  %1937 = vmatprep.subr.bf16.mxu0 %v1416
  %1938 = vmatpush1.bf16.msra.mxu0 %v1415
  %1939 = vmatprep.subr.bf16.mxu0 %v1420
  %1940 = vmatpush1.bf16.msra.mxu0 %v1419
  %1941 = vmatprep.subr.bf16.mxu0 %v1424
  %1942 = vmatpush1.bf16.msra.mxu0 %v1423
  %1943 = vmatprep.subr.bf16.mxu0 %v1428
  %1944 = vmatpush1.bf16.msra.mxu0 %v1427
  %1945 = vmatprep.subr.bf16.mxu0 %v1432
  %1946 = vmatpush1.bf16.msra.mxu0 %v1431
  %1947 = vmatprep.subr.bf16.mxu0 %v1436
  %1948 = vmatpush1.bf16.msra.mxu0 %v1435
  %1949 = vmatprep.subr.bf16.mxu0 %v1440
  %1950 = vmatpush1.bf16.msra.mxu0 %v1439
  %1951 = vmatprep.subr.bf16.mxu0 %v1444
  %1952 = vmatpush1.bf16.msra.mxu0 %v1443
  %1953 = vmatprep.subr.bf16.mxu0 %v1448
  %1954 = vmatpush1.bf16.msra.mxu0 %v1447
  %1955 = vmatprep.subr.bf16.mxu0 %v1452
  %1956 = vmatpush1.bf16.msra.mxu0 %v1451
  %1957 = vmatprep.subr.bf16.mxu0 %v1456
  %1958 = vmatpush1.bf16.msra.mxu0 %v1455
  %1959 = vmatprep.subr.bf16.mxu0 %v1460
  %1960 = vmatpush1.bf16.msra.mxu0 %v1459
  %1961 = vmatprep.mubr.bf16.mxu0 %v379
  %1962 = vmatmul.mubr.bf16.gmra.mrb[0].mxu0 %v365
  %v1963 = vpop.f32.mrb[0].mxu0
  %v1964 = vadd.f32 %v1923, %v1963
  %v1965 = vpop.f32.mrb[0].mxu0
  %v1966 = vadd.f32 %v1925, %v1965
  %v1967 = vpop.f32.mrb[0].mxu0
  %v1968 = vpop.f32.mrb[0].mxu0
  %1969 = vdwg.mxu0
  %1970 = vmatprep.subr.bf16.mxu0 %v1464
  %1971 = vmatpush1.bf16.msra.mxu0 %v1463
  %1972 = vmatprep.subr.bf16.mxu0 %v1468
  %1973 = vmatpush1.bf16.msra.mxu0 %v1467
  %1974 = vmatprep.subr.bf16.mxu0 %v1472
  %1975 = vmatpush1.bf16.msra.mxu0 %v1471
  %1976 = vmatprep.subr.bf16.mxu0 %v1476
  %1977 = vmatpush1.bf16.msra.mxu0 %v1475
  %1978 = vmatprep.subr.bf16.mxu0 %v1480
  %1979 = vmatpush1.bf16.msra.mxu0 %v1479
  %1980 = vmatprep.subr.bf16.mxu0 %v1484
  %1981 = vmatpush1.bf16.msra.mxu0 %v1483
  %1982 = vmatprep.subr.bf16.mxu0 %v1488
  %1983 = vmatpush1.bf16.msra.mxu0 %v1487
  %1984 = vmatprep.subr.bf16.mxu0 %v1492
  %1985 = vmatpush1.bf16.msra.mxu0 %v1491
  %1986 = vmatprep.subr.bf16.mxu0 %v1496
  %1987 = vmatpush1.bf16.msra.mxu0 %v1495
  %1988 = vmatprep.subr.bf16.mxu0 %v1500
  %1989 = vmatpush1.bf16.msra.mxu0 %v1499
  %1990 = vmatprep.subr.bf16.mxu0 %v1504
  %1991 = vmatpush1.bf16.msra.mxu0 %v1503
  %1992 = vmatprep.subr.bf16.mxu0 %v1508
  %1993 = vmatpush1.bf16.msra.mxu0 %v1507
  %1994 = vmatprep.subr.bf16.mxu0 %v1512
  %1995 = vmatpush1.bf16.msra.mxu0 %v1511
  %1996 = vmatprep.subr.bf16.mxu0 %v1516
  %1997 = vmatpush1.bf16.msra.mxu0 %v1515
  %1998 = vmatprep.subr.bf16.mxu0 %v1520
  %1999 = vmatpush1.bf16.msra.mxu0 %v1519
  %2000 = vmatprep.subr.bf16.mxu0 %v1524
  %2001 = vmatpush1.bf16.msra.mxu0 %v1523
  %2002 = vmatprep.mubr.bf16.mxu0 %v383
  %2003 = vmatmul.mubr.bf16.gmra.mrb[0].mxu0 %v381
  %v2004 = vpop.f32.mrb[0].mxu0
  %v2005 = vadd.f32 %v1964, %v2004
  %v2006 = vpop.f32.mrb[0].mxu0
  %v2007 = vadd.f32 %v1966, %v2006
  %v2008 = vpop.f32.mrb[0].mxu0
  %v2009 = vpop.f32.mrb[0].mxu0
  %2010 = vdwg.mxu0
  %2011 = vmatprep.subr.bf16.mxu0 %v1528
  %2012 = vmatpush1.bf16.msra.mxu0 %v1527
  %2013 = vmatprep.subr.bf16.mxu0 %v1532
  %2014 = vmatpush1.bf16.msra.mxu0 %v1531
  %2015 = vmatprep.subr.bf16.mxu0 %v1536
  %2016 = vmatpush1.bf16.msra.mxu0 %v1535
  %2017 = vmatprep.subr.bf16.mxu0 %v1540
  %2018 = vmatpush1.bf16.msra.mxu0 %v1539
  %2019 = vmatprep.subr.bf16.mxu0 %v1544
  %2020 = vmatpush1.bf16.msra.mxu0 %v1543
  %2021 = vmatprep.subr.bf16.mxu0 %v1548
  %2022 = vmatpush1.bf16.msra.mxu0 %v1547
  %2023 = vmatprep.subr.bf16.mxu0 %v1552
  %2024 = vmatpush1.bf16.msra.mxu0 %v1551
  %2025 = vmatprep.subr.bf16.mxu0 %v1556
  %2026 = vmatpush1.bf16.msra.mxu0 %v1555
  %2027 = vmatprep.subr.bf16.mxu0 0
  %2028 = vmatpush1.bf16.msra.mxu0 0
  %2029 = vmatprep.subr.bf16.mxu0 0
  %2030 = vmatpush1.bf16.msra.mxu0 0
  %2031 = vmatprep.subr.bf16.mxu0 0
  %2032 = vmatpush1.bf16.msra.mxu0 0
  %2033 = vmatprep.subr.bf16.mxu0 0
  %2034 = vmatpush1.bf16.msra.mxu0 0
  %2035 = vmatprep.subr.bf16.mxu0 0
  %2036 = vmatpush1.bf16.msra.mxu0 0
  %2037 = vmatprep.subr.bf16.mxu0 0
  %2038 = vmatpush1.bf16.msra.mxu0 0
  %2039 = vmatprep.subr.bf16.mxu0 0
  %2040 = vmatpush1.bf16.msra.mxu0 0
  %2041 = vmatprep.subr.bf16.mxu0 0
  %2042 = vmatpush1.bf16.msra.mxu0 0
  %2043 = vmatprep.mubr.bf16.mxu0 0
  %2044 = vmatmul.mubr.bf16.gmra.mrb[0].mxu0 %v397
  %v2045 = vpop.f32.mrb[0].mxu0
  %v2046 = vadd.f32 %v2005, %v2045
  %v2047 = vpop.f32.mrb[0].mxu0
  %v2048 = vadd.f32 %v2007, %v2047
  %v2049 = vpop.f32.mrb[0].mxu0
  %v2050 = vpop.f32.mrb[0].mxu0
  %2051 = vdwg.mxu0
  %2052 = vmatprep.subr.bf16.mxu0 %v1274
  %2053 = vmatpush1.bf16.msra.mxu0 %v1273
  %2054 = vmatprep.subr.bf16.mxu0 %v1278
  %2055 = vmatpush1.bf16.msra.mxu0 %v1277
  %2056 = vmatprep.subr.bf16.mxu0 %v1282
  %2057 = vmatpush1.bf16.msra.mxu0 %v1281
  %2058 = vmatprep.subr.bf16.mxu0 %v1286
  %2059 = vmatpush1.bf16.msra.mxu0 %v1285
  %2060 = vmatprep.subr.bf16.mxu0 %v1290
  %2061 = vmatpush1.bf16.msra.mxu0 %v1289
  %2062 = vmatprep.subr.bf16.mxu0 %v1294
  %2063 = vmatpush1.bf16.msra.mxu0 %v1293
  %2064 = vmatprep.subr.bf16.mxu0 %v1298
  %2065 = vmatpush1.bf16.msra.mxu0 %v1297
  %2066 = vmatprep.subr.bf16.mxu0 %v1302
  %2067 = vmatpush1.bf16.msra.mxu0 %v1301
  %2068 = vmatprep.subr.bf16.mxu0 %v1306
  %2069 = vmatpush1.bf16.msra.mxu0 %v1305
  %2070 = vmatprep.subr.bf16.mxu0 %v1310
  %2071 = vmatpush1.bf16.msra.mxu0 %v1309
  %2072 = vmatprep.subr.bf16.mxu0 %v1314
  %2073 = vmatpush1.bf16.msra.mxu0 %v1313
  %2074 = vmatprep.subr.bf16.mxu0 %v1318
  %2075 = vmatpush1.bf16.msra.mxu0 %v1317
  %2076 = vmatprep.subr.bf16.mxu0 %v1322
  %2077 = vmatpush1.bf16.msra.mxu0 %v1321
  %2078 = vmatprep.subr.bf16.mxu0 %v1326
  %2079 = vmatpush1.bf16.msra.mxu0 %v1325
  %2080 = vmatprep.subr.bf16.mxu0 %v1330
  %2081 = vmatpush1.bf16.msra.mxu0 %v1329
  %2082 = vmatprep.subr.bf16.mxu0 %v1334
  %2083 = vmatpush1.bf16.msra.mxu0 %v1333
  %2084 = vmatprep.mubr.bf16.mxu0 %v372
  %2085 = vmatmul.mubr.bf16.gmra.mrb[0].mxu0 %v358
  %v2086 = vpop.f32.mrb[0].mxu0
  %v2087 = vadd.f32 %v324, %v2086
  %v2088 = vpop.f32.mrb[0].mxu0
  %v2089 = vadd.f32 %v328, %v2088
  %v2090 = vpop.f32.mrb[0].mxu0
  %v2091 = vpop.f32.mrb[0].mxu0
  %2092 = vdwg.mxu0
  %2093 = vmatprep.subr.bf16.mxu0 %v1338
  %2094 = vmatpush1.bf16.msra.mxu0 %v1337
  %2095 = vmatprep.subr.bf16.mxu0 %v1342
  %2096 = vmatpush1.bf16.msra.mxu0 %v1341
  %2097 = vmatprep.subr.bf16.mxu0 %v1346
  %2098 = vmatpush1.bf16.msra.mxu0 %v1345
  %2099 = vmatprep.subr.bf16.mxu0 %v1350
  %2100 = vmatpush1.bf16.msra.mxu0 %v1349
  %2101 = vmatprep.subr.bf16.mxu0 %v1354
  %2102 = vmatpush1.bf16.msra.mxu0 %v1353
  %2103 = vmatprep.subr.bf16.mxu0 %v1358
  %2104 = vmatpush1.bf16.msra.mxu0 %v1357
  %2105 = vmatprep.subr.bf16.mxu0 %v1362
  %2106 = vmatpush1.bf16.msra.mxu0 %v1361
  %2107 = vmatprep.subr.bf16.mxu0 %v1366
  %2108 = vmatpush1.bf16.msra.mxu0 %v1365
  %2109 = vmatprep.subr.bf16.mxu0 %v1370
  %2110 = vmatpush1.bf16.msra.mxu0 %v1369
  %2111 = vmatprep.subr.bf16.mxu0 %v1374
  %2112 = vmatpush1.bf16.msra.mxu0 %v1373
  %2113 = vmatprep.subr.bf16.mxu0 %v1378
  %2114 = vmatpush1.bf16.msra.mxu0 %v1377
  %2115 = vmatprep.subr.bf16.mxu0 %v1382
  %2116 = vmatpush1.bf16.msra.mxu0 %v1381
  %2117 = vmatprep.subr.bf16.mxu0 %v1386
  %2118 = vmatpush1.bf16.msra.mxu0 %v1385
  %2119 = vmatprep.subr.bf16.mxu0 %v1390
  %2120 = vmatpush1.bf16.msra.mxu0 %v1389
  %2121 = vmatprep.subr.bf16.mxu0 %v1394
  %2122 = vmatpush1.bf16.msra.mxu0 %v1393
  %2123 = vmatprep.subr.bf16.mxu0 %v1398
  %2124 = vmatpush1.bf16.msra.mxu0 %v1397
  %2125 = vmatprep.mubr.bf16.mxu0 %v382
  %2126 = vmatmul.mubr.bf16.gmra.mrb[0].mxu0 %v380
  %v2127 = vpop.f32.mrb[0].mxu0
  %v2128 = vadd.f32 %v2087, %v2127
  %v2129 = vpop.f32.mrb[0].mxu0
  %v2130 = vadd.f32 %v2089, %v2129
  %v2131 = vpop.f32.mrb[0].mxu0
  %v2132 = vpop.f32.mrb[0].mxu0
  %2133 = vdwg.mxu0
  %2134 = vmatprep.subr.bf16.mxu0 %v1402
  %2135 = vmatpush1.bf16.msra.mxu0 %v1401
  %2136 = vmatprep.subr.bf16.mxu0 %v1406
  %2137 = vmatpush1.bf16.msra.mxu0 %v1405
  %2138 = vmatprep.subr.bf16.mxu0 %v1410
  %2139 = vmatpush1.bf16.msra.mxu0 %v1409
  %2140 = vmatprep.subr.bf16.mxu0 %v1414
  %2141 = vmatpush1.bf16.msra.mxu0 %v1413
  %2142 = vmatprep.subr.bf16.mxu0 %v1418
  %2143 = vmatpush1.bf16.msra.mxu0 %v1417
  %2144 = vmatprep.subr.bf16.mxu0 %v1422
  %2145 = vmatpush1.bf16.msra.mxu0 %v1421
  %2146 = vmatprep.subr.bf16.mxu0 %v1426
  %2147 = vmatpush1.bf16.msra.mxu0 %v1425
  %2148 = vmatprep.subr.bf16.mxu0 %v1430
  %2149 = vmatpush1.bf16.msra.mxu0 %v1429
  %2150 = vmatprep.subr.bf16.mxu0 %v1434
  %2151 = vmatpush1.bf16.msra.mxu0 %v1433
  %2152 = vmatprep.subr.bf16.mxu0 %v1438
  %2153 = vmatpush1.bf16.msra.mxu0 %v1437
  %2154 = vmatprep.subr.bf16.mxu0 %v1442
  %2155 = vmatpush1.bf16.msra.mxu0 %v1441
  %2156 = vmatprep.subr.bf16.mxu0 %v1446
  %2157 = vmatpush1.bf16.msra.mxu0 %v1445
  %2158 = vmatprep.subr.bf16.mxu0 %v1450
  %2159 = vmatpush1.bf16.msra.mxu0 %v1449
  %2160 = vmatprep.subr.bf16.mxu0 %v1454
  %2161 = vmatpush1.bf16.msra.mxu0 %v1453
  %2162 = vmatprep.subr.bf16.mxu0 %v1458
  %2163 = vmatpush1.bf16.msra.mxu0 %v1457
  %2164 = vmatprep.subr.bf16.mxu0 %v1462
  %2165 = vmatpush1.bf16.msra.mxu0 %v1461
  %2166 = vmatprep.mubr.bf16.mxu0 %v379
  %2167 = vmatmul.mubr.bf16.gmra.mrb[0].mxu0 %v365
  %v2168 = vpop.f32.mrb[0].mxu0
  %v2169 = vadd.f32 %v2128, %v2168
  %v2170 = vpop.f32.mrb[0].mxu0
  %v2171 = vadd.f32 %v2130, %v2170
  %v2172 = vpop.f32.mrb[0].mxu0
  %v2173 = vpop.f32.mrb[0].mxu0
  %2174 = vdwg.mxu0
  %2175 = vmatprep.subr.bf16.mxu0 %v1466
  %2176 = vmatpush1.bf16.msra.mxu0 %v1465
  %2177 = vmatprep.subr.bf16.mxu0 %v1470
  %2178 = vmatpush1.bf16.msra.mxu0 %v1469
  %2179 = vmatprep.subr.bf16.mxu0 %v1474
  %2180 = vmatpush1.bf16.msra.mxu0 %v1473
  %2181 = vmatprep.subr.bf16.mxu0 %v1478
  %2182 = vmatpush1.bf16.msra.mxu0 %v1477
  %2183 = vmatprep.subr.bf16.mxu0 %v1482
  %2184 = vmatpush1.bf16.msra.mxu0 %v1481
  %2185 = vmatprep.subr.bf16.mxu0 %v1486
  %2186 = vmatpush1.bf16.msra.mxu0 %v1485
  %2187 = vmatprep.subr.bf16.mxu0 %v1490
  %2188 = vmatpush1.bf16.msra.mxu0 %v1489
  %2189 = vmatprep.subr.bf16.mxu0 %v1494
  %2190 = vmatpush1.bf16.msra.mxu0 %v1493
  %2191 = vmatprep.subr.bf16.mxu0 %v1498
  %2192 = vmatpush1.bf16.msra.mxu0 %v1497
  %2193 = vmatprep.subr.bf16.mxu0 %v1502
  %2194 = vmatpush1.bf16.msra.mxu0 %v1501
  %2195 = vmatprep.subr.bf16.mxu0 %v1506
  %2196 = vmatpush1.bf16.msra.mxu0 %v1505
  %2197 = vmatprep.subr.bf16.mxu0 %v1510
  %2198 = vmatpush1.bf16.msra.mxu0 %v1509
  %2199 = vmatprep.subr.bf16.mxu0 %v1514
  %2200 = vmatpush1.bf16.msra.mxu0 %v1513
  %2201 = vmatprep.subr.bf16.mxu0 %v1518
  %2202 = vmatpush1.bf16.msra.mxu0 %v1517
  %2203 = vmatprep.subr.bf16.mxu0 %v1522
  %2204 = vmatpush1.bf16.msra.mxu0 %v1521
  %2205 = vmatprep.subr.bf16.mxu0 %v1526
  %2206 = vmatpush1.bf16.msra.mxu0 %v1525
  %2207 = vmatprep.mubr.bf16.mxu0 %v383
  %2208 = vmatmul.mubr.bf16.gmra.mrb[0].mxu0 %v381
  %v2209 = vpop.f32.mrb[0].mxu0
  %v2210 = vadd.f32 %v2169, %v2209
  %v2211 = vpop.f32.mrb[0].mxu0
  %v2212 = vadd.f32 %v2171, %v2211
  %v2213 = vpop.f32.mrb[0].mxu0
  %v2214 = vpop.f32.mrb[0].mxu0
  %2215 = vdwg.mxu0
  %2216 = vmatprep.subr.bf16.mxu0 %v1530
  %2217 = vmatpush1.bf16.msra.mxu0 %v1529
  %2218 = vmatprep.subr.bf16.mxu0 %v1534
  %2219 = vmatpush1.bf16.msra.mxu0 %v1533
  %2220 = vmatprep.subr.bf16.mxu0 %v1538
  %2221 = vmatpush1.bf16.msra.mxu0 %v1537
  %2222 = vmatprep.subr.bf16.mxu0 %v1542
  %2223 = vmatpush1.bf16.msra.mxu0 %v1541
  %2224 = vmatprep.subr.bf16.mxu0 %v1546
  %2225 = vmatpush1.bf16.msra.mxu0 %v1545
  %2226 = vmatprep.subr.bf16.mxu0 %v1550
  %2227 = vmatpush1.bf16.msra.mxu0 %v1549
  %2228 = vmatprep.subr.bf16.mxu0 %v1554
  %2229 = vmatpush1.bf16.msra.mxu0 %v1553
  %2230 = vmatprep.subr.bf16.mxu0 %v1558
  %2231 = vmatpush1.bf16.msra.mxu0 %v1557
  %2232 = vmatprep.subr.bf16.mxu0 0
  %2233 = vmatpush1.bf16.msra.mxu0 0
  %2234 = vmatprep.subr.bf16.mxu0 0
  %2235 = vmatpush1.bf16.msra.mxu0 0
  %2236 = vmatprep.subr.bf16.mxu0 0
  %2237 = vmatpush1.bf16.msra.mxu0 0
  %2238 = vmatprep.subr.bf16.mxu0 0
  %2239 = vmatpush1.bf16.msra.mxu0 0
  %2240 = vmatprep.subr.bf16.mxu0 0
  %2241 = vmatpush1.bf16.msra.mxu0 0
  %2242 = vmatprep.subr.bf16.mxu0 0
  %2243 = vmatpush1.bf16.msra.mxu0 0
  %2244 = vmatprep.subr.bf16.mxu0 0
  %2245 = vmatpush1.bf16.msra.mxu0 0
  %2246 = vmatprep.subr.bf16.mxu0 0
  %2247 = vmatpush1.bf16.msra.mxu0 0
  %2248 = vmatprep.mubr.bf16.mxu0 0
  %2249 = vmatmul.mubr.bf16.gmra.mrb[0].mxu0 %v397
  %v2250 = vpop.f32.mrb[0].mxu0
  %v2251 = vadd.f32 %v2210, %v2250
  %v2252 = vpop.f32.mrb[0].mxu0
  %v2253 = vadd.f32 %v2212, %v2252
  %v2254 = vpop.f32.mrb[0].mxu0
  %v2255 = vpop.f32.mrb[0].mxu0
  %2256 = vdwg.mxu0
  %v2257 = vpack.c.bf16 %v2046, %v2046
  %v2258 = vpack.c.bf16 %v2048, %v2048
  %v2259 = vpack.c.bf16 %v2251, %v2251
  %v2260 = vpack.c.bf16 %v2253, %v2253
  %v2261 = vld [vmem:[%s3] sm:$0xf]
  %v2262 = vld [vmem:[%s3 + $0x4] sm:$0xf]
  %v2263 = vld [vmem:[%s3 + $0x8] sm:$0xf]
  %v2264 = vld [vmem:[%s3 + $0xc] sm:$0xf]
  %v2265 = vld [vmem:[%s3 + $0x10] sm:$0xf]
  %v2266 = vld [vmem:[%s3 + $0x14] sm:$0xf]
  %v2267 = vld [vmem:[%s3 + $0x18] sm:$0xf]
  %v2268 = vld [vmem:[%s3 + $0x1c] sm:$0xf]
  %v2269 = vld [vmem:[%s3 + $0x20] sm:$0xf]
  %v2270 = vld [vmem:[%s3 + $0x24] sm:$0xf]
  %v2271 = vld [vmem:[%s3 + $0x28] sm:$0xf]
  %v2272 = vld [vmem:[%s3 + $0x2c] sm:$0xf]
  %v2273 = vld [vmem:[%s3 + $0x30] sm:$0xf]
  %v2274 = vld [vmem:[%s3 + $0x34] sm:$0xf]
  %v2275 = vld [vmem:[%s3 + $0x38] sm:$0xf]
  %v2276 = vld [vmem:[%s3 + $0x3c] sm:$0xf]
  %v2277 = vld [vmem:[%s3 + $0x40] sm:$0xf]
  %v2278 = vld [vmem:[%s3 + $0x44] sm:$0xf]
  %v2279 = vld [vmem:[%s3 + $0x48] sm:$0xf]
  %v2280 = vld [vmem:[%s3 + $0x4c] sm:$0xf]
  %v2281 = vld [vmem:[%s3 + $0x50] sm:$0xf]
  %v2282 = vld [vmem:[%s3 + $0x54] sm:$0xf]
  %v2283 = vld [vmem:[%s3 + $0x58] sm:$0xf]
  %v2284 = vld [vmem:[%s3 + $0x5c] sm:$0xf]
  %v2285 = vld [vmem:[%s3 + $0x60] sm:$0xf]
  %v2286 = vld [vmem:[%s3 + $0x64] sm:$0xf]
  %v2287 = vld [vmem:[%s3 + $0x68] sm:$0xf]
  %v2288 = vld [vmem:[%s3 + $0x6c] sm:$0xf]
  %v2289 = vld [vmem:[%s3 + $0x70] sm:$0xf]
  %v2290 = vld [vmem:[%s3 + $0x74] sm:$0xf]
  %v2291 = vld [vmem:[%s3 + $0x78] sm:$0xf]
  %v2292 = vld [vmem:[%s3 + $0x7c] sm:$0xf]
  %v2293 = vld [vmem:[%s3 + $0x80] sm:$0xf]
  %v2294 = vld [vmem:[%s3 + $0x84] sm:$0xf]
  %v2295 = vld [vmem:[%s3 + $0x88] sm:$0xf]
  %v2296 = vld [vmem:[%s3 + $0x8c] sm:$0xf]
  %v2297 = vld [vmem:[%s3 + $0x90] sm:$0xf]
  %v2298 = vld [vmem:[%s3 + $0x94] sm:$0xf]
  %v2299 = vld [vmem:[%s3 + $0x98] sm:$0xf]
  %v2300 = vld [vmem:[%s3 + $0x9c] sm:$0xf]
  %v2301 = vld [vmem:[%s3 + $0xa0] sm:$0xf]
  %v2302 = vld [vmem:[%s3 + $0xa4] sm:$0xf]
  %v2303 = vld [vmem:[%s3 + $0xa8] sm:$0xf]
  %v2304 = vld [vmem:[%s3 + $0xac] sm:$0xf]
  %v2305 = vld [vmem:[%s3 + $0xb0] sm:$0xf]
  %v2306 = vld [vmem:[%s3 + $0xb4] sm:$0xf]
  %v2307 = vld [vmem:[%s3 + $0xb8] sm:$0xf]
  %v2308 = vld [vmem:[%s3 + $0xbc] sm:$0xf]
  %v2309 = vld [vmem:[%s3 + $0xc0] sm:$0xf]
  %v2310 = vld [vmem:[%s3 + $0xc4] sm:$0xf]
  %v2311 = vld [vmem:[%s3 + $0xc8] sm:$0xf]
  %v2312 = vld [vmem:[%s3 + $0xcc] sm:$0xf]
  %v2313 = vld [vmem:[%s3 + $0xd0] sm:$0xf]
  %v2314 = vld [vmem:[%s3 + $0xd4] sm:$0xf]
  %v2315 = vld [vmem:[%s3 + $0xd8] sm:$0xf]
  %v2316 = vld [vmem:[%s3 + $0xdc] sm:$0xf]
  %v2317 = vld [vmem:[%s3 + $0xe0] sm:$0xf]
  %v2318 = vld [vmem:[%s3 + $0xe4] sm:$0xf]
  %v2319 = vld [vmem:[%s3 + $0xe8] sm:$0xf]
  %v2320 = vld [vmem:[%s3 + $0xec] sm:$0xf]
  %v2321 = vld [vmem:[%s3 + $0xf0] sm:$0xf]
  %v2322 = vld [vmem:[%s3 + $0xf4] sm:$0xf]
  %v2323 = vld [vmem:[%s3 + $0xf8] sm:$0xf]
  %v2324 = vld [vmem:[%s3 + $0xfc] sm:$0xf]
  %v2325 = vld [vmem:[%s4] sm:$0x1]
  %v2327 = vlaneseq
  %v2328 = vshrl.u32 %v2327, 7
  %v2329 = vsub.s32 0, %v2328
  %v2330 = vrot.slane %v2325, %v2329
  %v2396 = vunpack.c.l.b16 %v2261
  %v2397 = vunpack.c.l.b16 %v2262
  %v2398 = vunpack.c.l.b16 %v2263
  %v2399 = vunpack.c.l.b16 %v2264
  %v2400 = vunpack.c.l.b16 %v2265
  %v2401 = vunpack.c.l.b16 %v2266
  %v2402 = vunpack.c.l.b16 %v2267
  %v2403 = vunpack.c.l.b16 %v2268
  %v2404 = vunpack.c.l.b16 %v2269
  %v2405 = vunpack.c.l.b16 %v2270
  %v2406 = vunpack.c.l.b16 %v2271
  %v2407 = vunpack.c.l.b16 %v2272
  %v2408 = vunpack.c.l.b16 %v2273
  %v2409 = vunpack.c.l.b16 %v2274
  %v2410 = vunpack.c.l.b16 %v2275
  %v2411 = vunpack.c.l.b16 %v2276
  %v2412 = vunpack.c.l.b16 %v2277
  %v2413 = vunpack.c.l.b16 %v2278
  %v2414 = vunpack.c.l.b16 %v2279
  %v2415 = vunpack.c.l.b16 %v2280
  %v2416 = vunpack.c.l.b16 %v2281
  %v2417 = vunpack.c.l.b16 %v2282
  %v2418 = vunpack.c.l.b16 %v2283
  %v2419 = vunpack.c.l.b16 %v2284
  %v2420 = vunpack.c.l.b16 %v2285
  %v2421 = vunpack.c.l.b16 %v2286
  %v2422 = vunpack.c.l.b16 %v2287
  %v2423 = vunpack.c.l.b16 %v2288
  %v2424 = vunpack.c.l.b16 %v2289
  %v2425 = vunpack.c.l.b16 %v2290
  %v2426 = vunpack.c.l.b16 %v2291
  %v2427 = vunpack.c.l.b16 %v2292
  %v2428 = vunpack.c.l.b16 %v2293
  %v2429 = vunpack.c.l.b16 %v2294
  %v2430 = vunpack.c.l.b16 %v2295
  %v2431 = vunpack.c.l.b16 %v2296
  %v2432 = vunpack.c.l.b16 %v2297
  %v2433 = vunpack.c.l.b16 %v2298
  %v2434 = vunpack.c.l.b16 %v2299
  %v2435 = vunpack.c.l.b16 %v2300
  %v2436 = vunpack.c.l.b16 %v2301
  %v2437 = vunpack.c.l.b16 %v2302
  %v2438 = vunpack.c.l.b16 %v2303
  %v2439 = vunpack.c.l.b16 %v2304
  %v2440 = vunpack.c.l.b16 %v2305
  %v2441 = vunpack.c.l.b16 %v2306
  %v2442 = vunpack.c.l.b16 %v2307
  %v2443 = vunpack.c.l.b16 %v2308
  %v2444 = vunpack.c.l.b16 %v2309
  %v2445 = vunpack.c.l.b16 %v2310
  %v2446 = vunpack.c.l.b16 %v2311
  %v2447 = vunpack.c.l.b16 %v2312
  %v2448 = vunpack.c.l.b16 %v2313
  %v2449 = vunpack.c.l.b16 %v2314
  %v2450 = vunpack.c.l.b16 %v2315
  %v2451 = vunpack.c.l.b16 %v2316
  %v2452 = vunpack.c.l.b16 %v2317
  %v2453 = vunpack.c.l.b16 %v2318
  %v2454 = vunpack.c.l.b16 %v2319
  %v2455 = vunpack.c.l.b16 %v2320
  %v2456 = vunpack.c.l.b16 %v2321
  %v2457 = vunpack.c.l.b16 %v2322
  %v2458 = vunpack.c.l.b16 %v2323
  %v2459 = vunpack.c.l.b16 %v2324
  %v2460 = vpack.c.b16 %v2397, %v2396
  %v2461 = vpack.c.b16 %v2399, %v2398
  %v2462 = vpack.c.b16 %v2401, %v2400
  %v2463 = vpack.c.b16 %v2403, %v2402
  %v2464 = vpack.c.b16 %v2405, %v2404
  %v2465 = vpack.c.b16 %v2407, %v2406
  %v2466 = vpack.c.b16 %v2409, %v2408
  %v2467 = vpack.c.b16 %v2411, %v2410
  %v2468 = vpack.c.b16 %v2413, %v2412
  %v2469 = vpack.c.b16 %v2415, %v2414
  %v2470 = vpack.c.b16 %v2417, %v2416
  %v2471 = vpack.c.b16 %v2419, %v2418
  %v2472 = vpack.c.b16 %v2421, %v2420
  %v2473 = vpack.c.b16 %v2423, %v2422
  %v2474 = vpack.c.b16 %v2425, %v2424
  %v2475 = vpack.c.b16 %v2427, %v2426
  %v2476 = vpack.c.b16 %v2429, %v2428
  %v2477 = vpack.c.b16 %v2431, %v2430
  %v2478 = vpack.c.b16 %v2433, %v2432
  %v2479 = vpack.c.b16 %v2435, %v2434
  %v2480 = vpack.c.b16 %v2437, %v2436
  %v2481 = vpack.c.b16 %v2439, %v2438
  %v2482 = vpack.c.b16 %v2441, %v2440
  %v2483 = vpack.c.b16 %v2443, %v2442
  %v2484 = vpack.c.b16 %v2445, %v2444
  %v2485 = vpack.c.b16 %v2447, %v2446
  %v2486 = vpack.c.b16 %v2449, %v2448
  %v2487 = vpack.c.b16 %v2451, %v2450
  %v2488 = vpack.c.b16 %v2453, %v2452
  %v2489 = vpack.c.b16 %v2455, %v2454
  %v2490 = vpack.c.b16 %v2457, %v2456
  %v2491 = vpack.c.b16 %v2459, %v2458
  %2524 = vmatprep.subr.bf16.mxu0 0
  %2525 = vmatpush1.bf16.msra.mxu0 %v2460
  %2526 = vmatprep.subr.bf16.mxu0 0
  %2527 = vmatpush1.bf16.msra.mxu0 %v2461
  %2528 = vmatprep.subr.bf16.mxu0 0
  %2529 = vmatpush1.bf16.msra.mxu0 %v2462
  %2530 = vmatprep.subr.bf16.mxu0 0
  %2531 = vmatpush1.bf16.msra.mxu0 %v2463
  %2532 = vmatprep.subr.bf16.mxu0 0
  %2533 = vmatpush1.bf16.msra.mxu0 %v2464
  %2534 = vmatprep.subr.bf16.mxu0 0
  %2535 = vmatpush1.bf16.msra.mxu0 %v2465
  %2536 = vmatprep.subr.bf16.mxu0 0
  %2537 = vmatpush1.bf16.msra.mxu0 %v2466
  %2538 = vmatprep.subr.bf16.mxu0 0
  %2539 = vmatpush1.bf16.msra.mxu0 %v2467
  %2540 = vmatprep.subr.bf16.mxu0 0
  %2541 = vmatpush1.bf16.msra.mxu0 %v2468
  %2542 = vmatprep.subr.bf16.mxu0 0
  %2543 = vmatpush1.bf16.msra.mxu0 %v2469
  %2544 = vmatprep.subr.bf16.mxu0 0
  %2545 = vmatpush1.bf16.msra.mxu0 %v2470
  %2546 = vmatprep.subr.bf16.mxu0 0
  %2547 = vmatpush1.bf16.msra.mxu0 %v2471
  %2548 = vmatprep.subr.bf16.mxu0 0
  %2549 = vmatpush1.bf16.msra.mxu0 %v2472
  %2550 = vmatprep.subr.bf16.mxu0 0
  %2551 = vmatpush1.bf16.msra.mxu0 %v2473
  %2552 = vmatprep.subr.bf16.mxu0 0
  %2553 = vmatpush1.bf16.msra.mxu0 %v2474
  %2554 = vmatprep.subr.bf16.mxu0 0
  %2555 = vmatpush1.bf16.msra.mxu0 %v2475
  %2556 = vmatprep.mubr.bf16.mxu0 %v2258
  %2557 = vmatmul.mubr.bf16.gmra.mrb[0].mxu0 %v2257
  %v2558 = vpop.f32.mrb[0].mxu0
  %v2559 = vadd.f32 %v2330, %v2558
  %v2560 = vpop.f32.mrb[0].mxu0
  %v2561 = vpop.f32.mrb[0].mxu0
  %v2562 = vpop.f32.mrb[0].mxu0
  %2563 = vdwg.mxu0
  %2564 = vmatprep.subr.bf16.mxu0 0
  %2565 = vmatpush1.bf16.msra.mxu0 %v2476
  %2566 = vmatprep.subr.bf16.mxu0 0
  %2567 = vmatpush1.bf16.msra.mxu0 %v2477
  %2568 = vmatprep.subr.bf16.mxu0 0
  %2569 = vmatpush1.bf16.msra.mxu0 %v2478
  %2570 = vmatprep.subr.bf16.mxu0 0
  %2571 = vmatpush1.bf16.msra.mxu0 %v2479
  %2572 = vmatprep.subr.bf16.mxu0 0
  %2573 = vmatpush1.bf16.msra.mxu0 %v2480
  %2574 = vmatprep.subr.bf16.mxu0 0
  %2575 = vmatpush1.bf16.msra.mxu0 %v2481
  %2576 = vmatprep.subr.bf16.mxu0 0
  %2577 = vmatpush1.bf16.msra.mxu0 %v2482
  %2578 = vmatprep.subr.bf16.mxu0 0
  %2579 = vmatpush1.bf16.msra.mxu0 %v2483
  %2580 = vmatprep.subr.bf16.mxu0 0
  %2581 = vmatpush1.bf16.msra.mxu0 %v2484
  %2582 = vmatprep.subr.bf16.mxu0 0
  %2583 = vmatpush1.bf16.msra.mxu0 %v2485
  %2584 = vmatprep.subr.bf16.mxu0 0
  %2585 = vmatpush1.bf16.msra.mxu0 %v2486
  %2586 = vmatprep.subr.bf16.mxu0 0
  %2587 = vmatpush1.bf16.msra.mxu0 %v2487
  %2588 = vmatprep.subr.bf16.mxu0 0
  %2589 = vmatpush1.bf16.msra.mxu0 %v2488
  %2590 = vmatprep.subr.bf16.mxu0 0
  %2591 = vmatpush1.bf16.msra.mxu0 %v2489
  %2592 = vmatprep.subr.bf16.mxu0 0
  %2593 = vmatpush1.bf16.msra.mxu0 %v2490
  %2594 = vmatprep.subr.bf16.mxu0 0
  %2595 = vmatpush1.bf16.msra.mxu0 %v2491
  %2596 = vmatprep.mubr.bf16.mxu0 %v2260
  %2597 = vmatmul.mubr.bf16.gmra.mrb[0].mxu0 %v2259
  %v2598 = vpop.f32.mrb[0].mxu0
  %v2599 = vadd.f32 %v2559, %v2598
  %v2600 = vpop.f32.mrb[0].mxu0
  %v2601 = vpop.f32.mrb[0].mxu0
  %v2602 = vpop.f32.mrb[0].mxu0
  %2603 = vdwg.mxu0
  %vm2604 = vcmask 50176
  %2605 = vst.msk [vmem:[%s5] sm:$0x3] %vm2604, %v2599
  // Predicated region
  $region22: #{ppo_forward.9} parent=0 // pred_check
    _
  $region23: #{ppo_forward.9} parent=0 // pred_check_branch
    %2607 = sbr.rel (0) target = $region25
  $region24: #{ppo_forward.9} parent=0 // pred_region
    _
  $region25: #{ppo_forward.9} parent=0 // pred_fallthru
    _
  // Predicated region
  $region26: #{ppo_forward.9} parent=0 // pred_check
    _
  $region27: #{ppo_forward.9} parent=0 // pred_check_branch
    %2609 = sbr.rel (0) target = $region29
  $region28: #{ppo_forward.9} parent=0 // pred_region
    _
  $region29: #{ppo_forward.9} parent=0 // pred_fallthru
    _

</llo_original>
